<compile_context>
chip_gen: v5e
topology: v5e:2x2
jax: 0.10.0
libtpu: 0.0.40
codegen_flags: <defaults>
</compile_context>

<pallas_src>
import functools
import math

import jax
import jax.numpy as jnp
from jax.experimental import pallas as pl
from jax.experimental.pallas import tpu as pltpu


# ---------------------------------------------------------------------------
# In-kernel helpers (operate on VMEM values)
# ---------------------------------------------------------------------------
def _layer_norm(x, g, b, eps=1e-5):
    mu = jnp.mean(x, axis=-1, keepdims=True)
    c = x - mu
    var = jnp.mean(c * c, axis=-1, keepdims=True)
    return c * jax.lax.rsqrt(var + eps) * g + b


def _attend(q, k, v, wo, bo, *, B, Sq, Sk, H, hd):
    """Multi-head attention on batch-major (B*S, D) slabs.

    q: (B*Sq, D), k/v: (B*Sk, D).  Heads are contiguous hd-wide column chunks
    (PyTorch head split).  Per head: one batched-over-B dot for the scores,
    softmax over the lane (Sk) axis, one batched dot with V, and the output
    projection is accumulated per head (no concatenation of heads).  The
    1/sqrt(hd) scale is already folded into the Q projection weights.
    Returns out_proj(concat_heads) + bias, shape (B*Sq, D), all in VMEM.
    """
    D = H * hd
    q3 = q.reshape(B, Sq, D)        # leading-dim split: free, lane dim unchanged
    k3 = k.reshape(B, Sk, D)
    v3 = v.reshape(B, Sk, D)
    out = jnp.zeros((B * Sq, D), jnp.float32)
    for h in range(H):              # short static loop over heads only
        c0 = h * hd
        qh = q3[:, :, c0:c0 + hd]   # (B, Sq, hd)
        kh = k3[:, :, c0:c0 + hd]   # (B, Sk, hd)
        vh = v3[:, :, c0:c0 + hd]
        s = jnp.einsum('bqd,bkd->bqk', qh, kh,
                       preferred_element_type=jnp.float32)       # (B, Sq, Sk)
        s = s - jnp.max(s, axis=-1, keepdims=True)
        p = jnp.exp(s)
        p = p * pl.reciprocal(jnp.sum(p, axis=-1, keepdims=True), approx=True)
        oh = jnp.einsum('bqk,bkd->bqd', p, vh,
                        preferred_element_type=jnp.float32)      # (B, Sq, hd)
        # out_proj decomposed over heads: no concat, just accumulate.
        out = out + jnp.dot(oh.reshape(B * Sq, hd), wo[c0:c0 + hd, :],
                            preferred_element_type=jnp.float32)
    return out + bo


# ---------------------------------------------------------------------------
# The single fused model kernel
# ---------------------------------------------------------------------------
def _gene_transformer_kernel(*refs, B, Se, Sd, H, n_enc, n_dec):
    """Entire GeneTransformer forward.  refs = (inputs..., out_ref)."""
    o_ref = refs[-1]
    it = iter(refs[:-1])

    def nxt():
        return next(it)[...]

    ids_e = nxt()                        # (B*Se, 1) int32, batch-major rows
    ids_d = nxt()                        # (B*Sd, 1) int32
    emb = nxt()                          # (Gp, D), Gp padded to multiple of 128
    xval = nxt()                         # (B*Se, D)
    Gp, D = emb.shape
    hd = D // H

    # --- in-kernel embedding gather: lane-dense one-hot matmul ---
    def gather(ids, M):
        iota = jax.lax.broadcasted_iota(jnp.int32, (M, Gp), 1)
        onehot = jnp.where(iota == ids, 1.0, 0.0).astype(jnp.float32)
        return jnp.dot(onehot, emb, preferred_element_type=jnp.float32)

    # --- nn.TransformerEncoderLayer (post-norm, ReLU, eval) ---
    def enc_block(x, Sq):
        wqkv, bqkv, wo, bo = nxt(), nxt(), nxt(), nxt()
        g1, b1 = nxt(), nxt()
        w1, bf1, w2, bf2 = nxt(), nxt(), nxt(), nxt()
        g2, b2 = nxt(), nxt()
        qkv = jnp.dot(x, wqkv, preferred_element_type=jnp.float32) + bqkv
        a = _attend(qkv[:, :D], qkv[:, D:2 * D], qkv[:, 2 * D:], wo, bo,
                    B=B, Sq=Sq, Sk=Sq, H=H, hd=hd)
        h1 = _layer_norm(x + a, g1, b1)
        f = jnp.maximum(
            jnp.dot(h1, w1, preferred_element_type=jnp.float32) + bf1, 0.0)
        f = jnp.dot(f, w2, preferred_element_type=jnp.float32) + bf2
        return _layer_norm(h1 + f, g2, b2)

    # --- nn.TransformerDecoderLayer (post-norm, ReLU, no masks, eval) ---
    def dec_block(x, mem):
        wqkv, bqkv, wos, bos = nxt(), nxt(), nxt(), nxt()
        g1, b1 = nxt(), nxt()
        wqc, bqc, wkvc, bkvc, woc, boc = (nxt(), nxt(), nxt(),
                                          nxt(), nxt(), nxt())
        g2, b2 = nxt(), nxt()
        w1, bf1, w2, bf2 = nxt(), nxt(), nxt(), nxt()
        g3, b3 = nxt(), nxt()
        # self-attention (fused QKV projection)
        qkv = jnp.dot(x, wqkv, preferred_element_type=jnp.float32) + bqkv
        a = _attend(qkv[:, :D], qkv[:, D:2 * D], qkv[:, 2 * D:], wos, bos,
                    B=B, Sq=Sd, Sk=Sd, H=H, hd=hd)
        h1 = _layer_norm(x + a, g1, b1)
        # cross-attention (fused K/V projection of the memory)
        qc = jnp.dot(h1, wqc, preferred_element_type=jnp.float32) + bqc
        kv = jnp.dot(mem, wkvc, preferred_element_type=jnp.float32) + bkvc
        a2 = _attend(qc, kv[:, :D], kv[:, D:], woc, boc,
                     B=B, Sq=Sd, Sk=Se, H=H, hd=hd)
        h2 = _layer_norm(h1 + a2, g2, b2)
        # feed-forward
        f = jnp.maximum(
            jnp.dot(h2, w1, preferred_element_type=jnp.float32) + bf1, 0.0)
        f = jnp.dot(f, w2, preferred_element_type=jnp.float32) + bf2
        return _layer_norm(h2 + f, g3, b3)

    # ---- forward: everything stays in VMEM values across layers ----
    xe = gather(ids_e, B * Se)
    for _ in range(n_enc):
        xe = enc_block(xe, Se)

    xd = gather(ids_d, B * Sd)
    for _ in range(n_dec):
        xd = dec_block(xd, xe)

    # final nn.MultiheadAttention: query=decoded, key=encoded, value=x_value
    wq, bq = nxt(), nxt()
    wk, bk = nxt(), nxt()
    wv, bv = nxt(), nxt()
    wo, bo = nxt(), nxt()
    q = jnp.dot(xd, wq, preferred_element_type=jnp.float32) + bq
    k = jnp.dot(xe, wk, preferred_element_type=jnp.float32) + bk
    v = jnp.dot(xval, wv, preferred_element_type=jnp.float32) + bv
    out = _attend(q, k, v, wo, bo, B=B, Sq=Sd, Sk=Se, H=H, hd=hd)
    o_ref[...] = out.astype(o_ref.dtype)


# ---------------------------------------------------------------------------
# Wrapper: boundary layout glue + the single pallas_call
# ---------------------------------------------------------------------------
def _vmem_spec():
    return pl.BlockSpec(memory_space=pltpu.MemorySpace.VMEM)


def _flatten_params(params):
    """Flatten weights in the exact order the kernel consumes them."""
    args = []
    for lp in params["enc_layers"]:
        a = lp["attn"]
        args += [a["wqkv"], a["bqkv"], a["wo"], a["bo"],
                 lp["g1"], lp["b1"],
                 lp["w1"], lp["bf1"], lp["w2"], lp["bf2"],
                 lp["g2"], lp["b2"]]
    for lp in params["dec_layers"]:
        a = lp["attn"]
        c = lp["cross"]
        args += [a["wqkv"], a["bqkv"], a["wo"], a["bo"],
                 lp["g1"], lp["b1"],
                 c["wq"], c["bq"], c["wkv"], c["bkv"], c["wo"], c["bo"],
                 lp["g2"], lp["b2"],
                 lp["w1"], lp["bf1"], lp["w2"], lp["bf2"],
                 lp["g3"], lp["b3"]]
    m = params["mha_custom"]
    args += [m["wq"], m["bq"], m["wk"], m["bk"], m["wv"], m["bv"],
             m["wo"], m["bo"]]
    return args


def gene_transformer_forward(params, x_enc_ids, x_dec_ids, x_value, *, n_heads):
    Se, B = x_enc_ids.shape
    Sd = x_dec_ids.shape[0]
    emb = params["emb"]
    G, D = emb.shape

    # Boundary glue only (tiny XLA ops); all compute is in the fused kernel.
    Gp = ((G + 127) // 128) * 128                    # lane-dense one-hot width
    emb_p = jnp.pad(emb, ((0, Gp - G), (0, 0)))
    ids_e = x_enc_ids.T.reshape(B * Se, 1).astype(jnp.int32)   # batch-major rows
    ids_d = x_dec_ids.T.reshape(B * Sd, 1).astype(jnp.int32)
    xval = jnp.transpose(x_value, (1, 0, 2)).reshape(B * Se, D)

    args = [ids_e, ids_d, emb_p, xval] + _flatten_params(params)
    kernel = functools.partial(
        _gene_transformer_kernel, B=B, Se=Se, Sd=Sd, H=n_heads,
        n_enc=len(params["enc_layers"]), n_dec=len(params["dec_layers"]))

    out2d = pl.pallas_call(
        kernel,
        out_shape=jax.ShapeDtypeStruct((B * Sd, D), jnp.float32),
        in_specs=[_vmem_spec() for _ in args],
        out_specs=_vmem_spec(),
    )(*args)
    # (B*Sd, D) batch-major -> (Sd, B, D) seq-first, matching PyTorch.
    return jnp.transpose(out2d.reshape(B, Sd, D), (1, 0, 2))


# ---------------------------------------------------------------------------
# Deterministic kernel-ready parameter init.
#  * weights pre-transposed to (in, out), biases pre-reshaped to (1, N)
#  * the 1/sqrt(head_dim) softmax scale is folded into the Q projections
# ---------------------------------------------------------------------------
def init_params(key, d_model, n_heads, gene_num, ff_dim):
    keys = iter(jax.random.split(key, 256))
    D, F = d_model, ff_dim
    scale = 1.0 / math.sqrt(D // n_heads)

    def mat(shape, s=0.05):
        return s * jax.random.normal(next(keys), shape, jnp.float32)

    def row(n, s=0.01):
        return s * jax.random.normal(next(keys), (1, n), jnp.float32)

    def self_attn_p():
        # wqkv ~ in_proj_weight.T (fused Q/K/V); Q columns carry the scale.
        wqkv = mat((D, 3 * D))
        bqkv = row(3 * D)
        wqkv = wqkv.at[:, :D].multiply(scale)
        bqkv = bqkv.at[:, :D].multiply(scale)
        return dict(wqkv=wqkv, bqkv=bqkv, wo=mat((D, D)), bo=row(D))

    def cross_attn_p():
        # wq ~ Wq.T (scaled), wkv ~ [Wk; Wv].T (key == value == memory).
        return dict(wq=mat((D, D)) * scale, bq=row(D) * scale,
                    wkv=mat((D, 2 * D)), bkv=row(2 * D),
                    wo=mat((D, D)), bo=row(D))

    def mha_full_p():
        # Final MHA has key != value -> separate projections; Q is scaled.
        return dict(wq=mat((D, D)) * scale, bq=row(D) * scale,
                    wk=mat((D, D)), bk=row(D),
                    wv=mat((D, D)), bv=row(D),
                    wo=mat((D, D)), bo=row(D))

    def enc_p():
        return dict(attn=self_attn_p(),
                    w1=mat((D, F)), bf1=row(F),
                    w2=mat((F, D)), bf2=row(D),
                    g1=jnp.ones((1, D), jnp.float32),
                    b1=jnp.zeros((1, D), jnp.float32),
                    g2=jnp.ones((1, D), jnp.float32),
                    b2=jnp.zeros((1, D), jnp.float32))

    def dec_p():
        p = enc_p()
        p.update(cross=cross_attn_p(),
                 g3=jnp.ones((1, D), jnp.float32),
                 b3=jnp.zeros((1, D), jnp.float32))
        return p

    return dict(
        emb=0.05 * jax.random.normal(next(keys), (gene_num, D), jnp.float32),
        enc_layers=[enc_p() for _ in range(3)],
        dec_layers=[dec_p() for _ in range(2)],
        mha_custom=mha_full_p(),
    )


# ---------------------------------------------------------------------------
if __name__ == "__main__":
    d_model, n_heads, gene_num, ff_dim = 32, 4, 50, 64
    S_enc, S_dec, B = 8, 8, 2

    root = jax.random.PRNGKey(0)
    k_par, k_e, k_d, k_v = jax.random.split(root, 4)

    params = init_params(k_par, d_model, n_heads, gene_num, ff_dim)

    x_enc = jax.random.randint(k_e, (S_enc, B), 0, gene_num, dtype=jnp.int32)
    x_dec = jax.random.randint(k_d, (S_dec, B), 0, gene_num, dtype=jnp.int32)
    x_value = jax.random.normal(k_v, (S_enc, B, d_model), jnp.float32)

    fwd = jax.jit(gene_transformer_forward, static_argnames=("n_heads",))
    out = jax.block_until_ready(fwd(params, x_enc, x_dec, x_value,
                                    n_heads=n_heads))

    assert out.shape == (S_dec, B, d_model)
    assert bool(jnp.all(jnp.isfinite(out)))
    print("KERNEL_OK")
</pallas_src>

<mosaic_0001>
module attributes {stable_mosaic.version = 11 : i64} {
  func.func @_gene_transformer_kernel(%arg0: memref<16x1xi32, #tpu.memory_space<vmem>>, %arg1: memref<16x1xi32, #tpu.memory_space<vmem>>, %arg2: memref<128x32xf32, #tpu.memory_space<vmem>>, %arg3: memref<16x32xf32, #tpu.memory_space<vmem>>, %arg4: memref<32x96xf32, #tpu.memory_space<vmem>>, %arg5: memref<1x96xf32, #tpu.memory_space<vmem>>, %arg6: memref<32x32xf32, #tpu.memory_space<vmem>>, %arg7: memref<1x32xf32, #tpu.memory_space<vmem>>, %arg8: memref<1x32xf32, #tpu.memory_space<vmem>>, %arg9: memref<1x32xf32, #tpu.memory_space<vmem>>, %arg10: memref<32x64xf32, #tpu.memory_space<vmem>>, %arg11: memref<1x64xf32, #tpu.memory_space<vmem>>, %arg12: memref<64x32xf32, #tpu.memory_space<vmem>>, %arg13: memref<1x32xf32, #tpu.memory_space<vmem>>, %arg14: memref<1x32xf32, #tpu.memory_space<vmem>>, %arg15: memref<1x32xf32, #tpu.memory_space<vmem>>, %arg16: memref<32x96xf32, #tpu.memory_space<vmem>>, %arg17: memref<1x96xf32, #tpu.memory_space<vmem>>, %arg18: memref<32x32xf32, #tpu.memory_space<vmem>>, %arg19: memref<1x32xf32, #tpu.memory_space<vmem>>, %arg20: memref<1x32xf32, #tpu.memory_space<vmem>>, %arg21: memref<1x32xf32, #tpu.memory_space<vmem>>, %arg22: memref<32x64xf32, #tpu.memory_space<vmem>>, %arg23: memref<1x64xf32, #tpu.memory_space<vmem>>, %arg24: memref<64x32xf32, #tpu.memory_space<vmem>>, %arg25: memref<1x32xf32, #tpu.memory_space<vmem>>, %arg26: memref<1x32xf32, #tpu.memory_space<vmem>>, %arg27: memref<1x32xf32, #tpu.memory_space<vmem>>, %arg28: memref<32x96xf32, #tpu.memory_space<vmem>>, %arg29: memref<1x96xf32, #tpu.memory_space<vmem>>, %arg30: memref<32x32xf32, #tpu.memory_space<vmem>>, %arg31: memref<1x32xf32, #tpu.memory_space<vmem>>, %arg32: memref<1x32xf32, #tpu.memory_space<vmem>>, %arg33: memref<1x32xf32, #tpu.memory_space<vmem>>, %arg34: memref<32x64xf32, #tpu.memory_space<vmem>>, %arg35: memref<1x64xf32, #tpu.memory_space<vmem>>, %arg36: memref<64x32xf32, #tpu.memory_space<vmem>>, %arg37: memref<1x32xf32, #tpu.memory_space<vmem>>, %arg38: memref<1x32xf32, #tpu.memory_space<vmem>>, %arg39: memref<1x32xf32, #tpu.memory_space<vmem>>, %arg40: memref<32x96xf32, #tpu.memory_space<vmem>>, %arg41: memref<1x96xf32, #tpu.memory_space<vmem>>, %arg42: memref<32x32xf32, #tpu.memory_space<vmem>>, %arg43: memref<1x32xf32, #tpu.memory_space<vmem>>, %arg44: memref<1x32xf32, #tpu.memory_space<vmem>>, %arg45: memref<1x32xf32, #tpu.memory_space<vmem>>, %arg46: memref<32x32xf32, #tpu.memory_space<vmem>>, %arg47: memref<1x32xf32, #tpu.memory_space<vmem>>, %arg48: memref<32x64xf32, #tpu.memory_space<vmem>>, %arg49: memref<1x64xf32, #tpu.memory_space<vmem>>, %arg50: memref<32x32xf32, #tpu.memory_space<vmem>>, %arg51: memref<1x32xf32, #tpu.memory_space<vmem>>, %arg52: memref<1x32xf32, #tpu.memory_space<vmem>>, %arg53: memref<1x32xf32, #tpu.memory_space<vmem>>, %arg54: memref<32x64xf32, #tpu.memory_space<vmem>>, %arg55: memref<1x64xf32, #tpu.memory_space<vmem>>, %arg56: memref<64x32xf32, #tpu.memory_space<vmem>>, %arg57: memref<1x32xf32, #tpu.memory_space<vmem>>, %arg58: memref<1x32xf32, #tpu.memory_space<vmem>>, %arg59: memref<1x32xf32, #tpu.memory_space<vmem>>, %arg60: memref<32x96xf32, #tpu.memory_space<vmem>>, %arg61: memref<1x96xf32, #tpu.memory_space<vmem>>, %arg62: memref<32x32xf32, #tpu.memory_space<vmem>>, %arg63: memref<1x32xf32, #tpu.memory_space<vmem>>, %arg64: memref<1x32xf32, #tpu.memory_space<vmem>>, %arg65: memref<1x32xf32, #tpu.memory_space<vmem>>, %arg66: memref<32x32xf32, #tpu.memory_space<vmem>>, %arg67: memref<1x32xf32, #tpu.memory_space<vmem>>, %arg68: memref<32x64xf32, #tpu.memory_space<vmem>>, %arg69: memref<1x64xf32, #tpu.memory_space<vmem>>, %arg70: memref<32x32xf32, #tpu.memory_space<vmem>>, %arg71: memref<1x32xf32, #tpu.memory_space<vmem>>, %arg72: memref<1x32xf32, #tpu.memory_space<vmem>>, %arg73: memref<1x32xf32, #tpu.memory_space<vmem>>, %arg74: memref<32x64xf32, #tpu.memory_space<vmem>>, %arg75: memref<1x64xf32, #tpu.memory_space<vmem>>, %arg76: memref<64x32xf32, #tpu.memory_space<vmem>>, %arg77: memref<1x32xf32, #tpu.memory_space<vmem>>, %arg78: memref<1x32xf32, #tpu.memory_space<vmem>>, %arg79: memref<1x32xf32, #tpu.memory_space<vmem>>, %arg80: memref<32x32xf32, #tpu.memory_space<vmem>>, %arg81: memref<1x32xf32, #tpu.memory_space<vmem>>, %arg82: memref<32x32xf32, #tpu.memory_space<vmem>>, %arg83: memref<1x32xf32, #tpu.memory_space<vmem>>, %arg84: memref<32x32xf32, #tpu.memory_space<vmem>>, %arg85: memref<1x32xf32, #tpu.memory_space<vmem>>, %arg86: memref<32x32xf32, #tpu.memory_space<vmem>>, %arg87: memref<1x32xf32, #tpu.memory_space<vmem>>, %arg88: memref<16x32xf32, #tpu.memory_space<vmem>>) attributes {dimension_semantics = [], scalar_prefetch = 0 : i64, scratch_operands = 0 : i64, tpu.core_type = #tpu.core_type<tc>} {
    %c0 = arith.constant 0 : index
    %c0_0 = arith.constant 0 : index
    %0 = vector.load %arg0[%c0, %c0_0] : memref<16x1xi32, #tpu.memory_space<vmem>>, vector<16x1xi32>
    %c0_1 = arith.constant 0 : index
    %c0_2 = arith.constant 0 : index
    %1 = vector.load %arg1[%c0_1, %c0_2] : memref<16x1xi32, #tpu.memory_space<vmem>>, vector<16x1xi32>
    %c0_3 = arith.constant 0 : index
    %c0_4 = arith.constant 0 : index
    %2 = vector.load %arg2[%c0_3, %c0_4] : memref<128x32xf32, #tpu.memory_space<vmem>>, vector<128x32xf32>
    %c0_5 = arith.constant 0 : index
    %c0_6 = arith.constant 0 : index
    %3 = vector.load %arg3[%c0_5, %c0_6] : memref<16x32xf32, #tpu.memory_space<vmem>>, vector<16x32xf32>
    %4 = tpu.iota {dimensions = array<i32: 1>} : vector<16x128xi32>
    %5 = vector.broadcast %0 : vector<16x1xi32> to vector<16x128xi32>
    %6 = arith.cmpi eq, %4, %5 : vector<16x128xi32>
    %cst = arith.constant 1.000000e+00 : f32
    %cst_7 = arith.constant 0.000000e+00 : f32
    %7 = vector.broadcast %cst : f32 to vector<16x128xf32>
    %8 = vector.broadcast %cst_7 : f32 to vector<16x128xf32>
    %9 = arith.select %6, %7, %8 : vector<16x128xi1>, vector<16x128xf32>
    %cst_8 = arith.constant dense<0.000000e+00> : vector<16x32xf32>
    %10 = tpu.matmul %9, %2, %cst_8 {dimension_numbers = #tpu.dot_dimension_numbers<[1], [0], [0], [1], [0, 0, 1, 1], [], []>} : vector<16x128xf32>, vector<128x32xf32>, vector<16x32xf32> -> vector<16x32xf32>
    %c0_9 = arith.constant 0 : index
    %c0_10 = arith.constant 0 : index
    %11 = vector.load %arg4[%c0_9, %c0_10] : memref<32x96xf32, #tpu.memory_space<vmem>>, vector<32x96xf32>
    %c0_11 = arith.constant 0 : index
    %c0_12 = arith.constant 0 : index
    %12 = vector.load %arg5[%c0_11, %c0_12] : memref<1x96xf32, #tpu.memory_space<vmem>>, vector<1x96xf32>
    %c0_13 = arith.constant 0 : index
    %c0_14 = arith.constant 0 : index
    %13 = vector.load %arg6[%c0_13, %c0_14] : memref<32x32xf32, #tpu.memory_space<vmem>>, vector<32x32xf32>
    %c0_15 = arith.constant 0 : index
    %c0_16 = arith.constant 0 : index
    %14 = vector.load %arg7[%c0_15, %c0_16] : memref<1x32xf32, #tpu.memory_space<vmem>>, vector<1x32xf32>
    %c0_17 = arith.constant 0 : index
    %c0_18 = arith.constant 0 : index
    %15 = vector.load %arg8[%c0_17, %c0_18] : memref<1x32xf32, #tpu.memory_space<vmem>>, vector<1x32xf32>
    %c0_19 = arith.constant 0 : index
    %c0_20 = arith.constant 0 : index
    %16 = vector.load %arg9[%c0_19, %c0_20] : memref<1x32xf32, #tpu.memory_space<vmem>>, vector<1x32xf32>
    %c0_21 = arith.constant 0 : index
    %c0_22 = arith.constant 0 : index
    %17 = vector.load %arg10[%c0_21, %c0_22] : memref<32x64xf32, #tpu.memory_space<vmem>>, vector<32x64xf32>
    %c0_23 = arith.constant 0 : index
    %c0_24 = arith.constant 0 : index
    %18 = vector.load %arg11[%c0_23, %c0_24] : memref<1x64xf32, #tpu.memory_space<vmem>>, vector<1x64xf32>
    %c0_25 = arith.constant 0 : index
    %c0_26 = arith.constant 0 : index
    %19 = vector.load %arg12[%c0_25, %c0_26] : memref<64x32xf32, #tpu.memory_space<vmem>>, vector<64x32xf32>
    %c0_27 = arith.constant 0 : index
    %c0_28 = arith.constant 0 : index
    %20 = vector.load %arg13[%c0_27, %c0_28] : memref<1x32xf32, #tpu.memory_space<vmem>>, vector<1x32xf32>
    %c0_29 = arith.constant 0 : index
    %c0_30 = arith.constant 0 : index
    %21 = vector.load %arg14[%c0_29, %c0_30] : memref<1x32xf32, #tpu.memory_space<vmem>>, vector<1x32xf32>
    %c0_31 = arith.constant 0 : index
    %c0_32 = arith.constant 0 : index
    %22 = vector.load %arg15[%c0_31, %c0_32] : memref<1x32xf32, #tpu.memory_space<vmem>>, vector<1x32xf32>
    %cst_33 = arith.constant dense<0.000000e+00> : vector<16x96xf32>
    %23 = tpu.matmul %10, %11, %cst_33 {dimension_numbers = #tpu.dot_dimension_numbers<[1], [0], [0], [1], [0, 0, 1, 1], [], []>} : vector<16x32xf32>, vector<32x96xf32>, vector<16x96xf32> -> vector<16x96xf32>
    %24 = vector.broadcast %12 : vector<1x96xf32> to vector<16x96xf32>
    %25 = arith.addf %23, %24 : vector<16x96xf32>
    %26 = vector.extract_strided_slice %25 {offsets = [0, 0], sizes = [16, 32], strides = [1, 1]} : vector<16x96xf32> to vector<16x32xf32>
    %27 = vector.extract_strided_slice %25 {offsets = [0, 32], sizes = [16, 32], strides = [1, 1]} : vector<16x96xf32> to vector<16x32xf32>
    %28 = vector.extract_strided_slice %25 {offsets = [0, 64], sizes = [16, 32], strides = [1, 1]} : vector<16x96xf32> to vector<16x32xf32>
    %29 = vector.shape_cast %26 : vector<16x32xf32> to vector<2x8x32xf32>
    %30 = vector.shape_cast %27 : vector<16x32xf32> to vector<2x8x32xf32>
    %31 = vector.shape_cast %28 : vector<16x32xf32> to vector<2x8x32xf32>
    %cst_34 = arith.constant 0.000000e+00 : f32
    %32 = vector.broadcast %cst_34 : f32 to vector<16x32xf32>
    %33 = vector.extract_strided_slice %29 {offsets = [0, 0, 0], sizes = [2, 8, 8], strides = [1, 1, 1]} : vector<2x8x32xf32> to vector<2x8x8xf32>
    %34 = vector.extract_strided_slice %30 {offsets = [0, 0, 0], sizes = [2, 8, 8], strides = [1, 1, 1]} : vector<2x8x32xf32> to vector<2x8x8xf32>
    %35 = vector.extract_strided_slice %31 {offsets = [0, 0, 0], sizes = [2, 8, 8], strides = [1, 1, 1]} : vector<2x8x32xf32> to vector<2x8x8xf32>
    "tpu.trace_start"() <{level = 10 : i32, message = "bqd,bkd->bqk"}> : () -> ()
    %cst_35 = arith.constant dense<0.000000e+00> : vector<2x8x8xf32>
    %36 = tpu.matmul %33, %34, %cst_35 {dimension_numbers = #tpu.dot_dimension_numbers<[2], [2], [1], [1], [0, 0, 0, 1, 1, 1], [0], [0]>} : vector<2x8x8xf32>, vector<2x8x8xf32>, vector<2x8x8xf32> -> vector<2x8x8xf32>
    "tpu.trace_stop"() : () -> ()
    %cst_36 = arith.constant dense<0xFF800000> : vector<2x8xf32>
    %37 = vector.multi_reduction <maximumf>, %36, %cst_36 [2] : vector<2x8x8xf32> to vector<2x8xf32>
    %38 = vector.shape_cast %37 : vector<2x8xf32> to vector<2x8x1xf32>
    %39 = vector.broadcast %38 : vector<2x8x1xf32> to vector<2x8x8xf32>
    %40 = arith.subf %36, %39 : vector<2x8x8xf32>
    %41 = math.exp %40 : vector<2x8x8xf32>
    %cst_37 = arith.constant dense<0.000000e+00> : vector<2x8xf32>
    %42 = vector.multi_reduction <add>, %41, %cst_37 [2] : vector<2x8x8xf32> to vector<2x8xf32>
    %43 = vector.shape_cast %42 : vector<2x8xf32> to vector<2x8x1xf32>
    %44 = tpu.reciprocal %43 {approx = true} : vector<2x8x1xf32> -> vector<2x8x1xf32>
    %45 = vector.broadcast %44 : vector<2x8x1xf32> to vector<2x8x8xf32>
    %46 = arith.mulf %41, %45 : vector<2x8x8xf32>
    "tpu.trace_start"() <{level = 10 : i32, message = "bqk,bkd->bqd"}> : () -> ()
    %cst_38 = arith.constant dense<0.000000e+00> : vector<2x8x8xf32>
    %47 = tpu.matmul %46, %35, %cst_38 {dimension_numbers = #tpu.dot_dimension_numbers<[2], [1], [1], [2], [0, 0, 0, 1, 1, 2], [0], [0]>} : vector<2x8x8xf32>, vector<2x8x8xf32>, vector<2x8x8xf32> -> vector<2x8x8xf32>
    "tpu.trace_stop"() : () -> ()
    %48 = vector.shape_cast %47 : vector<2x8x8xf32> to vector<16x8xf32>
    %49 = vector.extract_strided_slice %13 {offsets = [0, 0], sizes = [8, 32], strides = [1, 1]} : vector<32x32xf32> to vector<8x32xf32>
    %cst_39 = arith.constant dense<0.000000e+00> : vector<16x32xf32>
    %50 = tpu.matmul %48, %49, %cst_39 {dimension_numbers = #tpu.dot_dimension_numbers<[1], [0], [0], [1], [0, 0, 1, 1], [], []>} : vector<16x8xf32>, vector<8x32xf32>, vector<16x32xf32> -> vector<16x32xf32>
    %51 = arith.addf %32, %50 : vector<16x32xf32>
    %52 = vector.extract_strided_slice %29 {offsets = [0, 0, 8], sizes = [2, 8, 8], strides = [1, 1, 1]} : vector<2x8x32xf32> to vector<2x8x8xf32>
    %53 = vector.extract_strided_slice %30 {offsets = [0, 0, 8], sizes = [2, 8, 8], strides = [1, 1, 1]} : vector<2x8x32xf32> to vector<2x8x8xf32>
    %54 = vector.extract_strided_slice %31 {offsets = [0, 0, 8], sizes = [2, 8, 8], strides = [1, 1, 1]} : vector<2x8x32xf32> to vector<2x8x8xf32>
    "tpu.trace_start"() <{level = 10 : i32, message = "bqd,bkd->bqk"}> : () -> ()
    %cst_40 = arith.constant dense<0.000000e+00> : vector<2x8x8xf32>
    %55 = tpu.matmul %52, %53, %cst_40 {dimension_numbers = #tpu.dot_dimension_numbers<[2], [2], [1], [1], [0, 0, 0, 1, 1, 1], [0], [0]>} : vector<2x8x8xf32>, vector<2x8x8xf32>, vector<2x8x8xf32> -> vector<2x8x8xf32>
    "tpu.trace_stop"() : () -> ()
    %cst_41 = arith.constant dense<0xFF800000> : vector<2x8xf32>
    %56 = vector.multi_reduction <maximumf>, %55, %cst_41 [2] : vector<2x8x8xf32> to vector<2x8xf32>
    %57 = vector.shape_cast %56 : vector<2x8xf32> to vector<2x8x1xf32>
    %58 = vector.broadcast %57 : vector<2x8x1xf32> to vector<2x8x8xf32>
    %59 = arith.subf %55, %58 : vector<2x8x8xf32>
    %60 = math.exp %59 : vector<2x8x8xf32>
    %cst_42 = arith.constant dense<0.000000e+00> : vector<2x8xf32>
    %61 = vector.multi_reduction <add>, %60, %cst_42 [2] : vector<2x8x8xf32> to vector<2x8xf32>
    %62 = vector.shape_cast %61 : vector<2x8xf32> to vector<2x8x1xf32>
    %63 = tpu.reciprocal %62 {approx = true} : vector<2x8x1xf32> -> vector<2x8x1xf32>
    %64 = vector.broadcast %63 : vector<2x8x1xf32> to vector<2x8x8xf32>
    %65 = arith.mulf %60, %64 : vector<2x8x8xf32>
    "tpu.trace_start"() <{level = 10 : i32, message = "bqk,bkd->bqd"}> : () -> ()
    %cst_43 = arith.constant dense<0.000000e+00> : vector<2x8x8xf32>
    %66 = tpu.matmul %65, %54, %cst_43 {dimension_numbers = #tpu.dot_dimension_numbers<[2], [1], [1], [2], [0, 0, 0, 1, 1, 2], [0], [0]>} : vector<2x8x8xf32>, vector<2x8x8xf32>, vector<2x8x8xf32> -> vector<2x8x8xf32>
    "tpu.trace_stop"() : () -> ()
    %67 = vector.shape_cast %66 : vector<2x8x8xf32> to vector<16x8xf32>
    %68 = vector.extract_strided_slice %13 {offsets = [8, 0], sizes = [8, 32], strides = [1, 1]} : vector<32x32xf32> to vector<8x32xf32>
    %cst_44 = arith.constant dense<0.000000e+00> : vector<16x32xf32>
    %69 = tpu.matmul %67, %68, %cst_44 {dimension_numbers = #tpu.dot_dimension_numbers<[1], [0], [0], [1], [0, 0, 1, 1], [], []>} : vector<16x8xf32>, vector<8x32xf32>, vector<16x32xf32> -> vector<16x32xf32>
    %70 = arith.addf %51, %69 : vector<16x32xf32>
    %71 = vector.extract_strided_slice %29 {offsets = [0, 0, 16], sizes = [2, 8, 8], strides = [1, 1, 1]} : vector<2x8x32xf32> to vector<2x8x8xf32>
    %72 = vector.extract_strided_slice %30 {offsets = [0, 0, 16], sizes = [2, 8, 8], strides = [1, 1, 1]} : vector<2x8x32xf32> to vector<2x8x8xf32>
    %73 = vector.extract_strided_slice %31 {offsets = [0, 0, 16], sizes = [2, 8, 8], strides = [1, 1, 1]} : vector<2x8x32xf32> to vector<2x8x8xf32>
    "tpu.trace_start"() <{level = 10 : i32, message = "bqd,bkd->bqk"}> : () -> ()
    %cst_45 = arith.constant dense<0.000000e+00> : vector<2x8x8xf32>
    %74 = tpu.matmul %71, %72, %cst_45 {dimension_numbers = #tpu.dot_dimension_numbers<[2], [2], [1], [1], [0, 0, 0, 1, 1, 1], [0], [0]>} : vector<2x8x8xf32>, vector<2x8x8xf32>, vector<2x8x8xf32> -> vector<2x8x8xf32>
    "tpu.trace_stop"() : () -> ()
    %cst_46 = arith.constant dense<0xFF800000> : vector<2x8xf32>
    %75 = vector.multi_reduction <maximumf>, %74, %cst_46 [2] : vector<2x8x8xf32> to vector<2x8xf32>
    %76 = vector.shape_cast %75 : vector<2x8xf32> to vector<2x8x1xf32>
    %77 = vector.broadcast %76 : vector<2x8x1xf32> to vector<2x8x8xf32>
    %78 = arith.subf %74, %77 : vector<2x8x8xf32>
    %79 = math.exp %78 : vector<2x8x8xf32>
    %cst_47 = arith.constant dense<0.000000e+00> : vector<2x8xf32>
    %80 = vector.multi_reduction <add>, %79, %cst_47 [2] : vector<2x8x8xf32> to vector<2x8xf32>
    %81 = vector.shape_cast %80 : vector<2x8xf32> to vector<2x8x1xf32>
    %82 = tpu.reciprocal %81 {approx = true} : vector<2x8x1xf32> -> vector<2x8x1xf32>
    %83 = vector.broadcast %82 : vector<2x8x1xf32> to vector<2x8x8xf32>
    %84 = arith.mulf %79, %83 : vector<2x8x8xf32>
    "tpu.trace_start"() <{level = 10 : i32, message = "bqk,bkd->bqd"}> : () -> ()
    %cst_48 = arith.constant dense<0.000000e+00> : vector<2x8x8xf32>
    %85 = tpu.matmul %84, %73, %cst_48 {dimension_numbers = #tpu.dot_dimension_numbers<[2], [1], [1], [2], [0, 0, 0, 1, 1, 2], [0], [0]>} : vector<2x8x8xf32>, vector<2x8x8xf32>, vector<2x8x8xf32> -> vector<2x8x8xf32>
    "tpu.trace_stop"() : () -> ()
    %86 = vector.shape_cast %85 : vector<2x8x8xf32> to vector<16x8xf32>
    %87 = vector.extract_strided_slice %13 {offsets = [16, 0], sizes = [8, 32], strides = [1, 1]} : vector<32x32xf32> to vector<8x32xf32>
    %cst_49 = arith.constant dense<0.000000e+00> : vector<16x32xf32>
    %88 = tpu.matmul %86, %87, %cst_49 {dimension_numbers = #tpu.dot_dimension_numbers<[1], [0], [0], [1], [0, 0, 1, 1], [], []>} : vector<16x8xf32>, vector<8x32xf32>, vector<16x32xf32> -> vector<16x32xf32>
    %89 = arith.addf %70, %88 : vector<16x32xf32>
    %90 = vector.extract_strided_slice %29 {offsets = [0, 0, 24], sizes = [2, 8, 8], strides = [1, 1, 1]} : vector<2x8x32xf32> to vector<2x8x8xf32>
    %91 = vector.extract_strided_slice %30 {offsets = [0, 0, 24], sizes = [2, 8, 8], strides = [1, 1, 1]} : vector<2x8x32xf32> to vector<2x8x8xf32>
    %92 = vector.extract_strided_slice %31 {offsets = [0, 0, 24], sizes = [2, 8, 8], strides = [1, 1, 1]} : vector<2x8x32xf32> to vector<2x8x8xf32>
    "tpu.trace_start"() <{level = 10 : i32, message = "bqd,bkd->bqk"}> : () -> ()
    %cst_50 = arith.constant dense<0.000000e+00> : vector<2x8x8xf32>
    %93 = tpu.matmul %90, %91, %cst_50 {dimension_numbers = #tpu.dot_dimension_numbers<[2], [2], [1], [1], [0, 0, 0, 1, 1, 1], [0], [0]>} : vector<2x8x8xf32>, vector<2x8x8xf32>, vector<2x8x8xf32> -> vector<2x8x8xf32>
    "tpu.trace_stop"() : () -> ()
    %cst_51 = arith.constant dense<0xFF800000> : vector<2x8xf32>
    %94 = vector.multi_reduction <maximumf>, %93, %cst_51 [2] : vector<2x8x8xf32> to vector<2x8xf32>
    %95 = vector.shape_cast %94 : vector<2x8xf32> to vector<2x8x1xf32>
    %96 = vector.broadcast %95 : vector<2x8x1xf32> to vector<2x8x8xf32>
    %97 = arith.subf %93, %96 : vector<2x8x8xf32>
    %98 = math.exp %97 : vector<2x8x8xf32>
    %cst_52 = arith.constant dense<0.000000e+00> : vector<2x8xf32>
    %99 = vector.multi_reduction <add>, %98, %cst_52 [2] : vector<2x8x8xf32> to vector<2x8xf32>
    %100 = vector.shape_cast %99 : vector<2x8xf32> to vector<2x8x1xf32>
    %101 = tpu.reciprocal %100 {approx = true} : vector<2x8x1xf32> -> vector<2x8x1xf32>
    %102 = vector.broadcast %101 : vector<2x8x1xf32> to vector<2x8x8xf32>
    %103 = arith.mulf %98, %102 : vector<2x8x8xf32>
    "tpu.trace_start"() <{level = 10 : i32, message = "bqk,bkd->bqd"}> : () -> ()
    %cst_53 = arith.constant dense<0.000000e+00> : vector<2x8x8xf32>
    %104 = tpu.matmul %103, %92, %cst_53 {dimension_numbers = #tpu.dot_dimension_numbers<[2], [1], [1], [2], [0, 0, 0, 1, 1, 2], [0], [0]>} : vector<2x8x8xf32>, vector<2x8x8xf32>, vector<2x8x8xf32> -> vector<2x8x8xf32>
    "tpu.trace_stop"() : () -> ()
    %105 = vector.shape_cast %104 : vector<2x8x8xf32> to vector<16x8xf32>
    %106 = vector.extract_strided_slice %13 {offsets = [24, 0], sizes = [8, 32], strides = [1, 1]} : vector<32x32xf32> to vector<8x32xf32>
    %cst_54 = arith.constant dense<0.000000e+00> : vector<16x32xf32>
    %107 = tpu.matmul %105, %106, %cst_54 {dimension_numbers = #tpu.dot_dimension_numbers<[1], [0], [0], [1], [0, 0, 1, 1], [], []>} : vector<16x8xf32>, vector<8x32xf32>, vector<16x32xf32> -> vector<16x32xf32>
    %108 = arith.addf %89, %107 : vector<16x32xf32>
    %109 = vector.broadcast %14 : vector<1x32xf32> to vector<16x32xf32>
    %110 = arith.addf %108, %109 : vector<16x32xf32>
    %111 = arith.addf %10, %110 : vector<16x32xf32>
    %cst_55 = arith.constant dense<0.000000e+00> : vector<16xf32>
    %112 = vector.multi_reduction <add>, %111, %cst_55 [1] : vector<16x32xf32> to vector<16xf32>
    %113 = vector.shape_cast %112 : vector<16xf32> to vector<16x1xf32>
    %cst_56 = arith.constant 3.200000e+01 : f32
    %114 = vector.broadcast %cst_56 : f32 to vector<16x1xf32>
    %115 = arith.divf %113, %114 : vector<16x1xf32>
    %116 = vector.broadcast %115 : vector<16x1xf32> to vector<16x32xf32>
    %117 = arith.subf %111, %116 : vector<16x32xf32>
    %118 = arith.mulf %117, %117 : vector<16x32xf32>
    %cst_57 = arith.constant dense<0.000000e+00> : vector<16xf32>
    %119 = vector.multi_reduction <add>, %118, %cst_57 [1] : vector<16x32xf32> to vector<16xf32>
    %120 = vector.shape_cast %119 : vector<16xf32> to vector<16x1xf32>
    %cst_58 = arith.constant 3.200000e+01 : f32
    %121 = vector.broadcast %cst_58 : f32 to vector<16x1xf32>
    %122 = arith.divf %120, %121 : vector<16x1xf32>
    %cst_59 = arith.constant 9.99999974E-6 : f32
    %123 = vector.broadcast %cst_59 : f32 to vector<16x1xf32>
    %124 = arith.addf %122, %123 : vector<16x1xf32>
    %125 = math.rsqrt %124 : vector<16x1xf32>
    %126 = vector.broadcast %125 : vector<16x1xf32> to vector<16x32xf32>
    %127 = arith.mulf %117, %126 : vector<16x32xf32>
    %128 = vector.broadcast %15 : vector<1x32xf32> to vector<16x32xf32>
    %129 = arith.mulf %127, %128 : vector<16x32xf32>
    %130 = vector.broadcast %16 : vector<1x32xf32> to vector<16x32xf32>
    %131 = arith.addf %129, %130 : vector<16x32xf32>
    %cst_60 = arith.constant dense<0.000000e+00> : vector<16x64xf32>
    %132 = tpu.matmul %131, %17, %cst_60 {dimension_numbers = #tpu.dot_dimension_numbers<[1], [0], [0], [1], [0, 0, 1, 1], [], []>} : vector<16x32xf32>, vector<32x64xf32>, vector<16x64xf32> -> vector<16x64xf32>
    %133 = vector.broadcast %18 : vector<1x64xf32> to vector<16x64xf32>
    %134 = arith.addf %132, %133 : vector<16x64xf32>
    %cst_61 = arith.constant 0.000000e+00 : f32
    %135 = vector.broadcast %cst_61 : f32 to vector<16x64xf32>
    %136 = arith.maximumf %134, %135 : vector<16x64xf32>
    %cst_62 = arith.constant dense<0.000000e+00> : vector<16x32xf32>
    %137 = tpu.matmul %136, %19, %cst_62 {dimension_numbers = #tpu.dot_dimension_numbers<[1], [0], [0], [1], [0, 0, 1, 1], [], []>} : vector<16x64xf32>, vector<64x32xf32>, vector<16x32xf32> -> vector<16x32xf32>
    %138 = vector.broadcast %20 : vector<1x32xf32> to vector<16x32xf32>
    %139 = arith.addf %137, %138 : vector<16x32xf32>
    %140 = arith.addf %131, %139 : vector<16x32xf32>
    %cst_63 = arith.constant dense<0.000000e+00> : vector<16xf32>
    %141 = vector.multi_reduction <add>, %140, %cst_63 [1] : vector<16x32xf32> to vector<16xf32>
    %142 = vector.shape_cast %141 : vector<16xf32> to vector<16x1xf32>
    %cst_64 = arith.constant 3.200000e+01 : f32
    %143 = vector.broadcast %cst_64 : f32 to vector<16x1xf32>
    %144 = arith.divf %142, %143 : vector<16x1xf32>
    %145 = vector.broadcast %144 : vector<16x1xf32> to vector<16x32xf32>
    %146 = arith.subf %140, %145 : vector<16x32xf32>
    %147 = arith.mulf %146, %146 : vector<16x32xf32>
    %cst_65 = arith.constant dense<0.000000e+00> : vector<16xf32>
    %148 = vector.multi_reduction <add>, %147, %cst_65 [1] : vector<16x32xf32> to vector<16xf32>
    %149 = vector.shape_cast %148 : vector<16xf32> to vector<16x1xf32>
    %cst_66 = arith.constant 3.200000e+01 : f32
    %150 = vector.broadcast %cst_66 : f32 to vector<16x1xf32>
    %151 = arith.divf %149, %150 : vector<16x1xf32>
    %cst_67 = arith.constant 9.99999974E-6 : f32
    %152 = vector.broadcast %cst_67 : f32 to vector<16x1xf32>
    %153 = arith.addf %151, %152 : vector<16x1xf32>
    %154 = math.rsqrt %153 : vector<16x1xf32>
    %155 = vector.broadcast %154 : vector<16x1xf32> to vector<16x32xf32>
    %156 = arith.mulf %146, %155 : vector<16x32xf32>
    %157 = vector.broadcast %21 : vector<1x32xf32> to vector<16x32xf32>
    %158 = arith.mulf %156, %157 : vector<16x32xf32>
    %159 = vector.broadcast %22 : vector<1x32xf32> to vector<16x32xf32>
    %160 = arith.addf %158, %159 : vector<16x32xf32>
    %c0_68 = arith.constant 0 : index
    %c0_69 = arith.constant 0 : index
    %161 = vector.load %arg16[%c0_68, %c0_69] : memref<32x96xf32, #tpu.memory_space<vmem>>, vector<32x96xf32>
    %c0_70 = arith.constant 0 : index
    %c0_71 = arith.constant 0 : index
    %162 = vector.load %arg17[%c0_70, %c0_71] : memref<1x96xf32, #tpu.memory_space<vmem>>, vector<1x96xf32>
    %c0_72 = arith.constant 0 : index
    %c0_73 = arith.constant 0 : index
    %163 = vector.load %arg18[%c0_72, %c0_73] : memref<32x32xf32, #tpu.memory_space<vmem>>, vector<32x32xf32>
    %c0_74 = arith.constant 0 : index
    %c0_75 = arith.constant 0 : index
    %164 = vector.load %arg19[%c0_74, %c0_75] : memref<1x32xf32, #tpu.memory_space<vmem>>, vector<1x32xf32>
    %c0_76 = arith.constant 0 : index
    %c0_77 = arith.constant 0 : index
    %165 = vector.load %arg20[%c0_76, %c0_77] : memref<1x32xf32, #tpu.memory_space<vmem>>, vector<1x32xf32>
    %c0_78 = arith.constant 0 : index
    %c0_79 = arith.constant 0 : index
    %166 = vector.load %arg21[%c0_78, %c0_79] : memref<1x32xf32, #tpu.memory_space<vmem>>, vector<1x32xf32>
    %c0_80 = arith.constant 0 : index
    %c0_81 = arith.constant 0 : index
    %167 = vector.load %arg22[%c0_80, %c0_81] : memref<32x64xf32, #tpu.memory_space<vmem>>, vector<32x64xf32>
    %c0_82 = arith.constant 0 : index
    %c0_83 = arith.constant 0 : index
    %168 = vector.load %arg23[%c0_82, %c0_83] : memref<1x64xf32, #tpu.memory_space<vmem>>, vector<1x64xf32>
    %c0_84 = arith.constant 0 : index
    %c0_85 = arith.constant 0 : index
    %169 = vector.load %arg24[%c0_84, %c0_85] : memref<64x32xf32, #tpu.memory_space<vmem>>, vector<64x32xf32>
    %c0_86 = arith.constant 0 : index
    %c0_87 = arith.constant 0 : index
    %170 = vector.load %arg25[%c0_86, %c0_87] : memref<1x32xf32, #tpu.memory_space<vmem>>, vector<1x32xf32>
    %c0_88 = arith.constant 0 : index
    %c0_89 = arith.constant 0 : index
    %171 = vector.load %arg26[%c0_88, %c0_89] : memref<1x32xf32, #tpu.memory_space<vmem>>, vector<1x32xf32>
    %c0_90 = arith.constant 0 : index
    %c0_91 = arith.constant 0 : index
    %172 = vector.load %arg27[%c0_90, %c0_91] : memref<1x32xf32, #tpu.memory_space<vmem>>, vector<1x32xf32>
    %cst_92 = arith.constant dense<0.000000e+00> : vector<16x96xf32>
    %173 = tpu.matmul %160, %161, %cst_92 {dimension_numbers = #tpu.dot_dimension_numbers<[1], [0], [0], [1], [0, 0, 1, 1], [], []>} : vector<16x32xf32>, vector<32x96xf32>, vector<16x96xf32> -> vector<16x96xf32>
    %174 = vector.broadcast %162 : vector<1x96xf32> to vector<16x96xf32>
    %175 = arith.addf %173, %174 : vector<16x96xf32>
    %176 = vector.extract_strided_slice %175 {offsets = [0, 0], sizes = [16, 32], strides = [1, 1]} : vector<16x96xf32> to vector<16x32xf32>
    %177 = vector.extract_strided_slice %175 {offsets = [0, 32], sizes = [16, 32], strides = [1, 1]} : vector<16x96xf32> to vector<16x32xf32>
    %178 = vector.extract_strided_slice %175 {offsets = [0, 64], sizes = [16, 32], strides = [1, 1]} : vector<16x96xf32> to vector<16x32xf32>
    %179 = vector.shape_cast %176 : vector<16x32xf32> to vector<2x8x32xf32>
    %180 = vector.shape_cast %177 : vector<16x32xf32> to vector<2x8x32xf32>
    %181 = vector.shape_cast %178 : vector<16x32xf32> to vector<2x8x32xf32>
    %cst_93 = arith.constant 0.000000e+00 : f32
    %182 = vector.broadcast %cst_93 : f32 to vector<16x32xf32>
    %183 = vector.extract_strided_slice %179 {offsets = [0, 0, 0], sizes = [2, 8, 8], strides = [1, 1, 1]} : vector<2x8x32xf32> to vector<2x8x8xf32>
    %184 = vector.extract_strided_slice %180 {offsets = [0, 0, 0], sizes = [2, 8, 8], strides = [1, 1, 1]} : vector<2x8x32xf32> to vector<2x8x8xf32>
    %185 = vector.extract_strided_slice %181 {offsets = [0, 0, 0], sizes = [2, 8, 8], strides = [1, 1, 1]} : vector<2x8x32xf32> to vector<2x8x8xf32>
    "tpu.trace_start"() <{level = 10 : i32, message = "bqd,bkd->bqk"}> : () -> ()
    %cst_94 = arith.constant dense<0.000000e+00> : vector<2x8x8xf32>
    %186 = tpu.matmul %183, %184, %cst_94 {dimension_numbers = #tpu.dot_dimension_numbers<[2], [2], [1], [1], [0, 0, 0, 1, 1, 1], [0], [0]>} : vector<2x8x8xf32>, vector<2x8x8xf32>, vector<2x8x8xf32> -> vector<2x8x8xf32>
    "tpu.trace_stop"() : () -> ()
    %cst_95 = arith.constant dense<0xFF800000> : vector<2x8xf32>
    %187 = vector.multi_reduction <maximumf>, %186, %cst_95 [2] : vector<2x8x8xf32> to vector<2x8xf32>
    %188 = vector.shape_cast %187 : vector<2x8xf32> to vector<2x8x1xf32>
    %189 = vector.broadcast %188 : vector<2x8x1xf32> to vector<2x8x8xf32>
    %190 = arith.subf %186, %189 : vector<2x8x8xf32>
    %191 = math.exp %190 : vector<2x8x8xf32>
    %cst_96 = arith.constant dense<0.000000e+00> : vector<2x8xf32>
    %192 = vector.multi_reduction <add>, %191, %cst_96 [2] : vector<2x8x8xf32> to vector<2x8xf32>
    %193 = vector.shape_cast %192 : vector<2x8xf32> to vector<2x8x1xf32>
    %194 = tpu.reciprocal %193 {approx = true} : vector<2x8x1xf32> -> vector<2x8x1xf32>
    %195 = vector.broadcast %194 : vector<2x8x1xf32> to vector<2x8x8xf32>
    %196 = arith.mulf %191, %195 : vector<2x8x8xf32>
    "tpu.trace_start"() <{level = 10 : i32, message = "bqk,bkd->bqd"}> : () -> ()
    %cst_97 = arith.constant dense<0.000000e+00> : vector<2x8x8xf32>
    %197 = tpu.matmul %196, %185, %cst_97 {dimension_numbers = #tpu.dot_dimension_numbers<[2], [1], [1], [2], [0, 0, 0, 1, 1, 2], [0], [0]>} : vector<2x8x8xf32>, vector<2x8x8xf32>, vector<2x8x8xf32> -> vector<2x8x8xf32>
    "tpu.trace_stop"() : () -> ()
    %198 = vector.shape_cast %197 : vector<2x8x8xf32> to vector<16x8xf32>
    %199 = vector.extract_strided_slice %163 {offsets = [0, 0], sizes = [8, 32], strides = [1, 1]} : vector<32x32xf32> to vector<8x32xf32>
    %cst_98 = arith.constant dense<0.000000e+00> : vector<16x32xf32>
    %200 = tpu.matmul %198, %199, %cst_98 {dimension_numbers = #tpu.dot_dimension_numbers<[1], [0], [0], [1], [0, 0, 1, 1], [], []>} : vector<16x8xf32>, vector<8x32xf32>, vector<16x32xf32> -> vector<16x32xf32>
    %201 = arith.addf %182, %200 : vector<16x32xf32>
    %202 = vector.extract_strided_slice %179 {offsets = [0, 0, 8], sizes = [2, 8, 8], strides = [1, 1, 1]} : vector<2x8x32xf32> to vector<2x8x8xf32>
    %203 = vector.extract_strided_slice %180 {offsets = [0, 0, 8], sizes = [2, 8, 8], strides = [1, 1, 1]} : vector<2x8x32xf32> to vector<2x8x8xf32>
    %204 = vector.extract_strided_slice %181 {offsets = [0, 0, 8], sizes = [2, 8, 8], strides = [1, 1, 1]} : vector<2x8x32xf32> to vector<2x8x8xf32>
    "tpu.trace_start"() <{level = 10 : i32, message = "bqd,bkd->bqk"}> : () -> ()
    %cst_99 = arith.constant dense<0.000000e+00> : vector<2x8x8xf32>
    %205 = tpu.matmul %202, %203, %cst_99 {dimension_numbers = #tpu.dot_dimension_numbers<[2], [2], [1], [1], [0, 0, 0, 1, 1, 1], [0], [0]>} : vector<2x8x8xf32>, vector<2x8x8xf32>, vector<2x8x8xf32> -> vector<2x8x8xf32>
    "tpu.trace_stop"() : () -> ()
    %cst_100 = arith.constant dense<0xFF800000> : vector<2x8xf32>
    %206 = vector.multi_reduction <maximumf>, %205, %cst_100 [2] : vector<2x8x8xf32> to vector<2x8xf32>
    %207 = vector.shape_cast %206 : vector<2x8xf32> to vector<2x8x1xf32>
    %208 = vector.broadcast %207 : vector<2x8x1xf32> to vector<2x8x8xf32>
    %209 = arith.subf %205, %208 : vector<2x8x8xf32>
    %210 = math.exp %209 : vector<2x8x8xf32>
    %cst_101 = arith.constant dense<0.000000e+00> : vector<2x8xf32>
    %211 = vector.multi_reduction <add>, %210, %cst_101 [2] : vector<2x8x8xf32> to vector<2x8xf32>
    %212 = vector.shape_cast %211 : vector<2x8xf32> to vector<2x8x1xf32>
    %213 = tpu.reciprocal %212 {approx = true} : vector<2x8x1xf32> -> vector<2x8x1xf32>
    %214 = vector.broadcast %213 : vector<2x8x1xf32> to vector<2x8x8xf32>
    %215 = arith.mulf %210, %214 : vector<2x8x8xf32>
    "tpu.trace_start"() <{level = 10 : i32, message = "bqk,bkd->bqd"}> : () -> ()
    %cst_102 = arith.constant dense<0.000000e+00> : vector<2x8x8xf32>
    %216 = tpu.matmul %215, %204, %cst_102 {dimension_numbers = #tpu.dot_dimension_numbers<[2], [1], [1], [2], [0, 0, 0, 1, 1, 2], [0], [0]>} : vector<2x8x8xf32>, vector<2x8x8xf32>, vector<2x8x8xf32> -> vector<2x8x8xf32>
    "tpu.trace_stop"() : () -> ()
    %217 = vector.shape_cast %216 : vector<2x8x8xf32> to vector<16x8xf32>
    %218 = vector.extract_strided_slice %163 {offsets = [8, 0], sizes = [8, 32], strides = [1, 1]} : vector<32x32xf32> to vector<8x32xf32>
    %cst_103 = arith.constant dense<0.000000e+00> : vector<16x32xf32>
    %219 = tpu.matmul %217, %218, %cst_103 {dimension_numbers = #tpu.dot_dimension_numbers<[1], [0], [0], [1], [0, 0, 1, 1], [], []>} : vector<16x8xf32>, vector<8x32xf32>, vector<16x32xf32> -> vector<16x32xf32>
    %220 = arith.addf %201, %219 : vector<16x32xf32>
    %221 = vector.extract_strided_slice %179 {offsets = [0, 0, 16], sizes = [2, 8, 8], strides = [1, 1, 1]} : vector<2x8x32xf32> to vector<2x8x8xf32>
    %222 = vector.extract_strided_slice %180 {offsets = [0, 0, 16], sizes = [2, 8, 8], strides = [1, 1, 1]} : vector<2x8x32xf32> to vector<2x8x8xf32>
    %223 = vector.extract_strided_slice %181 {offsets = [0, 0, 16], sizes = [2, 8, 8], strides = [1, 1, 1]} : vector<2x8x32xf32> to vector<2x8x8xf32>
    "tpu.trace_start"() <{level = 10 : i32, message = "bqd,bkd->bqk"}> : () -> ()
    %cst_104 = arith.constant dense<0.000000e+00> : vector<2x8x8xf32>
    %224 = tpu.matmul %221, %222, %cst_104 {dimension_numbers = #tpu.dot_dimension_numbers<[2], [2], [1], [1], [0, 0, 0, 1, 1, 1], [0], [0]>} : vector<2x8x8xf32>, vector<2x8x8xf32>, vector<2x8x8xf32> -> vector<2x8x8xf32>
    "tpu.trace_stop"() : () -> ()
    %cst_105 = arith.constant dense<0xFF800000> : vector<2x8xf32>
    %225 = vector.multi_reduction <maximumf>, %224, %cst_105 [2] : vector<2x8x8xf32> to vector<2x8xf32>
    %226 = vector.shape_cast %225 : vector<2x8xf32> to vector<2x8x1xf32>
    %227 = vector.broadcast %226 : vector<2x8x1xf32> to vector<2x8x8xf32>
    %228 = arith.subf %224, %227 : vector<2x8x8xf32>
    %229 = math.exp %228 : vector<2x8x8xf32>
    %cst_106 = arith.constant dense<0.000000e+00> : vector<2x8xf32>
    %230 = vector.multi_reduction <add>, %229, %cst_106 [2] : vector<2x8x8xf32> to vector<2x8xf32>
    %231 = vector.shape_cast %230 : vector<2x8xf32> to vector<2x8x1xf32>
    %232 = tpu.reciprocal %231 {approx = true} : vector<2x8x1xf32> -> vector<2x8x1xf32>
    %233 = vector.broadcast %232 : vector<2x8x1xf32> to vector<2x8x8xf32>
    %234 = arith.mulf %229, %233 : vector<2x8x8xf32>
    "tpu.trace_start"() <{level = 10 : i32, message = "bqk,bkd->bqd"}> : () -> ()
    %cst_107 = arith.constant dense<0.000000e+00> : vector<2x8x8xf32>
    %235 = tpu.matmul %234, %223, %cst_107 {dimension_numbers = #tpu.dot_dimension_numbers<[2], [1], [1], [2], [0, 0, 0, 1, 1, 2], [0], [0]>} : vector<2x8x8xf32>, vector<2x8x8xf32>, vector<2x8x8xf32> -> vector<2x8x8xf32>
    "tpu.trace_stop"() : () -> ()
    %236 = vector.shape_cast %235 : vector<2x8x8xf32> to vector<16x8xf32>
    %237 = vector.extract_strided_slice %163 {offsets = [16, 0], sizes = [8, 32], strides = [1, 1]} : vector<32x32xf32> to vector<8x32xf32>
    %cst_108 = arith.constant dense<0.000000e+00> : vector<16x32xf32>
    %238 = tpu.matmul %236, %237, %cst_108 {dimension_numbers = #tpu.dot_dimension_numbers<[1], [0], [0], [1], [0, 0, 1, 1], [], []>} : vector<16x8xf32>, vector<8x32xf32>, vector<16x32xf32> -> vector<16x32xf32>
    %239 = arith.addf %220, %238 : vector<16x32xf32>
    %240 = vector.extract_strided_slice %179 {offsets = [0, 0, 24], sizes = [2, 8, 8], strides = [1, 1, 1]} : vector<2x8x32xf32> to vector<2x8x8xf32>
    %241 = vector.extract_strided_slice %180 {offsets = [0, 0, 24], sizes = [2, 8, 8], strides = [1, 1, 1]} : vector<2x8x32xf32> to vector<2x8x8xf32>
    %242 = vector.extract_strided_slice %181 {offsets = [0, 0, 24], sizes = [2, 8, 8], strides = [1, 1, 1]} : vector<2x8x32xf32> to vector<2x8x8xf32>
    "tpu.trace_start"() <{level = 10 : i32, message = "bqd,bkd->bqk"}> : () -> ()
    %cst_109 = arith.constant dense<0.000000e+00> : vector<2x8x8xf32>
    %243 = tpu.matmul %240, %241, %cst_109 {dimension_numbers = #tpu.dot_dimension_numbers<[2], [2], [1], [1], [0, 0, 0, 1, 1, 1], [0], [0]>} : vector<2x8x8xf32>, vector<2x8x8xf32>, vector<2x8x8xf32> -> vector<2x8x8xf32>
    "tpu.trace_stop"() : () -> ()
    %cst_110 = arith.constant dense<0xFF800000> : vector<2x8xf32>
    %244 = vector.multi_reduction <maximumf>, %243, %cst_110 [2] : vector<2x8x8xf32> to vector<2x8xf32>
    %245 = vector.shape_cast %244 : vector<2x8xf32> to vector<2x8x1xf32>
    %246 = vector.broadcast %245 : vector<2x8x1xf32> to vector<2x8x8xf32>
    %247 = arith.subf %243, %246 : vector<2x8x8xf32>
    %248 = math.exp %247 : vector<2x8x8xf32>
    %cst_111 = arith.constant dense<0.000000e+00> : vector<2x8xf32>
    %249 = vector.multi_reduction <add>, %248, %cst_111 [2] : vector<2x8x8xf32> to vector<2x8xf32>
    %250 = vector.shape_cast %249 : vector<2x8xf32> to vector<2x8x1xf32>
    %251 = tpu.reciprocal %250 {approx = true} : vector<2x8x1xf32> -> vector<2x8x1xf32>
    %252 = vector.broadcast %251 : vector<2x8x1xf32> to vector<2x8x8xf32>
    %253 = arith.mulf %248, %252 : vector<2x8x8xf32>
    "tpu.trace_start"() <{level = 10 : i32, message = "bqk,bkd->bqd"}> : () -> ()
    %cst_112 = arith.constant dense<0.000000e+00> : vector<2x8x8xf32>
    %254 = tpu.matmul %253, %242, %cst_112 {dimension_numbers = #tpu.dot_dimension_numbers<[2], [1], [1], [2], [0, 0, 0, 1, 1, 2], [0], [0]>} : vector<2x8x8xf32>, vector<2x8x8xf32>, vector<2x8x8xf32> -> vector<2x8x8xf32>
    "tpu.trace_stop"() : () -> ()
    %255 = vector.shape_cast %254 : vector<2x8x8xf32> to vector<16x8xf32>
    %256 = vector.extract_strided_slice %163 {offsets = [24, 0], sizes = [8, 32], strides = [1, 1]} : vector<32x32xf32> to vector<8x32xf32>
    %cst_113 = arith.constant dense<0.000000e+00> : vector<16x32xf32>
    %257 = tpu.matmul %255, %256, %cst_113 {dimension_numbers = #tpu.dot_dimension_numbers<[1], [0], [0], [1], [0, 0, 1, 1], [], []>} : vector<16x8xf32>, vector<8x32xf32>, vector<16x32xf32> -> vector<16x32xf32>
    %258 = arith.addf %239, %257 : vector<16x32xf32>
    %259 = vector.broadcast %164 : vector<1x32xf32> to vector<16x32xf32>
    %260 = arith.addf %258, %259 : vector<16x32xf32>
    %261 = arith.addf %160, %260 : vector<16x32xf32>
    %cst_114 = arith.constant dense<0.000000e+00> : vector<16xf32>
    %262 = vector.multi_reduction <add>, %261, %cst_114 [1] : vector<16x32xf32> to vector<16xf32>
    %263 = vector.shape_cast %262 : vector<16xf32> to vector<16x1xf32>
    %cst_115 = arith.constant 3.200000e+01 : f32
    %264 = vector.broadcast %cst_115 : f32 to vector<16x1xf32>
    %265 = arith.divf %263, %264 : vector<16x1xf32>
    %266 = vector.broadcast %265 : vector<16x1xf32> to vector<16x32xf32>
    %267 = arith.subf %261, %266 : vector<16x32xf32>
    %268 = arith.mulf %267, %267 : vector<16x32xf32>
    %cst_116 = arith.constant dense<0.000000e+00> : vector<16xf32>
    %269 = vector.multi_reduction <add>, %268, %cst_116 [1] : vector<16x32xf32> to vector<16xf32>
    %270 = vector.shape_cast %269 : vector<16xf32> to vector<16x1xf32>
    %cst_117 = arith.constant 3.200000e+01 : f32
    %271 = vector.broadcast %cst_117 : f32 to vector<16x1xf32>
    %272 = arith.divf %270, %271 : vector<16x1xf32>
    %cst_118 = arith.constant 9.99999974E-6 : f32
    %273 = vector.broadcast %cst_118 : f32 to vector<16x1xf32>
    %274 = arith.addf %272, %273 : vector<16x1xf32>
    %275 = math.rsqrt %274 : vector<16x1xf32>
    %276 = vector.broadcast %275 : vector<16x1xf32> to vector<16x32xf32>
    %277 = arith.mulf %267, %276 : vector<16x32xf32>
    %278 = vector.broadcast %165 : vector<1x32xf32> to vector<16x32xf32>
    %279 = arith.mulf %277, %278 : vector<16x32xf32>
    %280 = vector.broadcast %166 : vector<1x32xf32> to vector<16x32xf32>
    %281 = arith.addf %279, %280 : vector<16x32xf32>
    %cst_119 = arith.constant dense<0.000000e+00> : vector<16x64xf32>
    %282 = tpu.matmul %281, %167, %cst_119 {dimension_numbers = #tpu.dot_dimension_numbers<[1], [0], [0], [1], [0, 0, 1, 1], [], []>} : vector<16x32xf32>, vector<32x64xf32>, vector<16x64xf32> -> vector<16x64xf32>
    %283 = vector.broadcast %168 : vector<1x64xf32> to vector<16x64xf32>
    %284 = arith.addf %282, %283 : vector<16x64xf32>
    %cst_120 = arith.constant 0.000000e+00 : f32
    %285 = vector.broadcast %cst_120 : f32 to vector<16x64xf32>
    %286 = arith.maximumf %284, %285 : vector<16x64xf32>
    %cst_121 = arith.constant dense<0.000000e+00> : vector<16x32xf32>
    %287 = tpu.matmul %286, %169, %cst_121 {dimension_numbers = #tpu.dot_dimension_numbers<[1], [0], [0], [1], [0, 0, 1, 1], [], []>} : vector<16x64xf32>, vector<64x32xf32>, vector<16x32xf32> -> vector<16x32xf32>
    %288 = vector.broadcast %170 : vector<1x32xf32> to vector<16x32xf32>
    %289 = arith.addf %287, %288 : vector<16x32xf32>
    %290 = arith.addf %281, %289 : vector<16x32xf32>
    %cst_122 = arith.constant dense<0.000000e+00> : vector<16xf32>
    %291 = vector.multi_reduction <add>, %290, %cst_122 [1] : vector<16x32xf32> to vector<16xf32>
    %292 = vector.shape_cast %291 : vector<16xf32> to vector<16x1xf32>
    %cst_123 = arith.constant 3.200000e+01 : f32
    %293 = vector.broadcast %cst_123 : f32 to vector<16x1xf32>
    %294 = arith.divf %292, %293 : vector<16x1xf32>
    %295 = vector.broadcast %294 : vector<16x1xf32> to vector<16x32xf32>
    %296 = arith.subf %290, %295 : vector<16x32xf32>
    %297 = arith.mulf %296, %296 : vector<16x32xf32>
    %cst_124 = arith.constant dense<0.000000e+00> : vector<16xf32>
    %298 = vector.multi_reduction <add>, %297, %cst_124 [1] : vector<16x32xf32> to vector<16xf32>
    %299 = vector.shape_cast %298 : vector<16xf32> to vector<16x1xf32>
    %cst_125 = arith.constant 3.200000e+01 : f32
    %300 = vector.broadcast %cst_125 : f32 to vector<16x1xf32>
    %301 = arith.divf %299, %300 : vector<16x1xf32>
    %cst_126 = arith.constant 9.99999974E-6 : f32
    %302 = vector.broadcast %cst_126 : f32 to vector<16x1xf32>
    %303 = arith.addf %301, %302 : vector<16x1xf32>
    %304 = math.rsqrt %303 : vector<16x1xf32>
    %305 = vector.broadcast %304 : vector<16x1xf32> to vector<16x32xf32>
    %306 = arith.mulf %296, %305 : vector<16x32xf32>
    %307 = vector.broadcast %171 : vector<1x32xf32> to vector<16x32xf32>
    %308 = arith.mulf %306, %307 : vector<16x32xf32>
    %309 = vector.broadcast %172 : vector<1x32xf32> to vector<16x32xf32>
    %310 = arith.addf %308, %309 : vector<16x32xf32>
    %c0_127 = arith.constant 0 : index
    %c0_128 = arith.constant 0 : index
    %311 = vector.load %arg28[%c0_127, %c0_128] : memref<32x96xf32, #tpu.memory_space<vmem>>, vector<32x96xf32>
    %c0_129 = arith.constant 0 : index
    %c0_130 = arith.constant 0 : index
    %312 = vector.load %arg29[%c0_129, %c0_130] : memref<1x96xf32, #tpu.memory_space<vmem>>, vector<1x96xf32>
    %c0_131 = arith.constant 0 : index
    %c0_132 = arith.constant 0 : index
    %313 = vector.load %arg30[%c0_131, %c0_132] : memref<32x32xf32, #tpu.memory_space<vmem>>, vector<32x32xf32>
    %c0_133 = arith.constant 0 : index
    %c0_134 = arith.constant 0 : index
    %314 = vector.load %arg31[%c0_133, %c0_134] : memref<1x32xf32, #tpu.memory_space<vmem>>, vector<1x32xf32>
    %c0_135 = arith.constant 0 : index
    %c0_136 = arith.constant 0 : index
    %315 = vector.load %arg32[%c0_135, %c0_136] : memref<1x32xf32, #tpu.memory_space<vmem>>, vector<1x32xf32>
    %c0_137 = arith.constant 0 : index
    %c0_138 = arith.constant 0 : index
    %316 = vector.load %arg33[%c0_137, %c0_138] : memref<1x32xf32, #tpu.memory_space<vmem>>, vector<1x32xf32>
    %c0_139 = arith.constant 0 : index
    %c0_140 = arith.constant 0 : index
    %317 = vector.load %arg34[%c0_139, %c0_140] : memref<32x64xf32, #tpu.memory_space<vmem>>, vector<32x64xf32>
    %c0_141 = arith.constant 0 : index
    %c0_142 = arith.constant 0 : index
    %318 = vector.load %arg35[%c0_141, %c0_142] : memref<1x64xf32, #tpu.memory_space<vmem>>, vector<1x64xf32>
    %c0_143 = arith.constant 0 : index
    %c0_144 = arith.constant 0 : index
    %319 = vector.load %arg36[%c0_143, %c0_144] : memref<64x32xf32, #tpu.memory_space<vmem>>, vector<64x32xf32>
    %c0_145 = arith.constant 0 : index
    %c0_146 = arith.constant 0 : index
    %320 = vector.load %arg37[%c0_145, %c0_146] : memref<1x32xf32, #tpu.memory_space<vmem>>, vector<1x32xf32>
    %c0_147 = arith.constant 0 : index
    %c0_148 = arith.constant 0 : index
    %321 = vector.load %arg38[%c0_147, %c0_148] : memref<1x32xf32, #tpu.memory_space<vmem>>, vector<1x32xf32>
    %c0_149 = arith.constant 0 : index
    %c0_150 = arith.constant 0 : index
    %322 = vector.load %arg39[%c0_149, %c0_150] : memref<1x32xf32, #tpu.memory_space<vmem>>, vector<1x32xf32>
    %cst_151 = arith.constant dense<0.000000e+00> : vector<16x96xf32>
    %323 = tpu.matmul %310, %311, %cst_151 {dimension_numbers = #tpu.dot_dimension_numbers<[1], [0], [0], [1], [0, 0, 1, 1], [], []>} : vector<16x32xf32>, vector<32x96xf32>, vector<16x96xf32> -> vector<16x96xf32>
    %324 = vector.broadcast %312 : vector<1x96xf32> to vector<16x96xf32>
    %325 = arith.addf %323, %324 : vector<16x96xf32>
    %326 = vector.extract_strided_slice %325 {offsets = [0, 0], sizes = [16, 32], strides = [1, 1]} : vector<16x96xf32> to vector<16x32xf32>
    %327 = vector.extract_strided_slice %325 {offsets = [0, 32], sizes = [16, 32], strides = [1, 1]} : vector<16x96xf32> to vector<16x32xf32>
    %328 = vector.extract_strided_slice %325 {offsets = [0, 64], sizes = [16, 32], strides = [1, 1]} : vector<16x96xf32> to vector<16x32xf32>
    %329 = vector.shape_cast %326 : vector<16x32xf32> to vector<2x8x32xf32>
    %330 = vector.shape_cast %327 : vector<16x32xf32> to vector<2x8x32xf32>
    %331 = vector.shape_cast %328 : vector<16x32xf32> to vector<2x8x32xf32>
    %cst_152 = arith.constant 0.000000e+00 : f32
    %332 = vector.broadcast %cst_152 : f32 to vector<16x32xf32>
    %333 = vector.extract_strided_slice %329 {offsets = [0, 0, 0], sizes = [2, 8, 8], strides = [1, 1, 1]} : vector<2x8x32xf32> to vector<2x8x8xf32>
    %334 = vector.extract_strided_slice %330 {offsets = [0, 0, 0], sizes = [2, 8, 8], strides = [1, 1, 1]} : vector<2x8x32xf32> to vector<2x8x8xf32>
    %335 = vector.extract_strided_slice %331 {offsets = [0, 0, 0], sizes = [2, 8, 8], strides = [1, 1, 1]} : vector<2x8x32xf32> to vector<2x8x8xf32>
    "tpu.trace_start"() <{level = 10 : i32, message = "bqd,bkd->bqk"}> : () -> ()
    %cst_153 = arith.constant dense<0.000000e+00> : vector<2x8x8xf32>
    %336 = tpu.matmul %333, %334, %cst_153 {dimension_numbers = #tpu.dot_dimension_numbers<[2], [2], [1], [1], [0, 0, 0, 1, 1, 1], [0], [0]>} : vector<2x8x8xf32>, vector<2x8x8xf32>, vector<2x8x8xf32> -> vector<2x8x8xf32>
    "tpu.trace_stop"() : () -> ()
    %cst_154 = arith.constant dense<0xFF800000> : vector<2x8xf32>
    %337 = vector.multi_reduction <maximumf>, %336, %cst_154 [2] : vector<2x8x8xf32> to vector<2x8xf32>
    %338 = vector.shape_cast %337 : vector<2x8xf32> to vector<2x8x1xf32>
    %339 = vector.broadcast %338 : vector<2x8x1xf32> to vector<2x8x8xf32>
    %340 = arith.subf %336, %339 : vector<2x8x8xf32>
    %341 = math.exp %340 : vector<2x8x8xf32>
    %cst_155 = arith.constant dense<0.000000e+00> : vector<2x8xf32>
    %342 = vector.multi_reduction <add>, %341, %cst_155 [2] : vector<2x8x8xf32> to vector<2x8xf32>
    %343 = vector.shape_cast %342 : vector<2x8xf32> to vector<2x8x1xf32>
    %344 = tpu.reciprocal %343 {approx = true} : vector<2x8x1xf32> -> vector<2x8x1xf32>
    %345 = vector.broadcast %344 : vector<2x8x1xf32> to vector<2x8x8xf32>
    %346 = arith.mulf %341, %345 : vector<2x8x8xf32>
    "tpu.trace_start"() <{level = 10 : i32, message = "bqk,bkd->bqd"}> : () -> ()
    %cst_156 = arith.constant dense<0.000000e+00> : vector<2x8x8xf32>
    %347 = tpu.matmul %346, %335, %cst_156 {dimension_numbers = #tpu.dot_dimension_numbers<[2], [1], [1], [2], [0, 0, 0, 1, 1, 2], [0], [0]>} : vector<2x8x8xf32>, vector<2x8x8xf32>, vector<2x8x8xf32> -> vector<2x8x8xf32>
    "tpu.trace_stop"() : () -> ()
    %348 = vector.shape_cast %347 : vector<2x8x8xf32> to vector<16x8xf32>
    %349 = vector.extract_strided_slice %313 {offsets = [0, 0], sizes = [8, 32], strides = [1, 1]} : vector<32x32xf32> to vector<8x32xf32>
    %cst_157 = arith.constant dense<0.000000e+00> : vector<16x32xf32>
    %350 = tpu.matmul %348, %349, %cst_157 {dimension_numbers = #tpu.dot_dimension_numbers<[1], [0], [0], [1], [0, 0, 1, 1], [], []>} : vector<16x8xf32>, vector<8x32xf32>, vector<16x32xf32> -> vector<16x32xf32>
    %351 = arith.addf %332, %350 : vector<16x32xf32>
    %352 = vector.extract_strided_slice %329 {offsets = [0, 0, 8], sizes = [2, 8, 8], strides = [1, 1, 1]} : vector<2x8x32xf32> to vector<2x8x8xf32>
    %353 = vector.extract_strided_slice %330 {offsets = [0, 0, 8], sizes = [2, 8, 8], strides = [1, 1, 1]} : vector<2x8x32xf32> to vector<2x8x8xf32>
    %354 = vector.extract_strided_slice %331 {offsets = [0, 0, 8], sizes = [2, 8, 8], strides = [1, 1, 1]} : vector<2x8x32xf32> to vector<2x8x8xf32>
    "tpu.trace_start"() <{level = 10 : i32, message = "bqd,bkd->bqk"}> : () -> ()
    %cst_158 = arith.constant dense<0.000000e+00> : vector<2x8x8xf32>
    %355 = tpu.matmul %352, %353, %cst_158 {dimension_numbers = #tpu.dot_dimension_numbers<[2], [2], [1], [1], [0, 0, 0, 1, 1, 1], [0], [0]>} : vector<2x8x8xf32>, vector<2x8x8xf32>, vector<2x8x8xf32> -> vector<2x8x8xf32>
    "tpu.trace_stop"() : () -> ()
    %cst_159 = arith.constant dense<0xFF800000> : vector<2x8xf32>
    %356 = vector.multi_reduction <maximumf>, %355, %cst_159 [2] : vector<2x8x8xf32> to vector<2x8xf32>
    %357 = vector.shape_cast %356 : vector<2x8xf32> to vector<2x8x1xf32>
    %358 = vector.broadcast %357 : vector<2x8x1xf32> to vector<2x8x8xf32>
    %359 = arith.subf %355, %358 : vector<2x8x8xf32>
    %360 = math.exp %359 : vector<2x8x8xf32>
    %cst_160 = arith.constant dense<0.000000e+00> : vector<2x8xf32>
    %361 = vector.multi_reduction <add>, %360, %cst_160 [2] : vector<2x8x8xf32> to vector<2x8xf32>
    %362 = vector.shape_cast %361 : vector<2x8xf32> to vector<2x8x1xf32>
    %363 = tpu.reciprocal %362 {approx = true} : vector<2x8x1xf32> -> vector<2x8x1xf32>
    %364 = vector.broadcast %363 : vector<2x8x1xf32> to vector<2x8x8xf32>
    %365 = arith.mulf %360, %364 : vector<2x8x8xf32>
    "tpu.trace_start"() <{level = 10 : i32, message = "bqk,bkd->bqd"}> : () -> ()
    %cst_161 = arith.constant dense<0.000000e+00> : vector<2x8x8xf32>
    %366 = tpu.matmul %365, %354, %cst_161 {dimension_numbers = #tpu.dot_dimension_numbers<[2], [1], [1], [2], [0, 0, 0, 1, 1, 2], [0], [0]>} : vector<2x8x8xf32>, vector<2x8x8xf32>, vector<2x8x8xf32> -> vector<2x8x8xf32>
    "tpu.trace_stop"() : () -> ()
    %367 = vector.shape_cast %366 : vector<2x8x8xf32> to vector<16x8xf32>
    %368 = vector.extract_strided_slice %313 {offsets = [8, 0], sizes = [8, 32], strides = [1, 1]} : vector<32x32xf32> to vector<8x32xf32>
    %cst_162 = arith.constant dense<0.000000e+00> : vector<16x32xf32>
    %369 = tpu.matmul %367, %368, %cst_162 {dimension_numbers = #tpu.dot_dimension_numbers<[1], [0], [0], [1], [0, 0, 1, 1], [], []>} : vector<16x8xf32>, vector<8x32xf32>, vector<16x32xf32> -> vector<16x32xf32>
    %370 = arith.addf %351, %369 : vector<16x32xf32>
    %371 = vector.extract_strided_slice %329 {offsets = [0, 0, 16], sizes = [2, 8, 8], strides = [1, 1, 1]} : vector<2x8x32xf32> to vector<2x8x8xf32>
    %372 = vector.extract_strided_slice %330 {offsets = [0, 0, 16], sizes = [2, 8, 8], strides = [1, 1, 1]} : vector<2x8x32xf32> to vector<2x8x8xf32>
    %373 = vector.extract_strided_slice %331 {offsets = [0, 0, 16], sizes = [2, 8, 8], strides = [1, 1, 1]} : vector<2x8x32xf32> to vector<2x8x8xf32>
    "tpu.trace_start"() <{level = 10 : i32, message = "bqd,bkd->bqk"}> : () -> ()
    %cst_163 = arith.constant dense<0.000000e+00> : vector<2x8x8xf32>
    %374 = tpu.matmul %371, %372, %cst_163 {dimension_numbers = #tpu.dot_dimension_numbers<[2], [2], [1], [1], [0, 0, 0, 1, 1, 1], [0], [0]>} : vector<2x8x8xf32>, vector<2x8x8xf32>, vector<2x8x8xf32> -> vector<2x8x8xf32>
    "tpu.trace_stop"() : () -> ()
    %cst_164 = arith.constant dense<0xFF800000> : vector<2x8xf32>
    %375 = vector.multi_reduction <maximumf>, %374, %cst_164 [2] : vector<2x8x8xf32> to vector<2x8xf32>
    %376 = vector.shape_cast %375 : vector<2x8xf32> to vector<2x8x1xf32>
    %377 = vector.broadcast %376 : vector<2x8x1xf32> to vector<2x8x8xf32>
    %378 = arith.subf %374, %377 : vector<2x8x8xf32>
    %379 = math.exp %378 : vector<2x8x8xf32>
    %cst_165 = arith.constant dense<0.000000e+00> : vector<2x8xf32>
    %380 = vector.multi_reduction <add>, %379, %cst_165 [2] : vector<2x8x8xf32> to vector<2x8xf32>
    %381 = vector.shape_cast %380 : vector<2x8xf32> to vector<2x8x1xf32>
    %382 = tpu.reciprocal %381 {approx = true} : vector<2x8x1xf32> -> vector<2x8x1xf32>
    %383 = vector.broadcast %382 : vector<2x8x1xf32> to vector<2x8x8xf32>
    %384 = arith.mulf %379, %383 : vector<2x8x8xf32>
    "tpu.trace_start"() <{level = 10 : i32, message = "bqk,bkd->bqd"}> : () -> ()
    %cst_166 = arith.constant dense<0.000000e+00> : vector<2x8x8xf32>
    %385 = tpu.matmul %384, %373, %cst_166 {dimension_numbers = #tpu.dot_dimension_numbers<[2], [1], [1], [2], [0, 0, 0, 1, 1, 2], [0], [0]>} : vector<2x8x8xf32>, vector<2x8x8xf32>, vector<2x8x8xf32> -> vector<2x8x8xf32>
    "tpu.trace_stop"() : () -> ()
    %386 = vector.shape_cast %385 : vector<2x8x8xf32> to vector<16x8xf32>
    %387 = vector.extract_strided_slice %313 {offsets = [16, 0], sizes = [8, 32], strides = [1, 1]} : vector<32x32xf32> to vector<8x32xf32>
    %cst_167 = arith.constant dense<0.000000e+00> : vector<16x32xf32>
    %388 = tpu.matmul %386, %387, %cst_167 {dimension_numbers = #tpu.dot_dimension_numbers<[1], [0], [0], [1], [0, 0, 1, 1], [], []>} : vector<16x8xf32>, vector<8x32xf32>, vector<16x32xf32> -> vector<16x32xf32>
    %389 = arith.addf %370, %388 : vector<16x32xf32>
    %390 = vector.extract_strided_slice %329 {offsets = [0, 0, 24], sizes = [2, 8, 8], strides = [1, 1, 1]} : vector<2x8x32xf32> to vector<2x8x8xf32>
    %391 = vector.extract_strided_slice %330 {offsets = [0, 0, 24], sizes = [2, 8, 8], strides = [1, 1, 1]} : vector<2x8x32xf32> to vector<2x8x8xf32>
    %392 = vector.extract_strided_slice %331 {offsets = [0, 0, 24], sizes = [2, 8, 8], strides = [1, 1, 1]} : vector<2x8x32xf32> to vector<2x8x8xf32>
    "tpu.trace_start"() <{level = 10 : i32, message = "bqd,bkd->bqk"}> : () -> ()
    %cst_168 = arith.constant dense<0.000000e+00> : vector<2x8x8xf32>
    %393 = tpu.matmul %390, %391, %cst_168 {dimension_numbers = #tpu.dot_dimension_numbers<[2], [2], [1], [1], [0, 0, 0, 1, 1, 1], [0], [0]>} : vector<2x8x8xf32>, vector<2x8x8xf32>, vector<2x8x8xf32> -> vector<2x8x8xf32>
    "tpu.trace_stop"() : () -> ()
    %cst_169 = arith.constant dense<0xFF800000> : vector<2x8xf32>
    %394 = vector.multi_reduction <maximumf>, %393, %cst_169 [2] : vector<2x8x8xf32> to vector<2x8xf32>
    %395 = vector.shape_cast %394 : vector<2x8xf32> to vector<2x8x1xf32>
    %396 = vector.broadcast %395 : vector<2x8x1xf32> to vector<2x8x8xf32>
    %397 = arith.subf %393, %396 : vector<2x8x8xf32>
    %398 = math.exp %397 : vector<2x8x8xf32>
    %cst_170 = arith.constant dense<0.000000e+00> : vector<2x8xf32>
    %399 = vector.multi_reduction <add>, %398, %cst_170 [2] : vector<2x8x8xf32> to vector<2x8xf32>
    %400 = vector.shape_cast %399 : vector<2x8xf32> to vector<2x8x1xf32>
    %401 = tpu.reciprocal %400 {approx = true} : vector<2x8x1xf32> -> vector<2x8x1xf32>
    %402 = vector.broadcast %401 : vector<2x8x1xf32> to vector<2x8x8xf32>
    %403 = arith.mulf %398, %402 : vector<2x8x8xf32>
    "tpu.trace_start"() <{level = 10 : i32, message = "bqk,bkd->bqd"}> : () -> ()
    %cst_171 = arith.constant dense<0.000000e+00> : vector<2x8x8xf32>
    %404 = tpu.matmul %403, %392, %cst_171 {dimension_numbers = #tpu.dot_dimension_numbers<[2], [1], [1], [2], [0, 0, 0, 1, 1, 2], [0], [0]>} : vector<2x8x8xf32>, vector<2x8x8xf32>, vector<2x8x8xf32> -> vector<2x8x8xf32>
    "tpu.trace_stop"() : () -> ()
    %405 = vector.shape_cast %404 : vector<2x8x8xf32> to vector<16x8xf32>
    %406 = vector.extract_strided_slice %313 {offsets = [24, 0], sizes = [8, 32], strides = [1, 1]} : vector<32x32xf32> to vector<8x32xf32>
    %cst_172 = arith.constant dense<0.000000e+00> : vector<16x32xf32>
    %407 = tpu.matmul %405, %406, %cst_172 {dimension_numbers = #tpu.dot_dimension_numbers<[1], [0], [0], [1], [0, 0, 1, 1], [], []>} : vector<16x8xf32>, vector<8x32xf32>, vector<16x32xf32> -> vector<16x32xf32>
    %408 = arith.addf %389, %407 : vector<16x32xf32>
    %409 = vector.broadcast %314 : vector<1x32xf32> to vector<16x32xf32>
    %410 = arith.addf %408, %409 : vector<16x32xf32>
    %411 = arith.addf %310, %410 : vector<16x32xf32>
    %cst_173 = arith.constant dense<0.000000e+00> : vector<16xf32>
    %412 = vector.multi_reduction <add>, %411, %cst_173 [1] : vector<16x32xf32> to vector<16xf32>
    %413 = vector.shape_cast %412 : vector<16xf32> to vector<16x1xf32>
    %cst_174 = arith.constant 3.200000e+01 : f32
    %414 = vector.broadcast %cst_174 : f32 to vector<16x1xf32>
    %415 = arith.divf %413, %414 : vector<16x1xf32>
    %416 = vector.broadcast %415 : vector<16x1xf32> to vector<16x32xf32>
    %417 = arith.subf %411, %416 : vector<16x32xf32>
    %418 = arith.mulf %417, %417 : vector<16x32xf32>
    %cst_175 = arith.constant dense<0.000000e+00> : vector<16xf32>
    %419 = vector.multi_reduction <add>, %418, %cst_175 [1] : vector<16x32xf32> to vector<16xf32>
    %420 = vector.shape_cast %419 : vector<16xf32> to vector<16x1xf32>
    %cst_176 = arith.constant 3.200000e+01 : f32
    %421 = vector.broadcast %cst_176 : f32 to vector<16x1xf32>
    %422 = arith.divf %420, %421 : vector<16x1xf32>
    %cst_177 = arith.constant 9.99999974E-6 : f32
    %423 = vector.broadcast %cst_177 : f32 to vector<16x1xf32>
    %424 = arith.addf %422, %423 : vector<16x1xf32>
    %425 = math.rsqrt %424 : vector<16x1xf32>
    %426 = vector.broadcast %425 : vector<16x1xf32> to vector<16x32xf32>
    %427 = arith.mulf %417, %426 : vector<16x32xf32>
    %428 = vector.broadcast %315 : vector<1x32xf32> to vector<16x32xf32>
    %429 = arith.mulf %427, %428 : vector<16x32xf32>
    %430 = vector.broadcast %316 : vector<1x32xf32> to vector<16x32xf32>
    %431 = arith.addf %429, %430 : vector<16x32xf32>
    %cst_178 = arith.constant dense<0.000000e+00> : vector<16x64xf32>
    %432 = tpu.matmul %431, %317, %cst_178 {dimension_numbers = #tpu.dot_dimension_numbers<[1], [0], [0], [1], [0, 0, 1, 1], [], []>} : vector<16x32xf32>, vector<32x64xf32>, vector<16x64xf32> -> vector<16x64xf32>
    %433 = vector.broadcast %318 : vector<1x64xf32> to vector<16x64xf32>
    %434 = arith.addf %432, %433 : vector<16x64xf32>
    %cst_179 = arith.constant 0.000000e+00 : f32
    %435 = vector.broadcast %cst_179 : f32 to vector<16x64xf32>
    %436 = arith.maximumf %434, %435 : vector<16x64xf32>
    %cst_180 = arith.constant dense<0.000000e+00> : vector<16x32xf32>
    %437 = tpu.matmul %436, %319, %cst_180 {dimension_numbers = #tpu.dot_dimension_numbers<[1], [0], [0], [1], [0, 0, 1, 1], [], []>} : vector<16x64xf32>, vector<64x32xf32>, vector<16x32xf32> -> vector<16x32xf32>
    %438 = vector.broadcast %320 : vector<1x32xf32> to vector<16x32xf32>
    %439 = arith.addf %437, %438 : vector<16x32xf32>
    %440 = arith.addf %431, %439 : vector<16x32xf32>
    %cst_181 = arith.constant dense<0.000000e+00> : vector<16xf32>
    %441 = vector.multi_reduction <add>, %440, %cst_181 [1] : vector<16x32xf32> to vector<16xf32>
    %442 = vector.shape_cast %441 : vector<16xf32> to vector<16x1xf32>
    %cst_182 = arith.constant 3.200000e+01 : f32
    %443 = vector.broadcast %cst_182 : f32 to vector<16x1xf32>
    %444 = arith.divf %442, %443 : vector<16x1xf32>
    %445 = vector.broadcast %444 : vector<16x1xf32> to vector<16x32xf32>
    %446 = arith.subf %440, %445 : vector<16x32xf32>
    %447 = arith.mulf %446, %446 : vector<16x32xf32>
    %cst_183 = arith.constant dense<0.000000e+00> : vector<16xf32>
    %448 = vector.multi_reduction <add>, %447, %cst_183 [1] : vector<16x32xf32> to vector<16xf32>
    %449 = vector.shape_cast %448 : vector<16xf32> to vector<16x1xf32>
    %cst_184 = arith.constant 3.200000e+01 : f32
    %450 = vector.broadcast %cst_184 : f32 to vector<16x1xf32>
    %451 = arith.divf %449, %450 : vector<16x1xf32>
    %cst_185 = arith.constant 9.99999974E-6 : f32
    %452 = vector.broadcast %cst_185 : f32 to vector<16x1xf32>
    %453 = arith.addf %451, %452 : vector<16x1xf32>
    %454 = math.rsqrt %453 : vector<16x1xf32>
    %455 = vector.broadcast %454 : vector<16x1xf32> to vector<16x32xf32>
    %456 = arith.mulf %446, %455 : vector<16x32xf32>
    %457 = vector.broadcast %321 : vector<1x32xf32> to vector<16x32xf32>
    %458 = arith.mulf %456, %457 : vector<16x32xf32>
    %459 = vector.broadcast %322 : vector<1x32xf32> to vector<16x32xf32>
    %460 = arith.addf %458, %459 : vector<16x32xf32>
    %461 = tpu.iota {dimensions = array<i32: 1>} : vector<16x128xi32>
    %462 = vector.broadcast %1 : vector<16x1xi32> to vector<16x128xi32>
    %463 = arith.cmpi eq, %461, %462 : vector<16x128xi32>
    %cst_186 = arith.constant 1.000000e+00 : f32
    %cst_187 = arith.constant 0.000000e+00 : f32
    %464 = vector.broadcast %cst_186 : f32 to vector<16x128xf32>
    %465 = vector.broadcast %cst_187 : f32 to vector<16x128xf32>
    %466 = arith.select %463, %464, %465 : vector<16x128xi1>, vector<16x128xf32>
    %cst_188 = arith.constant dense<0.000000e+00> : vector<16x32xf32>
    %467 = tpu.matmul %466, %2, %cst_188 {dimension_numbers = #tpu.dot_dimension_numbers<[1], [0], [0], [1], [0, 0, 1, 1], [], []>} : vector<16x128xf32>, vector<128x32xf32>, vector<16x32xf32> -> vector<16x32xf32>
    %c0_189 = arith.constant 0 : index
    %c0_190 = arith.constant 0 : index
    %468 = vector.load %arg40[%c0_189, %c0_190] : memref<32x96xf32, #tpu.memory_space<vmem>>, vector<32x96xf32>
    %c0_191 = arith.constant 0 : index
    %c0_192 = arith.constant 0 : index
    %469 = vector.load %arg41[%c0_191, %c0_192] : memref<1x96xf32, #tpu.memory_space<vmem>>, vector<1x96xf32>
    %c0_193 = arith.constant 0 : index
    %c0_194 = arith.constant 0 : index
    %470 = vector.load %arg42[%c0_193, %c0_194] : memref<32x32xf32, #tpu.memory_space<vmem>>, vector<32x32xf32>
    %c0_195 = arith.constant 0 : index
    %c0_196 = arith.constant 0 : index
    %471 = vector.load %arg43[%c0_195, %c0_196] : memref<1x32xf32, #tpu.memory_space<vmem>>, vector<1x32xf32>
    %c0_197 = arith.constant 0 : index
    %c0_198 = arith.constant 0 : index
    %472 = vector.load %arg44[%c0_197, %c0_198] : memref<1x32xf32, #tpu.memory_space<vmem>>, vector<1x32xf32>
    %c0_199 = arith.constant 0 : index
    %c0_200 = arith.constant 0 : index
    %473 = vector.load %arg45[%c0_199, %c0_200] : memref<1x32xf32, #tpu.memory_space<vmem>>, vector<1x32xf32>
    %c0_201 = arith.constant 0 : index
    %c0_202 = arith.constant 0 : index
    %474 = vector.load %arg46[%c0_201, %c0_202] : memref<32x32xf32, #tpu.memory_space<vmem>>, vector<32x32xf32>
    %c0_203 = arith.constant 0 : index
    %c0_204 = arith.constant 0 : index
    %475 = vector.load %arg47[%c0_203, %c0_204] : memref<1x32xf32, #tpu.memory_space<vmem>>, vector<1x32xf32>
    %c0_205 = arith.constant 0 : index
    %c0_206 = arith.constant 0 : index
    %476 = vector.load %arg48[%c0_205, %c0_206] : memref<32x64xf32, #tpu.memory_space<vmem>>, vector<32x64xf32>
    %c0_207 = arith.constant 0 : index
    %c0_208 = arith.constant 0 : index
    %477 = vector.load %arg49[%c0_207, %c0_208] : memref<1x64xf32, #tpu.memory_space<vmem>>, vector<1x64xf32>
    %c0_209 = arith.constant 0 : index
    %c0_210 = arith.constant 0 : index
    %478 = vector.load %arg50[%c0_209, %c0_210] : memref<32x32xf32, #tpu.memory_space<vmem>>, vector<32x32xf32>
    %c0_211 = arith.constant 0 : index
    %c0_212 = arith.constant 0 : index
    %479 = vector.load %arg51[%c0_211, %c0_212] : memref<1x32xf32, #tpu.memory_space<vmem>>, vector<1x32xf32>
    %c0_213 = arith.constant 0 : index
    %c0_214 = arith.constant 0 : index
    %480 = vector.load %arg52[%c0_213, %c0_214] : memref<1x32xf32, #tpu.memory_space<vmem>>, vector<1x32xf32>
    %c0_215 = arith.constant 0 : index
    %c0_216 = arith.constant 0 : index
    %481 = vector.load %arg53[%c0_215, %c0_216] : memref<1x32xf32, #tpu.memory_space<vmem>>, vector<1x32xf32>
    %c0_217 = arith.constant 0 : index
    %c0_218 = arith.constant 0 : index
    %482 = vector.load %arg54[%c0_217, %c0_218] : memref<32x64xf32, #tpu.memory_space<vmem>>, vector<32x64xf32>
    %c0_219 = arith.constant 0 : index
    %c0_220 = arith.constant 0 : index
    %483 = vector.load %arg55[%c0_219, %c0_220] : memref<1x64xf32, #tpu.memory_space<vmem>>, vector<1x64xf32>
    %c0_221 = arith.constant 0 : index
    %c0_222 = arith.constant 0 : index
    %484 = vector.load %arg56[%c0_221, %c0_222] : memref<64x32xf32, #tpu.memory_space<vmem>>, vector<64x32xf32>
    %c0_223 = arith.constant 0 : index
    %c0_224 = arith.constant 0 : index
    %485 = vector.load %arg57[%c0_223, %c0_224] : memref<1x32xf32, #tpu.memory_space<vmem>>, vector<1x32xf32>
    %c0_225 = arith.constant 0 : index
    %c0_226 = arith.constant 0 : index
    %486 = vector.load %arg58[%c0_225, %c0_226] : memref<1x32xf32, #tpu.memory_space<vmem>>, vector<1x32xf32>
    %c0_227 = arith.constant 0 : index
    %c0_228 = arith.constant 0 : index
    %487 = vector.load %arg59[%c0_227, %c0_228] : memref<1x32xf32, #tpu.memory_space<vmem>>, vector<1x32xf32>
    %cst_229 = arith.constant dense<0.000000e+00> : vector<16x96xf32>
    %488 = tpu.matmul %467, %468, %cst_229 {dimension_numbers = #tpu.dot_dimension_numbers<[1], [0], [0], [1], [0, 0, 1, 1], [], []>} : vector<16x32xf32>, vector<32x96xf32>, vector<16x96xf32> -> vector<16x96xf32>
    %489 = vector.broadcast %469 : vector<1x96xf32> to vector<16x96xf32>
    %490 = arith.addf %488, %489 : vector<16x96xf32>
    %491 = vector.extract_strided_slice %490 {offsets = [0, 0], sizes = [16, 32], strides = [1, 1]} : vector<16x96xf32> to vector<16x32xf32>
    %492 = vector.extract_strided_slice %490 {offsets = [0, 32], sizes = [16, 32], strides = [1, 1]} : vector<16x96xf32> to vector<16x32xf32>
    %493 = vector.extract_strided_slice %490 {offsets = [0, 64], sizes = [16, 32], strides = [1, 1]} : vector<16x96xf32> to vector<16x32xf32>
    %494 = vector.shape_cast %491 : vector<16x32xf32> to vector<2x8x32xf32>
    %495 = vector.shape_cast %492 : vector<16x32xf32> to vector<2x8x32xf32>
    %496 = vector.shape_cast %493 : vector<16x32xf32> to vector<2x8x32xf32>
    %cst_230 = arith.constant 0.000000e+00 : f32
    %497 = vector.broadcast %cst_230 : f32 to vector<16x32xf32>
    %498 = vector.extract_strided_slice %494 {offsets = [0, 0, 0], sizes = [2, 8, 8], strides = [1, 1, 1]} : vector<2x8x32xf32> to vector<2x8x8xf32>
    %499 = vector.extract_strided_slice %495 {offsets = [0, 0, 0], sizes = [2, 8, 8], strides = [1, 1, 1]} : vector<2x8x32xf32> to vector<2x8x8xf32>
    %500 = vector.extract_strided_slice %496 {offsets = [0, 0, 0], sizes = [2, 8, 8], strides = [1, 1, 1]} : vector<2x8x32xf32> to vector<2x8x8xf32>
    "tpu.trace_start"() <{level = 10 : i32, message = "bqd,bkd->bqk"}> : () -> ()
    %cst_231 = arith.constant dense<0.000000e+00> : vector<2x8x8xf32>
    %501 = tpu.matmul %498, %499, %cst_231 {dimension_numbers = #tpu.dot_dimension_numbers<[2], [2], [1], [1], [0, 0, 0, 1, 1, 1], [0], [0]>} : vector<2x8x8xf32>, vector<2x8x8xf32>, vector<2x8x8xf32> -> vector<2x8x8xf32>
    "tpu.trace_stop"() : () -> ()
    %cst_232 = arith.constant dense<0xFF800000> : vector<2x8xf32>
    %502 = vector.multi_reduction <maximumf>, %501, %cst_232 [2] : vector<2x8x8xf32> to vector<2x8xf32>
    %503 = vector.shape_cast %502 : vector<2x8xf32> to vector<2x8x1xf32>
    %504 = vector.broadcast %503 : vector<2x8x1xf32> to vector<2x8x8xf32>
    %505 = arith.subf %501, %504 : vector<2x8x8xf32>
    %506 = math.exp %505 : vector<2x8x8xf32>
    %cst_233 = arith.constant dense<0.000000e+00> : vector<2x8xf32>
    %507 = vector.multi_reduction <add>, %506, %cst_233 [2] : vector<2x8x8xf32> to vector<2x8xf32>
    %508 = vector.shape_cast %507 : vector<2x8xf32> to vector<2x8x1xf32>
    %509 = tpu.reciprocal %508 {approx = true} : vector<2x8x1xf32> -> vector<2x8x1xf32>
    %510 = vector.broadcast %509 : vector<2x8x1xf32> to vector<2x8x8xf32>
    %511 = arith.mulf %506, %510 : vector<2x8x8xf32>
    "tpu.trace_start"() <{level = 10 : i32, message = "bqk,bkd->bqd"}> : () -> ()
    %cst_234 = arith.constant dense<0.000000e+00> : vector<2x8x8xf32>
    %512 = tpu.matmul %511, %500, %cst_234 {dimension_numbers = #tpu.dot_dimension_numbers<[2], [1], [1], [2], [0, 0, 0, 1, 1, 2], [0], [0]>} : vector<2x8x8xf32>, vector<2x8x8xf32>, vector<2x8x8xf32> -> vector<2x8x8xf32>
    "tpu.trace_stop"() : () -> ()
    %513 = vector.shape_cast %512 : vector<2x8x8xf32> to vector<16x8xf32>
    %514 = vector.extract_strided_slice %470 {offsets = [0, 0], sizes = [8, 32], strides = [1, 1]} : vector<32x32xf32> to vector<8x32xf32>
    %cst_235 = arith.constant dense<0.000000e+00> : vector<16x32xf32>
    %515 = tpu.matmul %513, %514, %cst_235 {dimension_numbers = #tpu.dot_dimension_numbers<[1], [0], [0], [1], [0, 0, 1, 1], [], []>} : vector<16x8xf32>, vector<8x32xf32>, vector<16x32xf32> -> vector<16x32xf32>
    %516 = arith.addf %497, %515 : vector<16x32xf32>
    %517 = vector.extract_strided_slice %494 {offsets = [0, 0, 8], sizes = [2, 8, 8], strides = [1, 1, 1]} : vector<2x8x32xf32> to vector<2x8x8xf32>
    %518 = vector.extract_strided_slice %495 {offsets = [0, 0, 8], sizes = [2, 8, 8], strides = [1, 1, 1]} : vector<2x8x32xf32> to vector<2x8x8xf32>
    %519 = vector.extract_strided_slice %496 {offsets = [0, 0, 8], sizes = [2, 8, 8], strides = [1, 1, 1]} : vector<2x8x32xf32> to vector<2x8x8xf32>
    "tpu.trace_start"() <{level = 10 : i32, message = "bqd,bkd->bqk"}> : () -> ()
    %cst_236 = arith.constant dense<0.000000e+00> : vector<2x8x8xf32>
    %520 = tpu.matmul %517, %518, %cst_236 {dimension_numbers = #tpu.dot_dimension_numbers<[2], [2], [1], [1], [0, 0, 0, 1, 1, 1], [0], [0]>} : vector<2x8x8xf32>, vector<2x8x8xf32>, vector<2x8x8xf32> -> vector<2x8x8xf32>
    "tpu.trace_stop"() : () -> ()
    %cst_237 = arith.constant dense<0xFF800000> : vector<2x8xf32>
    %521 = vector.multi_reduction <maximumf>, %520, %cst_237 [2] : vector<2x8x8xf32> to vector<2x8xf32>
    %522 = vector.shape_cast %521 : vector<2x8xf32> to vector<2x8x1xf32>
    %523 = vector.broadcast %522 : vector<2x8x1xf32> to vector<2x8x8xf32>
    %524 = arith.subf %520, %523 : vector<2x8x8xf32>
    %525 = math.exp %524 : vector<2x8x8xf32>
    %cst_238 = arith.constant dense<0.000000e+00> : vector<2x8xf32>
    %526 = vector.multi_reduction <add>, %525, %cst_238 [2] : vector<2x8x8xf32> to vector<2x8xf32>
    %527 = vector.shape_cast %526 : vector<2x8xf32> to vector<2x8x1xf32>
    %528 = tpu.reciprocal %527 {approx = true} : vector<2x8x1xf32> -> vector<2x8x1xf32>
    %529 = vector.broadcast %528 : vector<2x8x1xf32> to vector<2x8x8xf32>
    %530 = arith.mulf %525, %529 : vector<2x8x8xf32>
    "tpu.trace_start"() <{level = 10 : i32, message = "bqk,bkd->bqd"}> : () -> ()
    %cst_239 = arith.constant dense<0.000000e+00> : vector<2x8x8xf32>
    %531 = tpu.matmul %530, %519, %cst_239 {dimension_numbers = #tpu.dot_dimension_numbers<[2], [1], [1], [2], [0, 0, 0, 1, 1, 2], [0], [0]>} : vector<2x8x8xf32>, vector<2x8x8xf32>, vector<2x8x8xf32> -> vector<2x8x8xf32>
    "tpu.trace_stop"() : () -> ()
    %532 = vector.shape_cast %531 : vector<2x8x8xf32> to vector<16x8xf32>
    %533 = vector.extract_strided_slice %470 {offsets = [8, 0], sizes = [8, 32], strides = [1, 1]} : vector<32x32xf32> to vector<8x32xf32>
    %cst_240 = arith.constant dense<0.000000e+00> : vector<16x32xf32>
    %534 = tpu.matmul %532, %533, %cst_240 {dimension_numbers = #tpu.dot_dimension_numbers<[1], [0], [0], [1], [0, 0, 1, 1], [], []>} : vector<16x8xf32>, vector<8x32xf32>, vector<16x32xf32> -> vector<16x32xf32>
    %535 = arith.addf %516, %534 : vector<16x32xf32>
    %536 = vector.extract_strided_slice %494 {offsets = [0, 0, 16], sizes = [2, 8, 8], strides = [1, 1, 1]} : vector<2x8x32xf32> to vector<2x8x8xf32>
    %537 = vector.extract_strided_slice %495 {offsets = [0, 0, 16], sizes = [2, 8, 8], strides = [1, 1, 1]} : vector<2x8x32xf32> to vector<2x8x8xf32>
    %538 = vector.extract_strided_slice %496 {offsets = [0, 0, 16], sizes = [2, 8, 8], strides = [1, 1, 1]} : vector<2x8x32xf32> to vector<2x8x8xf32>
    "tpu.trace_start"() <{level = 10 : i32, message = "bqd,bkd->bqk"}> : () -> ()
    %cst_241 = arith.constant dense<0.000000e+00> : vector<2x8x8xf32>
    %539 = tpu.matmul %536, %537, %cst_241 {dimension_numbers = #tpu.dot_dimension_numbers<[2], [2], [1], [1], [0, 0, 0, 1, 1, 1], [0], [0]>} : vector<2x8x8xf32>, vector<2x8x8xf32>, vector<2x8x8xf32> -> vector<2x8x8xf32>
    "tpu.trace_stop"() : () -> ()
    %cst_242 = arith.constant dense<0xFF800000> : vector<2x8xf32>
    %540 = vector.multi_reduction <maximumf>, %539, %cst_242 [2] : vector<2x8x8xf32> to vector<2x8xf32>
    %541 = vector.shape_cast %540 : vector<2x8xf32> to vector<2x8x1xf32>
    %542 = vector.broadcast %541 : vector<2x8x1xf32> to vector<2x8x8xf32>
    %543 = arith.subf %539, %542 : vector<2x8x8xf32>
    %544 = math.exp %543 : vector<2x8x8xf32>
    %cst_243 = arith.constant dense<0.000000e+00> : vector<2x8xf32>
    %545 = vector.multi_reduction <add>, %544, %cst_243 [2] : vector<2x8x8xf32> to vector<2x8xf32>
    %546 = vector.shape_cast %545 : vector<2x8xf32> to vector<2x8x1xf32>
    %547 = tpu.reciprocal %546 {approx = true} : vector<2x8x1xf32> -> vector<2x8x1xf32>
    %548 = vector.broadcast %547 : vector<2x8x1xf32> to vector<2x8x8xf32>
    %549 = arith.mulf %544, %548 : vector<2x8x8xf32>
    "tpu.trace_start"() <{level = 10 : i32, message = "bqk,bkd->bqd"}> : () -> ()
    %cst_244 = arith.constant dense<0.000000e+00> : vector<2x8x8xf32>
    %550 = tpu.matmul %549, %538, %cst_244 {dimension_numbers = #tpu.dot_dimension_numbers<[2], [1], [1], [2], [0, 0, 0, 1, 1, 2], [0], [0]>} : vector<2x8x8xf32>, vector<2x8x8xf32>, vector<2x8x8xf32> -> vector<2x8x8xf32>
    "tpu.trace_stop"() : () -> ()
    %551 = vector.shape_cast %550 : vector<2x8x8xf32> to vector<16x8xf32>
    %552 = vector.extract_strided_slice %470 {offsets = [16, 0], sizes = [8, 32], strides = [1, 1]} : vector<32x32xf32> to vector<8x32xf32>
    %cst_245 = arith.constant dense<0.000000e+00> : vector<16x32xf32>
    %553 = tpu.matmul %551, %552, %cst_245 {dimension_numbers = #tpu.dot_dimension_numbers<[1], [0], [0], [1], [0, 0, 1, 1], [], []>} : vector<16x8xf32>, vector<8x32xf32>, vector<16x32xf32> -> vector<16x32xf32>
    %554 = arith.addf %535, %553 : vector<16x32xf32>
    %555 = vector.extract_strided_slice %494 {offsets = [0, 0, 24], sizes = [2, 8, 8], strides = [1, 1, 1]} : vector<2x8x32xf32> to vector<2x8x8xf32>
    %556 = vector.extract_strided_slice %495 {offsets = [0, 0, 24], sizes = [2, 8, 8], strides = [1, 1, 1]} : vector<2x8x32xf32> to vector<2x8x8xf32>
    %557 = vector.extract_strided_slice %496 {offsets = [0, 0, 24], sizes = [2, 8, 8], strides = [1, 1, 1]} : vector<2x8x32xf32> to vector<2x8x8xf32>
    "tpu.trace_start"() <{level = 10 : i32, message = "bqd,bkd->bqk"}> : () -> ()
    %cst_246 = arith.constant dense<0.000000e+00> : vector<2x8x8xf32>
    %558 = tpu.matmul %555, %556, %cst_246 {dimension_numbers = #tpu.dot_dimension_numbers<[2], [2], [1], [1], [0, 0, 0, 1, 1, 1], [0], [0]>} : vector<2x8x8xf32>, vector<2x8x8xf32>, vector<2x8x8xf32> -> vector<2x8x8xf32>
    "tpu.trace_stop"() : () -> ()
    %cst_247 = arith.constant dense<0xFF800000> : vector<2x8xf32>
    %559 = vector.multi_reduction <maximumf>, %558, %cst_247 [2] : vector<2x8x8xf32> to vector<2x8xf32>
    %560 = vector.shape_cast %559 : vector<2x8xf32> to vector<2x8x1xf32>
    %561 = vector.broadcast %560 : vector<2x8x1xf32> to vector<2x8x8xf32>
    %562 = arith.subf %558, %561 : vector<2x8x8xf32>
    %563 = math.exp %562 : vector<2x8x8xf32>
    %cst_248 = arith.constant dense<0.000000e+00> : vector<2x8xf32>
    %564 = vector.multi_reduction <add>, %563, %cst_248 [2] : vector<2x8x8xf32> to vector<2x8xf32>
    %565 = vector.shape_cast %564 : vector<2x8xf32> to vector<2x8x1xf32>
    %566 = tpu.reciprocal %565 {approx = true} : vector<2x8x1xf32> -> vector<2x8x1xf32>
    %567 = vector.broadcast %566 : vector<2x8x1xf32> to vector<2x8x8xf32>
    %568 = arith.mulf %563, %567 : vector<2x8x8xf32>
    "tpu.trace_start"() <{level = 10 : i32, message = "bqk,bkd->bqd"}> : () -> ()
    %cst_249 = arith.constant dense<0.000000e+00> : vector<2x8x8xf32>
    %569 = tpu.matmul %568, %557, %cst_249 {dimension_numbers = #tpu.dot_dimension_numbers<[2], [1], [1], [2], [0, 0, 0, 1, 1, 2], [0], [0]>} : vector<2x8x8xf32>, vector<2x8x8xf32>, vector<2x8x8xf32> -> vector<2x8x8xf32>
    "tpu.trace_stop"() : () -> ()
    %570 = vector.shape_cast %569 : vector<2x8x8xf32> to vector<16x8xf32>
    %571 = vector.extract_strided_slice %470 {offsets = [24, 0], sizes = [8, 32], strides = [1, 1]} : vector<32x32xf32> to vector<8x32xf32>
    %cst_250 = arith.constant dense<0.000000e+00> : vector<16x32xf32>
    %572 = tpu.matmul %570, %571, %cst_250 {dimension_numbers = #tpu.dot_dimension_numbers<[1], [0], [0], [1], [0, 0, 1, 1], [], []>} : vector<16x8xf32>, vector<8x32xf32>, vector<16x32xf32> -> vector<16x32xf32>
    %573 = arith.addf %554, %572 : vector<16x32xf32>
    %574 = vector.broadcast %471 : vector<1x32xf32> to vector<16x32xf32>
    %575 = arith.addf %573, %574 : vector<16x32xf32>
    %576 = arith.addf %467, %575 : vector<16x32xf32>
    %cst_251 = arith.constant dense<0.000000e+00> : vector<16xf32>
    %577 = vector.multi_reduction <add>, %576, %cst_251 [1] : vector<16x32xf32> to vector<16xf32>
    %578 = vector.shape_cast %577 : vector<16xf32> to vector<16x1xf32>
    %cst_252 = arith.constant 3.200000e+01 : f32
    %579 = vector.broadcast %cst_252 : f32 to vector<16x1xf32>
    %580 = arith.divf %578, %579 : vector<16x1xf32>
    %581 = vector.broadcast %580 : vector<16x1xf32> to vector<16x32xf32>
    %582 = arith.subf %576, %581 : vector<16x32xf32>
    %583 = arith.mulf %582, %582 : vector<16x32xf32>
    %cst_253 = arith.constant dense<0.000000e+00> : vector<16xf32>
    %584 = vector.multi_reduction <add>, %583, %cst_253 [1] : vector<16x32xf32> to vector<16xf32>
    %585 = vector.shape_cast %584 : vector<16xf32> to vector<16x1xf32>
    %cst_254 = arith.constant 3.200000e+01 : f32
    %586 = vector.broadcast %cst_254 : f32 to vector<16x1xf32>
    %587 = arith.divf %585, %586 : vector<16x1xf32>
    %cst_255 = arith.constant 9.99999974E-6 : f32
    %588 = vector.broadcast %cst_255 : f32 to vector<16x1xf32>
    %589 = arith.addf %587, %588 : vector<16x1xf32>
    %590 = math.rsqrt %589 : vector<16x1xf32>
    %591 = vector.broadcast %590 : vector<16x1xf32> to vector<16x32xf32>
    %592 = arith.mulf %582, %591 : vector<16x32xf32>
    %593 = vector.broadcast %472 : vector<1x32xf32> to vector<16x32xf32>
    %594 = arith.mulf %592, %593 : vector<16x32xf32>
    %595 = vector.broadcast %473 : vector<1x32xf32> to vector<16x32xf32>
    %596 = arith.addf %594, %595 : vector<16x32xf32>
    %cst_256 = arith.constant dense<0.000000e+00> : vector<16x32xf32>
    %597 = tpu.matmul %596, %474, %cst_256 {dimension_numbers = #tpu.dot_dimension_numbers<[1], [0], [0], [1], [0, 0, 1, 1], [], []>} : vector<16x32xf32>, vector<32x32xf32>, vector<16x32xf32> -> vector<16x32xf32>
    %598 = vector.broadcast %475 : vector<1x32xf32> to vector<16x32xf32>
    %599 = arith.addf %597, %598 : vector<16x32xf32>
    %cst_257 = arith.constant dense<0.000000e+00> : vector<16x64xf32>
    %600 = tpu.matmul %460, %476, %cst_257 {dimension_numbers = #tpu.dot_dimension_numbers<[1], [0], [0], [1], [0, 0, 1, 1], [], []>} : vector<16x32xf32>, vector<32x64xf32>, vector<16x64xf32> -> vector<16x64xf32>
    %601 = vector.broadcast %477 : vector<1x64xf32> to vector<16x64xf32>
    %602 = arith.addf %600, %601 : vector<16x64xf32>
    %603 = vector.extract_strided_slice %602 {offsets = [0, 0], sizes = [16, 32], strides = [1, 1]} : vector<16x64xf32> to vector<16x32xf32>
    %604 = vector.extract_strided_slice %602 {offsets = [0, 32], sizes = [16, 32], strides = [1, 1]} : vector<16x64xf32> to vector<16x32xf32>
    %605 = vector.shape_cast %599 : vector<16x32xf32> to vector<2x8x32xf32>
    %606 = vector.shape_cast %603 : vector<16x32xf32> to vector<2x8x32xf32>
    %607 = vector.shape_cast %604 : vector<16x32xf32> to vector<2x8x32xf32>
    %cst_258 = arith.constant 0.000000e+00 : f32
    %608 = vector.broadcast %cst_258 : f32 to vector<16x32xf32>
    %609 = vector.extract_strided_slice %605 {offsets = [0, 0, 0], sizes = [2, 8, 8], strides = [1, 1, 1]} : vector<2x8x32xf32> to vector<2x8x8xf32>
    %610 = vector.extract_strided_slice %606 {offsets = [0, 0, 0], sizes = [2, 8, 8], strides = [1, 1, 1]} : vector<2x8x32xf32> to vector<2x8x8xf32>
    %611 = vector.extract_strided_slice %607 {offsets = [0, 0, 0], sizes = [2, 8, 8], strides = [1, 1, 1]} : vector<2x8x32xf32> to vector<2x8x8xf32>
    "tpu.trace_start"() <{level = 10 : i32, message = "bqd,bkd->bqk"}> : () -> ()
    %cst_259 = arith.constant dense<0.000000e+00> : vector<2x8x8xf32>
    %612 = tpu.matmul %609, %610, %cst_259 {dimension_numbers = #tpu.dot_dimension_numbers<[2], [2], [1], [1], [0, 0, 0, 1, 1, 1], [0], [0]>} : vector<2x8x8xf32>, vector<2x8x8xf32>, vector<2x8x8xf32> -> vector<2x8x8xf32>
    "tpu.trace_stop"() : () -> ()
    %cst_260 = arith.constant dense<0xFF800000> : vector<2x8xf32>
    %613 = vector.multi_reduction <maximumf>, %612, %cst_260 [2] : vector<2x8x8xf32> to vector<2x8xf32>
    %614 = vector.shape_cast %613 : vector<2x8xf32> to vector<2x8x1xf32>
    %615 = vector.broadcast %614 : vector<2x8x1xf32> to vector<2x8x8xf32>
    %616 = arith.subf %612, %615 : vector<2x8x8xf32>
    %617 = math.exp %616 : vector<2x8x8xf32>
    %cst_261 = arith.constant dense<0.000000e+00> : vector<2x8xf32>
    %618 = vector.multi_reduction <add>, %617, %cst_261 [2] : vector<2x8x8xf32> to vector<2x8xf32>
    %619 = vector.shape_cast %618 : vector<2x8xf32> to vector<2x8x1xf32>
    %620 = tpu.reciprocal %619 {approx = true} : vector<2x8x1xf32> -> vector<2x8x1xf32>
    %621 = vector.broadcast %620 : vector<2x8x1xf32> to vector<2x8x8xf32>
    %622 = arith.mulf %617, %621 : vector<2x8x8xf32>
    "tpu.trace_start"() <{level = 10 : i32, message = "bqk,bkd->bqd"}> : () -> ()
    %cst_262 = arith.constant dense<0.000000e+00> : vector<2x8x8xf32>
    %623 = tpu.matmul %622, %611, %cst_262 {dimension_numbers = #tpu.dot_dimension_numbers<[2], [1], [1], [2], [0, 0, 0, 1, 1, 2], [0], [0]>} : vector<2x8x8xf32>, vector<2x8x8xf32>, vector<2x8x8xf32> -> vector<2x8x8xf32>
    "tpu.trace_stop"() : () -> ()
    %624 = vector.shape_cast %623 : vector<2x8x8xf32> to vector<16x8xf32>
    %625 = vector.extract_strided_slice %478 {offsets = [0, 0], sizes = [8, 32], strides = [1, 1]} : vector<32x32xf32> to vector<8x32xf32>
    %cst_263 = arith.constant dense<0.000000e+00> : vector<16x32xf32>
    %626 = tpu.matmul %624, %625, %cst_263 {dimension_numbers = #tpu.dot_dimension_numbers<[1], [0], [0], [1], [0, 0, 1, 1], [], []>} : vector<16x8xf32>, vector<8x32xf32>, vector<16x32xf32> -> vector<16x32xf32>
    %627 = arith.addf %608, %626 : vector<16x32xf32>
    %628 = vector.extract_strided_slice %605 {offsets = [0, 0, 8], sizes = [2, 8, 8], strides = [1, 1, 1]} : vector<2x8x32xf32> to vector<2x8x8xf32>
    %629 = vector.extract_strided_slice %606 {offsets = [0, 0, 8], sizes = [2, 8, 8], strides = [1, 1, 1]} : vector<2x8x32xf32> to vector<2x8x8xf32>
    %630 = vector.extract_strided_slice %607 {offsets = [0, 0, 8], sizes = [2, 8, 8], strides = [1, 1, 1]} : vector<2x8x32xf32> to vector<2x8x8xf32>
    "tpu.trace_start"() <{level = 10 : i32, message = "bqd,bkd->bqk"}> : () -> ()
    %cst_264 = arith.constant dense<0.000000e+00> : vector<2x8x8xf32>
    %631 = tpu.matmul %628, %629, %cst_264 {dimension_numbers = #tpu.dot_dimension_numbers<[2], [2], [1], [1], [0, 0, 0, 1, 1, 1], [0], [0]>} : vector<2x8x8xf32>, vector<2x8x8xf32>, vector<2x8x8xf32> -> vector<2x8x8xf32>
    "tpu.trace_stop"() : () -> ()
    %cst_265 = arith.constant dense<0xFF800000> : vector<2x8xf32>
    %632 = vector.multi_reduction <maximumf>, %631, %cst_265 [2] : vector<2x8x8xf32> to vector<2x8xf32>
    %633 = vector.shape_cast %632 : vector<2x8xf32> to vector<2x8x1xf32>
    %634 = vector.broadcast %633 : vector<2x8x1xf32> to vector<2x8x8xf32>
    %635 = arith.subf %631, %634 : vector<2x8x8xf32>
    %636 = math.exp %635 : vector<2x8x8xf32>
    %cst_266 = arith.constant dense<0.000000e+00> : vector<2x8xf32>
    %637 = vector.multi_reduction <add>, %636, %cst_266 [2] : vector<2x8x8xf32> to vector<2x8xf32>
    %638 = vector.shape_cast %637 : vector<2x8xf32> to vector<2x8x1xf32>
    %639 = tpu.reciprocal %638 {approx = true} : vector<2x8x1xf32> -> vector<2x8x1xf32>
    %640 = vector.broadcast %639 : vector<2x8x1xf32> to vector<2x8x8xf32>
    %641 = arith.mulf %636, %640 : vector<2x8x8xf32>
    "tpu.trace_start"() <{level = 10 : i32, message = "bqk,bkd->bqd"}> : () -> ()
    %cst_267 = arith.constant dense<0.000000e+00> : vector<2x8x8xf32>
    %642 = tpu.matmul %641, %630, %cst_267 {dimension_numbers = #tpu.dot_dimension_numbers<[2], [1], [1], [2], [0, 0, 0, 1, 1, 2], [0], [0]>} : vector<2x8x8xf32>, vector<2x8x8xf32>, vector<2x8x8xf32> -> vector<2x8x8xf32>
    "tpu.trace_stop"() : () -> ()
    %643 = vector.shape_cast %642 : vector<2x8x8xf32> to vector<16x8xf32>
    %644 = vector.extract_strided_slice %478 {offsets = [8, 0], sizes = [8, 32], strides = [1, 1]} : vector<32x32xf32> to vector<8x32xf32>
    %cst_268 = arith.constant dense<0.000000e+00> : vector<16x32xf32>
    %645 = tpu.matmul %643, %644, %cst_268 {dimension_numbers = #tpu.dot_dimension_numbers<[1], [0], [0], [1], [0, 0, 1, 1], [], []>} : vector<16x8xf32>, vector<8x32xf32>, vector<16x32xf32> -> vector<16x32xf32>
    %646 = arith.addf %627, %645 : vector<16x32xf32>
    %647 = vector.extract_strided_slice %605 {offsets = [0, 0, 16], sizes = [2, 8, 8], strides = [1, 1, 1]} : vector<2x8x32xf32> to vector<2x8x8xf32>
    %648 = vector.extract_strided_slice %606 {offsets = [0, 0, 16], sizes = [2, 8, 8], strides = [1, 1, 1]} : vector<2x8x32xf32> to vector<2x8x8xf32>
    %649 = vector.extract_strided_slice %607 {offsets = [0, 0, 16], sizes = [2, 8, 8], strides = [1, 1, 1]} : vector<2x8x32xf32> to vector<2x8x8xf32>
    "tpu.trace_start"() <{level = 10 : i32, message = "bqd,bkd->bqk"}> : () -> ()
    %cst_269 = arith.constant dense<0.000000e+00> : vector<2x8x8xf32>
    %650 = tpu.matmul %647, %648, %cst_269 {dimension_numbers = #tpu.dot_dimension_numbers<[2], [2], [1], [1], [0, 0, 0, 1, 1, 1], [0], [0]>} : vector<2x8x8xf32>, vector<2x8x8xf32>, vector<2x8x8xf32> -> vector<2x8x8xf32>
    "tpu.trace_stop"() : () -> ()
    %cst_270 = arith.constant dense<0xFF800000> : vector<2x8xf32>
    %651 = vector.multi_reduction <maximumf>, %650, %cst_270 [2] : vector<2x8x8xf32> to vector<2x8xf32>
    %652 = vector.shape_cast %651 : vector<2x8xf32> to vector<2x8x1xf32>
    %653 = vector.broadcast %652 : vector<2x8x1xf32> to vector<2x8x8xf32>
    %654 = arith.subf %650, %653 : vector<2x8x8xf32>
    %655 = math.exp %654 : vector<2x8x8xf32>
    %cst_271 = arith.constant dense<0.000000e+00> : vector<2x8xf32>
    %656 = vector.multi_reduction <add>, %655, %cst_271 [2] : vector<2x8x8xf32> to vector<2x8xf32>
    %657 = vector.shape_cast %656 : vector<2x8xf32> to vector<2x8x1xf32>
    %658 = tpu.reciprocal %657 {approx = true} : vector<2x8x1xf32> -> vector<2x8x1xf32>
    %659 = vector.broadcast %658 : vector<2x8x1xf32> to vector<2x8x8xf32>
    %660 = arith.mulf %655, %659 : vector<2x8x8xf32>
    "tpu.trace_start"() <{level = 10 : i32, message = "bqk,bkd->bqd"}> : () -> ()
    %cst_272 = arith.constant dense<0.000000e+00> : vector<2x8x8xf32>
    %661 = tpu.matmul %660, %649, %cst_272 {dimension_numbers = #tpu.dot_dimension_numbers<[2], [1], [1], [2], [0, 0, 0, 1, 1, 2], [0], [0]>} : vector<2x8x8xf32>, vector<2x8x8xf32>, vector<2x8x8xf32> -> vector<2x8x8xf32>
    "tpu.trace_stop"() : () -> ()
    %662 = vector.shape_cast %661 : vector<2x8x8xf32> to vector<16x8xf32>
    %663 = vector.extract_strided_slice %478 {offsets = [16, 0], sizes = [8, 32], strides = [1, 1]} : vector<32x32xf32> to vector<8x32xf32>
    %cst_273 = arith.constant dense<0.000000e+00> : vector<16x32xf32>
    %664 = tpu.matmul %662, %663, %cst_273 {dimension_numbers = #tpu.dot_dimension_numbers<[1], [0], [0], [1], [0, 0, 1, 1], [], []>} : vector<16x8xf32>, vector<8x32xf32>, vector<16x32xf32> -> vector<16x32xf32>
    %665 = arith.addf %646, %664 : vector<16x32xf32>
    %666 = vector.extract_strided_slice %605 {offsets = [0, 0, 24], sizes = [2, 8, 8], strides = [1, 1, 1]} : vector<2x8x32xf32> to vector<2x8x8xf32>
    %667 = vector.extract_strided_slice %606 {offsets = [0, 0, 24], sizes = [2, 8, 8], strides = [1, 1, 1]} : vector<2x8x32xf32> to vector<2x8x8xf32>
    %668 = vector.extract_strided_slice %607 {offsets = [0, 0, 24], sizes = [2, 8, 8], strides = [1, 1, 1]} : vector<2x8x32xf32> to vector<2x8x8xf32>
    "tpu.trace_start"() <{level = 10 : i32, message = "bqd,bkd->bqk"}> : () -> ()
    %cst_274 = arith.constant dense<0.000000e+00> : vector<2x8x8xf32>
    %669 = tpu.matmul %666, %667, %cst_274 {dimension_numbers = #tpu.dot_dimension_numbers<[2], [2], [1], [1], [0, 0, 0, 1, 1, 1], [0], [0]>} : vector<2x8x8xf32>, vector<2x8x8xf32>, vector<2x8x8xf32> -> vector<2x8x8xf32>
    "tpu.trace_stop"() : () -> ()
    %cst_275 = arith.constant dense<0xFF800000> : vector<2x8xf32>
    %670 = vector.multi_reduction <maximumf>, %669, %cst_275 [2] : vector<2x8x8xf32> to vector<2x8xf32>
    %671 = vector.shape_cast %670 : vector<2x8xf32> to vector<2x8x1xf32>
    %672 = vector.broadcast %671 : vector<2x8x1xf32> to vector<2x8x8xf32>
    %673 = arith.subf %669, %672 : vector<2x8x8xf32>
    %674 = math.exp %673 : vector<2x8x8xf32>
    %cst_276 = arith.constant dense<0.000000e+00> : vector<2x8xf32>
    %675 = vector.multi_reduction <add>, %674, %cst_276 [2] : vector<2x8x8xf32> to vector<2x8xf32>
    %676 = vector.shape_cast %675 : vector<2x8xf32> to vector<2x8x1xf32>
    %677 = tpu.reciprocal %676 {approx = true} : vector<2x8x1xf32> -> vector<2x8x1xf32>
    %678 = vector.broadcast %677 : vector<2x8x1xf32> to vector<2x8x8xf32>
    %679 = arith.mulf %674, %678 : vector<2x8x8xf32>
    "tpu.trace_start"() <{level = 10 : i32, message = "bqk,bkd->bqd"}> : () -> ()
    %cst_277 = arith.constant dense<0.000000e+00> : vector<2x8x8xf32>
    %680 = tpu.matmul %679, %668, %cst_277 {dimension_numbers = #tpu.dot_dimension_numbers<[2], [1], [1], [2], [0, 0, 0, 1, 1, 2], [0], [0]>} : vector<2x8x8xf32>, vector<2x8x8xf32>, vector<2x8x8xf32> -> vector<2x8x8xf32>
    "tpu.trace_stop"() : () -> ()
    %681 = vector.shape_cast %680 : vector<2x8x8xf32> to vector<16x8xf32>
    %682 = vector.extract_strided_slice %478 {offsets = [24, 0], sizes = [8, 32], strides = [1, 1]} : vector<32x32xf32> to vector<8x32xf32>
    %cst_278 = arith.constant dense<0.000000e+00> : vector<16x32xf32>
    %683 = tpu.matmul %681, %682, %cst_278 {dimension_numbers = #tpu.dot_dimension_numbers<[1], [0], [0], [1], [0, 0, 1, 1], [], []>} : vector<16x8xf32>, vector<8x32xf32>, vector<16x32xf32> -> vector<16x32xf32>
    %684 = arith.addf %665, %683 : vector<16x32xf32>
    %685 = vector.broadcast %479 : vector<1x32xf32> to vector<16x32xf32>
    %686 = arith.addf %684, %685 : vector<16x32xf32>
    %687 = arith.addf %596, %686 : vector<16x32xf32>
    %cst_279 = arith.constant dense<0.000000e+00> : vector<16xf32>
    %688 = vector.multi_reduction <add>, %687, %cst_279 [1] : vector<16x32xf32> to vector<16xf32>
    %689 = vector.shape_cast %688 : vector<16xf32> to vector<16x1xf32>
    %cst_280 = arith.constant 3.200000e+01 : f32
    %690 = vector.broadcast %cst_280 : f32 to vector<16x1xf32>
    %691 = arith.divf %689, %690 : vector<16x1xf32>
    %692 = vector.broadcast %691 : vector<16x1xf32> to vector<16x32xf32>
    %693 = arith.subf %687, %692 : vector<16x32xf32>
    %694 = arith.mulf %693, %693 : vector<16x32xf32>
    %cst_281 = arith.constant dense<0.000000e+00> : vector<16xf32>
    %695 = vector.multi_reduction <add>, %694, %cst_281 [1] : vector<16x32xf32> to vector<16xf32>
    %696 = vector.shape_cast %695 : vector<16xf32> to vector<16x1xf32>
    %cst_282 = arith.constant 3.200000e+01 : f32
    %697 = vector.broadcast %cst_282 : f32 to vector<16x1xf32>
    %698 = arith.divf %696, %697 : vector<16x1xf32>
    %cst_283 = arith.constant 9.99999974E-6 : f32
    %699 = vector.broadcast %cst_283 : f32 to vector<16x1xf32>
    %700 = arith.addf %698, %699 : vector<16x1xf32>
    %701 = math.rsqrt %700 : vector<16x1xf32>
    %702 = vector.broadcast %701 : vector<16x1xf32> to vector<16x32xf32>
    %703 = arith.mulf %693, %702 : vector<16x32xf32>
    %704 = vector.broadcast %480 : vector<1x32xf32> to vector<16x32xf32>
    %705 = arith.mulf %703, %704 : vector<16x32xf32>
    %706 = vector.broadcast %481 : vector<1x32xf32> to vector<16x32xf32>
    %707 = arith.addf %705, %706 : vector<16x32xf32>
    %cst_284 = arith.constant dense<0.000000e+00> : vector<16x64xf32>
    %708 = tpu.matmul %707, %482, %cst_284 {dimension_numbers = #tpu.dot_dimension_numbers<[1], [0], [0], [1], [0, 0, 1, 1], [], []>} : vector<16x32xf32>, vector<32x64xf32>, vector<16x64xf32> -> vector<16x64xf32>
    %709 = vector.broadcast %483 : vector<1x64xf32> to vector<16x64xf32>
    %710 = arith.addf %708, %709 : vector<16x64xf32>
    %cst_285 = arith.constant 0.000000e+00 : f32
    %711 = vector.broadcast %cst_285 : f32 to vector<16x64xf32>
    %712 = arith.maximumf %710, %711 : vector<16x64xf32>
    %cst_286 = arith.constant dense<0.000000e+00> : vector<16x32xf32>
    %713 = tpu.matmul %712, %484, %cst_286 {dimension_numbers = #tpu.dot_dimension_numbers<[1], [0], [0], [1], [0, 0, 1, 1], [], []>} : vector<16x64xf32>, vector<64x32xf32>, vector<16x32xf32> -> vector<16x32xf32>
    %714 = vector.broadcast %485 : vector<1x32xf32> to vector<16x32xf32>
    %715 = arith.addf %713, %714 : vector<16x32xf32>
    %716 = arith.addf %707, %715 : vector<16x32xf32>
    %cst_287 = arith.constant dense<0.000000e+00> : vector<16xf32>
    %717 = vector.multi_reduction <add>, %716, %cst_287 [1] : vector<16x32xf32> to vector<16xf32>
    %718 = vector.shape_cast %717 : vector<16xf32> to vector<16x1xf32>
    %cst_288 = arith.constant 3.200000e+01 : f32
    %719 = vector.broadcast %cst_288 : f32 to vector<16x1xf32>
    %720 = arith.divf %718, %719 : vector<16x1xf32>
    %721 = vector.broadcast %720 : vector<16x1xf32> to vector<16x32xf32>
    %722 = arith.subf %716, %721 : vector<16x32xf32>
    %723 = arith.mulf %722, %722 : vector<16x32xf32>
    %cst_289 = arith.constant dense<0.000000e+00> : vector<16xf32>
    %724 = vector.multi_reduction <add>, %723, %cst_289 [1] : vector<16x32xf32> to vector<16xf32>
    %725 = vector.shape_cast %724 : vector<16xf32> to vector<16x1xf32>
    %cst_290 = arith.constant 3.200000e+01 : f32
    %726 = vector.broadcast %cst_290 : f32 to vector<16x1xf32>
    %727 = arith.divf %725, %726 : vector<16x1xf32>
    %cst_291 = arith.constant 9.99999974E-6 : f32
    %728 = vector.broadcast %cst_291 : f32 to vector<16x1xf32>
    %729 = arith.addf %727, %728 : vector<16x1xf32>
    %730 = math.rsqrt %729 : vector<16x1xf32>
    %731 = vector.broadcast %730 : vector<16x1xf32> to vector<16x32xf32>
    %732 = arith.mulf %722, %731 : vector<16x32xf32>
    %733 = vector.broadcast %486 : vector<1x32xf32> to vector<16x32xf32>
    %734 = arith.mulf %732, %733 : vector<16x32xf32>
    %735 = vector.broadcast %487 : vector<1x32xf32> to vector<16x32xf32>
    %736 = arith.addf %734, %735 : vector<16x32xf32>
    %c0_292 = arith.constant 0 : index
    %c0_293 = arith.constant 0 : index
    %737 = vector.load %arg60[%c0_292, %c0_293] : memref<32x96xf32, #tpu.memory_space<vmem>>, vector<32x96xf32>
    %c0_294 = arith.constant 0 : index
    %c0_295 = arith.constant 0 : index
    %738 = vector.load %arg61[%c0_294, %c0_295] : memref<1x96xf32, #tpu.memory_space<vmem>>, vector<1x96xf32>
    %c0_296 = arith.constant 0 : index
    %c0_297 = arith.constant 0 : index
    %739 = vector.load %arg62[%c0_296, %c0_297] : memref<32x32xf32, #tpu.memory_space<vmem>>, vector<32x32xf32>
    %c0_298 = arith.constant 0 : index
    %c0_299 = arith.constant 0 : index
    %740 = vector.load %arg63[%c0_298, %c0_299] : memref<1x32xf32, #tpu.memory_space<vmem>>, vector<1x32xf32>
    %c0_300 = arith.constant 0 : index
    %c0_301 = arith.constant 0 : index
    %741 = vector.load %arg64[%c0_300, %c0_301] : memref<1x32xf32, #tpu.memory_space<vmem>>, vector<1x32xf32>
    %c0_302 = arith.constant 0 : index
    %c0_303 = arith.constant 0 : index
    %742 = vector.load %arg65[%c0_302, %c0_303] : memref<1x32xf32, #tpu.memory_space<vmem>>, vector<1x32xf32>
    %c0_304 = arith.constant 0 : index
    %c0_305 = arith.constant 0 : index
    %743 = vector.load %arg66[%c0_304, %c0_305] : memref<32x32xf32, #tpu.memory_space<vmem>>, vector<32x32xf32>
    %c0_306 = arith.constant 0 : index
    %c0_307 = arith.constant 0 : index
    %744 = vector.load %arg67[%c0_306, %c0_307] : memref<1x32xf32, #tpu.memory_space<vmem>>, vector<1x32xf32>
    %c0_308 = arith.constant 0 : index
    %c0_309 = arith.constant 0 : index
    %745 = vector.load %arg68[%c0_308, %c0_309] : memref<32x64xf32, #tpu.memory_space<vmem>>, vector<32x64xf32>
    %c0_310 = arith.constant 0 : index
    %c0_311 = arith.constant 0 : index
    %746 = vector.load %arg69[%c0_310, %c0_311] : memref<1x64xf32, #tpu.memory_space<vmem>>, vector<1x64xf32>
    %c0_312 = arith.constant 0 : index
    %c0_313 = arith.constant 0 : index
    %747 = vector.load %arg70[%c0_312, %c0_313] : memref<32x32xf32, #tpu.memory_space<vmem>>, vector<32x32xf32>
    %c0_314 = arith.constant 0 : index
    %c0_315 = arith.constant 0 : index
    %748 = vector.load %arg71[%c0_314, %c0_315] : memref<1x32xf32, #tpu.memory_space<vmem>>, vector<1x32xf32>
    %c0_316 = arith.constant 0 : index
    %c0_317 = arith.constant 0 : index
    %749 = vector.load %arg72[%c0_316, %c0_317] : memref<1x32xf32, #tpu.memory_space<vmem>>, vector<1x32xf32>
    %c0_318 = arith.constant 0 : index
    %c0_319 = arith.constant 0 : index
    %750 = vector.load %arg73[%c0_318, %c0_319] : memref<1x32xf32, #tpu.memory_space<vmem>>, vector<1x32xf32>
    %c0_320 = arith.constant 0 : index
    %c0_321 = arith.constant 0 : index
    %751 = vector.load %arg74[%c0_320, %c0_321] : memref<32x64xf32, #tpu.memory_space<vmem>>, vector<32x64xf32>
    %c0_322 = arith.constant 0 : index
    %c0_323 = arith.constant 0 : index
    %752 = vector.load %arg75[%c0_322, %c0_323] : memref<1x64xf32, #tpu.memory_space<vmem>>, vector<1x64xf32>
    %c0_324 = arith.constant 0 : index
    %c0_325 = arith.constant 0 : index
    %753 = vector.load %arg76[%c0_324, %c0_325] : memref<64x32xf32, #tpu.memory_space<vmem>>, vector<64x32xf32>
    %c0_326 = arith.constant 0 : index
    %c0_327 = arith.constant 0 : index
    %754 = vector.load %arg77[%c0_326, %c0_327] : memref<1x32xf32, #tpu.memory_space<vmem>>, vector<1x32xf32>
    %c0_328 = arith.constant 0 : index
    %c0_329 = arith.constant 0 : index
    %755 = vector.load %arg78[%c0_328, %c0_329] : memref<1x32xf32, #tpu.memory_space<vmem>>, vector<1x32xf32>
    %c0_330 = arith.constant 0 : index
    %c0_331 = arith.constant 0 : index
    %756 = vector.load %arg79[%c0_330, %c0_331] : memref<1x32xf32, #tpu.memory_space<vmem>>, vector<1x32xf32>
    %cst_332 = arith.constant dense<0.000000e+00> : vector<16x96xf32>
    %757 = tpu.matmul %736, %737, %cst_332 {dimension_numbers = #tpu.dot_dimension_numbers<[1], [0], [0], [1], [0, 0, 1, 1], [], []>} : vector<16x32xf32>, vector<32x96xf32>, vector<16x96xf32> -> vector<16x96xf32>
    %758 = vector.broadcast %738 : vector<1x96xf32> to vector<16x96xf32>
    %759 = arith.addf %757, %758 : vector<16x96xf32>
    %760 = vector.extract_strided_slice %759 {offsets = [0, 0], sizes = [16, 32], strides = [1, 1]} : vector<16x96xf32> to vector<16x32xf32>
    %761 = vector.extract_strided_slice %759 {offsets = [0, 32], sizes = [16, 32], strides = [1, 1]} : vector<16x96xf32> to vector<16x32xf32>
    %762 = vector.extract_strided_slice %759 {offsets = [0, 64], sizes = [16, 32], strides = [1, 1]} : vector<16x96xf32> to vector<16x32xf32>
    %763 = vector.shape_cast %760 : vector<16x32xf32> to vector<2x8x32xf32>
    %764 = vector.shape_cast %761 : vector<16x32xf32> to vector<2x8x32xf32>
    %765 = vector.shape_cast %762 : vector<16x32xf32> to vector<2x8x32xf32>
    %cst_333 = arith.constant 0.000000e+00 : f32
    %766 = vector.broadcast %cst_333 : f32 to vector<16x32xf32>
    %767 = vector.extract_strided_slice %763 {offsets = [0, 0, 0], sizes = [2, 8, 8], strides = [1, 1, 1]} : vector<2x8x32xf32> to vector<2x8x8xf32>
    %768 = vector.extract_strided_slice %764 {offsets = [0, 0, 0], sizes = [2, 8, 8], strides = [1, 1, 1]} : vector<2x8x32xf32> to vector<2x8x8xf32>
    %769 = vector.extract_strided_slice %765 {offsets = [0, 0, 0], sizes = [2, 8, 8], strides = [1, 1, 1]} : vector<2x8x32xf32> to vector<2x8x8xf32>
    "tpu.trace_start"() <{level = 10 : i32, message = "bqd,bkd->bqk"}> : () -> ()
    %cst_334 = arith.constant dense<0.000000e+00> : vector<2x8x8xf32>
    %770 = tpu.matmul %767, %768, %cst_334 {dimension_numbers = #tpu.dot_dimension_numbers<[2], [2], [1], [1], [0, 0, 0, 1, 1, 1], [0], [0]>} : vector<2x8x8xf32>, vector<2x8x8xf32>, vector<2x8x8xf32> -> vector<2x8x8xf32>
    "tpu.trace_stop"() : () -> ()
    %cst_335 = arith.constant dense<0xFF800000> : vector<2x8xf32>
    %771 = vector.multi_reduction <maximumf>, %770, %cst_335 [2] : vector<2x8x8xf32> to vector<2x8xf32>
    %772 = vector.shape_cast %771 : vector<2x8xf32> to vector<2x8x1xf32>
    %773 = vector.broadcast %772 : vector<2x8x1xf32> to vector<2x8x8xf32>
    %774 = arith.subf %770, %773 : vector<2x8x8xf32>
    %775 = math.exp %774 : vector<2x8x8xf32>
    %cst_336 = arith.constant dense<0.000000e+00> : vector<2x8xf32>
    %776 = vector.multi_reduction <add>, %775, %cst_336 [2] : vector<2x8x8xf32> to vector<2x8xf32>
    %777 = vector.shape_cast %776 : vector<2x8xf32> to vector<2x8x1xf32>
    %778 = tpu.reciprocal %777 {approx = true} : vector<2x8x1xf32> -> vector<2x8x1xf32>
    %779 = vector.broadcast %778 : vector<2x8x1xf32> to vector<2x8x8xf32>
    %780 = arith.mulf %775, %779 : vector<2x8x8xf32>
    "tpu.trace_start"() <{level = 10 : i32, message = "bqk,bkd->bqd"}> : () -> ()
    %cst_337 = arith.constant dense<0.000000e+00> : vector<2x8x8xf32>
    %781 = tpu.matmul %780, %769, %cst_337 {dimension_numbers = #tpu.dot_dimension_numbers<[2], [1], [1], [2], [0, 0, 0, 1, 1, 2], [0], [0]>} : vector<2x8x8xf32>, vector<2x8x8xf32>, vector<2x8x8xf32> -> vector<2x8x8xf32>
    "tpu.trace_stop"() : () -> ()
    %782 = vector.shape_cast %781 : vector<2x8x8xf32> to vector<16x8xf32>
    %783 = vector.extract_strided_slice %739 {offsets = [0, 0], sizes = [8, 32], strides = [1, 1]} : vector<32x32xf32> to vector<8x32xf32>
    %cst_338 = arith.constant dense<0.000000e+00> : vector<16x32xf32>
    %784 = tpu.matmul %782, %783, %cst_338 {dimension_numbers = #tpu.dot_dimension_numbers<[1], [0], [0], [1], [0, 0, 1, 1], [], []>} : vector<16x8xf32>, vector<8x32xf32>, vector<16x32xf32> -> vector<16x32xf32>
    %785 = arith.addf %766, %784 : vector<16x32xf32>
    %786 = vector.extract_strided_slice %763 {offsets = [0, 0, 8], sizes = [2, 8, 8], strides = [1, 1, 1]} : vector<2x8x32xf32> to vector<2x8x8xf32>
    %787 = vector.extract_strided_slice %764 {offsets = [0, 0, 8], sizes = [2, 8, 8], strides = [1, 1, 1]} : vector<2x8x32xf32> to vector<2x8x8xf32>
    %788 = vector.extract_strided_slice %765 {offsets = [0, 0, 8], sizes = [2, 8, 8], strides = [1, 1, 1]} : vector<2x8x32xf32> to vector<2x8x8xf32>
    "tpu.trace_start"() <{level = 10 : i32, message = "bqd,bkd->bqk"}> : () -> ()
    %cst_339 = arith.constant dense<0.000000e+00> : vector<2x8x8xf32>
    %789 = tpu.matmul %786, %787, %cst_339 {dimension_numbers = #tpu.dot_dimension_numbers<[2], [2], [1], [1], [0, 0, 0, 1, 1, 1], [0], [0]>} : vector<2x8x8xf32>, vector<2x8x8xf32>, vector<2x8x8xf32> -> vector<2x8x8xf32>
    "tpu.trace_stop"() : () -> ()
    %cst_340 = arith.constant dense<0xFF800000> : vector<2x8xf32>
    %790 = vector.multi_reduction <maximumf>, %789, %cst_340 [2] : vector<2x8x8xf32> to vector<2x8xf32>
    %791 = vector.shape_cast %790 : vector<2x8xf32> to vector<2x8x1xf32>
    %792 = vector.broadcast %791 : vector<2x8x1xf32> to vector<2x8x8xf32>
    %793 = arith.subf %789, %792 : vector<2x8x8xf32>
    %794 = math.exp %793 : vector<2x8x8xf32>
    %cst_341 = arith.constant dense<0.000000e+00> : vector<2x8xf32>
    %795 = vector.multi_reduction <add>, %794, %cst_341 [2] : vector<2x8x8xf32> to vector<2x8xf32>
    %796 = vector.shape_cast %795 : vector<2x8xf32> to vector<2x8x1xf32>
    %797 = tpu.reciprocal %796 {approx = true} : vector<2x8x1xf32> -> vector<2x8x1xf32>
    %798 = vector.broadcast %797 : vector<2x8x1xf32> to vector<2x8x8xf32>
    %799 = arith.mulf %794, %798 : vector<2x8x8xf32>
    "tpu.trace_start"() <{level = 10 : i32, message = "bqk,bkd->bqd"}> : () -> ()
    %cst_342 = arith.constant dense<0.000000e+00> : vector<2x8x8xf32>
    %800 = tpu.matmul %799, %788, %cst_342 {dimension_numbers = #tpu.dot_dimension_numbers<[2], [1], [1], [2], [0, 0, 0, 1, 1, 2], [0], [0]>} : vector<2x8x8xf32>, vector<2x8x8xf32>, vector<2x8x8xf32> -> vector<2x8x8xf32>
    "tpu.trace_stop"() : () -> ()
    %801 = vector.shape_cast %800 : vector<2x8x8xf32> to vector<16x8xf32>
    %802 = vector.extract_strided_slice %739 {offsets = [8, 0], sizes = [8, 32], strides = [1, 1]} : vector<32x32xf32> to vector<8x32xf32>
    %cst_343 = arith.constant dense<0.000000e+00> : vector<16x32xf32>
    %803 = tpu.matmul %801, %802, %cst_343 {dimension_numbers = #tpu.dot_dimension_numbers<[1], [0], [0], [1], [0, 0, 1, 1], [], []>} : vector<16x8xf32>, vector<8x32xf32>, vector<16x32xf32> -> vector<16x32xf32>
    %804 = arith.addf %785, %803 : vector<16x32xf32>
    %805 = vector.extract_strided_slice %763 {offsets = [0, 0, 16], sizes = [2, 8, 8], strides = [1, 1, 1]} : vector<2x8x32xf32> to vector<2x8x8xf32>
    %806 = vector.extract_strided_slice %764 {offsets = [0, 0, 16], sizes = [2, 8, 8], strides = [1, 1, 1]} : vector<2x8x32xf32> to vector<2x8x8xf32>
    %807 = vector.extract_strided_slice %765 {offsets = [0, 0, 16], sizes = [2, 8, 8], strides = [1, 1, 1]} : vector<2x8x32xf32> to vector<2x8x8xf32>
    "tpu.trace_start"() <{level = 10 : i32, message = "bqd,bkd->bqk"}> : () -> ()
    %cst_344 = arith.constant dense<0.000000e+00> : vector<2x8x8xf32>
    %808 = tpu.matmul %805, %806, %cst_344 {dimension_numbers = #tpu.dot_dimension_numbers<[2], [2], [1], [1], [0, 0, 0, 1, 1, 1], [0], [0]>} : vector<2x8x8xf32>, vector<2x8x8xf32>, vector<2x8x8xf32> -> vector<2x8x8xf32>
    "tpu.trace_stop"() : () -> ()
    %cst_345 = arith.constant dense<0xFF800000> : vector<2x8xf32>
    %809 = vector.multi_reduction <maximumf>, %808, %cst_345 [2] : vector<2x8x8xf32> to vector<2x8xf32>
    %810 = vector.shape_cast %809 : vector<2x8xf32> to vector<2x8x1xf32>
    %811 = vector.broadcast %810 : vector<2x8x1xf32> to vector<2x8x8xf32>
    %812 = arith.subf %808, %811 : vector<2x8x8xf32>
    %813 = math.exp %812 : vector<2x8x8xf32>
    %cst_346 = arith.constant dense<0.000000e+00> : vector<2x8xf32>
    %814 = vector.multi_reduction <add>, %813, %cst_346 [2] : vector<2x8x8xf32> to vector<2x8xf32>
    %815 = vector.shape_cast %814 : vector<2x8xf32> to vector<2x8x1xf32>
    %816 = tpu.reciprocal %815 {approx = true} : vector<2x8x1xf32> -> vector<2x8x1xf32>
    %817 = vector.broadcast %816 : vector<2x8x1xf32> to vector<2x8x8xf32>
    %818 = arith.mulf %813, %817 : vector<2x8x8xf32>
    "tpu.trace_start"() <{level = 10 : i32, message = "bqk,bkd->bqd"}> : () -> ()
    %cst_347 = arith.constant dense<0.000000e+00> : vector<2x8x8xf32>
    %819 = tpu.matmul %818, %807, %cst_347 {dimension_numbers = #tpu.dot_dimension_numbers<[2], [1], [1], [2], [0, 0, 0, 1, 1, 2], [0], [0]>} : vector<2x8x8xf32>, vector<2x8x8xf32>, vector<2x8x8xf32> -> vector<2x8x8xf32>
    "tpu.trace_stop"() : () -> ()
    %820 = vector.shape_cast %819 : vector<2x8x8xf32> to vector<16x8xf32>
    %821 = vector.extract_strided_slice %739 {offsets = [16, 0], sizes = [8, 32], strides = [1, 1]} : vector<32x32xf32> to vector<8x32xf32>
    %cst_348 = arith.constant dense<0.000000e+00> : vector<16x32xf32>
    %822 = tpu.matmul %820, %821, %cst_348 {dimension_numbers = #tpu.dot_dimension_numbers<[1], [0], [0], [1], [0, 0, 1, 1], [], []>} : vector<16x8xf32>, vector<8x32xf32>, vector<16x32xf32> -> vector<16x32xf32>
    %823 = arith.addf %804, %822 : vector<16x32xf32>
    %824 = vector.extract_strided_slice %763 {offsets = [0, 0, 24], sizes = [2, 8, 8], strides = [1, 1, 1]} : vector<2x8x32xf32> to vector<2x8x8xf32>
    %825 = vector.extract_strided_slice %764 {offsets = [0, 0, 24], sizes = [2, 8, 8], strides = [1, 1, 1]} : vector<2x8x32xf32> to vector<2x8x8xf32>
    %826 = vector.extract_strided_slice %765 {offsets = [0, 0, 24], sizes = [2, 8, 8], strides = [1, 1, 1]} : vector<2x8x32xf32> to vector<2x8x8xf32>
    "tpu.trace_start"() <{level = 10 : i32, message = "bqd,bkd->bqk"}> : () -> ()
    %cst_349 = arith.constant dense<0.000000e+00> : vector<2x8x8xf32>
    %827 = tpu.matmul %824, %825, %cst_349 {dimension_numbers = #tpu.dot_dimension_numbers<[2], [2], [1], [1], [0, 0, 0, 1, 1, 1], [0], [0]>} : vector<2x8x8xf32>, vector<2x8x8xf32>, vector<2x8x8xf32> -> vector<2x8x8xf32>
    "tpu.trace_stop"() : () -> ()
    %cst_350 = arith.constant dense<0xFF800000> : vector<2x8xf32>
    %828 = vector.multi_reduction <maximumf>, %827, %cst_350 [2] : vector<2x8x8xf32> to vector<2x8xf32>
    %829 = vector.shape_cast %828 : vector<2x8xf32> to vector<2x8x1xf32>
    %830 = vector.broadcast %829 : vector<2x8x1xf32> to vector<2x8x8xf32>
    %831 = arith.subf %827, %830 : vector<2x8x8xf32>
    %832 = math.exp %831 : vector<2x8x8xf32>
    %cst_351 = arith.constant dense<0.000000e+00> : vector<2x8xf32>
    %833 = vector.multi_reduction <add>, %832, %cst_351 [2] : vector<2x8x8xf32> to vector<2x8xf32>
    %834 = vector.shape_cast %833 : vector<2x8xf32> to vector<2x8x1xf32>
    %835 = tpu.reciprocal %834 {approx = true} : vector<2x8x1xf32> -> vector<2x8x1xf32>
    %836 = vector.broadcast %835 : vector<2x8x1xf32> to vector<2x8x8xf32>
    %837 = arith.mulf %832, %836 : vector<2x8x8xf32>
    "tpu.trace_start"() <{level = 10 : i32, message = "bqk,bkd->bqd"}> : () -> ()
    %cst_352 = arith.constant dense<0.000000e+00> : vector<2x8x8xf32>
    %838 = tpu.matmul %837, %826, %cst_352 {dimension_numbers = #tpu.dot_dimension_numbers<[2], [1], [1], [2], [0, 0, 0, 1, 1, 2], [0], [0]>} : vector<2x8x8xf32>, vector<2x8x8xf32>, vector<2x8x8xf32> -> vector<2x8x8xf32>
    "tpu.trace_stop"() : () -> ()
    %839 = vector.shape_cast %838 : vector<2x8x8xf32> to vector<16x8xf32>
    %840 = vector.extract_strided_slice %739 {offsets = [24, 0], sizes = [8, 32], strides = [1, 1]} : vector<32x32xf32> to vector<8x32xf32>
    %cst_353 = arith.constant dense<0.000000e+00> : vector<16x32xf32>
    %841 = tpu.matmul %839, %840, %cst_353 {dimension_numbers = #tpu.dot_dimension_numbers<[1], [0], [0], [1], [0, 0, 1, 1], [], []>} : vector<16x8xf32>, vector<8x32xf32>, vector<16x32xf32> -> vector<16x32xf32>
    %842 = arith.addf %823, %841 : vector<16x32xf32>
    %843 = vector.broadcast %740 : vector<1x32xf32> to vector<16x32xf32>
    %844 = arith.addf %842, %843 : vector<16x32xf32>
    %845 = arith.addf %736, %844 : vector<16x32xf32>
    %cst_354 = arith.constant dense<0.000000e+00> : vector<16xf32>
    %846 = vector.multi_reduction <add>, %845, %cst_354 [1] : vector<16x32xf32> to vector<16xf32>
    %847 = vector.shape_cast %846 : vector<16xf32> to vector<16x1xf32>
    %cst_355 = arith.constant 3.200000e+01 : f32
    %848 = vector.broadcast %cst_355 : f32 to vector<16x1xf32>
    %849 = arith.divf %847, %848 : vector<16x1xf32>
    %850 = vector.broadcast %849 : vector<16x1xf32> to vector<16x32xf32>
    %851 = arith.subf %845, %850 : vector<16x32xf32>
    %852 = arith.mulf %851, %851 : vector<16x32xf32>
    %cst_356 = arith.constant dense<0.000000e+00> : vector<16xf32>
    %853 = vector.multi_reduction <add>, %852, %cst_356 [1] : vector<16x32xf32> to vector<16xf32>
    %854 = vector.shape_cast %853 : vector<16xf32> to vector<16x1xf32>
    %cst_357 = arith.constant 3.200000e+01 : f32
    %855 = vector.broadcast %cst_357 : f32 to vector<16x1xf32>
    %856 = arith.divf %854, %855 : vector<16x1xf32>
    %cst_358 = arith.constant 9.99999974E-6 : f32
    %857 = vector.broadcast %cst_358 : f32 to vector<16x1xf32>
    %858 = arith.addf %856, %857 : vector<16x1xf32>
    %859 = math.rsqrt %858 : vector<16x1xf32>
    %860 = vector.broadcast %859 : vector<16x1xf32> to vector<16x32xf32>
    %861 = arith.mulf %851, %860 : vector<16x32xf32>
    %862 = vector.broadcast %741 : vector<1x32xf32> to vector<16x32xf32>
    %863 = arith.mulf %861, %862 : vector<16x32xf32>
    %864 = vector.broadcast %742 : vector<1x32xf32> to vector<16x32xf32>
    %865 = arith.addf %863, %864 : vector<16x32xf32>
    %cst_359 = arith.constant dense<0.000000e+00> : vector<16x32xf32>
    %866 = tpu.matmul %865, %743, %cst_359 {dimension_numbers = #tpu.dot_dimension_numbers<[1], [0], [0], [1], [0, 0, 1, 1], [], []>} : vector<16x32xf32>, vector<32x32xf32>, vector<16x32xf32> -> vector<16x32xf32>
    %867 = vector.broadcast %744 : vector<1x32xf32> to vector<16x32xf32>
    %868 = arith.addf %866, %867 : vector<16x32xf32>
    %cst_360 = arith.constant dense<0.000000e+00> : vector<16x64xf32>
    %869 = tpu.matmul %460, %745, %cst_360 {dimension_numbers = #tpu.dot_dimension_numbers<[1], [0], [0], [1], [0, 0, 1, 1], [], []>} : vector<16x32xf32>, vector<32x64xf32>, vector<16x64xf32> -> vector<16x64xf32>
    %870 = vector.broadcast %746 : vector<1x64xf32> to vector<16x64xf32>
    %871 = arith.addf %869, %870 : vector<16x64xf32>
    %872 = vector.extract_strided_slice %871 {offsets = [0, 0], sizes = [16, 32], strides = [1, 1]} : vector<16x64xf32> to vector<16x32xf32>
    %873 = vector.extract_strided_slice %871 {offsets = [0, 32], sizes = [16, 32], strides = [1, 1]} : vector<16x64xf32> to vector<16x32xf32>
    %874 = vector.shape_cast %868 : vector<16x32xf32> to vector<2x8x32xf32>
    %875 = vector.shape_cast %872 : vector<16x32xf32> to vector<2x8x32xf32>
    %876 = vector.shape_cast %873 : vector<16x32xf32> to vector<2x8x32xf32>
    %cst_361 = arith.constant 0.000000e+00 : f32
    %877 = vector.broadcast %cst_361 : f32 to vector<16x32xf32>
    %878 = vector.extract_strided_slice %874 {offsets = [0, 0, 0], sizes = [2, 8, 8], strides = [1, 1, 1]} : vector<2x8x32xf32> to vector<2x8x8xf32>
    %879 = vector.extract_strided_slice %875 {offsets = [0, 0, 0], sizes = [2, 8, 8], strides = [1, 1, 1]} : vector<2x8x32xf32> to vector<2x8x8xf32>
    %880 = vector.extract_strided_slice %876 {offsets = [0, 0, 0], sizes = [2, 8, 8], strides = [1, 1, 1]} : vector<2x8x32xf32> to vector<2x8x8xf32>
    "tpu.trace_start"() <{level = 10 : i32, message = "bqd,bkd->bqk"}> : () -> ()
    %cst_362 = arith.constant dense<0.000000e+00> : vector<2x8x8xf32>
    %881 = tpu.matmul %878, %879, %cst_362 {dimension_numbers = #tpu.dot_dimension_numbers<[2], [2], [1], [1], [0, 0, 0, 1, 1, 1], [0], [0]>} : vector<2x8x8xf32>, vector<2x8x8xf32>, vector<2x8x8xf32> -> vector<2x8x8xf32>
    "tpu.trace_stop"() : () -> ()
    %cst_363 = arith.constant dense<0xFF800000> : vector<2x8xf32>
    %882 = vector.multi_reduction <maximumf>, %881, %cst_363 [2] : vector<2x8x8xf32> to vector<2x8xf32>
    %883 = vector.shape_cast %882 : vector<2x8xf32> to vector<2x8x1xf32>
    %884 = vector.broadcast %883 : vector<2x8x1xf32> to vector<2x8x8xf32>
    %885 = arith.subf %881, %884 : vector<2x8x8xf32>
    %886 = math.exp %885 : vector<2x8x8xf32>
    %cst_364 = arith.constant dense<0.000000e+00> : vector<2x8xf32>
    %887 = vector.multi_reduction <add>, %886, %cst_364 [2] : vector<2x8x8xf32> to vector<2x8xf32>
    %888 = vector.shape_cast %887 : vector<2x8xf32> to vector<2x8x1xf32>
    %889 = tpu.reciprocal %888 {approx = true} : vector<2x8x1xf32> -> vector<2x8x1xf32>
    %890 = vector.broadcast %889 : vector<2x8x1xf32> to vector<2x8x8xf32>
    %891 = arith.mulf %886, %890 : vector<2x8x8xf32>
    "tpu.trace_start"() <{level = 10 : i32, message = "bqk,bkd->bqd"}> : () -> ()
    %cst_365 = arith.constant dense<0.000000e+00> : vector<2x8x8xf32>
    %892 = tpu.matmul %891, %880, %cst_365 {dimension_numbers = #tpu.dot_dimension_numbers<[2], [1], [1], [2], [0, 0, 0, 1, 1, 2], [0], [0]>} : vector<2x8x8xf32>, vector<2x8x8xf32>, vector<2x8x8xf32> -> vector<2x8x8xf32>
    "tpu.trace_stop"() : () -> ()
    %893 = vector.shape_cast %892 : vector<2x8x8xf32> to vector<16x8xf32>
    %894 = vector.extract_strided_slice %747 {offsets = [0, 0], sizes = [8, 32], strides = [1, 1]} : vector<32x32xf32> to vector<8x32xf32>
    %cst_366 = arith.constant dense<0.000000e+00> : vector<16x32xf32>
    %895 = tpu.matmul %893, %894, %cst_366 {dimension_numbers = #tpu.dot_dimension_numbers<[1], [0], [0], [1], [0, 0, 1, 1], [], []>} : vector<16x8xf32>, vector<8x32xf32>, vector<16x32xf32> -> vector<16x32xf32>
    %896 = arith.addf %877, %895 : vector<16x32xf32>
    %897 = vector.extract_strided_slice %874 {offsets = [0, 0, 8], sizes = [2, 8, 8], strides = [1, 1, 1]} : vector<2x8x32xf32> to vector<2x8x8xf32>
    %898 = vector.extract_strided_slice %875 {offsets = [0, 0, 8], sizes = [2, 8, 8], strides = [1, 1, 1]} : vector<2x8x32xf32> to vector<2x8x8xf32>
    %899 = vector.extract_strided_slice %876 {offsets = [0, 0, 8], sizes = [2, 8, 8], strides = [1, 1, 1]} : vector<2x8x32xf32> to vector<2x8x8xf32>
    "tpu.trace_start"() <{level = 10 : i32, message = "bqd,bkd->bqk"}> : () -> ()
    %cst_367 = arith.constant dense<0.000000e+00> : vector<2x8x8xf32>
    %900 = tpu.matmul %897, %898, %cst_367 {dimension_numbers = #tpu.dot_dimension_numbers<[2], [2], [1], [1], [0, 0, 0, 1, 1, 1], [0], [0]>} : vector<2x8x8xf32>, vector<2x8x8xf32>, vector<2x8x8xf32> -> vector<2x8x8xf32>
    "tpu.trace_stop"() : () -> ()
    %cst_368 = arith.constant dense<0xFF800000> : vector<2x8xf32>
    %901 = vector.multi_reduction <maximumf>, %900, %cst_368 [2] : vector<2x8x8xf32> to vector<2x8xf32>
    %902 = vector.shape_cast %901 : vector<2x8xf32> to vector<2x8x1xf32>
    %903 = vector.broadcast %902 : vector<2x8x1xf32> to vector<2x8x8xf32>
    %904 = arith.subf %900, %903 : vector<2x8x8xf32>
    %905 = math.exp %904 : vector<2x8x8xf32>
    %cst_369 = arith.constant dense<0.000000e+00> : vector<2x8xf32>
    %906 = vector.multi_reduction <add>, %905, %cst_369 [2] : vector<2x8x8xf32> to vector<2x8xf32>
    %907 = vector.shape_cast %906 : vector<2x8xf32> to vector<2x8x1xf32>
    %908 = tpu.reciprocal %907 {approx = true} : vector<2x8x1xf32> -> vector<2x8x1xf32>
    %909 = vector.broadcast %908 : vector<2x8x1xf32> to vector<2x8x8xf32>
    %910 = arith.mulf %905, %909 : vector<2x8x8xf32>
    "tpu.trace_start"() <{level = 10 : i32, message = "bqk,bkd->bqd"}> : () -> ()
    %cst_370 = arith.constant dense<0.000000e+00> : vector<2x8x8xf32>
    %911 = tpu.matmul %910, %899, %cst_370 {dimension_numbers = #tpu.dot_dimension_numbers<[2], [1], [1], [2], [0, 0, 0, 1, 1, 2], [0], [0]>} : vector<2x8x8xf32>, vector<2x8x8xf32>, vector<2x8x8xf32> -> vector<2x8x8xf32>
    "tpu.trace_stop"() : () -> ()
    %912 = vector.shape_cast %911 : vector<2x8x8xf32> to vector<16x8xf32>
    %913 = vector.extract_strided_slice %747 {offsets = [8, 0], sizes = [8, 32], strides = [1, 1]} : vector<32x32xf32> to vector<8x32xf32>
    %cst_371 = arith.constant dense<0.000000e+00> : vector<16x32xf32>
    %914 = tpu.matmul %912, %913, %cst_371 {dimension_numbers = #tpu.dot_dimension_numbers<[1], [0], [0], [1], [0, 0, 1, 1], [], []>} : vector<16x8xf32>, vector<8x32xf32>, vector<16x32xf32> -> vector<16x32xf32>
    %915 = arith.addf %896, %914 : vector<16x32xf32>
    %916 = vector.extract_strided_slice %874 {offsets = [0, 0, 16], sizes = [2, 8, 8], strides = [1, 1, 1]} : vector<2x8x32xf32> to vector<2x8x8xf32>
    %917 = vector.extract_strided_slice %875 {offsets = [0, 0, 16], sizes = [2, 8, 8], strides = [1, 1, 1]} : vector<2x8x32xf32> to vector<2x8x8xf32>
    %918 = vector.extract_strided_slice %876 {offsets = [0, 0, 16], sizes = [2, 8, 8], strides = [1, 1, 1]} : vector<2x8x32xf32> to vector<2x8x8xf32>
    "tpu.trace_start"() <{level = 10 : i32, message = "bqd,bkd->bqk"}> : () -> ()
    %cst_372 = arith.constant dense<0.000000e+00> : vector<2x8x8xf32>
    %919 = tpu.matmul %916, %917, %cst_372 {dimension_numbers = #tpu.dot_dimension_numbers<[2], [2], [1], [1], [0, 0, 0, 1, 1, 1], [0], [0]>} : vector<2x8x8xf32>, vector<2x8x8xf32>, vector<2x8x8xf32> -> vector<2x8x8xf32>
    "tpu.trace_stop"() : () -> ()
    %cst_373 = arith.constant dense<0xFF800000> : vector<2x8xf32>
    %920 = vector.multi_reduction <maximumf>, %919, %cst_373 [2] : vector<2x8x8xf32> to vector<2x8xf32>
    %921 = vector.shape_cast %920 : vector<2x8xf32> to vector<2x8x1xf32>
    %922 = vector.broadcast %921 : vector<2x8x1xf32> to vector<2x8x8xf32>
    %923 = arith.subf %919, %922 : vector<2x8x8xf32>
    %924 = math.exp %923 : vector<2x8x8xf32>
    %cst_374 = arith.constant dense<0.000000e+00> : vector<2x8xf32>
    %925 = vector.multi_reduction <add>, %924, %cst_374 [2] : vector<2x8x8xf32> to vector<2x8xf32>
    %926 = vector.shape_cast %925 : vector<2x8xf32> to vector<2x8x1xf32>
    %927 = tpu.reciprocal %926 {approx = true} : vector<2x8x1xf32> -> vector<2x8x1xf32>
    %928 = vector.broadcast %927 : vector<2x8x1xf32> to vector<2x8x8xf32>
    %929 = arith.mulf %924, %928 : vector<2x8x8xf32>
    "tpu.trace_start"() <{level = 10 : i32, message = "bqk,bkd->bqd"}> : () -> ()
    %cst_375 = arith.constant dense<0.000000e+00> : vector<2x8x8xf32>
    %930 = tpu.matmul %929, %918, %cst_375 {dimension_numbers = #tpu.dot_dimension_numbers<[2], [1], [1], [2], [0, 0, 0, 1, 1, 2], [0], [0]>} : vector<2x8x8xf32>, vector<2x8x8xf32>, vector<2x8x8xf32> -> vector<2x8x8xf32>
    "tpu.trace_stop"() : () -> ()
    %931 = vector.shape_cast %930 : vector<2x8x8xf32> to vector<16x8xf32>
    %932 = vector.extract_strided_slice %747 {offsets = [16, 0], sizes = [8, 32], strides = [1, 1]} : vector<32x32xf32> to vector<8x32xf32>
    %cst_376 = arith.constant dense<0.000000e+00> : vector<16x32xf32>
    %933 = tpu.matmul %931, %932, %cst_376 {dimension_numbers = #tpu.dot_dimension_numbers<[1], [0], [0], [1], [0, 0, 1, 1], [], []>} : vector<16x8xf32>, vector<8x32xf32>, vector<16x32xf32> -> vector<16x32xf32>
    %934 = arith.addf %915, %933 : vector<16x32xf32>
    %935 = vector.extract_strided_slice %874 {offsets = [0, 0, 24], sizes = [2, 8, 8], strides = [1, 1, 1]} : vector<2x8x32xf32> to vector<2x8x8xf32>
    %936 = vector.extract_strided_slice %875 {offsets = [0, 0, 24], sizes = [2, 8, 8], strides = [1, 1, 1]} : vector<2x8x32xf32> to vector<2x8x8xf32>
    %937 = vector.extract_strided_slice %876 {offsets = [0, 0, 24], sizes = [2, 8, 8], strides = [1, 1, 1]} : vector<2x8x32xf32> to vector<2x8x8xf32>
    "tpu.trace_start"() <{level = 10 : i32, message = "bqd,bkd->bqk"}> : () -> ()
    %cst_377 = arith.constant dense<0.000000e+00> : vector<2x8x8xf32>
    %938 = tpu.matmul %935, %936, %cst_377 {dimension_numbers = #tpu.dot_dimension_numbers<[2], [2], [1], [1], [0, 0, 0, 1, 1, 1], [0], [0]>} : vector<2x8x8xf32>, vector<2x8x8xf32>, vector<2x8x8xf32> -> vector<2x8x8xf32>
    "tpu.trace_stop"() : () -> ()
    %cst_378 = arith.constant dense<0xFF800000> : vector<2x8xf32>
    %939 = vector.multi_reduction <maximumf>, %938, %cst_378 [2] : vector<2x8x8xf32> to vector<2x8xf32>
    %940 = vector.shape_cast %939 : vector<2x8xf32> to vector<2x8x1xf32>
    %941 = vector.broadcast %940 : vector<2x8x1xf32> to vector<2x8x8xf32>
    %942 = arith.subf %938, %941 : vector<2x8x8xf32>
    %943 = math.exp %942 : vector<2x8x8xf32>
    %cst_379 = arith.constant dense<0.000000e+00> : vector<2x8xf32>
    %944 = vector.multi_reduction <add>, %943, %cst_379 [2] : vector<2x8x8xf32> to vector<2x8xf32>
    %945 = vector.shape_cast %944 : vector<2x8xf32> to vector<2x8x1xf32>
    %946 = tpu.reciprocal %945 {approx = true} : vector<2x8x1xf32> -> vector<2x8x1xf32>
    %947 = vector.broadcast %946 : vector<2x8x1xf32> to vector<2x8x8xf32>
    %948 = arith.mulf %943, %947 : vector<2x8x8xf32>
    "tpu.trace_start"() <{level = 10 : i32, message = "bqk,bkd->bqd"}> : () -> ()
    %cst_380 = arith.constant dense<0.000000e+00> : vector<2x8x8xf32>
    %949 = tpu.matmul %948, %937, %cst_380 {dimension_numbers = #tpu.dot_dimension_numbers<[2], [1], [1], [2], [0, 0, 0, 1, 1, 2], [0], [0]>} : vector<2x8x8xf32>, vector<2x8x8xf32>, vector<2x8x8xf32> -> vector<2x8x8xf32>
    "tpu.trace_stop"() : () -> ()
    %950 = vector.shape_cast %949 : vector<2x8x8xf32> to vector<16x8xf32>
    %951 = vector.extract_strided_slice %747 {offsets = [24, 0], sizes = [8, 32], strides = [1, 1]} : vector<32x32xf32> to vector<8x32xf32>
    %cst_381 = arith.constant dense<0.000000e+00> : vector<16x32xf32>
    %952 = tpu.matmul %950, %951, %cst_381 {dimension_numbers = #tpu.dot_dimension_numbers<[1], [0], [0], [1], [0, 0, 1, 1], [], []>} : vector<16x8xf32>, vector<8x32xf32>, vector<16x32xf32> -> vector<16x32xf32>
    %953 = arith.addf %934, %952 : vector<16x32xf32>
    %954 = vector.broadcast %748 : vector<1x32xf32> to vector<16x32xf32>
    %955 = arith.addf %953, %954 : vector<16x32xf32>
    %956 = arith.addf %865, %955 : vector<16x32xf32>
    %cst_382 = arith.constant dense<0.000000e+00> : vector<16xf32>
    %957 = vector.multi_reduction <add>, %956, %cst_382 [1] : vector<16x32xf32> to vector<16xf32>
    %958 = vector.shape_cast %957 : vector<16xf32> to vector<16x1xf32>
    %cst_383 = arith.constant 3.200000e+01 : f32
    %959 = vector.broadcast %cst_383 : f32 to vector<16x1xf32>
    %960 = arith.divf %958, %959 : vector<16x1xf32>
    %961 = vector.broadcast %960 : vector<16x1xf32> to vector<16x32xf32>
    %962 = arith.subf %956, %961 : vector<16x32xf32>
    %963 = arith.mulf %962, %962 : vector<16x32xf32>
    %cst_384 = arith.constant dense<0.000000e+00> : vector<16xf32>
    %964 = vector.multi_reduction <add>, %963, %cst_384 [1] : vector<16x32xf32> to vector<16xf32>
    %965 = vector.shape_cast %964 : vector<16xf32> to vector<16x1xf32>
    %cst_385 = arith.constant 3.200000e+01 : f32
    %966 = vector.broadcast %cst_385 : f32 to vector<16x1xf32>
    %967 = arith.divf %965, %966 : vector<16x1xf32>
    %cst_386 = arith.constant 9.99999974E-6 : f32
    %968 = vector.broadcast %cst_386 : f32 to vector<16x1xf32>
    %969 = arith.addf %967, %968 : vector<16x1xf32>
    %970 = math.rsqrt %969 : vector<16x1xf32>
    %971 = vector.broadcast %970 : vector<16x1xf32> to vector<16x32xf32>
    %972 = arith.mulf %962, %971 : vector<16x32xf32>
    %973 = vector.broadcast %749 : vector<1x32xf32> to vector<16x32xf32>
    %974 = arith.mulf %972, %973 : vector<16x32xf32>
    %975 = vector.broadcast %750 : vector<1x32xf32> to vector<16x32xf32>
    %976 = arith.addf %974, %975 : vector<16x32xf32>
    %cst_387 = arith.constant dense<0.000000e+00> : vector<16x64xf32>
    %977 = tpu.matmul %976, %751, %cst_387 {dimension_numbers = #tpu.dot_dimension_numbers<[1], [0], [0], [1], [0, 0, 1, 1], [], []>} : vector<16x32xf32>, vector<32x64xf32>, vector<16x64xf32> -> vector<16x64xf32>
    %978 = vector.broadcast %752 : vector<1x64xf32> to vector<16x64xf32>
    %979 = arith.addf %977, %978 : vector<16x64xf32>
    %cst_388 = arith.constant 0.000000e+00 : f32
    %980 = vector.broadcast %cst_388 : f32 to vector<16x64xf32>
    %981 = arith.maximumf %979, %980 : vector<16x64xf32>
    %cst_389 = arith.constant dense<0.000000e+00> : vector<16x32xf32>
    %982 = tpu.matmul %981, %753, %cst_389 {dimension_numbers = #tpu.dot_dimension_numbers<[1], [0], [0], [1], [0, 0, 1, 1], [], []>} : vector<16x64xf32>, vector<64x32xf32>, vector<16x32xf32> -> vector<16x32xf32>
    %983 = vector.broadcast %754 : vector<1x32xf32> to vector<16x32xf32>
    %984 = arith.addf %982, %983 : vector<16x32xf32>
    %985 = arith.addf %976, %984 : vector<16x32xf32>
    %cst_390 = arith.constant dense<0.000000e+00> : vector<16xf32>
    %986 = vector.multi_reduction <add>, %985, %cst_390 [1] : vector<16x32xf32> to vector<16xf32>
    %987 = vector.shape_cast %986 : vector<16xf32> to vector<16x1xf32>
    %cst_391 = arith.constant 3.200000e+01 : f32
    %988 = vector.broadcast %cst_391 : f32 to vector<16x1xf32>
    %989 = arith.divf %987, %988 : vector<16x1xf32>
    %990 = vector.broadcast %989 : vector<16x1xf32> to vector<16x32xf32>
    %991 = arith.subf %985, %990 : vector<16x32xf32>
    %992 = arith.mulf %991, %991 : vector<16x32xf32>
    %cst_392 = arith.constant dense<0.000000e+00> : vector<16xf32>
    %993 = vector.multi_reduction <add>, %992, %cst_392 [1] : vector<16x32xf32> to vector<16xf32>
    %994 = vector.shape_cast %993 : vector<16xf32> to vector<16x1xf32>
    %cst_393 = arith.constant 3.200000e+01 : f32
    %995 = vector.broadcast %cst_393 : f32 to vector<16x1xf32>
    %996 = arith.divf %994, %995 : vector<16x1xf32>
    %cst_394 = arith.constant 9.99999974E-6 : f32
    %997 = vector.broadcast %cst_394 : f32 to vector<16x1xf32>
    %998 = arith.addf %996, %997 : vector<16x1xf32>
    %999 = math.rsqrt %998 : vector<16x1xf32>
    %1000 = vector.broadcast %999 : vector<16x1xf32> to vector<16x32xf32>
    %1001 = arith.mulf %991, %1000 : vector<16x32xf32>
    %1002 = vector.broadcast %755 : vector<1x32xf32> to vector<16x32xf32>
    %1003 = arith.mulf %1001, %1002 : vector<16x32xf32>
    %1004 = vector.broadcast %756 : vector<1x32xf32> to vector<16x32xf32>
    %1005 = arith.addf %1003, %1004 : vector<16x32xf32>
    %c0_395 = arith.constant 0 : index
    %c0_396 = arith.constant 0 : index
    %1006 = vector.load %arg80[%c0_395, %c0_396] : memref<32x32xf32, #tpu.memory_space<vmem>>, vector<32x32xf32>
    %c0_397 = arith.constant 0 : index
    %c0_398 = arith.constant 0 : index
    %1007 = vector.load %arg81[%c0_397, %c0_398] : memref<1x32xf32, #tpu.memory_space<vmem>>, vector<1x32xf32>
    %c0_399 = arith.constant 0 : index
    %c0_400 = arith.constant 0 : index
    %1008 = vector.load %arg82[%c0_399, %c0_400] : memref<32x32xf32, #tpu.memory_space<vmem>>, vector<32x32xf32>
    %c0_401 = arith.constant 0 : index
    %c0_402 = arith.constant 0 : index
    %1009 = vector.load %arg83[%c0_401, %c0_402] : memref<1x32xf32, #tpu.memory_space<vmem>>, vector<1x32xf32>
    %c0_403 = arith.constant 0 : index
    %c0_404 = arith.constant 0 : index
    %1010 = vector.load %arg84[%c0_403, %c0_404] : memref<32x32xf32, #tpu.memory_space<vmem>>, vector<32x32xf32>
    %c0_405 = arith.constant 0 : index
    %c0_406 = arith.constant 0 : index
    %1011 = vector.load %arg85[%c0_405, %c0_406] : memref<1x32xf32, #tpu.memory_space<vmem>>, vector<1x32xf32>
    %c0_407 = arith.constant 0 : index
    %c0_408 = arith.constant 0 : index
    %1012 = vector.load %arg86[%c0_407, %c0_408] : memref<32x32xf32, #tpu.memory_space<vmem>>, vector<32x32xf32>
    %c0_409 = arith.constant 0 : index
    %c0_410 = arith.constant 0 : index
    %1013 = vector.load %arg87[%c0_409, %c0_410] : memref<1x32xf32, #tpu.memory_space<vmem>>, vector<1x32xf32>
    %cst_411 = arith.constant dense<0.000000e+00> : vector<16x32xf32>
    %1014 = tpu.matmul %1005, %1006, %cst_411 {dimension_numbers = #tpu.dot_dimension_numbers<[1], [0], [0], [1], [0, 0, 1, 1], [], []>} : vector<16x32xf32>, vector<32x32xf32>, vector<16x32xf32> -> vector<16x32xf32>
    %1015 = vector.broadcast %1007 : vector<1x32xf32> to vector<16x32xf32>
    %1016 = arith.addf %1014, %1015 : vector<16x32xf32>
    %cst_412 = arith.constant dense<0.000000e+00> : vector<16x32xf32>
    %1017 = tpu.matmul %460, %1008, %cst_412 {dimension_numbers = #tpu.dot_dimension_numbers<[1], [0], [0], [1], [0, 0, 1, 1], [], []>} : vector<16x32xf32>, vector<32x32xf32>, vector<16x32xf32> -> vector<16x32xf32>
    %1018 = vector.broadcast %1009 : vector<1x32xf32> to vector<16x32xf32>
    %1019 = arith.addf %1017, %1018 : vector<16x32xf32>
    %cst_413 = arith.constant dense<0.000000e+00> : vector<16x32xf32>
    %1020 = tpu.matmul %3, %1010, %cst_413 {dimension_numbers = #tpu.dot_dimension_numbers<[1], [0], [0], [1], [0, 0, 1, 1], [], []>} : vector<16x32xf32>, vector<32x32xf32>, vector<16x32xf32> -> vector<16x32xf32>
    %1021 = vector.broadcast %1011 : vector<1x32xf32> to vector<16x32xf32>
    %1022 = arith.addf %1020, %1021 : vector<16x32xf32>
    %1023 = vector.shape_cast %1016 : vector<16x32xf32> to vector<2x8x32xf32>
    %1024 = vector.shape_cast %1019 : vector<16x32xf32> to vector<2x8x32xf32>
    %1025 = vector.shape_cast %1022 : vector<16x32xf32> to vector<2x8x32xf32>
    %cst_414 = arith.constant 0.000000e+00 : f32
    %1026 = vector.broadcast %cst_414 : f32 to vector<16x32xf32>
    %1027 = vector.extract_strided_slice %1023 {offsets = [0, 0, 0], sizes = [2, 8, 8], strides = [1, 1, 1]} : vector<2x8x32xf32> to vector<2x8x8xf32>
    %1028 = vector.extract_strided_slice %1024 {offsets = [0, 0, 0], sizes = [2, 8, 8], strides = [1, 1, 1]} : vector<2x8x32xf32> to vector<2x8x8xf32>
    %1029 = vector.extract_strided_slice %1025 {offsets = [0, 0, 0], sizes = [2, 8, 8], strides = [1, 1, 1]} : vector<2x8x32xf32> to vector<2x8x8xf32>
    "tpu.trace_start"() <{level = 10 : i32, message = "bqd,bkd->bqk"}> : () -> ()
    %cst_415 = arith.constant dense<0.000000e+00> : vector<2x8x8xf32>
    %1030 = tpu.matmul %1027, %1028, %cst_415 {dimension_numbers = #tpu.dot_dimension_numbers<[2], [2], [1], [1], [0, 0, 0, 1, 1, 1], [0], [0]>} : vector<2x8x8xf32>, vector<2x8x8xf32>, vector<2x8x8xf32> -> vector<2x8x8xf32>
    "tpu.trace_stop"() : () -> ()
    %cst_416 = arith.constant dense<0xFF800000> : vector<2x8xf32>
    %1031 = vector.multi_reduction <maximumf>, %1030, %cst_416 [2] : vector<2x8x8xf32> to vector<2x8xf32>
    %1032 = vector.shape_cast %1031 : vector<2x8xf32> to vector<2x8x1xf32>
    %1033 = vector.broadcast %1032 : vector<2x8x1xf32> to vector<2x8x8xf32>
    %1034 = arith.subf %1030, %1033 : vector<2x8x8xf32>
    %1035 = math.exp %1034 : vector<2x8x8xf32>
    %cst_417 = arith.constant dense<0.000000e+00> : vector<2x8xf32>
    %1036 = vector.multi_reduction <add>, %1035, %cst_417 [2] : vector<2x8x8xf32> to vector<2x8xf32>
    %1037 = vector.shape_cast %1036 : vector<2x8xf32> to vector<2x8x1xf32>
    %1038 = tpu.reciprocal %1037 {approx = true} : vector<2x8x1xf32> -> vector<2x8x1xf32>
    %1039 = vector.broadcast %1038 : vector<2x8x1xf32> to vector<2x8x8xf32>
    %1040 = arith.mulf %1035, %1039 : vector<2x8x8xf32>
    "tpu.trace_start"() <{level = 10 : i32, message = "bqk,bkd->bqd"}> : () -> ()
    %cst_418 = arith.constant dense<0.000000e+00> : vector<2x8x8xf32>
    %1041 = tpu.matmul %1040, %1029, %cst_418 {dimension_numbers = #tpu.dot_dimension_numbers<[2], [1], [1], [2], [0, 0, 0, 1, 1, 2], [0], [0]>} : vector<2x8x8xf32>, vector<2x8x8xf32>, vector<2x8x8xf32> -> vector<2x8x8xf32>
    "tpu.trace_stop"() : () -> ()
    %1042 = vector.shape_cast %1041 : vector<2x8x8xf32> to vector<16x8xf32>
    %1043 = vector.extract_strided_slice %1012 {offsets = [0, 0], sizes = [8, 32], strides = [1, 1]} : vector<32x32xf32> to vector<8x32xf32>
    %cst_419 = arith.constant dense<0.000000e+00> : vector<16x32xf32>
    %1044 = tpu.matmul %1042, %1043, %cst_419 {dimension_numbers = #tpu.dot_dimension_numbers<[1], [0], [0], [1], [0, 0, 1, 1], [], []>} : vector<16x8xf32>, vector<8x32xf32>, vector<16x32xf32> -> vector<16x32xf32>
    %1045 = arith.addf %1026, %1044 : vector<16x32xf32>
    %1046 = vector.extract_strided_slice %1023 {offsets = [0, 0, 8], sizes = [2, 8, 8], strides = [1, 1, 1]} : vector<2x8x32xf32> to vector<2x8x8xf32>
    %1047 = vector.extract_strided_slice %1024 {offsets = [0, 0, 8], sizes = [2, 8, 8], strides = [1, 1, 1]} : vector<2x8x32xf32> to vector<2x8x8xf32>
    %1048 = vector.extract_strided_slice %1025 {offsets = [0, 0, 8], sizes = [2, 8, 8], strides = [1, 1, 1]} : vector<2x8x32xf32> to vector<2x8x8xf32>
    "tpu.trace_start"() <{level = 10 : i32, message = "bqd,bkd->bqk"}> : () -> ()
    %cst_420 = arith.constant dense<0.000000e+00> : vector<2x8x8xf32>
    %1049 = tpu.matmul %1046, %1047, %cst_420 {dimension_numbers = #tpu.dot_dimension_numbers<[2], [2], [1], [1], [0, 0, 0, 1, 1, 1], [0], [0]>} : vector<2x8x8xf32>, vector<2x8x8xf32>, vector<2x8x8xf32> -> vector<2x8x8xf32>
    "tpu.trace_stop"() : () -> ()
    %cst_421 = arith.constant dense<0xFF800000> : vector<2x8xf32>
    %1050 = vector.multi_reduction <maximumf>, %1049, %cst_421 [2] : vector<2x8x8xf32> to vector<2x8xf32>
    %1051 = vector.shape_cast %1050 : vector<2x8xf32> to vector<2x8x1xf32>
    %1052 = vector.broadcast %1051 : vector<2x8x1xf32> to vector<2x8x8xf32>
    %1053 = arith.subf %1049, %1052 : vector<2x8x8xf32>
    %1054 = math.exp %1053 : vector<2x8x8xf32>
    %cst_422 = arith.constant dense<0.000000e+00> : vector<2x8xf32>
    %1055 = vector.multi_reduction <add>, %1054, %cst_422 [2] : vector<2x8x8xf32> to vector<2x8xf32>
    %1056 = vector.shape_cast %1055 : vector<2x8xf32> to vector<2x8x1xf32>
    %1057 = tpu.reciprocal %1056 {approx = true} : vector<2x8x1xf32> -> vector<2x8x1xf32>
    %1058 = vector.broadcast %1057 : vector<2x8x1xf32> to vector<2x8x8xf32>
    %1059 = arith.mulf %1054, %1058 : vector<2x8x8xf32>
    "tpu.trace_start"() <{level = 10 : i32, message = "bqk,bkd->bqd"}> : () -> ()
    %cst_423 = arith.constant dense<0.000000e+00> : vector<2x8x8xf32>
    %1060 = tpu.matmul %1059, %1048, %cst_423 {dimension_numbers = #tpu.dot_dimension_numbers<[2], [1], [1], [2], [0, 0, 0, 1, 1, 2], [0], [0]>} : vector<2x8x8xf32>, vector<2x8x8xf32>, vector<2x8x8xf32> -> vector<2x8x8xf32>
    "tpu.trace_stop"() : () -> ()
    %1061 = vector.shape_cast %1060 : vector<2x8x8xf32> to vector<16x8xf32>
    %1062 = vector.extract_strided_slice %1012 {offsets = [8, 0], sizes = [8, 32], strides = [1, 1]} : vector<32x32xf32> to vector<8x32xf32>
    %cst_424 = arith.constant dense<0.000000e+00> : vector<16x32xf32>
    %1063 = tpu.matmul %1061, %1062, %cst_424 {dimension_numbers = #tpu.dot_dimension_numbers<[1], [0], [0], [1], [0, 0, 1, 1], [], []>} : vector<16x8xf32>, vector<8x32xf32>, vector<16x32xf32> -> vector<16x32xf32>
    %1064 = arith.addf %1045, %1063 : vector<16x32xf32>
    %1065 = vector.extract_strided_slice %1023 {offsets = [0, 0, 16], sizes = [2, 8, 8], strides = [1, 1, 1]} : vector<2x8x32xf32> to vector<2x8x8xf32>
    %1066 = vector.extract_strided_slice %1024 {offsets = [0, 0, 16], sizes = [2, 8, 8], strides = [1, 1, 1]} : vector<2x8x32xf32> to vector<2x8x8xf32>
    %1067 = vector.extract_strided_slice %1025 {offsets = [0, 0, 16], sizes = [2, 8, 8], strides = [1, 1, 1]} : vector<2x8x32xf32> to vector<2x8x8xf32>
    "tpu.trace_start"() <{level = 10 : i32, message = "bqd,bkd->bqk"}> : () -> ()
    %cst_425 = arith.constant dense<0.000000e+00> : vector<2x8x8xf32>
    %1068 = tpu.matmul %1065, %1066, %cst_425 {dimension_numbers = #tpu.dot_dimension_numbers<[2], [2], [1], [1], [0, 0, 0, 1, 1, 1], [0], [0]>} : vector<2x8x8xf32>, vector<2x8x8xf32>, vector<2x8x8xf32> -> vector<2x8x8xf32>
    "tpu.trace_stop"() : () -> ()
    %cst_426 = arith.constant dense<0xFF800000> : vector<2x8xf32>
    %1069 = vector.multi_reduction <maximumf>, %1068, %cst_426 [2] : vector<2x8x8xf32> to vector<2x8xf32>
    %1070 = vector.shape_cast %1069 : vector<2x8xf32> to vector<2x8x1xf32>
    %1071 = vector.broadcast %1070 : vector<2x8x1xf32> to vector<2x8x8xf32>
    %1072 = arith.subf %1068, %1071 : vector<2x8x8xf32>
    %1073 = math.exp %1072 : vector<2x8x8xf32>
    %cst_427 = arith.constant dense<0.000000e+00> : vector<2x8xf32>
    %1074 = vector.multi_reduction <add>, %1073, %cst_427 [2] : vector<2x8x8xf32> to vector<2x8xf32>
    %1075 = vector.shape_cast %1074 : vector<2x8xf32> to vector<2x8x1xf32>
    %1076 = tpu.reciprocal %1075 {approx = true} : vector<2x8x1xf32> -> vector<2x8x1xf32>
    %1077 = vector.broadcast %1076 : vector<2x8x1xf32> to vector<2x8x8xf32>
    %1078 = arith.mulf %1073, %1077 : vector<2x8x8xf32>
    "tpu.trace_start"() <{level = 10 : i32, message = "bqk,bkd->bqd"}> : () -> ()
    %cst_428 = arith.constant dense<0.000000e+00> : vector<2x8x8xf32>
    %1079 = tpu.matmul %1078, %1067, %cst_428 {dimension_numbers = #tpu.dot_dimension_numbers<[2], [1], [1], [2], [0, 0, 0, 1, 1, 2], [0], [0]>} : vector<2x8x8xf32>, vector<2x8x8xf32>, vector<2x8x8xf32> -> vector<2x8x8xf32>
    "tpu.trace_stop"() : () -> ()
    %1080 = vector.shape_cast %1079 : vector<2x8x8xf32> to vector<16x8xf32>
    %1081 = vector.extract_strided_slice %1012 {offsets = [16, 0], sizes = [8, 32], strides = [1, 1]} : vector<32x32xf32> to vector<8x32xf32>
    %cst_429 = arith.constant dense<0.000000e+00> : vector<16x32xf32>
    %1082 = tpu.matmul %1080, %1081, %cst_429 {dimension_numbers = #tpu.dot_dimension_numbers<[1], [0], [0], [1], [0, 0, 1, 1], [], []>} : vector<16x8xf32>, vector<8x32xf32>, vector<16x32xf32> -> vector<16x32xf32>
    %1083 = arith.addf %1064, %1082 : vector<16x32xf32>
    %1084 = vector.extract_strided_slice %1023 {offsets = [0, 0, 24], sizes = [2, 8, 8], strides = [1, 1, 1]} : vector<2x8x32xf32> to vector<2x8x8xf32>
    %1085 = vector.extract_strided_slice %1024 {offsets = [0, 0, 24], sizes = [2, 8, 8], strides = [1, 1, 1]} : vector<2x8x32xf32> to vector<2x8x8xf32>
    %1086 = vector.extract_strided_slice %1025 {offsets = [0, 0, 24], sizes = [2, 8, 8], strides = [1, 1, 1]} : vector<2x8x32xf32> to vector<2x8x8xf32>
    "tpu.trace_start"() <{level = 10 : i32, message = "bqd,bkd->bqk"}> : () -> ()
    %cst_430 = arith.constant dense<0.000000e+00> : vector<2x8x8xf32>
    %1087 = tpu.matmul %1084, %1085, %cst_430 {dimension_numbers = #tpu.dot_dimension_numbers<[2], [2], [1], [1], [0, 0, 0, 1, 1, 1], [0], [0]>} : vector<2x8x8xf32>, vector<2x8x8xf32>, vector<2x8x8xf32> -> vector<2x8x8xf32>
    "tpu.trace_stop"() : () -> ()
    %cst_431 = arith.constant dense<0xFF800000> : vector<2x8xf32>
    %1088 = vector.multi_reduction <maximumf>, %1087, %cst_431 [2] : vector<2x8x8xf32> to vector<2x8xf32>
    %1089 = vector.shape_cast %1088 : vector<2x8xf32> to vector<2x8x1xf32>
    %1090 = vector.broadcast %1089 : vector<2x8x1xf32> to vector<2x8x8xf32>
    %1091 = arith.subf %1087, %1090 : vector<2x8x8xf32>
    %1092 = math.exp %1091 : vector<2x8x8xf32>
    %cst_432 = arith.constant dense<0.000000e+00> : vector<2x8xf32>
    %1093 = vector.multi_reduction <add>, %1092, %cst_432 [2] : vector<2x8x8xf32> to vector<2x8xf32>
    %1094 = vector.shape_cast %1093 : vector<2x8xf32> to vector<2x8x1xf32>
    %1095 = tpu.reciprocal %1094 {approx = true} : vector<2x8x1xf32> -> vector<2x8x1xf32>
    %1096 = vector.broadcast %1095 : vector<2x8x1xf32> to vector<2x8x8xf32>
    %1097 = arith.mulf %1092, %1096 : vector<2x8x8xf32>
    "tpu.trace_start"() <{level = 10 : i32, message = "bqk,bkd->bqd"}> : () -> ()
    %cst_433 = arith.constant dense<0.000000e+00> : vector<2x8x8xf32>
    %1098 = tpu.matmul %1097, %1086, %cst_433 {dimension_numbers = #tpu.dot_dimension_numbers<[2], [1], [1], [2], [0, 0, 0, 1, 1, 2], [0], [0]>} : vector<2x8x8xf32>, vector<2x8x8xf32>, vector<2x8x8xf32> -> vector<2x8x8xf32>
    "tpu.trace_stop"() : () -> ()
    %1099 = vector.shape_cast %1098 : vector<2x8x8xf32> to vector<16x8xf32>
    %1100 = vector.extract_strided_slice %1012 {offsets = [24, 0], sizes = [8, 32], strides = [1, 1]} : vector<32x32xf32> to vector<8x32xf32>
    %cst_434 = arith.constant dense<0.000000e+00> : vector<16x32xf32>
    %1101 = tpu.matmul %1099, %1100, %cst_434 {dimension_numbers = #tpu.dot_dimension_numbers<[1], [0], [0], [1], [0, 0, 1, 1], [], []>} : vector<16x8xf32>, vector<8x32xf32>, vector<16x32xf32> -> vector<16x32xf32>
    %1102 = arith.addf %1083, %1101 : vector<16x32xf32>
    %1103 = vector.broadcast %1013 : vector<1x32xf32> to vector<16x32xf32>
    %1104 = arith.addf %1102, %1103 : vector<16x32xf32>
    %c0_435 = arith.constant 0 : index
    %c0_436 = arith.constant 0 : index
    %1105 = vector.load %arg88[%c0_435, %c0_436] : memref<16x32xf32, #tpu.memory_space<vmem>>, vector<16x32xf32>
    tpu.vector_store %arg88[%c0_435, %c0_436], %1104 {strides = array<i32>} : memref<16x32xf32, #tpu.memory_space<vmem>>, vector<16x32xf32>,
    return
  }
}

</mosaic_0001>

<llo_original>
// kernel: gene_transformer_forward.1
$region0: #{gene_transformer_forward.1}
  #allocation0 [shape = 'u32[]', space=smem, size = 0x4, offset = 0x4, fixed_abs, tag = 'smem constant byte address 0x4 - core index']
  #allocation1 [shape = 'u32[72,128]{1,0:T(1,128)}', space=vmem, size = 0x9000, scoped, tag = 'internal scratch']
  %s0 = inlined_call_operand.smem [shape: u32[89], index: -1, kind: input, shape index: {}]
  %s1 = sld [smem:[%s0]]
  %s2 = scalar_lea.smem %s0, 1
  %s3 = sld [smem:[%s2]]
  %s4 = scalar_lea.smem %s0, 2
  %s5 = sld [smem:[%s4]]
  %s6 = scalar_lea.smem %s0, 3
  %s7 = sld [smem:[%s6]]
  %s8 = scalar_lea.smem %s0, 4
  %s9 = sld [smem:[%s8]]
  %s10 = scalar_lea.smem %s0, 5
  %s11 = sld [smem:[%s10]]
  %s12 = scalar_lea.smem %s0, 6
  %s13 = sld [smem:[%s12]]
  %s14 = scalar_lea.smem %s0, 7
  %s15 = sld [smem:[%s14]]
  %s16 = scalar_lea.smem %s0, 8
  %s17 = sld [smem:[%s16]]
  %s18 = scalar_lea.smem %s0, 9
  %s19 = sld [smem:[%s18]]
  %s20 = scalar_lea.smem %s0, 10
  %s21 = sld [smem:[%s20]]
  %s22 = scalar_lea.smem %s0, 11
  %s23 = sld [smem:[%s22]]
  %s24 = scalar_lea.smem %s0, 12
  %s25 = sld [smem:[%s24]]
  %s26 = scalar_lea.smem %s0, 13
  %s27 = sld [smem:[%s26]]
  %s28 = scalar_lea.smem %s0, 14
  %s29 = sld [smem:[%s28]]
  %s30 = scalar_lea.smem %s0, 15
  %s31 = sld [smem:[%s30]]
  %s32 = scalar_lea.smem %s0, 16
  %s33 = sld [smem:[%s32]]
  %s34 = scalar_lea.smem %s0, 17
  %s35 = sld [smem:[%s34]]
  %s36 = scalar_lea.smem %s0, 18
  %s37 = sld [smem:[%s36]]
  %s38 = scalar_lea.smem %s0, 19
  %s39 = sld [smem:[%s38]]
  %s40 = scalar_lea.smem %s0, 20
  %s41 = sld [smem:[%s40]]
  %s42 = scalar_lea.smem %s0, 21
  %s43 = sld [smem:[%s42]]
  %s44 = scalar_lea.smem %s0, 22
  %s45 = sld [smem:[%s44]]
  %s46 = scalar_lea.smem %s0, 23
  %s47 = sld [smem:[%s46]]
  %s48 = scalar_lea.smem %s0, 24
  %s49 = sld [smem:[%s48]]
  %s50 = scalar_lea.smem %s0, 25
  %s51 = sld [smem:[%s50]]
  %s52 = scalar_lea.smem %s0, 26
  %s53 = sld [smem:[%s52]]
  %s54 = scalar_lea.smem %s0, 27
  %s55 = sld [smem:[%s54]]
  %s56 = scalar_lea.smem %s0, 28
  %s57 = sld [smem:[%s56]]
  %s58 = scalar_lea.smem %s0, 29
  %s59 = sld [smem:[%s58]]
  %s60 = scalar_lea.smem %s0, 30
  %s61 = sld [smem:[%s60]]
  %s62 = scalar_lea.smem %s0, 31
  %s63 = sld [smem:[%s62]]
  %s64 = scalar_lea.smem %s0, 32
  %s65 = sld [smem:[%s64]]
  %s66 = scalar_lea.smem %s0, 33
  %s67 = sld [smem:[%s66]]
  %s68 = scalar_lea.smem %s0, 34
  %s69 = sld [smem:[%s68]]
  %s70 = scalar_lea.smem %s0, 35
  %s71 = sld [smem:[%s70]]
  %s72 = scalar_lea.smem %s0, 36
  %s73 = sld [smem:[%s72]]
  %s74 = scalar_lea.smem %s0, 37
  %s75 = sld [smem:[%s74]]
  %s76 = scalar_lea.smem %s0, 38
  %s77 = sld [smem:[%s76]]
  %s78 = scalar_lea.smem %s0, 39
  %s79 = sld [smem:[%s78]]
  %s80 = scalar_lea.smem %s0, 40
  %s81 = sld [smem:[%s80]]
  %s82 = scalar_lea.smem %s0, 41
  %s83 = sld [smem:[%s82]]
  %s84 = scalar_lea.smem %s0, 42
  %s85 = sld [smem:[%s84]]
  %s86 = scalar_lea.smem %s0, 43
  %s87 = sld [smem:[%s86]]
  %s88 = scalar_lea.smem %s0, 44
  %s89 = sld [smem:[%s88]]
  %s90 = scalar_lea.smem %s0, 45
  %s91 = sld [smem:[%s90]]
  %s92 = scalar_lea.smem %s0, 46
  %s93 = sld [smem:[%s92]]
  %s94 = scalar_lea.smem %s0, 47
  %s95 = sld [smem:[%s94]]
  %s96 = scalar_lea.smem %s0, 48
  %s97 = sld [smem:[%s96]]
  %s98 = scalar_lea.smem %s0, 49
  %s99 = sld [smem:[%s98]]
  %s100 = scalar_lea.smem %s0, 50
  %s101 = sld [smem:[%s100]]
  %s102 = scalar_lea.smem %s0, 51
  %s103 = sld [smem:[%s102]]
  %s104 = scalar_lea.smem %s0, 52
  %s105 = sld [smem:[%s104]]
  %s106 = scalar_lea.smem %s0, 53
  %s107 = sld [smem:[%s106]]
  %s108 = scalar_lea.smem %s0, 54
  %s109 = sld [smem:[%s108]]
  %s110 = scalar_lea.smem %s0, 55
  %s111 = sld [smem:[%s110]]
  %s112 = scalar_lea.smem %s0, 56
  %s113 = sld [smem:[%s112]]
  %s114 = scalar_lea.smem %s0, 57
  %s115 = sld [smem:[%s114]]
  %s116 = scalar_lea.smem %s0, 58
  %s117 = sld [smem:[%s116]]
  %s118 = scalar_lea.smem %s0, 59
  %s119 = sld [smem:[%s118]]
  %s120 = scalar_lea.smem %s0, 60
  %s121 = sld [smem:[%s120]]
  %s122 = scalar_lea.smem %s0, 61
  %s123 = sld [smem:[%s122]]
  %s124 = scalar_lea.smem %s0, 62
  %s125 = sld [smem:[%s124]]
  %s126 = scalar_lea.smem %s0, 63
  %s127 = sld [smem:[%s126]]
  %s128 = scalar_lea.smem %s0, 64
  %s129 = sld [smem:[%s128]]
  %s130 = scalar_lea.smem %s0, 65
  %s131 = sld [smem:[%s130]]
  %s132 = scalar_lea.smem %s0, 66
  %s133 = sld [smem:[%s132]]
  %s134 = scalar_lea.smem %s0, 67
  %s135 = sld [smem:[%s134]]
  %s136 = scalar_lea.smem %s0, 68
  %s137 = sld [smem:[%s136]]
  %s138 = scalar_lea.smem %s0, 69
  %s139 = sld [smem:[%s138]]
  %s140 = scalar_lea.smem %s0, 70
  %s141 = sld [smem:[%s140]]
  %s142 = scalar_lea.smem %s0, 71
  %s143 = sld [smem:[%s142]]
  %s144 = scalar_lea.smem %s0, 72
  %s145 = sld [smem:[%s144]]
  %s146 = scalar_lea.smem %s0, 73
  %s147 = sld [smem:[%s146]]
  %s148 = scalar_lea.smem %s0, 74
  %s149 = sld [smem:[%s148]]
  %s150 = scalar_lea.smem %s0, 75
  %s151 = sld [smem:[%s150]]
  %s152 = scalar_lea.smem %s0, 76
  %s153 = sld [smem:[%s152]]
  %s154 = scalar_lea.smem %s0, 77
  %s155 = sld [smem:[%s154]]
  %s156 = scalar_lea.smem %s0, 78
  %s157 = sld [smem:[%s156]]
  %s158 = scalar_lea.smem %s0, 79
  %s159 = sld [smem:[%s158]]
  %s160 = scalar_lea.smem %s0, 80
  %s161 = sld [smem:[%s160]]
  %s162 = scalar_lea.smem %s0, 81
  %s163 = sld [smem:[%s162]]
  %s164 = scalar_lea.smem %s0, 82
  %s165 = sld [smem:[%s164]]
  %s166 = scalar_lea.smem %s0, 83
  %s167 = sld [smem:[%s166]]
  %s168 = scalar_lea.smem %s0, 84
  %s169 = sld [smem:[%s168]]
  %s170 = scalar_lea.smem %s0, 85
  %s171 = sld [smem:[%s170]]
  %s172 = scalar_lea.smem %s0, 86
  %s173 = sld [smem:[%s172]]
  %s174 = scalar_lea.smem %s0, 87
  %s175 = sld [smem:[%s174]]
  %s176 = scalar_lea.smem %s0, 88
  %s177 = sld [smem:[%s176]]
  %s178 = sld [smem:[#allocation0]]
  $region566: #{gene_transformer_forward.1} parent=0
    _
  %s180 = ssub.s32 1, %s178
  %s181 = scalar_select 0, %s180, %s178
  $region1: #{gene_transformer_forward.1} parent=0
    #allocation2 [shape = 'u8[512]{0}', space=vmem, size = 0x400, scoped, tag = 'input window, operand 11, single buffered']
    #allocation3 [shape = 's32[1]{0}', space=sflag, size = 0x4, scoped, tag = 'scoped memory for gene_transformer_forward.1']
    #allocation4 [shape = 'u8[512]{0}', space=vmem, size = 0x400, scoped, tag = 'input window, operand 13, single buffered']
    #allocation5 [shape = 's32[1]{0}', space=sflag, size = 0x4, scoped, tag = 'scoped memory for gene_transformer_forward.1']
    #allocation6 [shape = 'u8[512]{0}', space=vmem, size = 0x400, scoped, tag = 'input window, operand 14, single buffered']
    #allocation7 [shape = 'u8[512]{0}', space=vmem, size = 0x400, scoped, tag = 'input window, operand 15, single buffered']
    #allocation8 [shape = 's32[1]{0}', space=sflag, size = 0x4, scoped, tag = 'scoped memory for gene_transformer_forward.1']
    #allocation9 [shape = 'u8[512]{0}', space=vmem, size = 0x400, scoped, tag = 'input window, operand 17, single buffered']
    #allocation10 [shape = 'u8[512]{0}', space=vmem, size = 0x400, scoped, tag = 'input window, operand 19, single buffered']
    #allocation11 [shape = 's32[1]{0}', space=sflag, size = 0x4, scoped, tag = 'scoped memory for gene_transformer_forward.1']
    #allocation12 [shape = 'u8[512]{0}', space=vmem, size = 0x400, scoped, tag = 'input window, operand 20, single buffered']
    #allocation13 [shape = 'u8[512]{0}', space=vmem, size = 0x400, scoped, tag = 'input window, operand 21, single buffered']
    #allocation14 [shape = 's32[1]{0}', space=sflag, size = 0x4, scoped, tag = 'scoped memory for gene_transformer_forward.1']
    #allocation15 [shape = 'u8[512]{0}', space=vmem, size = 0x400, scoped, tag = 'input window, operand 23, single buffered']
    #allocation16 [shape = 'u8[512]{0}', space=vmem, size = 0x400, scoped, tag = 'input window, operand 25, single buffered']
    #allocation17 [shape = 's32[1]{0}', space=sflag, size = 0x4, scoped, tag = 'scoped memory for gene_transformer_forward.1']
    #allocation18 [shape = 'u8[512]{0}', space=vmem, size = 0x400, scoped, tag = 'input window, operand 26, single buffered']
    #allocation19 [shape = 'u8[512]{0}', space=vmem, size = 0x400, scoped, tag = 'input window, operand 27, single buffered']
    #allocation20 [shape = 's32[1]{0}', space=sflag, size = 0x4, scoped, tag = 'scoped memory for gene_transformer_forward.1']
    #allocation21 [shape = 'u8[512]{0}', space=vmem, size = 0x400, scoped, tag = 'input window, operand 29, single buffered']
    #allocation22 [shape = 'u8[512]{0}', space=vmem, size = 0x400, scoped, tag = 'input window, operand 31, single buffered']
    #allocation23 [shape = 's32[1]{0}', space=sflag, size = 0x4, scoped, tag = 'scoped memory for gene_transformer_forward.1']
    #allocation24 [shape = 'u8[512]{0}', space=vmem, size = 0x400, scoped, tag = 'input window, operand 32, single buffered']
    #allocation25 [shape = 'u8[512]{0}', space=vmem, size = 0x400, scoped, tag = 'input window, operand 33, single buffered']
    #allocation26 [shape = 's32[1]{0}', space=sflag, size = 0x4, scoped, tag = 'scoped memory for gene_transformer_forward.1']
    #allocation27 [shape = 'u8[512]{0}', space=vmem, size = 0x400, scoped, tag = 'input window, operand 35, single buffered']
    #allocation28 [shape = 'u8[512]{0}', space=vmem, size = 0x400, scoped, tag = 'input window, operand 37, single buffered']
    #allocation29 [shape = 's32[1]{0}', space=sflag, size = 0x4, scoped, tag = 'scoped memory for gene_transformer_forward.1']
    #allocation30 [shape = 'u8[512]{0}', space=vmem, size = 0x400, scoped, tag = 'input window, operand 38, single buffered']
    #allocation31 [shape = 'u8[512]{0}', space=vmem, size = 0x400, scoped, tag = 'input window, operand 39, single buffered']
    #allocation32 [shape = 's32[1]{0}', space=sflag, size = 0x4, scoped, tag = 'scoped memory for gene_transformer_forward.1']
    #allocation33 [shape = 'u8[512]{0}', space=vmem, size = 0x400, scoped, tag = 'input window, operand 44, single buffered']
    #allocation34 [shape = 'u8[512]{0}', space=vmem, size = 0x400, scoped, tag = 'input window, operand 47, single buffered']
    #allocation35 [shape = 's32[1]{0}', space=sflag, size = 0x4, scoped, tag = 'scoped memory for gene_transformer_forward.1']
    #allocation36 [shape = 'u8[512]{0}', space=vmem, size = 0x400, scoped, tag = 'input window, operand 49, single buffered']
    #allocation37 [shape = 'u8[512]{0}', space=vmem, size = 0x400, scoped, tag = 'input window, operand 51, single buffered']
    #allocation38 [shape = 's32[1]{0}', space=sflag, size = 0x4, scoped, tag = 'scoped memory for gene_transformer_forward.1']
    #allocation39 [shape = 'u8[512]{0}', space=vmem, size = 0x400, scoped, tag = 'input window, operand 52, single buffered']
    #allocation40 [shape = 'u8[512]{0}', space=vmem, size = 0x400, scoped, tag = 'input window, operand 53, single buffered']
    #allocation41 [shape = 's32[1]{0}', space=sflag, size = 0x4, scoped, tag = 'scoped memory for gene_transformer_forward.1']
    #allocation42 [shape = 'u8[512]{0}', space=vmem, size = 0x400, scoped, tag = 'input window, operand 55, single buffered']
    #allocation43 [shape = 'u8[512]{0}', space=vmem, size = 0x400, scoped, tag = 'input window, operand 57, single buffered']
    #allocation44 [shape = 's32[1]{0}', space=sflag, size = 0x4, scoped, tag = 'scoped memory for gene_transformer_forward.1']
    #allocation45 [shape = 'u8[512]{0}', space=vmem, size = 0x400, scoped, tag = 'input window, operand 58, single buffered']
    #allocation46 [shape = 'u8[512]{0}', space=vmem, size = 0x400, scoped, tag = 'input window, operand 59, single buffered']
    #allocation47 [shape = 's32[1]{0}', space=sflag, size = 0x4, scoped, tag = 'scoped memory for gene_transformer_forward.1']
    #allocation48 [shape = 'u8[512]{0}', space=vmem, size = 0x400, scoped, tag = 'input window, operand 61, single buffered']
    #allocation49 [shape = 'u8[512]{0}', space=vmem, size = 0x400, scoped, tag = 'input window, operand 63, single buffered']
    #allocation50 [shape = 's32[1]{0}', space=sflag, size = 0x4, scoped, tag = 'scoped memory for gene_transformer_forward.1']
    #allocation51 [shape = 'u8[512]{0}', space=vmem, size = 0x400, scoped, tag = 'input window, operand 64, single buffered']
    #allocation52 [shape = 'u8[512]{0}', space=vmem, size = 0x400, scoped, tag = 'input window, operand 65, single buffered']
    #allocation53 [shape = 's32[1]{0}', space=sflag, size = 0x4, scoped, tag = 'scoped memory for gene_transformer_forward.1']
    #allocation54 [shape = 'u8[512]{0}', space=vmem, size = 0x400, scoped, tag = 'input window, operand 67, single buffered']
    #allocation55 [shape = 'u8[512]{0}', space=vmem, size = 0x400, scoped, tag = 'input window, operand 69, single buffered']
    #allocation56 [shape = 's32[1]{0}', space=sflag, size = 0x4, scoped, tag = 'scoped memory for gene_transformer_forward.1']
    #allocation57 [shape = 'u8[512]{0}', space=vmem, size = 0x400, scoped, tag = 'input window, operand 71, single buffered']
    #allocation58 [shape = 'u8[512]{0}', space=vmem, size = 0x400, scoped, tag = 'input window, operand 72, single buffered']
    #allocation59 [shape = 's32[1]{0}', space=sflag, size = 0x4, scoped, tag = 'scoped memory for gene_transformer_forward.1']
    #allocation60 [shape = 'u8[512]{0}', space=vmem, size = 0x400, scoped, tag = 'input window, operand 73, single buffered']
    #allocation61 [shape = 'u8[512]{0}', space=vmem, size = 0x400, scoped, tag = 'input window, operand 75, single buffered']
    #allocation62 [shape = 's32[1]{0}', space=sflag, size = 0x4, scoped, tag = 'scoped memory for gene_transformer_forward.1']
    #allocation63 [shape = 'u8[512]{0}', space=vmem, size = 0x400, scoped, tag = 'input window, operand 77, single buffered']
    #allocation64 [shape = 'u8[512]{0}', space=vmem, size = 0x400, scoped, tag = 'input window, operand 78, single buffered']
    #allocation65 [shape = 's32[1]{0}', space=sflag, size = 0x4, scoped, tag = 'scoped memory for gene_transformer_forward.1']
    #allocation66 [shape = 'u8[512]{0}', space=vmem, size = 0x400, scoped, tag = 'input window, operand 79, single buffered']
    #allocation67 [shape = 'u8[16384]{0}', space=vmem, size = 0x4000, scoped, tag = 'input window, operand 80, single buffered']
    #allocation68 [shape = 's32[1]{0}', space=sflag, size = 0x4, scoped, tag = 'scoped memory for gene_transformer_forward.1']
    #allocation69 [shape = 'u8[512]{0}', space=vmem, size = 0x400, scoped, tag = 'input window, operand 81, single buffered']
    #allocation70 [shape = 'u8[16384]{0}', space=vmem, size = 0x4000, scoped, tag = 'input window, operand 82, single buffered']
    #allocation71 [shape = 's32[1]{0}', space=sflag, size = 0x4, scoped, tag = 'scoped memory for gene_transformer_forward.1']
    #allocation72 [shape = 'u8[512]{0}', space=vmem, size = 0x400, scoped, tag = 'input window, operand 83, single buffered']
    #allocation73 [shape = 'u8[16384]{0}', space=vmem, size = 0x4000, scoped, tag = 'input window, operand 84, single buffered']
    #allocation74 [shape = 's32[1]{0}', space=sflag, size = 0x4, scoped, tag = 'scoped memory for gene_transformer_forward.1']
    #allocation75 [shape = 'u8[512]{0}', space=vmem, size = 0x400, scoped, tag = 'input window, operand 85, single buffered']
    #allocation76 [shape = 'u8[16384]{0}', space=vmem, size = 0x4000, scoped, tag = 'input window, operand 86, single buffered']
    #allocation77 [shape = 's32[1]{0}', space=sflag, size = 0x4, scoped, tag = 'scoped memory for gene_transformer_forward.1']
    #allocation78 [shape = 'u8[512]{0}', space=vmem, size = 0x400, scoped, tag = 'input window, operand 87, single buffered']
    %182 = vsyncpa [#allocation3], 0
    %183 = vsyncpa [#allocation5], 0
    %184 = vsyncpa [#allocation8], 0
    %185 = vsyncpa [#allocation11], 0
    %186 = vsyncpa [#allocation14], 0
    %187 = vsyncpa [#allocation17], 0
    %188 = vsyncpa [#allocation20], 0
    %189 = vsyncpa [#allocation23], 0
    %190 = vsyncpa [#allocation26], 0
    %191 = vsyncpa [#allocation29], 0
    %192 = vsyncpa [#allocation32], 0
    %193 = vsyncpa [#allocation35], 0
    %194 = vsyncpa [#allocation38], 0
    %195 = vsyncpa [#allocation41], 0
    %196 = vsyncpa [#allocation44], 0
    %197 = vsyncpa [#allocation47], 0
    %198 = vsyncpa [#allocation50], 0
    %199 = vsyncpa [#allocation53], 0
    %200 = vsyncpa [#allocation56], 0
    %201 = vsyncpa [#allocation59], 0
    %202 = vsyncpa [#allocation62], 0
    %203 = vsyncpa [#allocation65], 0
    %204 = vsyncpa [#allocation68], 0
    %205 = vsyncpa [#allocation71], 0
    %206 = vsyncpa [#allocation74], 0
    %207 = vsyncpa [#allocation77], 0
    // Predicated region
    $region2: #{gene_transformer_forward.1} parent=1 // pred_check
      _
    $region3: #{gene_transformer_forward.1} parent=1 // pred_check_branch
      %209 = sbr.rel (0) target = $region5
    $region4: #{gene_transformer_forward.1} parent=1 // pred_region
      _
    $region5: #{gene_transformer_forward.1} parent=1 // pred_fallthru
      _
    // Predicated region
    $region6: #{gene_transformer_forward.1} parent=1 // pred_check
      _
    $region7: #{gene_transformer_forward.1} parent=1 // pred_check_branch
      %211 = sbr.rel (0) target = $region9
    $region8: #{gene_transformer_forward.1} parent=1 // pred_region
      _
    $region9: #{gene_transformer_forward.1} parent=1 // pred_fallthru
      _
    // Predicated region
    $region10: #{gene_transformer_forward.1} parent=1 // pred_check
      _
    $region11: #{gene_transformer_forward.1} parent=1 // pred_check_branch
      %213 = sbr.rel (0) target = $region13
    $region12: #{gene_transformer_forward.1} parent=1 // pred_region
      _
    $region13: #{gene_transformer_forward.1} parent=1 // pred_fallthru
      _
    // Predicated region
    $region14: #{gene_transformer_forward.1} parent=1 // pred_check
      _
    $region15: #{gene_transformer_forward.1} parent=1 // pred_check_branch
      %215 = sbr.rel (0) target = $region17
    $region16: #{gene_transformer_forward.1} parent=1 // pred_region
      _
    $region17: #{gene_transformer_forward.1} parent=1 // pred_fallthru
      _
    // Predicated region
    $region18: #{gene_transformer_forward.1} parent=1 // pred_check
      _
    $region19: #{gene_transformer_forward.1} parent=1 // pred_check_branch
      %217 = sbr.rel (0) target = $region21
    $region20: #{gene_transformer_forward.1} parent=1 // pred_region
      _
    $region21: #{gene_transformer_forward.1} parent=1 // pred_fallthru
      _
    // Predicated region
    $region22: #{gene_transformer_forward.1} parent=1 // pred_check
      _
    $region23: #{gene_transformer_forward.1} parent=1 // pred_check_branch
      %219 = sbr.rel (0) target = $region25
    $region24: #{gene_transformer_forward.1} parent=1 // pred_region
      _
    $region25: #{gene_transformer_forward.1} parent=1 // pred_fallthru
      _
    // Predicated region
    $region26: #{gene_transformer_forward.1} parent=1 // pred_check
      _
    $region27: #{gene_transformer_forward.1} parent=1 // pred_check_branch
      %221 = sbr.rel (0) target = $region29
    $region28: #{gene_transformer_forward.1} parent=1 // pred_region
      _
    $region29: #{gene_transformer_forward.1} parent=1 // pred_fallthru
      _
    // Predicated region
    $region30: #{gene_transformer_forward.1} parent=1 // pred_check
      _
    $region31: #{gene_transformer_forward.1} parent=1 // pred_check_branch
      %223 = sbr.rel (0) target = $region33
    $region32: #{gene_transformer_forward.1} parent=1 // pred_region
      _
    $region33: #{gene_transformer_forward.1} parent=1 // pred_fallthru
      _
    // Predicated region
    $region34: #{gene_transformer_forward.1} parent=1 // pred_check
      _
    $region35: #{gene_transformer_forward.1} parent=1 // pred_check_branch
      %225 = sbr.rel (0) target = $region37
    $region36: #{gene_transformer_forward.1} parent=1 // pred_region
      _
    $region37: #{gene_transformer_forward.1} parent=1 // pred_fallthru
      _
    // Predicated region
    $region38: #{gene_transformer_forward.1} parent=1 // pred_check
      _
    $region39: #{gene_transformer_forward.1} parent=1 // pred_check_branch
      %227 = sbr.rel (0) target = $region41
    $region40: #{gene_transformer_forward.1} parent=1 // pred_region
      _
    $region41: #{gene_transformer_forward.1} parent=1 // pred_fallthru
      _
    // Predicated region
    $region42: #{gene_transformer_forward.1} parent=1 // pred_check
      _
    $region43: #{gene_transformer_forward.1} parent=1 // pred_check_branch
      %229 = sbr.rel (0) target = $region45
    $region44: #{gene_transformer_forward.1} parent=1 // pred_region
      _
    $region45: #{gene_transformer_forward.1} parent=1 // pred_fallthru
      _
    // Predicated region
    $region46: #{gene_transformer_forward.1} parent=1 // pred_check
      _
    $region47: #{gene_transformer_forward.1} parent=1 // pred_check_branch
      %231 = sbr.rel (0) target = $region49
    $region48: #{gene_transformer_forward.1} parent=1 // pred_region
      %233 = vsyncadd [#allocation3], 0
      %s235 = sshll.u32 %s23, 4
      %s236 = int_to_ptr.hbm [resolvable:$true] %s235
      %s237 = sshll.u32 [#allocation2], 4
      %s238 = int_to_ptr.vmem [resolvable:$true] %s237
      %240 = dma.hbm_to_vmem [thread:$0]  %s236, 16, %s238, [#allocation3]
    $region49: #{gene_transformer_forward.1} parent=1 // pred_fallthru
      _
    // Predicated region
    $region50: #{gene_transformer_forward.1} parent=1 // pred_check
      _
    $region51: #{gene_transformer_forward.1} parent=1 // pred_check_branch
      %242 = sbr.rel (0) target = $region53
    $region52: #{gene_transformer_forward.1} parent=1 // pred_region
      _
    $region53: #{gene_transformer_forward.1} parent=1 // pred_fallthru
      _
    // Predicated region
    $region54: #{gene_transformer_forward.1} parent=1 // pred_check
      _
    $region55: #{gene_transformer_forward.1} parent=1 // pred_check_branch
      %244 = sbr.rel (0) target = $region57
    $region56: #{gene_transformer_forward.1} parent=1 // pred_region
      %246 = vsyncadd [#allocation5], 0
      %s248 = sshll.u32 %s27, 4
      %s249 = int_to_ptr.hbm [resolvable:$true] %s248
      %s250 = sshll.u32 [#allocation4], 4
      %s251 = int_to_ptr.vmem [resolvable:$true] %s250
      %253 = dma.hbm_to_vmem [thread:$0]  %s249, 16, %s251, [#allocation5]
    $region57: #{gene_transformer_forward.1} parent=1 // pred_fallthru
      _
    // Predicated region
    $region58: #{gene_transformer_forward.1} parent=1 // pred_check
      _
    $region59: #{gene_transformer_forward.1} parent=1 // pred_check_branch
      %255 = sbr.rel (0) target = $region61
    $region60: #{gene_transformer_forward.1} parent=1 // pred_region
      %257 = vsyncadd [#allocation5], 0
      %s259 = sshll.u32 %s29, 4
      %s260 = int_to_ptr.hbm [resolvable:$true] %s259
      %s261 = sshll.u32 [#allocation6], 4
      %s262 = int_to_ptr.vmem [resolvable:$true] %s261
      %264 = dma.hbm_to_vmem [thread:$0]  %s260, 16, %s262, [#allocation5]
    $region61: #{gene_transformer_forward.1} parent=1 // pred_fallthru
      _
    // Predicated region
    $region62: #{gene_transformer_forward.1} parent=1 // pred_check
      _
    $region63: #{gene_transformer_forward.1} parent=1 // pred_check_branch
      %266 = sbr.rel (0) target = $region65
    $region64: #{gene_transformer_forward.1} parent=1 // pred_region
      %268 = vsyncadd [#allocation8], 0
      %s270 = sshll.u32 %s31, 4
      %s271 = int_to_ptr.hbm [resolvable:$true] %s270
      %s272 = sshll.u32 [#allocation7], 4
      %s273 = int_to_ptr.vmem [resolvable:$true] %s272
      %275 = dma.hbm_to_vmem [thread:$0]  %s271, 16, %s273, [#allocation8]
    $region65: #{gene_transformer_forward.1} parent=1 // pred_fallthru
      _
    // Predicated region
    $region66: #{gene_transformer_forward.1} parent=1 // pred_check
      _
    $region67: #{gene_transformer_forward.1} parent=1 // pred_check_branch
      %277 = sbr.rel (0) target = $region69
    $region68: #{gene_transformer_forward.1} parent=1 // pred_region
      _
    $region69: #{gene_transformer_forward.1} parent=1 // pred_fallthru
      _
    // Predicated region
    $region70: #{gene_transformer_forward.1} parent=1 // pred_check
      _
    $region71: #{gene_transformer_forward.1} parent=1 // pred_check_branch
      %279 = sbr.rel (0) target = $region73
    $region72: #{gene_transformer_forward.1} parent=1 // pred_region
      %281 = vsyncadd [#allocation8], 0
      %s283 = sshll.u32 %s35, 4
      %s284 = int_to_ptr.hbm [resolvable:$true] %s283
      %s285 = sshll.u32 [#allocation9], 4
      %s286 = int_to_ptr.vmem [resolvable:$true] %s285
      %288 = dma.hbm_to_vmem [thread:$0]  %s284, 16, %s286, [#allocation8]
    $region73: #{gene_transformer_forward.1} parent=1 // pred_fallthru
      _
    // Predicated region
    $region74: #{gene_transformer_forward.1} parent=1 // pred_check
      _
    $region75: #{gene_transformer_forward.1} parent=1 // pred_check_branch
      %290 = sbr.rel (0) target = $region77
    $region76: #{gene_transformer_forward.1} parent=1 // pred_region
      _
    $region77: #{gene_transformer_forward.1} parent=1 // pred_fallthru
      _
    // Predicated region
    $region78: #{gene_transformer_forward.1} parent=1 // pred_check
      _
    $region79: #{gene_transformer_forward.1} parent=1 // pred_check_branch
      %292 = sbr.rel (0) target = $region81
    $region80: #{gene_transformer_forward.1} parent=1 // pred_region
      %294 = vsyncadd [#allocation11], 0
      %s296 = sshll.u32 %s39, 4
      %s297 = int_to_ptr.hbm [resolvable:$true] %s296
      %s298 = sshll.u32 [#allocation10], 4
      %s299 = int_to_ptr.vmem [resolvable:$true] %s298
      %301 = dma.hbm_to_vmem [thread:$0]  %s297, 16, %s299, [#allocation11]
    $region81: #{gene_transformer_forward.1} parent=1 // pred_fallthru
      _
    // Predicated region
    $region82: #{gene_transformer_forward.1} parent=1 // pred_check
      _
    $region83: #{gene_transformer_forward.1} parent=1 // pred_check_branch
      %303 = sbr.rel (0) target = $region85
    $region84: #{gene_transformer_forward.1} parent=1 // pred_region
      %305 = vsyncadd [#allocation11], 0
      %s307 = sshll.u32 %s41, 4
      %s308 = int_to_ptr.hbm [resolvable:$true] %s307
      %s309 = sshll.u32 [#allocation12], 4
      %s310 = int_to_ptr.vmem [resolvable:$true] %s309
      %312 = dma.hbm_to_vmem [thread:$0]  %s308, 16, %s310, [#allocation11]
    $region85: #{gene_transformer_forward.1} parent=1 // pred_fallthru
      _
    // Predicated region
    $region86: #{gene_transformer_forward.1} parent=1 // pred_check
      _
    $region87: #{gene_transformer_forward.1} parent=1 // pred_check_branch
      %314 = sbr.rel (0) target = $region89
    $region88: #{gene_transformer_forward.1} parent=1 // pred_region
      %316 = vsyncadd [#allocation14], 0
      %s318 = sshll.u32 %s43, 4
      %s319 = int_to_ptr.hbm [resolvable:$true] %s318
      %s320 = sshll.u32 [#allocation13], 4
      %s321 = int_to_ptr.vmem [resolvable:$true] %s320
      %323 = dma.hbm_to_vmem [thread:$0]  %s319, 16, %s321, [#allocation14]
    $region89: #{gene_transformer_forward.1} parent=1 // pred_fallthru
      _
    // Predicated region
    $region90: #{gene_transformer_forward.1} parent=1 // pred_check
      _
    $region91: #{gene_transformer_forward.1} parent=1 // pred_check_branch
      %325 = sbr.rel (0) target = $region93
    $region92: #{gene_transformer_forward.1} parent=1 // pred_region
      _
    $region93: #{gene_transformer_forward.1} parent=1 // pred_fallthru
      _
    // Predicated region
    $region94: #{gene_transformer_forward.1} parent=1 // pred_check
      _
    $region95: #{gene_transformer_forward.1} parent=1 // pred_check_branch
      %327 = sbr.rel (0) target = $region97
    $region96: #{gene_transformer_forward.1} parent=1 // pred_region
      %329 = vsyncadd [#allocation14], 0
      %s331 = sshll.u32 %s47, 4
      %s332 = int_to_ptr.hbm [resolvable:$true] %s331
      %s333 = sshll.u32 [#allocation15], 4
      %s334 = int_to_ptr.vmem [resolvable:$true] %s333
      %336 = dma.hbm_to_vmem [thread:$0]  %s332, 16, %s334, [#allocation14]
    $region97: #{gene_transformer_forward.1} parent=1 // pred_fallthru
      _
    // Predicated region
    $region98: #{gene_transformer_forward.1} parent=1 // pred_check
      _
    $region99: #{gene_transformer_forward.1} parent=1 // pred_check_branch
      %338 = sbr.rel (0) target = $region101
    $region100: #{gene_transformer_forward.1} parent=1 // pred_region
      _
    $region101: #{gene_transformer_forward.1} parent=1 // pred_fallthru
      _
    // Predicated region
    $region102: #{gene_transformer_forward.1} parent=1 // pred_check
      _
    $region103: #{gene_transformer_forward.1} parent=1 // pred_check_branch
      %340 = sbr.rel (0) target = $region105
    $region104: #{gene_transformer_forward.1} parent=1 // pred_region
      %342 = vsyncadd [#allocation17], 0
      %s344 = sshll.u32 %s51, 4
      %s345 = int_to_ptr.hbm [resolvable:$true] %s344
      %s346 = sshll.u32 [#allocation16], 4
      %s347 = int_to_ptr.vmem [resolvable:$true] %s346
      %349 = dma.hbm_to_vmem [thread:$0]  %s345, 16, %s347, [#allocation17]
    $region105: #{gene_transformer_forward.1} parent=1 // pred_fallthru
      _
    // Predicated region
    $region106: #{gene_transformer_forward.1} parent=1 // pred_check
      _
    $region107: #{gene_transformer_forward.1} parent=1 // pred_check_branch
      %351 = sbr.rel (0) target = $region109
    $region108: #{gene_transformer_forward.1} parent=1 // pred_region
      %353 = vsyncadd [#allocation17], 0
      %s355 = sshll.u32 %s53, 4
      %s356 = int_to_ptr.hbm [resolvable:$true] %s355
      %s357 = sshll.u32 [#allocation18], 4
      %s358 = int_to_ptr.vmem [resolvable:$true] %s357
      %360 = dma.hbm_to_vmem [thread:$0]  %s356, 16, %s358, [#allocation17]
    $region109: #{gene_transformer_forward.1} parent=1 // pred_fallthru
      _
    // Predicated region
    $region110: #{gene_transformer_forward.1} parent=1 // pred_check
      _
    $region111: #{gene_transformer_forward.1} parent=1 // pred_check_branch
      %362 = sbr.rel (0) target = $region113
    $region112: #{gene_transformer_forward.1} parent=1 // pred_region
      %364 = vsyncadd [#allocation20], 0
      %s366 = sshll.u32 %s55, 4
      %s367 = int_to_ptr.hbm [resolvable:$true] %s366
      %s368 = sshll.u32 [#allocation19], 4
      %s369 = int_to_ptr.vmem [resolvable:$true] %s368
      %371 = dma.hbm_to_vmem [thread:$0]  %s367, 16, %s369, [#allocation20]
    $region113: #{gene_transformer_forward.1} parent=1 // pred_fallthru
      _
    // Predicated region
    $region114: #{gene_transformer_forward.1} parent=1 // pred_check
      _
    $region115: #{gene_transformer_forward.1} parent=1 // pred_check_branch
      %373 = sbr.rel (0) target = $region117
    $region116: #{gene_transformer_forward.1} parent=1 // pred_region
      _
    $region117: #{gene_transformer_forward.1} parent=1 // pred_fallthru
      _
    // Predicated region
    $region118: #{gene_transformer_forward.1} parent=1 // pred_check
      _
    $region119: #{gene_transformer_forward.1} parent=1 // pred_check_branch
      %375 = sbr.rel (0) target = $region121
    $region120: #{gene_transformer_forward.1} parent=1 // pred_region
      %377 = vsyncadd [#allocation20], 0
      %s379 = sshll.u32 %s59, 4
      %s380 = int_to_ptr.hbm [resolvable:$true] %s379
      %s381 = sshll.u32 [#allocation21], 4
      %s382 = int_to_ptr.vmem [resolvable:$true] %s381
      %384 = dma.hbm_to_vmem [thread:$0]  %s380, 16, %s382, [#allocation20]
    $region121: #{gene_transformer_forward.1} parent=1 // pred_fallthru
      _
    // Predicated region
    $region122: #{gene_transformer_forward.1} parent=1 // pred_check
      _
    $region123: #{gene_transformer_forward.1} parent=1 // pred_check_branch
      %386 = sbr.rel (0) target = $region125
    $region124: #{gene_transformer_forward.1} parent=1 // pred_region
      _
    $region125: #{gene_transformer_forward.1} parent=1 // pred_fallthru
      _
    // Predicated region
    $region126: #{gene_transformer_forward.1} parent=1 // pred_check
      _
    $region127: #{gene_transformer_forward.1} parent=1 // pred_check_branch
      %388 = sbr.rel (0) target = $region129
    $region128: #{gene_transformer_forward.1} parent=1 // pred_region
      %390 = vsyncadd [#allocation23], 0
      %s392 = sshll.u32 %s63, 4
      %s393 = int_to_ptr.hbm [resolvable:$true] %s392
      %s394 = sshll.u32 [#allocation22], 4
      %s395 = int_to_ptr.vmem [resolvable:$true] %s394
      %397 = dma.hbm_to_vmem [thread:$0]  %s393, 16, %s395, [#allocation23]
    $region129: #{gene_transformer_forward.1} parent=1 // pred_fallthru
      _
    // Predicated region
    $region130: #{gene_transformer_forward.1} parent=1 // pred_check
      _
    $region131: #{gene_transformer_forward.1} parent=1 // pred_check_branch
      %399 = sbr.rel (0) target = $region133
    $region132: #{gene_transformer_forward.1} parent=1 // pred_region
      %401 = vsyncadd [#allocation23], 0
      %s403 = sshll.u32 %s65, 4
      %s404 = int_to_ptr.hbm [resolvable:$true] %s403
      %s405 = sshll.u32 [#allocation24], 4
      %s406 = int_to_ptr.vmem [resolvable:$true] %s405
      %408 = dma.hbm_to_vmem [thread:$0]  %s404, 16, %s406, [#allocation23]
    $region133: #{gene_transformer_forward.1} parent=1 // pred_fallthru
      _
    // Predicated region
    $region134: #{gene_transformer_forward.1} parent=1 // pred_check
      _
    $region135: #{gene_transformer_forward.1} parent=1 // pred_check_branch
      %410 = sbr.rel (0) target = $region137
    $region136: #{gene_transformer_forward.1} parent=1 // pred_region
      %412 = vsyncadd [#allocation26], 0
      %s414 = sshll.u32 %s67, 4
      %s415 = int_to_ptr.hbm [resolvable:$true] %s414
      %s416 = sshll.u32 [#allocation25], 4
      %s417 = int_to_ptr.vmem [resolvable:$true] %s416
      %419 = dma.hbm_to_vmem [thread:$0]  %s415, 16, %s417, [#allocation26]
    $region137: #{gene_transformer_forward.1} parent=1 // pred_fallthru
      _
    // Predicated region
    $region138: #{gene_transformer_forward.1} parent=1 // pred_check
      _
    $region139: #{gene_transformer_forward.1} parent=1 // pred_check_branch
      %421 = sbr.rel (0) target = $region141
    $region140: #{gene_transformer_forward.1} parent=1 // pred_region
      _
    $region141: #{gene_transformer_forward.1} parent=1 // pred_fallthru
      _
    // Predicated region
    $region142: #{gene_transformer_forward.1} parent=1 // pred_check
      _
    $region143: #{gene_transformer_forward.1} parent=1 // pred_check_branch
      %423 = sbr.rel (0) target = $region145
    $region144: #{gene_transformer_forward.1} parent=1 // pred_region
      %425 = vsyncadd [#allocation26], 0
      %s427 = sshll.u32 %s71, 4
      %s428 = int_to_ptr.hbm [resolvable:$true] %s427
      %s429 = sshll.u32 [#allocation27], 4
      %s430 = int_to_ptr.vmem [resolvable:$true] %s429
      %432 = dma.hbm_to_vmem [thread:$0]  %s428, 16, %s430, [#allocation26]
    $region145: #{gene_transformer_forward.1} parent=1 // pred_fallthru
      _
    // Predicated region
    $region146: #{gene_transformer_forward.1} parent=1 // pred_check
      _
    $region147: #{gene_transformer_forward.1} parent=1 // pred_check_branch
      %434 = sbr.rel (0) target = $region149
    $region148: #{gene_transformer_forward.1} parent=1 // pred_region
      _
    $region149: #{gene_transformer_forward.1} parent=1 // pred_fallthru
      _
    // Predicated region
    $region150: #{gene_transformer_forward.1} parent=1 // pred_check
      _
    $region151: #{gene_transformer_forward.1} parent=1 // pred_check_branch
      %436 = sbr.rel (0) target = $region153
    $region152: #{gene_transformer_forward.1} parent=1 // pred_region
      %438 = vsyncadd [#allocation29], 0
      %s440 = sshll.u32 %s75, 4
      %s441 = int_to_ptr.hbm [resolvable:$true] %s440
      %s442 = sshll.u32 [#allocation28], 4
      %s443 = int_to_ptr.vmem [resolvable:$true] %s442
      %445 = dma.hbm_to_vmem [thread:$0]  %s441, 16, %s443, [#allocation29]
    $region153: #{gene_transformer_forward.1} parent=1 // pred_fallthru
      _
    // Predicated region
    $region154: #{gene_transformer_forward.1} parent=1 // pred_check
      _
    $region155: #{gene_transformer_forward.1} parent=1 // pred_check_branch
      %447 = sbr.rel (0) target = $region157
    $region156: #{gene_transformer_forward.1} parent=1 // pred_region
      %449 = vsyncadd [#allocation29], 0
      %s451 = sshll.u32 %s77, 4
      %s452 = int_to_ptr.hbm [resolvable:$true] %s451
      %s453 = sshll.u32 [#allocation30], 4
      %s454 = int_to_ptr.vmem [resolvable:$true] %s453
      %456 = dma.hbm_to_vmem [thread:$0]  %s452, 16, %s454, [#allocation29]
    $region157: #{gene_transformer_forward.1} parent=1 // pred_fallthru
      _
    // Predicated region
    $region158: #{gene_transformer_forward.1} parent=1 // pred_check
      _
    $region159: #{gene_transformer_forward.1} parent=1 // pred_check_branch
      %458 = sbr.rel (0) target = $region161
    $region160: #{gene_transformer_forward.1} parent=1 // pred_region
      %460 = vsyncadd [#allocation32], 0
      %s462 = sshll.u32 %s79, 4
      %s463 = int_to_ptr.hbm [resolvable:$true] %s462
      %s464 = sshll.u32 [#allocation31], 4
      %s465 = int_to_ptr.vmem [resolvable:$true] %s464
      %467 = dma.hbm_to_vmem [thread:$0]  %s463, 16, %s465, [#allocation32]
    $region161: #{gene_transformer_forward.1} parent=1 // pred_fallthru
      _
    // Predicated region
    $region162: #{gene_transformer_forward.1} parent=1 // pred_check
      _
    $region163: #{gene_transformer_forward.1} parent=1 // pred_check_branch
      %469 = sbr.rel (0) target = $region165
    $region164: #{gene_transformer_forward.1} parent=1 // pred_region
      _
    $region165: #{gene_transformer_forward.1} parent=1 // pred_fallthru
      _
    // Predicated region
    $region166: #{gene_transformer_forward.1} parent=1 // pred_check
      _
    $region167: #{gene_transformer_forward.1} parent=1 // pred_check_branch
      %471 = sbr.rel (0) target = $region169
    $region168: #{gene_transformer_forward.1} parent=1 // pred_region
      _
    $region169: #{gene_transformer_forward.1} parent=1 // pred_fallthru
      _
    // Predicated region
    $region170: #{gene_transformer_forward.1} parent=1 // pred_check
      _
    $region171: #{gene_transformer_forward.1} parent=1 // pred_check_branch
      %473 = sbr.rel (0) target = $region173
    $region172: #{gene_transformer_forward.1} parent=1 // pred_region
      _
    $region173: #{gene_transformer_forward.1} parent=1 // pred_fallthru
      _
    // Predicated region
    $region174: #{gene_transformer_forward.1} parent=1 // pred_check
      _
    $region175: #{gene_transformer_forward.1} parent=1 // pred_check_branch
      %475 = sbr.rel (0) target = $region177
    $region176: #{gene_transformer_forward.1} parent=1 // pred_region
      _
    $region177: #{gene_transformer_forward.1} parent=1 // pred_fallthru
      _
    // Predicated region
    $region178: #{gene_transformer_forward.1} parent=1 // pred_check
      _
    $region179: #{gene_transformer_forward.1} parent=1 // pred_check_branch
      %477 = sbr.rel (0) target = $region181
    $region180: #{gene_transformer_forward.1} parent=1 // pred_region
      %479 = vsyncadd [#allocation32], 0
      %s481 = sshll.u32 %s89, 4
      %s482 = int_to_ptr.hbm [resolvable:$true] %s481
      %s483 = sshll.u32 [#allocation33], 4
      %s484 = int_to_ptr.vmem [resolvable:$true] %s483
      %486 = dma.hbm_to_vmem [thread:$0]  %s482, 16, %s484, [#allocation32]
    $region181: #{gene_transformer_forward.1} parent=1 // pred_fallthru
      _
    // Predicated region
    $region182: #{gene_transformer_forward.1} parent=1 // pred_check
      _
    $region183: #{gene_transformer_forward.1} parent=1 // pred_check_branch
      %488 = sbr.rel (0) target = $region185
    $region184: #{gene_transformer_forward.1} parent=1 // pred_region
      _
    $region185: #{gene_transformer_forward.1} parent=1 // pred_fallthru
      _
    // Predicated region
    $region186: #{gene_transformer_forward.1} parent=1 // pred_check
      _
    $region187: #{gene_transformer_forward.1} parent=1 // pred_check_branch
      %490 = sbr.rel (0) target = $region189
    $region188: #{gene_transformer_forward.1} parent=1 // pred_region
      _
    $region189: #{gene_transformer_forward.1} parent=1 // pred_fallthru
      _
    // Predicated region
    $region190: #{gene_transformer_forward.1} parent=1 // pred_check
      _
    $region191: #{gene_transformer_forward.1} parent=1 // pred_check_branch
      %492 = sbr.rel (0) target = $region193
    $region192: #{gene_transformer_forward.1} parent=1 // pred_region
      %494 = vsyncadd [#allocation35], 0
      %s496 = sshll.u32 %s95, 4
      %s497 = int_to_ptr.hbm [resolvable:$true] %s496
      %s498 = sshll.u32 [#allocation34], 4
      %s499 = int_to_ptr.vmem [resolvable:$true] %s498
      %501 = dma.hbm_to_vmem [thread:$0]  %s497, 16, %s499, [#allocation35]
    $region193: #{gene_transformer_forward.1} parent=1 // pred_fallthru
      _
    // Predicated region
    $region194: #{gene_transformer_forward.1} parent=1 // pred_check
      _
    $region195: #{gene_transformer_forward.1} parent=1 // pred_check_branch
      %503 = sbr.rel (0) target = $region197
    $region196: #{gene_transformer_forward.1} parent=1 // pred_region
      _
    $region197: #{gene_transformer_forward.1} parent=1 // pred_fallthru
      _
    // Predicated region
    $region198: #{gene_transformer_forward.1} parent=1 // pred_check
      _
    $region199: #{gene_transformer_forward.1} parent=1 // pred_check_branch
      %505 = sbr.rel (0) target = $region201
    $region200: #{gene_transformer_forward.1} parent=1 // pred_region
      %507 = vsyncadd [#allocation35], 0
      %s509 = sshll.u32 %s99, 4
      %s510 = int_to_ptr.hbm [resolvable:$true] %s509
      %s511 = sshll.u32 [#allocation36], 4
      %s512 = int_to_ptr.vmem [resolvable:$true] %s511
      %514 = dma.hbm_to_vmem [thread:$0]  %s510, 16, %s512, [#allocation35]
    $region201: #{gene_transformer_forward.1} parent=1 // pred_fallthru
      _
    // Predicated region
    $region202: #{gene_transformer_forward.1} parent=1 // pred_check
      _
    $region203: #{gene_transformer_forward.1} parent=1 // pred_check_branch
      %516 = sbr.rel (0) target = $region205
    $region204: #{gene_transformer_forward.1} parent=1 // pred_region
      _
    $region205: #{gene_transformer_forward.1} parent=1 // pred_fallthru
      _
    // Predicated region
    $region206: #{gene_transformer_forward.1} parent=1 // pred_check
      _
    $region207: #{gene_transformer_forward.1} parent=1 // pred_check_branch
      %518 = sbr.rel (0) target = $region209
    $region208: #{gene_transformer_forward.1} parent=1 // pred_region
      %520 = vsyncadd [#allocation38], 0
      %s522 = sshll.u32 %s103, 4
      %s523 = int_to_ptr.hbm [resolvable:$true] %s522
      %s524 = sshll.u32 [#allocation37], 4
      %s525 = int_to_ptr.vmem [resolvable:$true] %s524
      %527 = dma.hbm_to_vmem [thread:$0]  %s523, 16, %s525, [#allocation38]
    $region209: #{gene_transformer_forward.1} parent=1 // pred_fallthru
      _
    // Predicated region
    $region210: #{gene_transformer_forward.1} parent=1 // pred_check
      _
    $region211: #{gene_transformer_forward.1} parent=1 // pred_check_branch
      %529 = sbr.rel (0) target = $region213
    $region212: #{gene_transformer_forward.1} parent=1 // pred_region
      %531 = vsyncadd [#allocation38], 0
      %s533 = sshll.u32 %s105, 4
      %s534 = int_to_ptr.hbm [resolvable:$true] %s533
      %s535 = sshll.u32 [#allocation39], 4
      %s536 = int_to_ptr.vmem [resolvable:$true] %s535
      %538 = dma.hbm_to_vmem [thread:$0]  %s534, 16, %s536, [#allocation38]
    $region213: #{gene_transformer_forward.1} parent=1 // pred_fallthru
      _
    // Predicated region
    $region214: #{gene_transformer_forward.1} parent=1 // pred_check
      _
    $region215: #{gene_transformer_forward.1} parent=1 // pred_check_branch
      %540 = sbr.rel (0) target = $region217
    $region216: #{gene_transformer_forward.1} parent=1 // pred_region
      %542 = vsyncadd [#allocation41], 0
      %s544 = sshll.u32 %s107, 4
      %s545 = int_to_ptr.hbm [resolvable:$true] %s544
      %s546 = sshll.u32 [#allocation40], 4
      %s547 = int_to_ptr.vmem [resolvable:$true] %s546
      %549 = dma.hbm_to_vmem [thread:$0]  %s545, 16, %s547, [#allocation41]
    $region217: #{gene_transformer_forward.1} parent=1 // pred_fallthru
      _
    // Predicated region
    $region218: #{gene_transformer_forward.1} parent=1 // pred_check
      _
    $region219: #{gene_transformer_forward.1} parent=1 // pred_check_branch
      %551 = sbr.rel (0) target = $region221
    $region220: #{gene_transformer_forward.1} parent=1 // pred_region
      _
    $region221: #{gene_transformer_forward.1} parent=1 // pred_fallthru
      _
    // Predicated region
    $region222: #{gene_transformer_forward.1} parent=1 // pred_check
      _
    $region223: #{gene_transformer_forward.1} parent=1 // pred_check_branch
      %553 = sbr.rel (0) target = $region225
    $region224: #{gene_transformer_forward.1} parent=1 // pred_region
      %555 = vsyncadd [#allocation41], 0
      %s557 = sshll.u32 %s111, 4
      %s558 = int_to_ptr.hbm [resolvable:$true] %s557
      %s559 = sshll.u32 [#allocation42], 4
      %s560 = int_to_ptr.vmem [resolvable:$true] %s559
      %562 = dma.hbm_to_vmem [thread:$0]  %s558, 16, %s560, [#allocation41]
    $region225: #{gene_transformer_forward.1} parent=1 // pred_fallthru
      _
    // Predicated region
    $region226: #{gene_transformer_forward.1} parent=1 // pred_check
      _
    $region227: #{gene_transformer_forward.1} parent=1 // pred_check_branch
      %564 = sbr.rel (0) target = $region229
    $region228: #{gene_transformer_forward.1} parent=1 // pred_region
      _
    $region229: #{gene_transformer_forward.1} parent=1 // pred_fallthru
      _
    // Predicated region
    $region230: #{gene_transformer_forward.1} parent=1 // pred_check
      _
    $region231: #{gene_transformer_forward.1} parent=1 // pred_check_branch
      %566 = sbr.rel (0) target = $region233
    $region232: #{gene_transformer_forward.1} parent=1 // pred_region
      %568 = vsyncadd [#allocation44], 0
      %s570 = sshll.u32 %s115, 4
      %s571 = int_to_ptr.hbm [resolvable:$true] %s570
      %s572 = sshll.u32 [#allocation43], 4
      %s573 = int_to_ptr.vmem [resolvable:$true] %s572
      %575 = dma.hbm_to_vmem [thread:$0]  %s571, 16, %s573, [#allocation44]
    $region233: #{gene_transformer_forward.1} parent=1 // pred_fallthru
      _
    // Predicated region
    $region234: #{gene_transformer_forward.1} parent=1 // pred_check
      _
    $region235: #{gene_transformer_forward.1} parent=1 // pred_check_branch
      %577 = sbr.rel (0) target = $region237
    $region236: #{gene_transformer_forward.1} parent=1 // pred_region
      %579 = vsyncadd [#allocation44], 0
      %s581 = sshll.u32 %s117, 4
      %s582 = int_to_ptr.hbm [resolvable:$true] %s581
      %s583 = sshll.u32 [#allocation45], 4
      %s584 = int_to_ptr.vmem [resolvable:$true] %s583
      %586 = dma.hbm_to_vmem [thread:$0]  %s582, 16, %s584, [#allocation44]
    $region237: #{gene_transformer_forward.1} parent=1 // pred_fallthru
      _
    // Predicated region
    $region238: #{gene_transformer_forward.1} parent=1 // pred_check
      _
    $region239: #{gene_transformer_forward.1} parent=1 // pred_check_branch
      %588 = sbr.rel (0) target = $region241
    $region240: #{gene_transformer_forward.1} parent=1 // pred_region
      %590 = vsyncadd [#allocation47], 0
      %s592 = sshll.u32 %s119, 4
      %s593 = int_to_ptr.hbm [resolvable:$true] %s592
      %s594 = sshll.u32 [#allocation46], 4
      %s595 = int_to_ptr.vmem [resolvable:$true] %s594
      %597 = dma.hbm_to_vmem [thread:$0]  %s593, 16, %s595, [#allocation47]
    $region241: #{gene_transformer_forward.1} parent=1 // pred_fallthru
      _
    // Predicated region
    $region242: #{gene_transformer_forward.1} parent=1 // pred_check
      _
    $region243: #{gene_transformer_forward.1} parent=1 // pred_check_branch
      %599 = sbr.rel (0) target = $region245
    $region244: #{gene_transformer_forward.1} parent=1 // pred_region
      _
    $region245: #{gene_transformer_forward.1} parent=1 // pred_fallthru
      _
    // Predicated region
    $region246: #{gene_transformer_forward.1} parent=1 // pred_check
      _
    $region247: #{gene_transformer_forward.1} parent=1 // pred_check_branch
      %601 = sbr.rel (0) target = $region249
    $region248: #{gene_transformer_forward.1} parent=1 // pred_region
      %603 = vsyncadd [#allocation47], 0
      %s605 = sshll.u32 %s123, 4
      %s606 = int_to_ptr.hbm [resolvable:$true] %s605
      %s607 = sshll.u32 [#allocation48], 4
      %s608 = int_to_ptr.vmem [resolvable:$true] %s607
      %610 = dma.hbm_to_vmem [thread:$0]  %s606, 16, %s608, [#allocation47]
    $region249: #{gene_transformer_forward.1} parent=1 // pred_fallthru
      _
    // Predicated region
    $region250: #{gene_transformer_forward.1} parent=1 // pred_check
      _
    $region251: #{gene_transformer_forward.1} parent=1 // pred_check_branch
      %612 = sbr.rel (0) target = $region253
    $region252: #{gene_transformer_forward.1} parent=1 // pred_region
      _
    $region253: #{gene_transformer_forward.1} parent=1 // pred_fallthru
      _
    // Predicated region
    $region254: #{gene_transformer_forward.1} parent=1 // pred_check
      _
    $region255: #{gene_transformer_forward.1} parent=1 // pred_check_branch
      %614 = sbr.rel (0) target = $region257
    $region256: #{gene_transformer_forward.1} parent=1 // pred_region
      %616 = vsyncadd [#allocation50], 0
      %s618 = sshll.u32 %s127, 4
      %s619 = int_to_ptr.hbm [resolvable:$true] %s618
      %s620 = sshll.u32 [#allocation49], 4
      %s621 = int_to_ptr.vmem [resolvable:$true] %s620
      %623 = dma.hbm_to_vmem [thread:$0]  %s619, 16, %s621, [#allocation50]
    $region257: #{gene_transformer_forward.1} parent=1 // pred_fallthru
      _
    // Predicated region
    $region258: #{gene_transformer_forward.1} parent=1 // pred_check
      _
    $region259: #{gene_transformer_forward.1} parent=1 // pred_check_branch
      %625 = sbr.rel (0) target = $region261
    $region260: #{gene_transformer_forward.1} parent=1 // pred_region
      %627 = vsyncadd [#allocation50], 0
      %s629 = sshll.u32 %s129, 4
      %s630 = int_to_ptr.hbm [resolvable:$true] %s629
      %s631 = sshll.u32 [#allocation51], 4
      %s632 = int_to_ptr.vmem [resolvable:$true] %s631
      %634 = dma.hbm_to_vmem [thread:$0]  %s630, 16, %s632, [#allocation50]
    $region261: #{gene_transformer_forward.1} parent=1 // pred_fallthru
      _
    // Predicated region
    $region262: #{gene_transformer_forward.1} parent=1 // pred_check
      _
    $region263: #{gene_transformer_forward.1} parent=1 // pred_check_branch
      %636 = sbr.rel (0) target = $region265
    $region264: #{gene_transformer_forward.1} parent=1 // pred_region
      %638 = vsyncadd [#allocation53], 0
      %s640 = sshll.u32 %s131, 4
      %s641 = int_to_ptr.hbm [resolvable:$true] %s640
      %s642 = sshll.u32 [#allocation52], 4
      %s643 = int_to_ptr.vmem [resolvable:$true] %s642
      %645 = dma.hbm_to_vmem [thread:$0]  %s641, 16, %s643, [#allocation53]
    $region265: #{gene_transformer_forward.1} parent=1 // pred_fallthru
      _
    // Predicated region
    $region266: #{gene_transformer_forward.1} parent=1 // pred_check
      _
    $region267: #{gene_transformer_forward.1} parent=1 // pred_check_branch
      %647 = sbr.rel (0) target = $region269
    $region268: #{gene_transformer_forward.1} parent=1 // pred_region
      _
    $region269: #{gene_transformer_forward.1} parent=1 // pred_fallthru
      _
    // Predicated region
    $region270: #{gene_transformer_forward.1} parent=1 // pred_check
      _
    $region271: #{gene_transformer_forward.1} parent=1 // pred_check_branch
      %649 = sbr.rel (0) target = $region273
    $region272: #{gene_transformer_forward.1} parent=1 // pred_region
      %651 = vsyncadd [#allocation53], 0
      %s653 = sshll.u32 %s135, 4
      %s654 = int_to_ptr.hbm [resolvable:$true] %s653
      %s655 = sshll.u32 [#allocation54], 4
      %s656 = int_to_ptr.vmem [resolvable:$true] %s655
      %658 = dma.hbm_to_vmem [thread:$0]  %s654, 16, %s656, [#allocation53]
    $region273: #{gene_transformer_forward.1} parent=1 // pred_fallthru
      _
    // Predicated region
    $region274: #{gene_transformer_forward.1} parent=1 // pred_check
      _
    $region275: #{gene_transformer_forward.1} parent=1 // pred_check_branch
      %660 = sbr.rel (0) target = $region277
    $region276: #{gene_transformer_forward.1} parent=1 // pred_region
      _
    $region277: #{gene_transformer_forward.1} parent=1 // pred_fallthru
      _
    // Predicated region
    $region278: #{gene_transformer_forward.1} parent=1 // pred_check
      _
    $region279: #{gene_transformer_forward.1} parent=1 // pred_check_branch
      %662 = sbr.rel (0) target = $region281
    $region280: #{gene_transformer_forward.1} parent=1 // pred_region
      %664 = vsyncadd [#allocation56], 0
      %s666 = sshll.u32 %s139, 4
      %s667 = int_to_ptr.hbm [resolvable:$true] %s666
      %s668 = sshll.u32 [#allocation55], 4
      %s669 = int_to_ptr.vmem [resolvable:$true] %s668
      %671 = dma.hbm_to_vmem [thread:$0]  %s667, 16, %s669, [#allocation56]
    $region281: #{gene_transformer_forward.1} parent=1 // pred_fallthru
      _
    // Predicated region
    $region282: #{gene_transformer_forward.1} parent=1 // pred_check
      _
    $region283: #{gene_transformer_forward.1} parent=1 // pred_check_branch
      %673 = sbr.rel (0) target = $region285
    $region284: #{gene_transformer_forward.1} parent=1 // pred_region
      _
    $region285: #{gene_transformer_forward.1} parent=1 // pred_fallthru
      _
    // Predicated region
    $region286: #{gene_transformer_forward.1} parent=1 // pred_check
      _
    $region287: #{gene_transformer_forward.1} parent=1 // pred_check_branch
      %675 = sbr.rel (0) target = $region289
    $region288: #{gene_transformer_forward.1} parent=1 // pred_region
      %677 = vsyncadd [#allocation56], 0
      %s679 = sshll.u32 %s143, 4
      %s680 = int_to_ptr.hbm [resolvable:$true] %s679
      %s681 = sshll.u32 [#allocation57], 4
      %s682 = int_to_ptr.vmem [resolvable:$true] %s681
      %684 = dma.hbm_to_vmem [thread:$0]  %s680, 16, %s682, [#allocation56]
    $region289: #{gene_transformer_forward.1} parent=1 // pred_fallthru
      _
    // Predicated region
    $region290: #{gene_transformer_forward.1} parent=1 // pred_check
      _
    $region291: #{gene_transformer_forward.1} parent=1 // pred_check_branch
      %686 = sbr.rel (0) target = $region293
    $region292: #{gene_transformer_forward.1} parent=1 // pred_region
      %688 = vsyncadd [#allocation59], 0
      %s690 = sshll.u32 %s145, 4
      %s691 = int_to_ptr.hbm [resolvable:$true] %s690
      %s692 = sshll.u32 [#allocation58], 4
      %s693 = int_to_ptr.vmem [resolvable:$true] %s692
      %695 = dma.hbm_to_vmem [thread:$0]  %s691, 16, %s693, [#allocation59]
    $region293: #{gene_transformer_forward.1} parent=1 // pred_fallthru
      _
    // Predicated region
    $region294: #{gene_transformer_forward.1} parent=1 // pred_check
      _
    $region295: #{gene_transformer_forward.1} parent=1 // pred_check_branch
      %697 = sbr.rel (0) target = $region297
    $region296: #{gene_transformer_forward.1} parent=1 // pred_region
      %699 = vsyncadd [#allocation59], 0
      %s701 = sshll.u32 %s147, 4
      %s702 = int_to_ptr.hbm [resolvable:$true] %s701
      %s703 = sshll.u32 [#allocation60], 4
      %s704 = int_to_ptr.vmem [resolvable:$true] %s703
      %706 = dma.hbm_to_vmem [thread:$0]  %s702, 16, %s704, [#allocation59]
    $region297: #{gene_transformer_forward.1} parent=1 // pred_fallthru
      _
    // Predicated region
    $region298: #{gene_transformer_forward.1} parent=1 // pred_check
      _
    $region299: #{gene_transformer_forward.1} parent=1 // pred_check_branch
      %708 = sbr.rel (0) target = $region301
    $region300: #{gene_transformer_forward.1} parent=1 // pred_region
      _
    $region301: #{gene_transformer_forward.1} parent=1 // pred_fallthru
      _
    // Predicated region
    $region302: #{gene_transformer_forward.1} parent=1 // pred_check
      _
    $region303: #{gene_transformer_forward.1} parent=1 // pred_check_branch
      %710 = sbr.rel (0) target = $region305
    $region304: #{gene_transformer_forward.1} parent=1 // pred_region
      %712 = vsyncadd [#allocation62], 0
      %s714 = sshll.u32 %s151, 4
      %s715 = int_to_ptr.hbm [resolvable:$true] %s714
      %s716 = sshll.u32 [#allocation61], 4
      %s717 = int_to_ptr.vmem [resolvable:$true] %s716
      %719 = dma.hbm_to_vmem [thread:$0]  %s715, 16, %s717, [#allocation62]
    $region305: #{gene_transformer_forward.1} parent=1 // pred_fallthru
      _
    // Predicated region
    $region306: #{gene_transformer_forward.1} parent=1 // pred_check
      _
    $region307: #{gene_transformer_forward.1} parent=1 // pred_check_branch
      %721 = sbr.rel (0) target = $region309
    $region308: #{gene_transformer_forward.1} parent=1 // pred_region
      _
    $region309: #{gene_transformer_forward.1} parent=1 // pred_fallthru
      _
    // Predicated region
    $region310: #{gene_transformer_forward.1} parent=1 // pred_check
      _
    $region311: #{gene_transformer_forward.1} parent=1 // pred_check_branch
      %723 = sbr.rel (0) target = $region313
    $region312: #{gene_transformer_forward.1} parent=1 // pred_region
      %725 = vsyncadd [#allocation62], 0
      %s727 = sshll.u32 %s155, 4
      %s728 = int_to_ptr.hbm [resolvable:$true] %s727
      %s729 = sshll.u32 [#allocation63], 4
      %s730 = int_to_ptr.vmem [resolvable:$true] %s729
      %732 = dma.hbm_to_vmem [thread:$0]  %s728, 16, %s730, [#allocation62]
    $region313: #{gene_transformer_forward.1} parent=1 // pred_fallthru
      _
    // Predicated region
    $region314: #{gene_transformer_forward.1} parent=1 // pred_check
      _
    $region315: #{gene_transformer_forward.1} parent=1 // pred_check_branch
      %734 = sbr.rel (0) target = $region317
    $region316: #{gene_transformer_forward.1} parent=1 // pred_region
      %736 = vsyncadd [#allocation65], 0
      %s738 = sshll.u32 %s157, 4
      %s739 = int_to_ptr.hbm [resolvable:$true] %s738
      %s740 = sshll.u32 [#allocation64], 4
      %s741 = int_to_ptr.vmem [resolvable:$true] %s740
      %743 = dma.hbm_to_vmem [thread:$0]  %s739, 16, %s741, [#allocation65]
    $region317: #{gene_transformer_forward.1} parent=1 // pred_fallthru
      _
    // Predicated region
    $region318: #{gene_transformer_forward.1} parent=1 // pred_check
      _
    $region319: #{gene_transformer_forward.1} parent=1 // pred_check_branch
      %745 = sbr.rel (0) target = $region321
    $region320: #{gene_transformer_forward.1} parent=1 // pred_region
      %747 = vsyncadd [#allocation65], 0
      %s749 = sshll.u32 %s159, 4
      %s750 = int_to_ptr.hbm [resolvable:$true] %s749
      %s751 = sshll.u32 [#allocation66], 4
      %s752 = int_to_ptr.vmem [resolvable:$true] %s751
      %754 = dma.hbm_to_vmem [thread:$0]  %s750, 16, %s752, [#allocation65]
    $region321: #{gene_transformer_forward.1} parent=1 // pred_fallthru
      _
    // Predicated region
    $region322: #{gene_transformer_forward.1} parent=1 // pred_check
      _
    $region323: #{gene_transformer_forward.1} parent=1 // pred_check_branch
      %756 = sbr.rel (0) target = $region325
    $region324: #{gene_transformer_forward.1} parent=1 // pred_region
      %758 = vsyncadd [#allocation68], 0
      %s759 = sshll.u32 %s161, 4
      %s760 = int_to_ptr.hbm [resolvable:$true] %s759
      %s761 = sshll.u32 [#allocation67], 4
      %s762 = int_to_ptr.vmem [resolvable:$true] %s761
      %767 = dma.hbm_to_vmem [thread:$0]  %s760, 512, %s762, [#allocation68], 128, 128, 8
    $region325: #{gene_transformer_forward.1} parent=1 // pred_fallthru
      _
    // Predicated region
    $region326: #{gene_transformer_forward.1} parent=1 // pred_check
      _
    $region327: #{gene_transformer_forward.1} parent=1 // pred_check_branch
      %769 = sbr.rel (0) target = $region329
    $region328: #{gene_transformer_forward.1} parent=1 // pred_region
      %771 = vsyncadd [#allocation68], 0
      %s773 = sshll.u32 %s163, 4
      %s774 = int_to_ptr.hbm [resolvable:$true] %s773
      %s775 = sshll.u32 [#allocation69], 4
      %s776 = int_to_ptr.vmem [resolvable:$true] %s775
      %778 = dma.hbm_to_vmem [thread:$0]  %s774, 16, %s776, [#allocation68]
    $region329: #{gene_transformer_forward.1} parent=1 // pred_fallthru
      _
    // Predicated region
    $region330: #{gene_transformer_forward.1} parent=1 // pred_check
      _
    $region331: #{gene_transformer_forward.1} parent=1 // pred_check_branch
      %780 = sbr.rel (0) target = $region333
    $region332: #{gene_transformer_forward.1} parent=1 // pred_region
      %782 = vsyncadd [#allocation71], 0
      %s783 = sshll.u32 %s165, 4
      %s784 = int_to_ptr.hbm [resolvable:$true] %s783
      %s785 = sshll.u32 [#allocation70], 4
      %s786 = int_to_ptr.vmem [resolvable:$true] %s785
      %791 = dma.hbm_to_vmem [thread:$0]  %s784, 512, %s786, [#allocation71], 128, 128, 8
    $region333: #{gene_transformer_forward.1} parent=1 // pred_fallthru
      _
    // Predicated region
    $region334: #{gene_transformer_forward.1} parent=1 // pred_check
      _
    $region335: #{gene_transformer_forward.1} parent=1 // pred_check_branch
      %793 = sbr.rel (0) target = $region337
    $region336: #{gene_transformer_forward.1} parent=1 // pred_region
      %795 = vsyncadd [#allocation71], 0
      %s797 = sshll.u32 %s167, 4
      %s798 = int_to_ptr.hbm [resolvable:$true] %s797
      %s799 = sshll.u32 [#allocation72], 4
      %s800 = int_to_ptr.vmem [resolvable:$true] %s799
      %802 = dma.hbm_to_vmem [thread:$0]  %s798, 16, %s800, [#allocation71]
    $region337: #{gene_transformer_forward.1} parent=1 // pred_fallthru
      _
    // Predicated region
    $region338: #{gene_transformer_forward.1} parent=1 // pred_check
      _
    $region339: #{gene_transformer_forward.1} parent=1 // pred_check_branch
      %804 = sbr.rel (0) target = $region341
    $region340: #{gene_transformer_forward.1} parent=1 // pred_region
      %806 = vsyncadd [#allocation74], 0
      %s807 = sshll.u32 %s169, 4
      %s808 = int_to_ptr.hbm [resolvable:$true] %s807
      %s809 = sshll.u32 [#allocation73], 4
      %s810 = int_to_ptr.vmem [resolvable:$true] %s809
      %815 = dma.hbm_to_vmem [thread:$0]  %s808, 512, %s810, [#allocation74], 128, 128, 8
    $region341: #{gene_transformer_forward.1} parent=1 // pred_fallthru
      _
    // Predicated region
    $region342: #{gene_transformer_forward.1} parent=1 // pred_check
      _
    $region343: #{gene_transformer_forward.1} parent=1 // pred_check_branch
      %817 = sbr.rel (0) target = $region345
    $region344: #{gene_transformer_forward.1} parent=1 // pred_region
      %819 = vsyncadd [#allocation74], 0
      %s821 = sshll.u32 %s171, 4
      %s822 = int_to_ptr.hbm [resolvable:$true] %s821
      %s823 = sshll.u32 [#allocation75], 4
      %s824 = int_to_ptr.vmem [resolvable:$true] %s823
      %826 = dma.hbm_to_vmem [thread:$0]  %s822, 16, %s824, [#allocation74]
    $region345: #{gene_transformer_forward.1} parent=1 // pred_fallthru
      _
    // Predicated region
    $region346: #{gene_transformer_forward.1} parent=1 // pred_check
      _
    $region347: #{gene_transformer_forward.1} parent=1 // pred_check_branch
      %828 = sbr.rel (0) target = $region349
    $region348: #{gene_transformer_forward.1} parent=1 // pred_region
      %830 = vsyncadd [#allocation77], 0
      %s831 = sshll.u32 %s173, 4
      %s832 = int_to_ptr.hbm [resolvable:$true] %s831
      %s833 = sshll.u32 [#allocation76], 4
      %s834 = int_to_ptr.vmem [resolvable:$true] %s833
      %839 = dma.hbm_to_vmem [thread:$0]  %s832, 512, %s834, [#allocation77], 128, 128, 8
    $region349: #{gene_transformer_forward.1} parent=1 // pred_fallthru
      _
    // Predicated region
    $region350: #{gene_transformer_forward.1} parent=1 // pred_check
      _
    $region351: #{gene_transformer_forward.1} parent=1 // pred_check_branch
      %841 = sbr.rel (0) target = $region353
    $region352: #{gene_transformer_forward.1} parent=1 // pred_region
      %843 = vsyncadd [#allocation77], 0
      %s845 = sshll.u32 %s175, 4
      %s846 = int_to_ptr.hbm [resolvable:$true] %s845
      %s847 = sshll.u32 [#allocation78], 4
      %s848 = int_to_ptr.vmem [resolvable:$true] %s847
      %850 = dma.hbm_to_vmem [thread:$0]  %s846, 16, %s848, [#allocation77]
    $region353: #{gene_transformer_forward.1} parent=1 // pred_fallthru
      _
    // Predicated region
    $region354: #{gene_transformer_forward.1} parent=1 // pred_check
      _
    $region355: #{gene_transformer_forward.1} parent=1 // pred_check_branch
      %852 = sbr.rel (0) target = $region357
    $region356: #{gene_transformer_forward.1} parent=1 // pred_region
      %854 = dma.done [#allocation3], 16
    $region357: #{gene_transformer_forward.1} parent=1 // pred_fallthru
      _
    // Predicated region
    $region358: #{gene_transformer_forward.1} parent=1 // pred_check
      _
    $region359: #{gene_transformer_forward.1} parent=1 // pred_check_branch
      %856 = sbr.rel (0) target = $region361
    $region360: #{gene_transformer_forward.1} parent=1 // pred_region
      %858 = dma.done [#allocation5], 16
    $region361: #{gene_transformer_forward.1} parent=1 // pred_fallthru
      _
    // Predicated region
    $region362: #{gene_transformer_forward.1} parent=1 // pred_check
      _
    $region363: #{gene_transformer_forward.1} parent=1 // pred_check_branch
      %860 = sbr.rel (0) target = $region365
    $region364: #{gene_transformer_forward.1} parent=1 // pred_region
      %862 = dma.done [#allocation5], 16
    $region365: #{gene_transformer_forward.1} parent=1 // pred_fallthru
      _
    // Predicated region
    $region366: #{gene_transformer_forward.1} parent=1 // pred_check
      _
    $region367: #{gene_transformer_forward.1} parent=1 // pred_check_branch
      %864 = sbr.rel (0) target = $region369
    $region368: #{gene_transformer_forward.1} parent=1 // pred_region
      %866 = dma.done [#allocation8], 16
    $region369: #{gene_transformer_forward.1} parent=1 // pred_fallthru
      _
    // Predicated region
    $region370: #{gene_transformer_forward.1} parent=1 // pred_check
      _
    $region371: #{gene_transformer_forward.1} parent=1 // pred_check_branch
      %868 = sbr.rel (0) target = $region373
    $region372: #{gene_transformer_forward.1} parent=1 // pred_region
      %870 = dma.done [#allocation8], 16
    $region373: #{gene_transformer_forward.1} parent=1 // pred_fallthru
      _
    // Predicated region
    $region374: #{gene_transformer_forward.1} parent=1 // pred_check
      _
    $region375: #{gene_transformer_forward.1} parent=1 // pred_check_branch
      %872 = sbr.rel (0) target = $region377
    $region376: #{gene_transformer_forward.1} parent=1 // pred_region
      %874 = dma.done [#allocation11], 16
    $region377: #{gene_transformer_forward.1} parent=1 // pred_fallthru
      _
    // Predicated region
    $region378: #{gene_transformer_forward.1} parent=1 // pred_check
      _
    $region379: #{gene_transformer_forward.1} parent=1 // pred_check_branch
      %876 = sbr.rel (0) target = $region381
    $region380: #{gene_transformer_forward.1} parent=1 // pred_region
      %878 = dma.done [#allocation11], 16
    $region381: #{gene_transformer_forward.1} parent=1 // pred_fallthru
      _
    // Predicated region
    $region382: #{gene_transformer_forward.1} parent=1 // pred_check
      _
    $region383: #{gene_transformer_forward.1} parent=1 // pred_check_branch
      %880 = sbr.rel (0) target = $region385
    $region384: #{gene_transformer_forward.1} parent=1 // pred_region
      %882 = dma.done [#allocation14], 16
    $region385: #{gene_transformer_forward.1} parent=1 // pred_fallthru
      _
    // Predicated region
    $region386: #{gene_transformer_forward.1} parent=1 // pred_check
      _
    $region387: #{gene_transformer_forward.1} parent=1 // pred_check_branch
      %884 = sbr.rel (0) target = $region389
    $region388: #{gene_transformer_forward.1} parent=1 // pred_region
      %886 = dma.done [#allocation14], 16
    $region389: #{gene_transformer_forward.1} parent=1 // pred_fallthru
      _
    // Predicated region
    $region390: #{gene_transformer_forward.1} parent=1 // pred_check
      _
    $region391: #{gene_transformer_forward.1} parent=1 // pred_check_branch
      %888 = sbr.rel (0) target = $region393
    $region392: #{gene_transformer_forward.1} parent=1 // pred_region
      %890 = dma.done [#allocation17], 16
    $region393: #{gene_transformer_forward.1} parent=1 // pred_fallthru
      _
    // Predicated region
    $region394: #{gene_transformer_forward.1} parent=1 // pred_check
      _
    $region395: #{gene_transformer_forward.1} parent=1 // pred_check_branch
      %892 = sbr.rel (0) target = $region397
    $region396: #{gene_transformer_forward.1} parent=1 // pred_region
      %894 = dma.done [#allocation17], 16
    $region397: #{gene_transformer_forward.1} parent=1 // pred_fallthru
      _
    // Predicated region
    $region398: #{gene_transformer_forward.1} parent=1 // pred_check
      _
    $region399: #{gene_transformer_forward.1} parent=1 // pred_check_branch
      %896 = sbr.rel (0) target = $region401
    $region400: #{gene_transformer_forward.1} parent=1 // pred_region
      %898 = dma.done [#allocation20], 16
    $region401: #{gene_transformer_forward.1} parent=1 // pred_fallthru
      _
    // Predicated region
    $region402: #{gene_transformer_forward.1} parent=1 // pred_check
      _
    $region403: #{gene_transformer_forward.1} parent=1 // pred_check_branch
      %900 = sbr.rel (0) target = $region405
    $region404: #{gene_transformer_forward.1} parent=1 // pred_region
      %902 = dma.done [#allocation20], 16
    $region405: #{gene_transformer_forward.1} parent=1 // pred_fallthru
      _
    // Predicated region
    $region406: #{gene_transformer_forward.1} parent=1 // pred_check
      _
    $region407: #{gene_transformer_forward.1} parent=1 // pred_check_branch
      %904 = sbr.rel (0) target = $region409
    $region408: #{gene_transformer_forward.1} parent=1 // pred_region
      %906 = dma.done [#allocation23], 16
    $region409: #{gene_transformer_forward.1} parent=1 // pred_fallthru
      _
    // Predicated region
    $region410: #{gene_transformer_forward.1} parent=1 // pred_check
      _
    $region411: #{gene_transformer_forward.1} parent=1 // pred_check_branch
      %908 = sbr.rel (0) target = $region413
    $region412: #{gene_transformer_forward.1} parent=1 // pred_region
      %910 = dma.done [#allocation23], 16
    $region413: #{gene_transformer_forward.1} parent=1 // pred_fallthru
      _
    // Predicated region
    $region414: #{gene_transformer_forward.1} parent=1 // pred_check
      _
    $region415: #{gene_transformer_forward.1} parent=1 // pred_check_branch
      %912 = sbr.rel (0) target = $region417
    $region416: #{gene_transformer_forward.1} parent=1 // pred_region
      %914 = dma.done [#allocation26], 16
    $region417: #{gene_transformer_forward.1} parent=1 // pred_fallthru
      _
    // Predicated region
    $region418: #{gene_transformer_forward.1} parent=1 // pred_check
      _
    $region419: #{gene_transformer_forward.1} parent=1 // pred_check_branch
      %916 = sbr.rel (0) target = $region421
    $region420: #{gene_transformer_forward.1} parent=1 // pred_region
      %918 = dma.done [#allocation26], 16
    $region421: #{gene_transformer_forward.1} parent=1 // pred_fallthru
      _
    // Predicated region
    $region422: #{gene_transformer_forward.1} parent=1 // pred_check
      _
    $region423: #{gene_transformer_forward.1} parent=1 // pred_check_branch
      %920 = sbr.rel (0) target = $region425
    $region424: #{gene_transformer_forward.1} parent=1 // pred_region
      %922 = dma.done [#allocation29], 16
    $region425: #{gene_transformer_forward.1} parent=1 // pred_fallthru
      _
    // Predicated region
    $region426: #{gene_transformer_forward.1} parent=1 // pred_check
      _
    $region427: #{gene_transformer_forward.1} parent=1 // pred_check_branch
      %924 = sbr.rel (0) target = $region429
    $region428: #{gene_transformer_forward.1} parent=1 // pred_region
      %926 = dma.done [#allocation29], 16
    $region429: #{gene_transformer_forward.1} parent=1 // pred_fallthru
      _
    // Predicated region
    $region430: #{gene_transformer_forward.1} parent=1 // pred_check
      _
    $region431: #{gene_transformer_forward.1} parent=1 // pred_check_branch
      %928 = sbr.rel (0) target = $region433
    $region432: #{gene_transformer_forward.1} parent=1 // pred_region
      %930 = dma.done [#allocation32], 16
    $region433: #{gene_transformer_forward.1} parent=1 // pred_fallthru
      _
    // Predicated region
    $region434: #{gene_transformer_forward.1} parent=1 // pred_check
      _
    $region435: #{gene_transformer_forward.1} parent=1 // pred_check_branch
      %932 = sbr.rel (0) target = $region437
    $region436: #{gene_transformer_forward.1} parent=1 // pred_region
      %934 = dma.done [#allocation32], 16
    $region437: #{gene_transformer_forward.1} parent=1 // pred_fallthru
      _
    // Predicated region
    $region438: #{gene_transformer_forward.1} parent=1 // pred_check
      _
    $region439: #{gene_transformer_forward.1} parent=1 // pred_check_branch
      %936 = sbr.rel (0) target = $region441
    $region440: #{gene_transformer_forward.1} parent=1 // pred_region
      %938 = dma.done [#allocation35], 16
    $region441: #{gene_transformer_forward.1} parent=1 // pred_fallthru
      _
    // Predicated region
    $region442: #{gene_transformer_forward.1} parent=1 // pred_check
      _
    $region443: #{gene_transformer_forward.1} parent=1 // pred_check_branch
      %940 = sbr.rel (0) target = $region445
    $region444: #{gene_transformer_forward.1} parent=1 // pred_region
      %942 = dma.done [#allocation35], 16
    $region445: #{gene_transformer_forward.1} parent=1 // pred_fallthru
      _
    // Predicated region
    $region446: #{gene_transformer_forward.1} parent=1 // pred_check
      _
    $region447: #{gene_transformer_forward.1} parent=1 // pred_check_branch
      %944 = sbr.rel (0) target = $region449
    $region448: #{gene_transformer_forward.1} parent=1 // pred_region
      %946 = dma.done [#allocation38], 16
    $region449: #{gene_transformer_forward.1} parent=1 // pred_fallthru
      _
    // Predicated region
    $region450: #{gene_transformer_forward.1} parent=1 // pred_check
      _
    $region451: #{gene_transformer_forward.1} parent=1 // pred_check_branch
      %948 = sbr.rel (0) target = $region453
    $region452: #{gene_transformer_forward.1} parent=1 // pred_region
      %950 = dma.done [#allocation38], 16
    $region453: #{gene_transformer_forward.1} parent=1 // pred_fallthru
      _
    // Predicated region
    $region454: #{gene_transformer_forward.1} parent=1 // pred_check
      _
    $region455: #{gene_transformer_forward.1} parent=1 // pred_check_branch
      %952 = sbr.rel (0) target = $region457
    $region456: #{gene_transformer_forward.1} parent=1 // pred_region
      %954 = dma.done [#allocation41], 16
    $region457: #{gene_transformer_forward.1} parent=1 // pred_fallthru
      _
    // Predicated region
    $region458: #{gene_transformer_forward.1} parent=1 // pred_check
      _
    $region459: #{gene_transformer_forward.1} parent=1 // pred_check_branch
      %956 = sbr.rel (0) target = $region461
    $region460: #{gene_transformer_forward.1} parent=1 // pred_region
      %958 = dma.done [#allocation41], 16
    $region461: #{gene_transformer_forward.1} parent=1 // pred_fallthru
      _
    // Predicated region
    $region462: #{gene_transformer_forward.1} parent=1 // pred_check
      _
    $region463: #{gene_transformer_forward.1} parent=1 // pred_check_branch
      %960 = sbr.rel (0) target = $region465
    $region464: #{gene_transformer_forward.1} parent=1 // pred_region
      %962 = dma.done [#allocation44], 16
    $region465: #{gene_transformer_forward.1} parent=1 // pred_fallthru
      _
    // Predicated region
    $region466: #{gene_transformer_forward.1} parent=1 // pred_check
      _
    $region467: #{gene_transformer_forward.1} parent=1 // pred_check_branch
      %964 = sbr.rel (0) target = $region469
    $region468: #{gene_transformer_forward.1} parent=1 // pred_region
      %966 = dma.done [#allocation44], 16
    $region469: #{gene_transformer_forward.1} parent=1 // pred_fallthru
      _
    // Predicated region
    $region470: #{gene_transformer_forward.1} parent=1 // pred_check
      _
    $region471: #{gene_transformer_forward.1} parent=1 // pred_check_branch
      %968 = sbr.rel (0) target = $region473
    $region472: #{gene_transformer_forward.1} parent=1 // pred_region
      %970 = dma.done [#allocation47], 16
    $region473: #{gene_transformer_forward.1} parent=1 // pred_fallthru
      _
    // Predicated region
    $region474: #{gene_transformer_forward.1} parent=1 // pred_check
      _
    $region475: #{gene_transformer_forward.1} parent=1 // pred_check_branch
      %972 = sbr.rel (0) target = $region477
    $region476: #{gene_transformer_forward.1} parent=1 // pred_region
      %974 = dma.done [#allocation47], 16
    $region477: #{gene_transformer_forward.1} parent=1 // pred_fallthru
      _
    // Predicated region
    $region478: #{gene_transformer_forward.1} parent=1 // pred_check
      _
    $region479: #{gene_transformer_forward.1} parent=1 // pred_check_branch
      %976 = sbr.rel (0) target = $region481
    $region480: #{gene_transformer_forward.1} parent=1 // pred_region
      %978 = dma.done [#allocation50], 16
    $region481: #{gene_transformer_forward.1} parent=1 // pred_fallthru
      _
    // Predicated region
    $region482: #{gene_transformer_forward.1} parent=1 // pred_check
      _
    $region483: #{gene_transformer_forward.1} parent=1 // pred_check_branch
      %980 = sbr.rel (0) target = $region485
    $region484: #{gene_transformer_forward.1} parent=1 // pred_region
      %982 = dma.done [#allocation50], 16
    $region485: #{gene_transformer_forward.1} parent=1 // pred_fallthru
      _
    // Predicated region
    $region486: #{gene_transformer_forward.1} parent=1 // pred_check
      _
    $region487: #{gene_transformer_forward.1} parent=1 // pred_check_branch
      %984 = sbr.rel (0) target = $region489
    $region488: #{gene_transformer_forward.1} parent=1 // pred_region
      %986 = dma.done [#allocation53], 16
    $region489: #{gene_transformer_forward.1} parent=1 // pred_fallthru
      _
    // Predicated region
    $region490: #{gene_transformer_forward.1} parent=1 // pred_check
      _
    $region491: #{gene_transformer_forward.1} parent=1 // pred_check_branch
      %988 = sbr.rel (0) target = $region493
    $region492: #{gene_transformer_forward.1} parent=1 // pred_region
      %990 = dma.done [#allocation53], 16
    $region493: #{gene_transformer_forward.1} parent=1 // pred_fallthru
      _
    // Predicated region
    $region494: #{gene_transformer_forward.1} parent=1 // pred_check
      _
    $region495: #{gene_transformer_forward.1} parent=1 // pred_check_branch
      %992 = sbr.rel (0) target = $region497
    $region496: #{gene_transformer_forward.1} parent=1 // pred_region
      %994 = dma.done [#allocation56], 16
    $region497: #{gene_transformer_forward.1} parent=1 // pred_fallthru
      _
    // Predicated region
    $region498: #{gene_transformer_forward.1} parent=1 // pred_check
      _
    $region499: #{gene_transformer_forward.1} parent=1 // pred_check_branch
      %996 = sbr.rel (0) target = $region501
    $region500: #{gene_transformer_forward.1} parent=1 // pred_region
      %998 = dma.done [#allocation56], 16
    $region501: #{gene_transformer_forward.1} parent=1 // pred_fallthru
      _
    // Predicated region
    $region502: #{gene_transformer_forward.1} parent=1 // pred_check
      _
    $region503: #{gene_transformer_forward.1} parent=1 // pred_check_branch
      %1000 = sbr.rel (0) target = $region505
    $region504: #{gene_transformer_forward.1} parent=1 // pred_region
      %1002 = dma.done [#allocation59], 16
    $region505: #{gene_transformer_forward.1} parent=1 // pred_fallthru
      _
    // Predicated region
    $region506: #{gene_transformer_forward.1} parent=1 // pred_check
      _
    $region507: #{gene_transformer_forward.1} parent=1 // pred_check_branch
      %1004 = sbr.rel (0) target = $region509
    $region508: #{gene_transformer_forward.1} parent=1 // pred_region
      %1006 = dma.done [#allocation59], 16
    $region509: #{gene_transformer_forward.1} parent=1 // pred_fallthru
      _
    // Predicated region
    $region510: #{gene_transformer_forward.1} parent=1 // pred_check
      _
    $region511: #{gene_transformer_forward.1} parent=1 // pred_check_branch
      %1008 = sbr.rel (0) target = $region513
    $region512: #{gene_transformer_forward.1} parent=1 // pred_region
      %1010 = dma.done [#allocation62], 16
    $region513: #{gene_transformer_forward.1} parent=1 // pred_fallthru
      _
    // Predicated region
    $region514: #{gene_transformer_forward.1} parent=1 // pred_check
      _
    $region515: #{gene_transformer_forward.1} parent=1 // pred_check_branch
      %1012 = sbr.rel (0) target = $region517
    $region516: #{gene_transformer_forward.1} parent=1 // pred_region
      %1014 = dma.done [#allocation62], 16
    $region517: #{gene_transformer_forward.1} parent=1 // pred_fallthru
      _
    // Predicated region
    $region518: #{gene_transformer_forward.1} parent=1 // pred_check
      _
    $region519: #{gene_transformer_forward.1} parent=1 // pred_check_branch
      %1016 = sbr.rel (0) target = $region521
    $region520: #{gene_transformer_forward.1} parent=1 // pred_region
      %1018 = dma.done [#allocation65], 16
    $region521: #{gene_transformer_forward.1} parent=1 // pred_fallthru
      _
    // Predicated region
    $region522: #{gene_transformer_forward.1} parent=1 // pred_check
      _
    $region523: #{gene_transformer_forward.1} parent=1 // pred_check_branch
      %1020 = sbr.rel (0) target = $region525
    $region524: #{gene_transformer_forward.1} parent=1 // pred_region
      %1022 = dma.done [#allocation65], 16
    $region525: #{gene_transformer_forward.1} parent=1 // pred_fallthru
      _
    // Predicated region
    $region526: #{gene_transformer_forward.1} parent=1 // pred_check
      _
    $region527: #{gene_transformer_forward.1} parent=1 // pred_check_branch
      %1024 = sbr.rel (0) target = $region529
    $region528: #{gene_transformer_forward.1} parent=1 // pred_region
      %1026 = dma.done [#allocation68], 512
    $region529: #{gene_transformer_forward.1} parent=1 // pred_fallthru
      _
    // Predicated region
    $region530: #{gene_transformer_forward.1} parent=1 // pred_check
      _
    $region531: #{gene_transformer_forward.1} parent=1 // pred_check_branch
      %1028 = sbr.rel (0) target = $region533
    $region532: #{gene_transformer_forward.1} parent=1 // pred_region
      %1030 = dma.done [#allocation68], 16
    $region533: #{gene_transformer_forward.1} parent=1 // pred_fallthru
      _
    // Predicated region
    $region534: #{gene_transformer_forward.1} parent=1 // pred_check
      _
    $region535: #{gene_transformer_forward.1} parent=1 // pred_check_branch
      %1032 = sbr.rel (0) target = $region537
    $region536: #{gene_transformer_forward.1} parent=1 // pred_region
      %1034 = dma.done [#allocation71], 512
    $region537: #{gene_transformer_forward.1} parent=1 // pred_fallthru
      _
    // Predicated region
    $region538: #{gene_transformer_forward.1} parent=1 // pred_check
      _
    $region539: #{gene_transformer_forward.1} parent=1 // pred_check_branch
      %1036 = sbr.rel (0) target = $region541
    $region540: #{gene_transformer_forward.1} parent=1 // pred_region
      %1038 = dma.done [#allocation71], 16
    $region541: #{gene_transformer_forward.1} parent=1 // pred_fallthru
      _
    // Predicated region
    $region542: #{gene_transformer_forward.1} parent=1 // pred_check
      _
    $region543: #{gene_transformer_forward.1} parent=1 // pred_check_branch
      %1040 = sbr.rel (0) target = $region545
    $region544: #{gene_transformer_forward.1} parent=1 // pred_region
      %1042 = dma.done [#allocation74], 512
    $region545: #{gene_transformer_forward.1} parent=1 // pred_fallthru
      _
    // Predicated region
    $region546: #{gene_transformer_forward.1} parent=1 // pred_check
      _
    $region547: #{gene_transformer_forward.1} parent=1 // pred_check_branch
      %1044 = sbr.rel (0) target = $region549
    $region548: #{gene_transformer_forward.1} parent=1 // pred_region
      %1046 = dma.done [#allocation74], 16
    $region549: #{gene_transformer_forward.1} parent=1 // pred_fallthru
      _
    // Predicated region
    $region550: #{gene_transformer_forward.1} parent=1 // pred_check
      _
    $region551: #{gene_transformer_forward.1} parent=1 // pred_check_branch
      %1048 = sbr.rel (0) target = $region553
    $region552: #{gene_transformer_forward.1} parent=1 // pred_region
      %1050 = dma.done [#allocation77], 512
    $region553: #{gene_transformer_forward.1} parent=1 // pred_fallthru
      _
    // Predicated region
    $region554: #{gene_transformer_forward.1} parent=1 // pred_check
      _
    $region555: #{gene_transformer_forward.1} parent=1 // pred_check_branch
      %1052 = sbr.rel (0) target = $region557
    $region556: #{gene_transformer_forward.1} parent=1 // pred_region
      %1054 = dma.done [#allocation77], 16
    $region557: #{gene_transformer_forward.1} parent=1 // pred_fallthru
      _
    %v1055 = vld [vmem:[%s1] sm:$0xff]
    %v1056 = vld [vmem:[%s1 + $0x8] sm:$0xff]
    %v1057 = vld [vmem:[%s3] sm:$0xff]
    %v1058 = vld [vmem:[%s3 + $0x8] sm:$0xff]
    %v1059 = vld [vmem:[%s5] sm:$0xff]
    %v1060 = vld [vmem:[%s5 + $0x8] sm:$0xff]
    %v1061 = vld [vmem:[%s5 + $0x10] sm:$0xff]
    %v1062 = vld [vmem:[%s5 + $0x18] sm:$0xff]
    %v1063 = vld [vmem:[%s5 + $0x20] sm:$0xff]
    %v1064 = vld [vmem:[%s5 + $0x28] sm:$0xff]
    %v1065 = vld [vmem:[%s5 + $0x30] sm:$0xff]
    %v1066 = vld [vmem:[%s5 + $0x38] sm:$0xff]
    %v1067 = vld [vmem:[%s5 + $0x40] sm:$0xff]
    %v1068 = vld [vmem:[%s5 + $0x48] sm:$0xff]
    %v1069 = vld [vmem:[%s5 + $0x50] sm:$0xff]
    %v1070 = vld [vmem:[%s5 + $0x58] sm:$0xff]
    %v1071 = vld [vmem:[%s5 + $0x60] sm:$0xff]
    %v1072 = vld [vmem:[%s5 + $0x68] sm:$0xff]
    %v1073 = vld [vmem:[%s5 + $0x70] sm:$0xff]
    %v1074 = vld [vmem:[%s5 + $0x78] sm:$0xff]
    %v1075 = vld [vmem:[%s7] sm:$0xff]
    %v1076 = vld [vmem:[%s7 + $0x8] sm:$0xff]
    %v1077 = vlaneseq
    %v1078 = vand.u32 %v1077, 127
    %1079 = vset.pattern.permute.xlu0 0
    %1080 = vperm.xlu0 %1079, %v1055
    %v1081 = vpop.permute.xlu0 %1080
    %1082 = vset.pattern.permute.xlu0 0
    %1083 = vperm.xlu0 %1082, %v1056
    %v1084 = vpop.permute.xlu0 %1083
    %vm1085 = vcmp.eq.s32.totalorder %v1078, %v1081
    %vm1086 = vcmp.eq.s32.totalorder %v1078, %v1084
    %v1087 = vsel %vm1085, 1.0, 0.0
    %v1088 = vsel %vm1086, 1.0, 0.0
    %1089 = vmatpush.msra.mxu0 %v1074
    %1090 = vmatpush.msra.mxu0 %v1073
    %1091 = vmatpush.msra.mxu0 %v1072
    %1092 = vmatpush.msra.mxu0 %v1071
    %1093 = vmatpush.msra.mxu0 %v1070
    %1094 = vmatpush.msra.mxu0 %v1069
    %1095 = vmatpush.msra.mxu0 %v1068
    %1096 = vmatpush.msra.mxu0 %v1067
    %1097 = vmatpush.msra.mxu0 %v1066
    %1098 = vmatpush.msra.mxu0 %v1065
    %1099 = vmatpush.msra.mxu0 %v1064
    %1100 = vmatpush.msra.mxu0 %v1063
    %1101 = vmatpush.msra.mxu0 %v1062
    %1102 = vmatpush.msra.mxu0 %v1061
    %1103 = vmatpush.msra.mxu0 %v1060
    %1104 = vmatpush.msra.mxu0 %v1059
    %1105 = vmatmul.f32.gmra.mxu0 %v1087
    %v1106 = vpop.f32.mrf.mxu0
    %v1107 = vadd.f32 0.0, %v1106
    %1108 = vmatmul.f32.gmra.mxu0 %v1088
    %v1109 = vpop.f32.mrf.mxu0
    %v1110 = vadd.f32 0.0, %v1109
    %1111 = vdwg.mxu0
    %v1112 = vld [vmem:[%s9] sm:$0xff]
    %v1113 = vld [vmem:[%s9 + $0x8] sm:$0xff]
    %v1114 = vld [vmem:[%s9 + $0x10] sm:$0xff]
    %v1115 = vld [vmem:[%s9 + $0x18] sm:$0xff]
    %v1116 = vld [vmem:[%s11] sm:$0x1]
    %v1117 = vld [vmem:[%s13] sm:$0xff]
    %v1118 = vld [vmem:[%s13 + $0x8] sm:$0xff]
    %v1119 = vld [vmem:[%s13 + $0x10] sm:$0xff]
    %v1120 = vld [vmem:[%s13 + $0x18] sm:$0xff]
    %v1121 = vld [vmem:[%s15] sm:$0x1]
    %v1122 = vld [vmem:[%s17] sm:$0x1]
    %v1123 = vld [vmem:[%s19] sm:$0x1]
    %v1124 = vld [vmem:[%s21] sm:$0xff]
    %v1125 = vld [vmem:[%s21 + $0x8] sm:$0xff]
    %v1126 = vld [vmem:[%s21 + $0x10] sm:$0xff]
    %v1127 = vld [vmem:[%s21 + $0x18] sm:$0xff]
    %v1128 = vld [vmem:[#allocation2] sm:$0x1]
    %v1129 = vld [vmem:[%s25] sm:$0xff]
    %v1130 = vld [vmem:[%s25 + $0x8] sm:$0xff]
    %v1131 = vld [vmem:[%s25 + $0x10] sm:$0xff]
    %v1132 = vld [vmem:[%s25 + $0x18] sm:$0xff]
    %v1133 = vld [vmem:[%s25 + $0x20] sm:$0xff]
    %v1134 = vld [vmem:[%s25 + $0x28] sm:$0xff]
    %v1135 = vld [vmem:[%s25 + $0x30] sm:$0xff]
    %v1136 = vld [vmem:[%s25 + $0x38] sm:$0xff]
    %v1137 = vld [vmem:[#allocation4] sm:$0x1]
    %v1138 = vld [vmem:[#allocation6] sm:$0x1]
    %v1139 = vld [vmem:[#allocation7] sm:$0x1]
    %v1141 = vperm.slane %v1116, 0
    %vm1143 = vcmask 261120
    %v1145 = vsel %vm1143, %v1107, 0
    %v1148 = vsel %vm1143, %v1110, 0
    %1150 = vmatpush.msra.mxu0 0.0
    %1151 = vmatpush.msra.mxu0 0.0
    %1152 = vmatpush.msra.mxu0 0.0
    %1153 = vmatpush.msra.mxu0 0.0
    %1154 = vmatpush.msra.mxu0 0.0
    %1155 = vmatpush.msra.mxu0 0.0
    %1156 = vmatpush.msra.mxu0 0.0
    %1157 = vmatpush.msra.mxu0 0.0
    %1158 = vmatpush.msra.mxu0 0.0
    %1159 = vmatpush.msra.mxu0 0.0
    %1160 = vmatpush.msra.mxu0 0.0
    %1161 = vmatpush.msra.mxu0 0.0
    %1162 = vmatpush.msra.mxu0 %v1115
    %1163 = vmatpush.msra.mxu0 %v1114
    %1164 = vmatpush.msra.mxu0 %v1113
    %1165 = vmatpush.msra.mxu0 %v1112
    %1166 = vmatmul.f32.gmra.mxu0 %v1145
    %v1167 = vpop.f32.mrf.mxu0
    %v1168 = vadd.f32 %v1141, %v1167
    %1169 = vmatmul.f32.gmra.mxu0 %v1148
    %v1170 = vpop.f32.mrf.mxu0
    %v1171 = vadd.f32 %v1141, %v1170
    %1172 = vdwg.mxu0
    %1174 = vrot.lane.b32.xlu0 %v1168, 96
    %v1175 = vpop.permute.xlu0 %1174
    %vm1176 = vcmask 64512
    %v1177 = vsel %vm1176, %v1168, 0
    %v1179 = vsel %vm1176, %v1175, 0
    %1181 = vmatpush.xpose.msra.mxu0 0.0
    %1182 = vmatpush.xpose.msra.mxu0 0.0
    %1183 = vmatpush.xpose.msra.mxu0 0.0
    %1184 = vmatpush.xpose.msra.mxu0 0.0
    %1185 = vmatpush.xpose.msra.mxu0 0.0
    %1186 = vmatpush.xpose.msra.mxu0 0.0
    %1187 = vmatpush.xpose.msra.mxu0 0.0
    %1188 = vmatpush.xpose.msra.mxu0 0.0
    %1189 = vmatpush.xpose.msra.mxu0 0.0
    %1190 = vmatpush.xpose.msra.mxu0 0.0
    %1191 = vmatpush.xpose.msra.mxu0 0.0
    %1192 = vmatpush.xpose.msra.mxu0 0.0
    %1193 = vmatpush.xpose.msra.mxu0 0.0
    %1194 = vmatpush.xpose.msra.mxu0 0.0
    %1195 = vmatpush.xpose.msra.mxu0 0.0
    %1196 = vmatpush.xpose.msra.mxu0 %v1179
    %1197 = vmatmul.f32.gmra.mxu0 %v1177
    %v1198 = vpop.f32.mrf.mxu0
    %v1199 = vadd.f32 0.0, %v1198
    %1200 = vdwg.mxu0
    %1202 = vrot.lane.b32.xlu0 %v1171, 96
    %v1203 = vpop.permute.xlu0 %1202
    %v1204 = vsel %vm1176, %v1171, 0
    %v1206 = vsel %vm1176, %v1203, 0
    %1208 = vmatpush.xpose.msra.mxu0 0.0
    %1209 = vmatpush.xpose.msra.mxu0 0.0
    %1210 = vmatpush.xpose.msra.mxu0 0.0
    %1211 = vmatpush.xpose.msra.mxu0 0.0
    %1212 = vmatpush.xpose.msra.mxu0 0.0
    %1213 = vmatpush.xpose.msra.mxu0 0.0
    %1214 = vmatpush.xpose.msra.mxu0 0.0
    %1215 = vmatpush.xpose.msra.mxu0 0.0
    %1216 = vmatpush.xpose.msra.mxu0 0.0
    %1217 = vmatpush.xpose.msra.mxu0 0.0
    %1218 = vmatpush.xpose.msra.mxu0 0.0
    %1219 = vmatpush.xpose.msra.mxu0 0.0
    %1220 = vmatpush.xpose.msra.mxu0 0.0
    %1221 = vmatpush.xpose.msra.mxu0 0.0
    %1222 = vmatpush.xpose.msra.mxu0 0.0
    %1223 = vmatpush.xpose.msra.mxu0 %v1206
    %1224 = vmatmul.f32.gmra.mxu0 %v1204
    %v1225 = vpop.f32.mrf.mxu0
    %v1226 = vadd.f32 0.0, %v1225
    %1227 = vdwg.mxu0
    %v1228 = vsel %vm1176, %v1199, -inf
    %1229 = vmax.xlane.f32.xlu0 %v1228
    %v1230 = vpop.xlane.xlu0 %1229
    %v1231 = vsel %vm1176, %v1226, -inf
    %1232 = vmax.xlane.f32.xlu0 %v1231
    %v1233 = vpop.xlane.xlu0 %1232
    %v1234 = vsub.f32 %v1199, %v1230
    %v1235 = vsub.f32 %v1226, %v1233
    %v1236 = vmul.f32 %v1234, 1.442695
    %v1237 = vpow.pop %v1236
    %v1238 = vmul.f32 %v1235, 1.442695
    %v1239 = vpow.pop %v1238
    %v1240 = vsel %vm1176, %v1237, 0.0
    %1241 = vadd.xlane.f32.xlu0 %v1240
    %v1242 = vpop.xlane.xlu0 %1241
    %v1243 = vsel %vm1176, %v1239, 0.0
    %1244 = vadd.xlane.f32.xlu0 %v1243
    %v1245 = vpop.xlane.xlu0 %1244
    %v1246 = vrcp.pop %v1242
    %v1247 = vrcp.pop %v1245
    %v1248 = vmul.f32 %v1237, %v1246
    %v1249 = vmul.f32 %v1239, %v1247
    %1250 = vrot.lane.b32.xlu0 %v1168, 64
    %v1251 = vpop.permute.xlu0 %1250
    %v1254 = vsel %vm1176, %v1248, 0
    %1256 = vmatpush.msra.mxu0 0.0
    %1257 = vmatpush.msra.mxu0 0.0
    %1258 = vmatpush.msra.mxu0 0.0
    %1259 = vmatpush.msra.mxu0 0.0
    %1260 = vmatpush.msra.mxu0 0.0
    %1261 = vmatpush.msra.mxu0 0.0
    %1262 = vmatpush.msra.mxu0 0.0
    %1263 = vmatpush.msra.mxu0 0.0
    %1264 = vmatpush.msra.mxu0 0.0
    %1265 = vmatpush.msra.mxu0 0.0
    %1266 = vmatpush.msra.mxu0 0.0
    %1267 = vmatpush.msra.mxu0 0.0
    %1268 = vmatpush.msra.mxu0 0.0
    %1269 = vmatpush.msra.mxu0 0.0
    %1270 = vmatpush.msra.mxu0 0.0
    %1271 = vmatpush.msra.mxu0 %v1251
    %1272 = vmatmul.f32.gmra.mxu0 %v1254
    %v1273 = vpop.f32.mrf.mxu0
    %v1274 = vadd.f32 0.0, %v1273
    %1275 = vdwg.mxu0
    %1276 = vrot.lane.b32.xlu0 %v1171, 64
    %v1277 = vpop.permute.xlu0 %1276
    %v1280 = vsel %vm1176, %v1249, 0
    %1282 = vmatpush.msra.mxu0 0.0
    %1283 = vmatpush.msra.mxu0 0.0
    %1284 = vmatpush.msra.mxu0 0.0
    %1285 = vmatpush.msra.mxu0 0.0
    %1286 = vmatpush.msra.mxu0 0.0
    %1287 = vmatpush.msra.mxu0 0.0
    %1288 = vmatpush.msra.mxu0 0.0
    %1289 = vmatpush.msra.mxu0 0.0
    %1290 = vmatpush.msra.mxu0 0.0
    %1291 = vmatpush.msra.mxu0 0.0
    %1292 = vmatpush.msra.mxu0 0.0
    %1293 = vmatpush.msra.mxu0 0.0
    %1294 = vmatpush.msra.mxu0 0.0
    %1295 = vmatpush.msra.mxu0 0.0
    %1296 = vmatpush.msra.mxu0 0.0
    %1297 = vmatpush.msra.mxu0 %v1277
    %1298 = vmatmul.f32.gmra.mxu0 %v1280
    %v1299 = vpop.f32.mrf.mxu0
    %v1300 = vadd.f32 0.0, %v1299
    %1301 = vdwg.mxu0
    %1302 = vrot.lane.b32.xlu0 %v1168, 120
    %v1303 = vpop.permute.xlu0 %1302
    %1304 = vrot.lane.b32.xlu0 %v1168, 88
    %v1305 = vpop.permute.xlu0 %1304
    %v1306 = vsel %vm1176, %v1303, 0
    %v1308 = vsel %vm1176, %v1305, 0
    %1310 = vmatpush.xpose.msra.mxu0 0.0
    %1311 = vmatpush.xpose.msra.mxu0 0.0
    %1312 = vmatpush.xpose.msra.mxu0 0.0
    %1313 = vmatpush.xpose.msra.mxu0 0.0
    %1314 = vmatpush.xpose.msra.mxu0 0.0
    %1315 = vmatpush.xpose.msra.mxu0 0.0
    %1316 = vmatpush.xpose.msra.mxu0 0.0
    %1317 = vmatpush.xpose.msra.mxu0 0.0
    %1318 = vmatpush.xpose.msra.mxu0 0.0
    %1319 = vmatpush.xpose.msra.mxu0 0.0
    %1320 = vmatpush.xpose.msra.mxu0 0.0
    %1321 = vmatpush.xpose.msra.mxu0 0.0
    %1322 = vmatpush.xpose.msra.mxu0 0.0
    %1323 = vmatpush.xpose.msra.mxu0 0.0
    %1324 = vmatpush.xpose.msra.mxu0 0.0
    %1325 = vmatpush.xpose.msra.mxu0 %v1308
    %1326 = vmatmul.f32.gmra.mxu0 %v1306
    %v1327 = vpop.f32.mrf.mxu0
    %v1328 = vadd.f32 0.0, %v1327
    %1329 = vdwg.mxu0
    %1330 = vrot.lane.b32.xlu0 %v1171, 120
    %v1331 = vpop.permute.xlu0 %1330
    %1332 = vrot.lane.b32.xlu0 %v1171, 88
    %v1333 = vpop.permute.xlu0 %1332
    %v1334 = vsel %vm1176, %v1331, 0
    %v1336 = vsel %vm1176, %v1333, 0
    %1338 = vmatpush.xpose.msra.mxu0 0.0
    %1339 = vmatpush.xpose.msra.mxu0 0.0
    %1340 = vmatpush.xpose.msra.mxu0 0.0
    %1341 = vmatpush.xpose.msra.mxu0 0.0
    %1342 = vmatpush.xpose.msra.mxu0 0.0
    %1343 = vmatpush.xpose.msra.mxu0 0.0
    %1344 = vmatpush.xpose.msra.mxu0 0.0
    %1345 = vmatpush.xpose.msra.mxu0 0.0
    %1346 = vmatpush.xpose.msra.mxu0 0.0
    %1347 = vmatpush.xpose.msra.mxu0 0.0
    %1348 = vmatpush.xpose.msra.mxu0 0.0
    %1349 = vmatpush.xpose.msra.mxu0 0.0
    %1350 = vmatpush.xpose.msra.mxu0 0.0
    %1351 = vmatpush.xpose.msra.mxu0 0.0
    %1352 = vmatpush.xpose.msra.mxu0 0.0
    %1353 = vmatpush.xpose.msra.mxu0 %v1336
    %1354 = vmatmul.f32.gmra.mxu0 %v1334
    %v1355 = vpop.f32.mrf.mxu0
    %v1356 = vadd.f32 0.0, %v1355
    %1357 = vdwg.mxu0
    %v1358 = vsel %vm1176, %v1328, -inf
    %1359 = vmax.xlane.f32.xlu0 %v1358
    %v1360 = vpop.xlane.xlu0 %1359
    %v1361 = vsel %vm1176, %v1356, -inf
    %1362 = vmax.xlane.f32.xlu0 %v1361
    %v1363 = vpop.xlane.xlu0 %1362
    %v1364 = vsub.f32 %v1328, %v1360
    %v1365 = vsub.f32 %v1356, %v1363
    %v1366 = vmul.f32 %v1364, 1.442695
    %v1367 = vpow.pop %v1366
    %v1368 = vmul.f32 %v1365, 1.442695
    %v1369 = vpow.pop %v1368
    %v1370 = vsel %vm1176, %v1367, 0.0
    %1371 = vadd.xlane.f32.xlu0 %v1370
    %v1372 = vpop.xlane.xlu0 %1371
    %v1373 = vsel %vm1176, %v1369, 0.0
    %1374 = vadd.xlane.f32.xlu0 %v1373
    %v1375 = vpop.xlane.xlu0 %1374
    %v1376 = vrcp.pop %v1372
    %v1377 = vrcp.pop %v1375
    %v1378 = vmul.f32 %v1367, %v1376
    %v1379 = vmul.f32 %v1369, %v1377
    %1380 = vrot.lane.b32.xlu0 %v1168, 56
    %v1381 = vpop.permute.xlu0 %1380
    %v1384 = vsel %vm1176, %v1378, 0
    %1386 = vmatpush.msra.mxu0 0.0
    %1387 = vmatpush.msra.mxu0 0.0
    %1388 = vmatpush.msra.mxu0 0.0
    %1389 = vmatpush.msra.mxu0 0.0
    %1390 = vmatpush.msra.mxu0 0.0
    %1391 = vmatpush.msra.mxu0 0.0
    %1392 = vmatpush.msra.mxu0 0.0
    %1393 = vmatpush.msra.mxu0 0.0
    %1394 = vmatpush.msra.mxu0 0.0
    %1395 = vmatpush.msra.mxu0 0.0
    %1396 = vmatpush.msra.mxu0 0.0
    %1397 = vmatpush.msra.mxu0 0.0
    %1398 = vmatpush.msra.mxu0 0.0
    %1399 = vmatpush.msra.mxu0 0.0
    %1400 = vmatpush.msra.mxu0 0.0
    %1401 = vmatpush.msra.mxu0 %v1381
    %1402 = vmatmul.f32.gmra.mxu0 %v1384
    %v1403 = vpop.f32.mrf.mxu0
    %v1404 = vadd.f32 0.0, %v1403
    %1405 = vdwg.mxu0
    %1406 = vrot.lane.b32.xlu0 %v1171, 56
    %v1407 = vpop.permute.xlu0 %1406
    %v1410 = vsel %vm1176, %v1379, 0
    %1412 = vmatpush.msra.mxu0 0.0
    %1413 = vmatpush.msra.mxu0 0.0
    %1414 = vmatpush.msra.mxu0 0.0
    %1415 = vmatpush.msra.mxu0 0.0
    %1416 = vmatpush.msra.mxu0 0.0
    %1417 = vmatpush.msra.mxu0 0.0
    %1418 = vmatpush.msra.mxu0 0.0
    %1419 = vmatpush.msra.mxu0 0.0
    %1420 = vmatpush.msra.mxu0 0.0
    %1421 = vmatpush.msra.mxu0 0.0
    %1422 = vmatpush.msra.mxu0 0.0
    %1423 = vmatpush.msra.mxu0 0.0
    %1424 = vmatpush.msra.mxu0 0.0
    %1425 = vmatpush.msra.mxu0 0.0
    %1426 = vmatpush.msra.mxu0 0.0
    %1427 = vmatpush.msra.mxu0 %v1407
    %1428 = vmatmul.f32.gmra.mxu0 %v1410
    %v1429 = vpop.f32.mrf.mxu0
    %v1430 = vadd.f32 0.0, %v1429
    %1431 = vdwg.mxu0
    %v1433 = vsel %vm1176, %v1404, 0
    %v1436 = vsel %vm1176, %v1430, 0
    %1438 = vmatpush.msra.mxu0 0.0
    %1439 = vmatpush.msra.mxu0 0.0
    %1440 = vmatpush.msra.mxu0 0.0
    %1441 = vmatpush.msra.mxu0 0.0
    %1442 = vmatpush.msra.mxu0 0.0
    %1443 = vmatpush.msra.mxu0 0.0
    %1444 = vmatpush.msra.mxu0 0.0
    %1445 = vmatpush.msra.mxu0 0.0
    %1446 = vmatpush.msra.mxu0 0.0
    %1447 = vmatpush.msra.mxu0 0.0
    %1448 = vmatpush.msra.mxu0 0.0
    %1449 = vmatpush.msra.mxu0 0.0
    %1450 = vmatpush.msra.mxu0 0.0
    %1451 = vmatpush.msra.mxu0 0.0
    %1452 = vmatpush.msra.mxu0 0.0
    %1453 = vmatpush.msra.mxu0 %v1118
    %1454 = vmatmul.f32.gmra.mxu0 %v1433
    %v1455 = vpop.f32.mrf.mxu0
    %v1456 = vadd.f32 0.0, %v1455
    %1457 = vmatmul.f32.gmra.mxu0 %v1436
    %v1458 = vpop.f32.mrf.mxu0
    %v1459 = vadd.f32 0.0, %v1458
    %1460 = vdwg.mxu0
    %v1462 = vsel %vm1176, %v1274, 0
    %v1465 = vsel %vm1176, %v1300, 0
    %1467 = vmatpush.msra.mxu0 0.0
    %1468 = vmatpush.msra.mxu0 0.0
    %1469 = vmatpush.msra.mxu0 0.0
    %1470 = vmatpush.msra.mxu0 0.0
    %1471 = vmatpush.msra.mxu0 0.0
    %1472 = vmatpush.msra.mxu0 0.0
    %1473 = vmatpush.msra.mxu0 0.0
    %1474 = vmatpush.msra.mxu0 0.0
    %1475 = vmatpush.msra.mxu0 0.0
    %1476 = vmatpush.msra.mxu0 0.0
    %1477 = vmatpush.msra.mxu0 0.0
    %1478 = vmatpush.msra.mxu0 0.0
    %1479 = vmatpush.msra.mxu0 0.0
    %1480 = vmatpush.msra.mxu0 0.0
    %1481 = vmatpush.msra.mxu0 0.0
    %1482 = vmatpush.msra.mxu0 %v1117
    %1483 = vmatmul.f32.gmra.mxu0 %v1462
    %v1484 = vpop.f32.mrf.mxu0
    %v1485 = vadd.f32 %v1456, %v1484
    %1486 = vmatmul.f32.gmra.mxu0 %v1465
    %v1487 = vpop.f32.mrf.mxu0
    %v1488 = vadd.f32 %v1459, %v1487
    %1489 = vdwg.mxu0
    %1490 = vrot.lane.b32.xlu0 %v1168, 112
    %v1491 = vpop.permute.xlu0 %1490
    %1492 = vrot.lane.b32.xlu0 %v1168, 80
    %v1493 = vpop.permute.xlu0 %1492
    %v1494 = vsel %vm1176, %v1491, 0
    %v1496 = vsel %vm1176, %v1493, 0
    %1498 = vmatpush.xpose.msra.mxu0 0.0
    %1499 = vmatpush.xpose.msra.mxu0 0.0
    %1500 = vmatpush.xpose.msra.mxu0 0.0
    %1501 = vmatpush.xpose.msra.mxu0 0.0
    %1502 = vmatpush.xpose.msra.mxu0 0.0
    %1503 = vmatpush.xpose.msra.mxu0 0.0
    %1504 = vmatpush.xpose.msra.mxu0 0.0
    %1505 = vmatpush.xpose.msra.mxu0 0.0
    %1506 = vmatpush.xpose.msra.mxu0 0.0
    %1507 = vmatpush.xpose.msra.mxu0 0.0
    %1508 = vmatpush.xpose.msra.mxu0 0.0
    %1509 = vmatpush.xpose.msra.mxu0 0.0
    %1510 = vmatpush.xpose.msra.mxu0 0.0
    %1511 = vmatpush.xpose.msra.mxu0 0.0
    %1512 = vmatpush.xpose.msra.mxu0 0.0
    %1513 = vmatpush.xpose.msra.mxu0 %v1496
    %1514 = vmatmul.f32.gmra.mxu0 %v1494
    %v1515 = vpop.f32.mrf.mxu0
    %v1516 = vadd.f32 0.0, %v1515
    %1517 = vdwg.mxu0
    %1518 = vrot.lane.b32.xlu0 %v1171, 112
    %v1519 = vpop.permute.xlu0 %1518
    %1520 = vrot.lane.b32.xlu0 %v1171, 80
    %v1521 = vpop.permute.xlu0 %1520
    %v1522 = vsel %vm1176, %v1519, 0
    %v1524 = vsel %vm1176, %v1521, 0
    %1526 = vmatpush.xpose.msra.mxu0 0.0
    %1527 = vmatpush.xpose.msra.mxu0 0.0
    %1528 = vmatpush.xpose.msra.mxu0 0.0
    %1529 = vmatpush.xpose.msra.mxu0 0.0
    %1530 = vmatpush.xpose.msra.mxu0 0.0
    %1531 = vmatpush.xpose.msra.mxu0 0.0
    %1532 = vmatpush.xpose.msra.mxu0 0.0
    %1533 = vmatpush.xpose.msra.mxu0 0.0
    %1534 = vmatpush.xpose.msra.mxu0 0.0
    %1535 = vmatpush.xpose.msra.mxu0 0.0
    %1536 = vmatpush.xpose.msra.mxu0 0.0
    %1537 = vmatpush.xpose.msra.mxu0 0.0
    %1538 = vmatpush.xpose.msra.mxu0 0.0
    %1539 = vmatpush.xpose.msra.mxu0 0.0
    %1540 = vmatpush.xpose.msra.mxu0 0.0
    %1541 = vmatpush.xpose.msra.mxu0 %v1524
    %1542 = vmatmul.f32.gmra.mxu0 %v1522
    %v1543 = vpop.f32.mrf.mxu0
    %v1544 = vadd.f32 0.0, %v1543
    %1545 = vdwg.mxu0
    %v1546 = vsel %vm1176, %v1516, -inf
    %1547 = vmax.xlane.f32.xlu0 %v1546
    %v1548 = vpop.xlane.xlu0 %1547
    %v1549 = vsel %vm1176, %v1544, -inf
    %1550 = vmax.xlane.f32.xlu0 %v1549
    %v1551 = vpop.xlane.xlu0 %1550
    %v1552 = vsub.f32 %v1516, %v1548
    %v1553 = vsub.f32 %v1544, %v1551
    %v1554 = vmul.f32 %v1552, 1.442695
    %v1555 = vpow.pop %v1554
    %v1556 = vmul.f32 %v1553, 1.442695
    %v1557 = vpow.pop %v1556
    %v1558 = vsel %vm1176, %v1555, 0.0
    %1559 = vadd.xlane.f32.xlu0 %v1558
    %v1560 = vpop.xlane.xlu0 %1559
    %v1561 = vsel %vm1176, %v1557, 0.0
    %1562 = vadd.xlane.f32.xlu0 %v1561
    %v1563 = vpop.xlane.xlu0 %1562
    %v1564 = vrcp.pop %v1560
    %v1565 = vrcp.pop %v1563
    %v1566 = vmul.f32 %v1555, %v1564
    %v1567 = vmul.f32 %v1557, %v1565
    %1568 = vrot.lane.b32.xlu0 %v1168, 48
    %v1569 = vpop.permute.xlu0 %1568
    %v1572 = vsel %vm1176, %v1566, 0
    %1574 = vmatpush.msra.mxu0 0.0
    %1575 = vmatpush.msra.mxu0 0.0
    %1576 = vmatpush.msra.mxu0 0.0
    %1577 = vmatpush.msra.mxu0 0.0
    %1578 = vmatpush.msra.mxu0 0.0
    %1579 = vmatpush.msra.mxu0 0.0
    %1580 = vmatpush.msra.mxu0 0.0
    %1581 = vmatpush.msra.mxu0 0.0
    %1582 = vmatpush.msra.mxu0 0.0
    %1583 = vmatpush.msra.mxu0 0.0
    %1584 = vmatpush.msra.mxu0 0.0
    %1585 = vmatpush.msra.mxu0 0.0
    %1586 = vmatpush.msra.mxu0 0.0
    %1587 = vmatpush.msra.mxu0 0.0
    %1588 = vmatpush.msra.mxu0 0.0
    %1589 = vmatpush.msra.mxu0 %v1569
    %1590 = vmatmul.f32.gmra.mxu0 %v1572
    %v1591 = vpop.f32.mrf.mxu0
    %v1592 = vadd.f32 0.0, %v1591
    %1593 = vdwg.mxu0
    %1594 = vrot.lane.b32.xlu0 %v1171, 48
    %v1595 = vpop.permute.xlu0 %1594
    %v1598 = vsel %vm1176, %v1567, 0
    %1600 = vmatpush.msra.mxu0 0.0
    %1601 = vmatpush.msra.mxu0 0.0
    %1602 = vmatpush.msra.mxu0 0.0
    %1603 = vmatpush.msra.mxu0 0.0
    %1604 = vmatpush.msra.mxu0 0.0
    %1605 = vmatpush.msra.mxu0 0.0
    %1606 = vmatpush.msra.mxu0 0.0
    %1607 = vmatpush.msra.mxu0 0.0
    %1608 = vmatpush.msra.mxu0 0.0
    %1609 = vmatpush.msra.mxu0 0.0
    %1610 = vmatpush.msra.mxu0 0.0
    %1611 = vmatpush.msra.mxu0 0.0
    %1612 = vmatpush.msra.mxu0 0.0
    %1613 = vmatpush.msra.mxu0 0.0
    %1614 = vmatpush.msra.mxu0 0.0
    %1615 = vmatpush.msra.mxu0 %v1595
    %1616 = vmatmul.f32.gmra.mxu0 %v1598
    %v1617 = vpop.f32.mrf.mxu0
    %v1618 = vadd.f32 0.0, %v1617
    %1619 = vdwg.mxu0
    %v1621 = vsel %vm1176, %v1592, 0
    %v1624 = vsel %vm1176, %v1618, 0
    %1626 = vmatpush.msra.mxu0 0.0
    %1627 = vmatpush.msra.mxu0 0.0
    %1628 = vmatpush.msra.mxu0 0.0
    %1629 = vmatpush.msra.mxu0 0.0
    %1630 = vmatpush.msra.mxu0 0.0
    %1631 = vmatpush.msra.mxu0 0.0
    %1632 = vmatpush.msra.mxu0 0.0
    %1633 = vmatpush.msra.mxu0 0.0
    %1634 = vmatpush.msra.mxu0 0.0
    %1635 = vmatpush.msra.mxu0 0.0
    %1636 = vmatpush.msra.mxu0 0.0
    %1637 = vmatpush.msra.mxu0 0.0
    %1638 = vmatpush.msra.mxu0 0.0
    %1639 = vmatpush.msra.mxu0 0.0
    %1640 = vmatpush.msra.mxu0 0.0
    %1641 = vmatpush.msra.mxu0 %v1119
    %1642 = vmatmul.f32.gmra.mxu0 %v1621
    %v1643 = vpop.f32.mrf.mxu0
    %v1644 = vadd.f32 0.0, %v1643
    %1645 = vmatmul.f32.gmra.mxu0 %v1624
    %v1646 = vpop.f32.mrf.mxu0
    %v1647 = vadd.f32 0.0, %v1646
    %1648 = vdwg.mxu0
    %v1649 = vadd.f32 %v1485, %v1644
    %v1650 = vadd.f32 %v1488, %v1647
    %1651 = vrot.lane.b32.xlu0 %v1168, 104
    %v1652 = vpop.permute.xlu0 %1651
    %1653 = vrot.lane.b32.xlu0 %v1168, 72
    %v1654 = vpop.permute.xlu0 %1653
    %v1655 = vsel %vm1176, %v1652, 0
    %v1657 = vsel %vm1176, %v1654, 0
    %1659 = vmatpush.xpose.msra.mxu0 0.0
    %1660 = vmatpush.xpose.msra.mxu0 0.0
    %1661 = vmatpush.xpose.msra.mxu0 0.0
    %1662 = vmatpush.xpose.msra.mxu0 0.0
    %1663 = vmatpush.xpose.msra.mxu0 0.0
    %1664 = vmatpush.xpose.msra.mxu0 0.0
    %1665 = vmatpush.xpose.msra.mxu0 0.0
    %1666 = vmatpush.xpose.msra.mxu0 0.0
    %1667 = vmatpush.xpose.msra.mxu0 0.0
    %1668 = vmatpush.xpose.msra.mxu0 0.0
    %1669 = vmatpush.xpose.msra.mxu0 0.0
    %1670 = vmatpush.xpose.msra.mxu0 0.0
    %1671 = vmatpush.xpose.msra.mxu0 0.0
    %1672 = vmatpush.xpose.msra.mxu0 0.0
    %1673 = vmatpush.xpose.msra.mxu0 0.0
    %1674 = vmatpush.xpose.msra.mxu0 %v1657
    %1675 = vmatmul.f32.gmra.mxu0 %v1655
    %v1676 = vpop.f32.mrf.mxu0
    %v1677 = vadd.f32 0.0, %v1676
    %1678 = vdwg.mxu0
    %1679 = vrot.lane.b32.xlu0 %v1171, 104
    %v1680 = vpop.permute.xlu0 %1679
    %1681 = vrot.lane.b32.xlu0 %v1171, 72
    %v1682 = vpop.permute.xlu0 %1681
    %v1683 = vsel %vm1176, %v1680, 0
    %v1685 = vsel %vm1176, %v1682, 0
    %1687 = vmatpush.xpose.msra.mxu0 0.0
    %1688 = vmatpush.xpose.msra.mxu0 0.0
    %1689 = vmatpush.xpose.msra.mxu0 0.0
    %1690 = vmatpush.xpose.msra.mxu0 0.0
    %1691 = vmatpush.xpose.msra.mxu0 0.0
    %1692 = vmatpush.xpose.msra.mxu0 0.0
    %1693 = vmatpush.xpose.msra.mxu0 0.0
    %1694 = vmatpush.xpose.msra.mxu0 0.0
    %1695 = vmatpush.xpose.msra.mxu0 0.0
    %1696 = vmatpush.xpose.msra.mxu0 0.0
    %1697 = vmatpush.xpose.msra.mxu0 0.0
    %1698 = vmatpush.xpose.msra.mxu0 0.0
    %1699 = vmatpush.xpose.msra.mxu0 0.0
    %1700 = vmatpush.xpose.msra.mxu0 0.0
    %1701 = vmatpush.xpose.msra.mxu0 0.0
    %1702 = vmatpush.xpose.msra.mxu0 %v1685
    %1703 = vmatmul.f32.gmra.mxu0 %v1683
    %v1704 = vpop.f32.mrf.mxu0
    %v1705 = vadd.f32 0.0, %v1704
    %1706 = vdwg.mxu0
    %v1707 = vsel %vm1176, %v1677, -inf
    %1708 = vmax.xlane.f32.xlu0 %v1707
    %v1709 = vpop.xlane.xlu0 %1708
    %v1710 = vsel %vm1176, %v1705, -inf
    %1711 = vmax.xlane.f32.xlu0 %v1710
    %v1712 = vpop.xlane.xlu0 %1711
    %v1713 = vsub.f32 %v1677, %v1709
    %v1714 = vsub.f32 %v1705, %v1712
    %v1715 = vmul.f32 %v1713, 1.442695
    %v1716 = vpow.pop %v1715
    %v1717 = vmul.f32 %v1714, 1.442695
    %v1718 = vpow.pop %v1717
    %v1719 = vsel %vm1176, %v1716, 0.0
    %1720 = vadd.xlane.f32.xlu0 %v1719
    %v1721 = vpop.xlane.xlu0 %1720
    %v1722 = vsel %vm1176, %v1718, 0.0
    %1723 = vadd.xlane.f32.xlu0 %v1722
    %v1724 = vpop.xlane.xlu0 %1723
    %v1725 = vrcp.pop %v1721
    %v1726 = vrcp.pop %v1724
    %v1727 = vmul.f32 %v1716, %v1725
    %v1728 = vmul.f32 %v1718, %v1726
    %1729 = vrot.lane.b32.xlu0 %v1168, 40
    %v1730 = vpop.permute.xlu0 %1729
    %v1733 = vsel %vm1176, %v1727, 0
    %1735 = vmatpush.msra.mxu0 0.0
    %1736 = vmatpush.msra.mxu0 0.0
    %1737 = vmatpush.msra.mxu0 0.0
    %1738 = vmatpush.msra.mxu0 0.0
    %1739 = vmatpush.msra.mxu0 0.0
    %1740 = vmatpush.msra.mxu0 0.0
    %1741 = vmatpush.msra.mxu0 0.0
    %1742 = vmatpush.msra.mxu0 0.0
    %1743 = vmatpush.msra.mxu0 0.0
    %1744 = vmatpush.msra.mxu0 0.0
    %1745 = vmatpush.msra.mxu0 0.0
    %1746 = vmatpush.msra.mxu0 0.0
    %1747 = vmatpush.msra.mxu0 0.0
    %1748 = vmatpush.msra.mxu0 0.0
    %1749 = vmatpush.msra.mxu0 0.0
    %1750 = vmatpush.msra.mxu0 %v1730
    %1751 = vmatmul.f32.gmra.mxu0 %v1733
    %v1752 = vpop.f32.mrf.mxu0
    %v1753 = vadd.f32 0.0, %v1752
    %1754 = vdwg.mxu0
    %1755 = vrot.lane.b32.xlu0 %v1171, 40
    %v1756 = vpop.permute.xlu0 %1755
    %v1759 = vsel %vm1176, %v1728, 0
    %1761 = vmatpush.msra.mxu0 0.0
    %1762 = vmatpush.msra.mxu0 0.0
    %1763 = vmatpush.msra.mxu0 0.0
    %1764 = vmatpush.msra.mxu0 0.0
    %1765 = vmatpush.msra.mxu0 0.0
    %1766 = vmatpush.msra.mxu0 0.0
    %1767 = vmatpush.msra.mxu0 0.0
    %1768 = vmatpush.msra.mxu0 0.0
    %1769 = vmatpush.msra.mxu0 0.0
    %1770 = vmatpush.msra.mxu0 0.0
    %1771 = vmatpush.msra.mxu0 0.0
    %1772 = vmatpush.msra.mxu0 0.0
    %1773 = vmatpush.msra.mxu0 0.0
    %1774 = vmatpush.msra.mxu0 0.0
    %1775 = vmatpush.msra.mxu0 0.0
    %1776 = vmatpush.msra.mxu0 %v1756
    %1777 = vmatmul.f32.gmra.mxu0 %v1759
    %v1778 = vpop.f32.mrf.mxu0
    %v1779 = vadd.f32 0.0, %v1778
    %1780 = vdwg.mxu0
    %v1782 = vsel %vm1176, %v1753, 0
    %v1785 = vsel %vm1176, %v1779, 0
    %1787 = vmatpush.msra.mxu0 0.0
    %1788 = vmatpush.msra.mxu0 0.0
    %1789 = vmatpush.msra.mxu0 0.0
    %1790 = vmatpush.msra.mxu0 0.0
    %1791 = vmatpush.msra.mxu0 0.0
    %1792 = vmatpush.msra.mxu0 0.0
    %1793 = vmatpush.msra.mxu0 0.0
    %1794 = vmatpush.msra.mxu0 0.0
    %1795 = vmatpush.msra.mxu0 0.0
    %1796 = vmatpush.msra.mxu0 0.0
    %1797 = vmatpush.msra.mxu0 0.0
    %1798 = vmatpush.msra.mxu0 0.0
    %1799 = vmatpush.msra.mxu0 0.0
    %1800 = vmatpush.msra.mxu0 0.0
    %1801 = vmatpush.msra.mxu0 0.0
    %1802 = vmatpush.msra.mxu0 %v1120
    %1803 = vmatmul.f32.gmra.mxu0 %v1782
    %v1804 = vpop.f32.mrf.mxu0
    %v1805 = vadd.f32 0.0, %v1804
    %1806 = vmatmul.f32.gmra.mxu0 %v1785
    %v1807 = vpop.f32.mrf.mxu0
    %v1808 = vadd.f32 0.0, %v1807
    %1809 = vdwg.mxu0
    %v1810 = vadd.f32 %v1649, %v1805
    %v1811 = vadd.f32 %v1650, %v1808
    %v1813 = vperm.slane %v1121, 0
    %v1815 = vadd.f32 %v1810, %v1813
    %v1816 = vadd.f32 %v1811, %v1813
    %v1817 = vadd.f32 %v1107, %v1815
    %v1818 = vadd.f32 %v1110, %v1816
    %v1819 = vsel %vm1143, %v1817, 0.0
    %1820 = vadd.xlane.f32.xlu0 %v1819
    %v1821 = vpop.xlane.xlu0 %1820
    %v1822 = vsel %vm1143, %v1818, 0.0
    %1823 = vadd.xlane.f32.xlu0 %v1822
    %v1824 = vpop.xlane.xlu0 %1823
    %v1825 = vrcp.pop 32.0
    %v1826 = vmul.f32 32.0, %v1825
    %v1827 = vsub.f32 1.0, %v1826
    %v1828 = vmul.f32 %v1825, %v1827
    %v1829 = vadd.f32 %v1825, %v1828
    %vm1830 = vweird.f32 %v1825
    %v1831 = vsel %vm1830, %v1825, %v1829
    %v1832 = vmul.f32 %v1821, %v1831
    %v1833 = vmul.f32 %v1824, %v1831
    %v1834 = vsub.f32 %v1817, %v1832
    %v1835 = vsub.f32 %v1818, %v1833
    %v1836 = vmul.f32 %v1834, %v1834
    %v1837 = vmul.f32 %v1835, %v1835
    %v1838 = vsel %vm1143, %v1836, 0.0
    %1839 = vadd.xlane.f32.xlu0 %v1838
    %v1840 = vpop.xlane.xlu0 %1839
    %v1841 = vsel %vm1143, %v1837, 0.0
    %1842 = vadd.xlane.f32.xlu0 %v1841
    %v1843 = vpop.xlane.xlu0 %1842
    %v1844 = vmul.f32 %v1840, %v1831
    %v1845 = vmul.f32 %v1843, %v1831
    %v1846 = vadd.f32 %v1844, 1e-05
    %v1847 = vadd.f32 %v1845, 1e-05
    %v1848 = vrsqrt.pop %v1846
    %v1849 = vmul.f32 %v1848, %v1846
    %v1850 = vmul.f32 %v1849, %v1848
    %v1851 = vmul.f32 0.5, %v1850
    %v1852 = vsub.f32 1.5, %v1851
    %v1853 = vmul.f32 %v1848, %v1852
    %vm1854 = vweird.f32 %v1846
    %vm1855 = vweird.f32 %v1848
    %vm1856 = vmor %vm1854, %vm1855
    %v1857 = vsel %vm1856, %v1848, %v1853
    %v1858 = vrsqrt.pop %v1847
    %v1859 = vmul.f32 %v1858, %v1847
    %v1860 = vmul.f32 %v1859, %v1858
    %v1861 = vmul.f32 0.5, %v1860
    %v1862 = vsub.f32 1.5, %v1861
    %v1863 = vmul.f32 %v1858, %v1862
    %vm1864 = vweird.f32 %v1847
    %vm1865 = vweird.f32 %v1858
    %vm1866 = vmor %vm1864, %vm1865
    %v1867 = vsel %vm1866, %v1858, %v1863
    %v1868 = vmul.f32 %v1834, %v1857
    %v1869 = vmul.f32 %v1835, %v1867
    %v1871 = vperm.slane %v1122, 0
    %v1873 = vmul.f32 %v1868, %v1871
    %v1874 = vmul.f32 %v1869, %v1871
    %v1876 = vperm.slane %v1123, 0
    %v1878 = vadd.f32 %v1873, %v1876
    %v1879 = vadd.f32 %v1874, %v1876
    %v1881 = vperm.slane %v1128, 0
    %v1884 = vsel %vm1143, %v1878, 0
    %v1887 = vsel %vm1143, %v1879, 0
    %1889 = vmatpush.msra.mxu0 0.0
    %1890 = vmatpush.msra.mxu0 0.0
    %1891 = vmatpush.msra.mxu0 0.0
    %1892 = vmatpush.msra.mxu0 0.0
    %1893 = vmatpush.msra.mxu0 0.0
    %1894 = vmatpush.msra.mxu0 0.0
    %1895 = vmatpush.msra.mxu0 0.0
    %1896 = vmatpush.msra.mxu0 0.0
    %1897 = vmatpush.msra.mxu0 0.0
    %1898 = vmatpush.msra.mxu0 0.0
    %1899 = vmatpush.msra.mxu0 0.0
    %1900 = vmatpush.msra.mxu0 0.0
    %1901 = vmatpush.msra.mxu0 %v1127
    %1902 = vmatpush.msra.mxu0 %v1126
    %1903 = vmatpush.msra.mxu0 %v1125
    %1904 = vmatpush.msra.mxu0 %v1124
    %1905 = vmatmul.f32.gmra.mxu0 %v1884
    %v1906 = vpop.f32.mrf.mxu0
    %v1907 = vadd.f32 %v1881, %v1906
    %1908 = vmatmul.f32.gmra.mxu0 %v1887
    %v1909 = vpop.f32.mrf.mxu0
    %v1910 = vadd.f32 %v1881, %v1909
    %1911 = vdwg.mxu0
    %v1912 = vmax.f32 %v1907, 0.0
    %v1913 = vmax.f32 %v1910, 0.0
    %v1915 = vperm.slane %v1137, 0
    %vm1917 = vcmask 523264
    %v1919 = vsel %vm1917, %v1912, 0
    %v1922 = vsel %vm1917, %v1913, 0
    %1924 = vmatpush.msra.mxu0 0.0
    %1925 = vmatpush.msra.mxu0 0.0
    %1926 = vmatpush.msra.mxu0 0.0
    %1927 = vmatpush.msra.mxu0 0.0
    %1928 = vmatpush.msra.mxu0 0.0
    %1929 = vmatpush.msra.mxu0 0.0
    %1930 = vmatpush.msra.mxu0 0.0
    %1931 = vmatpush.msra.mxu0 0.0
    %1932 = vmatpush.msra.mxu0 %v1136
    %1933 = vmatpush.msra.mxu0 %v1135
    %1934 = vmatpush.msra.mxu0 %v1134
    %1935 = vmatpush.msra.mxu0 %v1133
    %1936 = vmatpush.msra.mxu0 %v1132
    %1937 = vmatpush.msra.mxu0 %v1131
    %1938 = vmatpush.msra.mxu0 %v1130
    %1939 = vmatpush.msra.mxu0 %v1129
    %1940 = vmatmul.f32.gmra.mxu0 %v1919
    %v1941 = vpop.f32.mrf.mxu0
    %v1942 = vadd.f32 %v1915, %v1941
    %1943 = vmatmul.f32.gmra.mxu0 %v1922
    %v1944 = vpop.f32.mrf.mxu0
    %v1945 = vadd.f32 %v1915, %v1944
    %1946 = vdwg.mxu0
    %v1947 = vadd.f32 %v1878, %v1942
    %v1948 = vadd.f32 %v1879, %v1945
    %v1949 = vsel %vm1143, %v1947, 0.0
    %1950 = vadd.xlane.f32.xlu0 %v1949
    %v1951 = vpop.xlane.xlu0 %1950
    %v1952 = vsel %vm1143, %v1948, 0.0
    %1953 = vadd.xlane.f32.xlu0 %v1952
    %v1954 = vpop.xlane.xlu0 %1953
    %v1955 = vmul.f32 %v1951, %v1831
    %v1956 = vmul.f32 %v1954, %v1831
    %v1957 = vsub.f32 %v1947, %v1955
    %v1958 = vsub.f32 %v1948, %v1956
    %v1959 = vmul.f32 %v1957, %v1957
    %v1960 = vmul.f32 %v1958, %v1958
    %v1961 = vsel %vm1143, %v1959, 0.0
    %1962 = vadd.xlane.f32.xlu0 %v1961
    %v1963 = vpop.xlane.xlu0 %1962
    %v1964 = vsel %vm1143, %v1960, 0.0
    %1965 = vadd.xlane.f32.xlu0 %v1964
    %v1966 = vpop.xlane.xlu0 %1965
    %v1967 = vmul.f32 %v1963, %v1831
    %v1968 = vmul.f32 %v1966, %v1831
    %v1969 = vadd.f32 %v1967, 1e-05
    %v1970 = vadd.f32 %v1968, 1e-05
    %v1971 = vrsqrt.pop %v1969
    %v1972 = vmul.f32 %v1971, %v1969
    %v1973 = vmul.f32 %v1972, %v1971
    %v1974 = vmul.f32 0.5, %v1973
    %v1975 = vsub.f32 1.5, %v1974
    %v1976 = vmul.f32 %v1971, %v1975
    %vm1977 = vweird.f32 %v1969
    %vm1978 = vweird.f32 %v1971
    %vm1979 = vmor %vm1977, %vm1978
    %v1980 = vsel %vm1979, %v1971, %v1976
    %v1981 = vrsqrt.pop %v1970
    %v1982 = vmul.f32 %v1981, %v1970
    %v1983 = vmul.f32 %v1982, %v1981
    %v1984 = vmul.f32 0.5, %v1983
    %v1985 = vsub.f32 1.5, %v1984
    %v1986 = vmul.f32 %v1981, %v1985
    %vm1987 = vweird.f32 %v1970
    %vm1988 = vweird.f32 %v1981
    %vm1989 = vmor %vm1987, %vm1988
    %v1990 = vsel %vm1989, %v1981, %v1986
    %v1991 = vmul.f32 %v1957, %v1980
    %v1992 = vmul.f32 %v1958, %v1990
    %v1994 = vperm.slane %v1138, 0
    %v1996 = vmul.f32 %v1991, %v1994
    %v1997 = vmul.f32 %v1992, %v1994
    %v1999 = vperm.slane %v1139, 0
    %v2001 = vadd.f32 %v1996, %v1999
    %v2002 = vadd.f32 %v1997, %v1999
    %v2003 = vld [vmem:[%s33] sm:$0xff]
    %v2004 = vld [vmem:[%s33 + $0x8] sm:$0xff]
    %v2005 = vld [vmem:[%s33 + $0x10] sm:$0xff]
    %v2006 = vld [vmem:[%s33 + $0x18] sm:$0xff]
    %v2007 = vld [vmem:[#allocation9] sm:$0x1]
    %v2008 = vld [vmem:[%s37] sm:$0xff]
    %v2009 = vld [vmem:[%s37 + $0x8] sm:$0xff]
    %v2010 = vld [vmem:[%s37 + $0x10] sm:$0xff]
    %v2011 = vld [vmem:[%s37 + $0x18] sm:$0xff]
    %v2012 = vld [vmem:[#allocation10] sm:$0x1]
    %v2013 = vld [vmem:[#allocation12] sm:$0x1]
    %v2014 = vld [vmem:[#allocation13] sm:$0x1]
    %v2015 = vld [vmem:[%s45] sm:$0xff]
    %v2016 = vld [vmem:[%s45 + $0x8] sm:$0xff]
    %v2017 = vld [vmem:[%s45 + $0x10] sm:$0xff]
    %v2018 = vld [vmem:[%s45 + $0x18] sm:$0xff]
    %v2019 = vld [vmem:[#allocation15] sm:$0x1]
    %v2020 = vld [vmem:[%s49] sm:$0xff]
    %v2021 = vld [vmem:[%s49 + $0x8] sm:$0xff]
    %v2022 = vld [vmem:[%s49 + $0x10] sm:$0xff]
    %v2023 = vld [vmem:[%s49 + $0x18] sm:$0xff]
    %v2024 = vld [vmem:[%s49 + $0x20] sm:$0xff]
    %v2025 = vld [vmem:[%s49 + $0x28] sm:$0xff]
    %v2026 = vld [vmem:[%s49 + $0x30] sm:$0xff]
    %v2027 = vld [vmem:[%s49 + $0x38] sm:$0xff]
    %v2028 = vld [vmem:[#allocation16] sm:$0x1]
    %v2029 = vld [vmem:[#allocation18] sm:$0x1]
    %v2030 = vld [vmem:[#allocation19] sm:$0x1]
    %v2032 = vperm.slane %v2007, 0
    %v2035 = vsel %vm1143, %v2001, 0
    %v2038 = vsel %vm1143, %v2002, 0
    %2040 = vmatpush.msra.mxu0 0.0
    %2041 = vmatpush.msra.mxu0 0.0
    %2042 = vmatpush.msra.mxu0 0.0
    %2043 = vmatpush.msra.mxu0 0.0
    %2044 = vmatpush.msra.mxu0 0.0
    %2045 = vmatpush.msra.mxu0 0.0
    %2046 = vmatpush.msra.mxu0 0.0
    %2047 = vmatpush.msra.mxu0 0.0
    %2048 = vmatpush.msra.mxu0 0.0
    %2049 = vmatpush.msra.mxu0 0.0
    %2050 = vmatpush.msra.mxu0 0.0
    %2051 = vmatpush.msra.mxu0 0.0
    %2052 = vmatpush.msra.mxu0 %v2006
    %2053 = vmatpush.msra.mxu0 %v2005
    %2054 = vmatpush.msra.mxu0 %v2004
    %2055 = vmatpush.msra.mxu0 %v2003
    %2056 = vmatmul.f32.gmra.mxu0 %v2035
    %v2057 = vpop.f32.mrf.mxu0
    %v2058 = vadd.f32 %v2032, %v2057
    %2059 = vmatmul.f32.gmra.mxu0 %v2038
    %v2060 = vpop.f32.mrf.mxu0
    %v2061 = vadd.f32 %v2032, %v2060
    %2062 = vdwg.mxu0
    %2064 = vrot.lane.b32.xlu0 %v2058, 96
    %v2065 = vpop.permute.xlu0 %2064
    %v2066 = vsel %vm1176, %v2058, 0
    %v2068 = vsel %vm1176, %v2065, 0
    %2070 = vmatpush.xpose.msra.mxu0 0.0
    %2071 = vmatpush.xpose.msra.mxu0 0.0
    %2072 = vmatpush.xpose.msra.mxu0 0.0
    %2073 = vmatpush.xpose.msra.mxu0 0.0
    %2074 = vmatpush.xpose.msra.mxu0 0.0
    %2075 = vmatpush.xpose.msra.mxu0 0.0
    %2076 = vmatpush.xpose.msra.mxu0 0.0
    %2077 = vmatpush.xpose.msra.mxu0 0.0
    %2078 = vmatpush.xpose.msra.mxu0 0.0
    %2079 = vmatpush.xpose.msra.mxu0 0.0
    %2080 = vmatpush.xpose.msra.mxu0 0.0
    %2081 = vmatpush.xpose.msra.mxu0 0.0
    %2082 = vmatpush.xpose.msra.mxu0 0.0
    %2083 = vmatpush.xpose.msra.mxu0 0.0
    %2084 = vmatpush.xpose.msra.mxu0 0.0
    %2085 = vmatpush.xpose.msra.mxu0 %v2068
    %2086 = vmatmul.f32.gmra.mxu0 %v2066
    %v2087 = vpop.f32.mrf.mxu0
    %v2088 = vadd.f32 0.0, %v2087
    %2089 = vdwg.mxu0
    %2091 = vrot.lane.b32.xlu0 %v2061, 96
    %v2092 = vpop.permute.xlu0 %2091
    %v2093 = vsel %vm1176, %v2061, 0
    %v2095 = vsel %vm1176, %v2092, 0
    %2097 = vmatpush.xpose.msra.mxu0 0.0
    %2098 = vmatpush.xpose.msra.mxu0 0.0
    %2099 = vmatpush.xpose.msra.mxu0 0.0
    %2100 = vmatpush.xpose.msra.mxu0 0.0
    %2101 = vmatpush.xpose.msra.mxu0 0.0
    %2102 = vmatpush.xpose.msra.mxu0 0.0
    %2103 = vmatpush.xpose.msra.mxu0 0.0
    %2104 = vmatpush.xpose.msra.mxu0 0.0
    %2105 = vmatpush.xpose.msra.mxu0 0.0
    %2106 = vmatpush.xpose.msra.mxu0 0.0
    %2107 = vmatpush.xpose.msra.mxu0 0.0
    %2108 = vmatpush.xpose.msra.mxu0 0.0
    %2109 = vmatpush.xpose.msra.mxu0 0.0
    %2110 = vmatpush.xpose.msra.mxu0 0.0
    %2111 = vmatpush.xpose.msra.mxu0 0.0
    %2112 = vmatpush.xpose.msra.mxu0 %v2095
    %2113 = vmatmul.f32.gmra.mxu0 %v2093
    %v2114 = vpop.f32.mrf.mxu0
    %v2115 = vadd.f32 0.0, %v2114
    %2116 = vdwg.mxu0
    %v2117 = vsel %vm1176, %v2088, -inf
    %2118 = vmax.xlane.f32.xlu0 %v2117
    %v2119 = vpop.xlane.xlu0 %2118
    %v2120 = vsel %vm1176, %v2115, -inf
    %2121 = vmax.xlane.f32.xlu0 %v2120
    %v2122 = vpop.xlane.xlu0 %2121
    %v2123 = vsub.f32 %v2088, %v2119
    %v2124 = vsub.f32 %v2115, %v2122
    %v2125 = vmul.f32 %v2123, 1.442695
    %v2126 = vpow.pop %v2125
    %v2127 = vmul.f32 %v2124, 1.442695
    %v2128 = vpow.pop %v2127
    %v2129 = vsel %vm1176, %v2126, 0.0
    %2130 = vadd.xlane.f32.xlu0 %v2129
    %v2131 = vpop.xlane.xlu0 %2130
    %v2132 = vsel %vm1176, %v2128, 0.0
    %2133 = vadd.xlane.f32.xlu0 %v2132
    %v2134 = vpop.xlane.xlu0 %2133
    %v2135 = vrcp.pop %v2131
    %v2136 = vrcp.pop %v2134
    %v2137 = vmul.f32 %v2126, %v2135
    %v2138 = vmul.f32 %v2128, %v2136
    %2139 = vrot.lane.b32.xlu0 %v2058, 64
    %v2140 = vpop.permute.xlu0 %2139
    %v2143 = vsel %vm1176, %v2137, 0
    %2145 = vmatpush.msra.mxu0 0.0
    %2146 = vmatpush.msra.mxu0 0.0
    %2147 = vmatpush.msra.mxu0 0.0
    %2148 = vmatpush.msra.mxu0 0.0
    %2149 = vmatpush.msra.mxu0 0.0
    %2150 = vmatpush.msra.mxu0 0.0
    %2151 = vmatpush.msra.mxu0 0.0
    %2152 = vmatpush.msra.mxu0 0.0
    %2153 = vmatpush.msra.mxu0 0.0
    %2154 = vmatpush.msra.mxu0 0.0
    %2155 = vmatpush.msra.mxu0 0.0
    %2156 = vmatpush.msra.mxu0 0.0
    %2157 = vmatpush.msra.mxu0 0.0
    %2158 = vmatpush.msra.mxu0 0.0
    %2159 = vmatpush.msra.mxu0 0.0
    %2160 = vmatpush.msra.mxu0 %v2140
    %2161 = vmatmul.f32.gmra.mxu0 %v2143
    %v2162 = vpop.f32.mrf.mxu0
    %v2163 = vadd.f32 0.0, %v2162
    %2164 = vdwg.mxu0
    %2165 = vrot.lane.b32.xlu0 %v2061, 64
    %v2166 = vpop.permute.xlu0 %2165
    %v2169 = vsel %vm1176, %v2138, 0
    %2171 = vmatpush.msra.mxu0 0.0
    %2172 = vmatpush.msra.mxu0 0.0
    %2173 = vmatpush.msra.mxu0 0.0
    %2174 = vmatpush.msra.mxu0 0.0
    %2175 = vmatpush.msra.mxu0 0.0
    %2176 = vmatpush.msra.mxu0 0.0
    %2177 = vmatpush.msra.mxu0 0.0
    %2178 = vmatpush.msra.mxu0 0.0
    %2179 = vmatpush.msra.mxu0 0.0
    %2180 = vmatpush.msra.mxu0 0.0
    %2181 = vmatpush.msra.mxu0 0.0
    %2182 = vmatpush.msra.mxu0 0.0
    %2183 = vmatpush.msra.mxu0 0.0
    %2184 = vmatpush.msra.mxu0 0.0
    %2185 = vmatpush.msra.mxu0 0.0
    %2186 = vmatpush.msra.mxu0 %v2166
    %2187 = vmatmul.f32.gmra.mxu0 %v2169
    %v2188 = vpop.f32.mrf.mxu0
    %v2189 = vadd.f32 0.0, %v2188
    %2190 = vdwg.mxu0
    %2191 = vrot.lane.b32.xlu0 %v2058, 120
    %v2192 = vpop.permute.xlu0 %2191
    %2193 = vrot.lane.b32.xlu0 %v2058, 88
    %v2194 = vpop.permute.xlu0 %2193
    %v2195 = vsel %vm1176, %v2192, 0
    %v2197 = vsel %vm1176, %v2194, 0
    %2199 = vmatpush.xpose.msra.mxu0 0.0
    %2200 = vmatpush.xpose.msra.mxu0 0.0
    %2201 = vmatpush.xpose.msra.mxu0 0.0
    %2202 = vmatpush.xpose.msra.mxu0 0.0
    %2203 = vmatpush.xpose.msra.mxu0 0.0
    %2204 = vmatpush.xpose.msra.mxu0 0.0
    %2205 = vmatpush.xpose.msra.mxu0 0.0
    %2206 = vmatpush.xpose.msra.mxu0 0.0
    %2207 = vmatpush.xpose.msra.mxu0 0.0
    %2208 = vmatpush.xpose.msra.mxu0 0.0
    %2209 = vmatpush.xpose.msra.mxu0 0.0
    %2210 = vmatpush.xpose.msra.mxu0 0.0
    %2211 = vmatpush.xpose.msra.mxu0 0.0
    %2212 = vmatpush.xpose.msra.mxu0 0.0
    %2213 = vmatpush.xpose.msra.mxu0 0.0
    %2214 = vmatpush.xpose.msra.mxu0 %v2197
    %2215 = vmatmul.f32.gmra.mxu0 %v2195
    %v2216 = vpop.f32.mrf.mxu0
    %v2217 = vadd.f32 0.0, %v2216
    %2218 = vdwg.mxu0
    %2219 = vrot.lane.b32.xlu0 %v2061, 120
    %v2220 = vpop.permute.xlu0 %2219
    %2221 = vrot.lane.b32.xlu0 %v2061, 88
    %v2222 = vpop.permute.xlu0 %2221
    %v2223 = vsel %vm1176, %v2220, 0
    %v2225 = vsel %vm1176, %v2222, 0
    %2227 = vmatpush.xpose.msra.mxu0 0.0
    %2228 = vmatpush.xpose.msra.mxu0 0.0
    %2229 = vmatpush.xpose.msra.mxu0 0.0
    %2230 = vmatpush.xpose.msra.mxu0 0.0
    %2231 = vmatpush.xpose.msra.mxu0 0.0
    %2232 = vmatpush.xpose.msra.mxu0 0.0
    %2233 = vmatpush.xpose.msra.mxu0 0.0
    %2234 = vmatpush.xpose.msra.mxu0 0.0
    %2235 = vmatpush.xpose.msra.mxu0 0.0
    %2236 = vmatpush.xpose.msra.mxu0 0.0
    %2237 = vmatpush.xpose.msra.mxu0 0.0
    %2238 = vmatpush.xpose.msra.mxu0 0.0
    %2239 = vmatpush.xpose.msra.mxu0 0.0
    %2240 = vmatpush.xpose.msra.mxu0 0.0
    %2241 = vmatpush.xpose.msra.mxu0 0.0
    %2242 = vmatpush.xpose.msra.mxu0 %v2225
    %2243 = vmatmul.f32.gmra.mxu0 %v2223
    %v2244 = vpop.f32.mrf.mxu0
    %v2245 = vadd.f32 0.0, %v2244
    %2246 = vdwg.mxu0
    %v2247 = vsel %vm1176, %v2217, -inf
    %2248 = vmax.xlane.f32.xlu0 %v2247
    %v2249 = vpop.xlane.xlu0 %2248
    %v2250 = vsel %vm1176, %v2245, -inf
    %2251 = vmax.xlane.f32.xlu0 %v2250
    %v2252 = vpop.xlane.xlu0 %2251
    %v2253 = vsub.f32 %v2217, %v2249
    %v2254 = vsub.f32 %v2245, %v2252
    %v2255 = vmul.f32 %v2253, 1.442695
    %v2256 = vpow.pop %v2255
    %v2257 = vmul.f32 %v2254, 1.442695
    %v2258 = vpow.pop %v2257
    %v2259 = vsel %vm1176, %v2256, 0.0
    %2260 = vadd.xlane.f32.xlu0 %v2259
    %v2261 = vpop.xlane.xlu0 %2260
    %v2262 = vsel %vm1176, %v2258, 0.0
    %2263 = vadd.xlane.f32.xlu0 %v2262
    %v2264 = vpop.xlane.xlu0 %2263
    %v2265 = vrcp.pop %v2261
    %v2266 = vrcp.pop %v2264
    %v2267 = vmul.f32 %v2256, %v2265
    %v2268 = vmul.f32 %v2258, %v2266
    %2269 = vrot.lane.b32.xlu0 %v2058, 56
    %v2270 = vpop.permute.xlu0 %2269
    %v2273 = vsel %vm1176, %v2267, 0
    %2275 = vmatpush.msra.mxu0 0.0
    %2276 = vmatpush.msra.mxu0 0.0
    %2277 = vmatpush.msra.mxu0 0.0
    %2278 = vmatpush.msra.mxu0 0.0
    %2279 = vmatpush.msra.mxu0 0.0
    %2280 = vmatpush.msra.mxu0 0.0
    %2281 = vmatpush.msra.mxu0 0.0
    %2282 = vmatpush.msra.mxu0 0.0
    %2283 = vmatpush.msra.mxu0 0.0
    %2284 = vmatpush.msra.mxu0 0.0
    %2285 = vmatpush.msra.mxu0 0.0
    %2286 = vmatpush.msra.mxu0 0.0
    %2287 = vmatpush.msra.mxu0 0.0
    %2288 = vmatpush.msra.mxu0 0.0
    %2289 = vmatpush.msra.mxu0 0.0
    %2290 = vmatpush.msra.mxu0 %v2270
    %2291 = vmatmul.f32.gmra.mxu0 %v2273
    %v2292 = vpop.f32.mrf.mxu0
    %v2293 = vadd.f32 0.0, %v2292
    %2294 = vdwg.mxu0
    %2295 = vrot.lane.b32.xlu0 %v2061, 56
    %v2296 = vpop.permute.xlu0 %2295
    %v2299 = vsel %vm1176, %v2268, 0
    %2301 = vmatpush.msra.mxu0 0.0
    %2302 = vmatpush.msra.mxu0 0.0
    %2303 = vmatpush.msra.mxu0 0.0
    %2304 = vmatpush.msra.mxu0 0.0
    %2305 = vmatpush.msra.mxu0 0.0
    %2306 = vmatpush.msra.mxu0 0.0
    %2307 = vmatpush.msra.mxu0 0.0
    %2308 = vmatpush.msra.mxu0 0.0
    %2309 = vmatpush.msra.mxu0 0.0
    %2310 = vmatpush.msra.mxu0 0.0
    %2311 = vmatpush.msra.mxu0 0.0
    %2312 = vmatpush.msra.mxu0 0.0
    %2313 = vmatpush.msra.mxu0 0.0
    %2314 = vmatpush.msra.mxu0 0.0
    %2315 = vmatpush.msra.mxu0 0.0
    %2316 = vmatpush.msra.mxu0 %v2296
    %2317 = vmatmul.f32.gmra.mxu0 %v2299
    %v2318 = vpop.f32.mrf.mxu0
    %v2319 = vadd.f32 0.0, %v2318
    %2320 = vdwg.mxu0
    %v2322 = vsel %vm1176, %v2293, 0
    %v2325 = vsel %vm1176, %v2319, 0
    %2327 = vmatpush.msra.mxu0 0.0
    %2328 = vmatpush.msra.mxu0 0.0
    %2329 = vmatpush.msra.mxu0 0.0
    %2330 = vmatpush.msra.mxu0 0.0
    %2331 = vmatpush.msra.mxu0 0.0
    %2332 = vmatpush.msra.mxu0 0.0
    %2333 = vmatpush.msra.mxu0 0.0
    %2334 = vmatpush.msra.mxu0 0.0
    %2335 = vmatpush.msra.mxu0 0.0
    %2336 = vmatpush.msra.mxu0 0.0
    %2337 = vmatpush.msra.mxu0 0.0
    %2338 = vmatpush.msra.mxu0 0.0
    %2339 = vmatpush.msra.mxu0 0.0
    %2340 = vmatpush.msra.mxu0 0.0
    %2341 = vmatpush.msra.mxu0 0.0
    %2342 = vmatpush.msra.mxu0 %v2009
    %2343 = vmatmul.f32.gmra.mxu0 %v2322
    %v2344 = vpop.f32.mrf.mxu0
    %v2345 = vadd.f32 0.0, %v2344
    %2346 = vmatmul.f32.gmra.mxu0 %v2325
    %v2347 = vpop.f32.mrf.mxu0
    %v2348 = vadd.f32 0.0, %v2347
    %2349 = vdwg.mxu0
    %v2351 = vsel %vm1176, %v2163, 0
    %v2354 = vsel %vm1176, %v2189, 0
    %2356 = vmatpush.msra.mxu0 0.0
    %2357 = vmatpush.msra.mxu0 0.0
    %2358 = vmatpush.msra.mxu0 0.0
    %2359 = vmatpush.msra.mxu0 0.0
    %2360 = vmatpush.msra.mxu0 0.0
    %2361 = vmatpush.msra.mxu0 0.0
    %2362 = vmatpush.msra.mxu0 0.0
    %2363 = vmatpush.msra.mxu0 0.0
    %2364 = vmatpush.msra.mxu0 0.0
    %2365 = vmatpush.msra.mxu0 0.0
    %2366 = vmatpush.msra.mxu0 0.0
    %2367 = vmatpush.msra.mxu0 0.0
    %2368 = vmatpush.msra.mxu0 0.0
    %2369 = vmatpush.msra.mxu0 0.0
    %2370 = vmatpush.msra.mxu0 0.0
    %2371 = vmatpush.msra.mxu0 %v2008
    %2372 = vmatmul.f32.gmra.mxu0 %v2351
    %v2373 = vpop.f32.mrf.mxu0
    %v2374 = vadd.f32 %v2345, %v2373
    %2375 = vmatmul.f32.gmra.mxu0 %v2354
    %v2376 = vpop.f32.mrf.mxu0
    %v2377 = vadd.f32 %v2348, %v2376
    %2378 = vdwg.mxu0
    %2379 = vrot.lane.b32.xlu0 %v2058, 112
    %v2380 = vpop.permute.xlu0 %2379
    %2381 = vrot.lane.b32.xlu0 %v2058, 80
    %v2382 = vpop.permute.xlu0 %2381
    %v2383 = vsel %vm1176, %v2380, 0
    %v2385 = vsel %vm1176, %v2382, 0
    %2387 = vmatpush.xpose.msra.mxu0 0.0
    %2388 = vmatpush.xpose.msra.mxu0 0.0
    %2389 = vmatpush.xpose.msra.mxu0 0.0
    %2390 = vmatpush.xpose.msra.mxu0 0.0
    %2391 = vmatpush.xpose.msra.mxu0 0.0
    %2392 = vmatpush.xpose.msra.mxu0 0.0
    %2393 = vmatpush.xpose.msra.mxu0 0.0
    %2394 = vmatpush.xpose.msra.mxu0 0.0
    %2395 = vmatpush.xpose.msra.mxu0 0.0
    %2396 = vmatpush.xpose.msra.mxu0 0.0
    %2397 = vmatpush.xpose.msra.mxu0 0.0
    %2398 = vmatpush.xpose.msra.mxu0 0.0
    %2399 = vmatpush.xpose.msra.mxu0 0.0
    %2400 = vmatpush.xpose.msra.mxu0 0.0
    %2401 = vmatpush.xpose.msra.mxu0 0.0
    %2402 = vmatpush.xpose.msra.mxu0 %v2385
    %2403 = vmatmul.f32.gmra.mxu0 %v2383
    %v2404 = vpop.f32.mrf.mxu0
    %v2405 = vadd.f32 0.0, %v2404
    %2406 = vdwg.mxu0
    %2407 = vrot.lane.b32.xlu0 %v2061, 112
    %v2408 = vpop.permute.xlu0 %2407
    %2409 = vrot.lane.b32.xlu0 %v2061, 80
    %v2410 = vpop.permute.xlu0 %2409
    %v2411 = vsel %vm1176, %v2408, 0
    %v2413 = vsel %vm1176, %v2410, 0
    %2415 = vmatpush.xpose.msra.mxu0 0.0
    %2416 = vmatpush.xpose.msra.mxu0 0.0
    %2417 = vmatpush.xpose.msra.mxu0 0.0
    %2418 = vmatpush.xpose.msra.mxu0 0.0
    %2419 = vmatpush.xpose.msra.mxu0 0.0
    %2420 = vmatpush.xpose.msra.mxu0 0.0
    %2421 = vmatpush.xpose.msra.mxu0 0.0
    %2422 = vmatpush.xpose.msra.mxu0 0.0
    %2423 = vmatpush.xpose.msra.mxu0 0.0
    %2424 = vmatpush.xpose.msra.mxu0 0.0
    %2425 = vmatpush.xpose.msra.mxu0 0.0
    %2426 = vmatpush.xpose.msra.mxu0 0.0
    %2427 = vmatpush.xpose.msra.mxu0 0.0
    %2428 = vmatpush.xpose.msra.mxu0 0.0
    %2429 = vmatpush.xpose.msra.mxu0 0.0
    %2430 = vmatpush.xpose.msra.mxu0 %v2413
    %2431 = vmatmul.f32.gmra.mxu0 %v2411
    %v2432 = vpop.f32.mrf.mxu0
    %v2433 = vadd.f32 0.0, %v2432
    %2434 = vdwg.mxu0
    %v2435 = vsel %vm1176, %v2405, -inf
    %2436 = vmax.xlane.f32.xlu0 %v2435
    %v2437 = vpop.xlane.xlu0 %2436
    %v2438 = vsel %vm1176, %v2433, -inf
    %2439 = vmax.xlane.f32.xlu0 %v2438
    %v2440 = vpop.xlane.xlu0 %2439
    %v2441 = vsub.f32 %v2405, %v2437
    %v2442 = vsub.f32 %v2433, %v2440
    %v2443 = vmul.f32 %v2441, 1.442695
    %v2444 = vpow.pop %v2443
    %v2445 = vmul.f32 %v2442, 1.442695
    %v2446 = vpow.pop %v2445
    %v2447 = vsel %vm1176, %v2444, 0.0
    %2448 = vadd.xlane.f32.xlu0 %v2447
    %v2449 = vpop.xlane.xlu0 %2448
    %v2450 = vsel %vm1176, %v2446, 0.0
    %2451 = vadd.xlane.f32.xlu0 %v2450
    %v2452 = vpop.xlane.xlu0 %2451
    %v2453 = vrcp.pop %v2449
    %v2454 = vrcp.pop %v2452
    %v2455 = vmul.f32 %v2444, %v2453
    %v2456 = vmul.f32 %v2446, %v2454
    %2457 = vrot.lane.b32.xlu0 %v2058, 48
    %v2458 = vpop.permute.xlu0 %2457
    %v2461 = vsel %vm1176, %v2455, 0
    %2463 = vmatpush.msra.mxu0 0.0
    %2464 = vmatpush.msra.mxu0 0.0
    %2465 = vmatpush.msra.mxu0 0.0
    %2466 = vmatpush.msra.mxu0 0.0
    %2467 = vmatpush.msra.mxu0 0.0
    %2468 = vmatpush.msra.mxu0 0.0
    %2469 = vmatpush.msra.mxu0 0.0
    %2470 = vmatpush.msra.mxu0 0.0
    %2471 = vmatpush.msra.mxu0 0.0
    %2472 = vmatpush.msra.mxu0 0.0
    %2473 = vmatpush.msra.mxu0 0.0
    %2474 = vmatpush.msra.mxu0 0.0
    %2475 = vmatpush.msra.mxu0 0.0
    %2476 = vmatpush.msra.mxu0 0.0
    %2477 = vmatpush.msra.mxu0 0.0
    %2478 = vmatpush.msra.mxu0 %v2458
    %2479 = vmatmul.f32.gmra.mxu0 %v2461
    %v2480 = vpop.f32.mrf.mxu0
    %v2481 = vadd.f32 0.0, %v2480
    %2482 = vdwg.mxu0
    %2483 = vrot.lane.b32.xlu0 %v2061, 48
    %v2484 = vpop.permute.xlu0 %2483
    %v2487 = vsel %vm1176, %v2456, 0
    %2489 = vmatpush.msra.mxu0 0.0
    %2490 = vmatpush.msra.mxu0 0.0
    %2491 = vmatpush.msra.mxu0 0.0
    %2492 = vmatpush.msra.mxu0 0.0
    %2493 = vmatpush.msra.mxu0 0.0
    %2494 = vmatpush.msra.mxu0 0.0
    %2495 = vmatpush.msra.mxu0 0.0
    %2496 = vmatpush.msra.mxu0 0.0
    %2497 = vmatpush.msra.mxu0 0.0
    %2498 = vmatpush.msra.mxu0 0.0
    %2499 = vmatpush.msra.mxu0 0.0
    %2500 = vmatpush.msra.mxu0 0.0
    %2501 = vmatpush.msra.mxu0 0.0
    %2502 = vmatpush.msra.mxu0 0.0
    %2503 = vmatpush.msra.mxu0 0.0
    %2504 = vmatpush.msra.mxu0 %v2484
    %2505 = vmatmul.f32.gmra.mxu0 %v2487
    %v2506 = vpop.f32.mrf.mxu0
    %v2507 = vadd.f32 0.0, %v2506
    %2508 = vdwg.mxu0
    %v2510 = vsel %vm1176, %v2481, 0
    %v2513 = vsel %vm1176, %v2507, 0
    %2515 = vmatpush.msra.mxu0 0.0
    %2516 = vmatpush.msra.mxu0 0.0
    %2517 = vmatpush.msra.mxu0 0.0
    %2518 = vmatpush.msra.mxu0 0.0
    %2519 = vmatpush.msra.mxu0 0.0
    %2520 = vmatpush.msra.mxu0 0.0
    %2521 = vmatpush.msra.mxu0 0.0
    %2522 = vmatpush.msra.mxu0 0.0
    %2523 = vmatpush.msra.mxu0 0.0
    %2524 = vmatpush.msra.mxu0 0.0
    %2525 = vmatpush.msra.mxu0 0.0
    %2526 = vmatpush.msra.mxu0 0.0
    %2527 = vmatpush.msra.mxu0 0.0
    %2528 = vmatpush.msra.mxu0 0.0
    %2529 = vmatpush.msra.mxu0 0.0
    %2530 = vmatpush.msra.mxu0 %v2010
    %2531 = vmatmul.f32.gmra.mxu0 %v2510
    %v2532 = vpop.f32.mrf.mxu0
    %v2533 = vadd.f32 0.0, %v2532
    %2534 = vmatmul.f32.gmra.mxu0 %v2513
    %v2535 = vpop.f32.mrf.mxu0
    %v2536 = vadd.f32 0.0, %v2535
    %2537 = vdwg.mxu0
    %v2538 = vadd.f32 %v2374, %v2533
    %v2539 = vadd.f32 %v2377, %v2536
    %2540 = vrot.lane.b32.xlu0 %v2058, 104
    %v2541 = vpop.permute.xlu0 %2540
    %2542 = vrot.lane.b32.xlu0 %v2058, 72
    %v2543 = vpop.permute.xlu0 %2542
    %v2544 = vsel %vm1176, %v2541, 0
    %v2546 = vsel %vm1176, %v2543, 0
    %2548 = vmatpush.xpose.msra.mxu0 0.0
    %2549 = vmatpush.xpose.msra.mxu0 0.0
    %2550 = vmatpush.xpose.msra.mxu0 0.0
    %2551 = vmatpush.xpose.msra.mxu0 0.0
    %2552 = vmatpush.xpose.msra.mxu0 0.0
    %2553 = vmatpush.xpose.msra.mxu0 0.0
    %2554 = vmatpush.xpose.msra.mxu0 0.0
    %2555 = vmatpush.xpose.msra.mxu0 0.0
    %2556 = vmatpush.xpose.msra.mxu0 0.0
    %2557 = vmatpush.xpose.msra.mxu0 0.0
    %2558 = vmatpush.xpose.msra.mxu0 0.0
    %2559 = vmatpush.xpose.msra.mxu0 0.0
    %2560 = vmatpush.xpose.msra.mxu0 0.0
    %2561 = vmatpush.xpose.msra.mxu0 0.0
    %2562 = vmatpush.xpose.msra.mxu0 0.0
    %2563 = vmatpush.xpose.msra.mxu0 %v2546
    %2564 = vmatmul.f32.gmra.mxu0 %v2544
    %v2565 = vpop.f32.mrf.mxu0
    %v2566 = vadd.f32 0.0, %v2565
    %2567 = vdwg.mxu0
    %2568 = vrot.lane.b32.xlu0 %v2061, 104
    %v2569 = vpop.permute.xlu0 %2568
    %2570 = vrot.lane.b32.xlu0 %v2061, 72
    %v2571 = vpop.permute.xlu0 %2570
    %v2572 = vsel %vm1176, %v2569, 0
    %v2574 = vsel %vm1176, %v2571, 0
    %2576 = vmatpush.xpose.msra.mxu0 0.0
    %2577 = vmatpush.xpose.msra.mxu0 0.0
    %2578 = vmatpush.xpose.msra.mxu0 0.0
    %2579 = vmatpush.xpose.msra.mxu0 0.0
    %2580 = vmatpush.xpose.msra.mxu0 0.0
    %2581 = vmatpush.xpose.msra.mxu0 0.0
    %2582 = vmatpush.xpose.msra.mxu0 0.0
    %2583 = vmatpush.xpose.msra.mxu0 0.0
    %2584 = vmatpush.xpose.msra.mxu0 0.0
    %2585 = vmatpush.xpose.msra.mxu0 0.0
    %2586 = vmatpush.xpose.msra.mxu0 0.0
    %2587 = vmatpush.xpose.msra.mxu0 0.0
    %2588 = vmatpush.xpose.msra.mxu0 0.0
    %2589 = vmatpush.xpose.msra.mxu0 0.0
    %2590 = vmatpush.xpose.msra.mxu0 0.0
    %2591 = vmatpush.xpose.msra.mxu0 %v2574
    %2592 = vmatmul.f32.gmra.mxu0 %v2572
    %v2593 = vpop.f32.mrf.mxu0
    %v2594 = vadd.f32 0.0, %v2593
    %2595 = vdwg.mxu0
    %v2596 = vsel %vm1176, %v2566, -inf
    %2597 = vmax.xlane.f32.xlu0 %v2596
    %v2598 = vpop.xlane.xlu0 %2597
    %v2599 = vsel %vm1176, %v2594, -inf
    %2600 = vmax.xlane.f32.xlu0 %v2599
    %v2601 = vpop.xlane.xlu0 %2600
    %v2602 = vsub.f32 %v2566, %v2598
    %v2603 = vsub.f32 %v2594, %v2601
    %v2604 = vmul.f32 %v2602, 1.442695
    %v2605 = vpow.pop %v2604
    %v2606 = vmul.f32 %v2603, 1.442695
    %v2607 = vpow.pop %v2606
    %v2608 = vsel %vm1176, %v2605, 0.0
    %2609 = vadd.xlane.f32.xlu0 %v2608
    %v2610 = vpop.xlane.xlu0 %2609
    %v2611 = vsel %vm1176, %v2607, 0.0
    %2612 = vadd.xlane.f32.xlu0 %v2611
    %v2613 = vpop.xlane.xlu0 %2612
    %v2614 = vrcp.pop %v2610
    %v2615 = vrcp.pop %v2613
    %v2616 = vmul.f32 %v2605, %v2614
    %v2617 = vmul.f32 %v2607, %v2615
    %2618 = vrot.lane.b32.xlu0 %v2058, 40
    %v2619 = vpop.permute.xlu0 %2618
    %v2622 = vsel %vm1176, %v2616, 0
    %2624 = vmatpush.msra.mxu0 0.0
    %2625 = vmatpush.msra.mxu0 0.0
    %2626 = vmatpush.msra.mxu0 0.0
    %2627 = vmatpush.msra.mxu0 0.0
    %2628 = vmatpush.msra.mxu0 0.0
    %2629 = vmatpush.msra.mxu0 0.0
    %2630 = vmatpush.msra.mxu0 0.0
    %2631 = vmatpush.msra.mxu0 0.0
    %2632 = vmatpush.msra.mxu0 0.0
    %2633 = vmatpush.msra.mxu0 0.0
    %2634 = vmatpush.msra.mxu0 0.0
    %2635 = vmatpush.msra.mxu0 0.0
    %2636 = vmatpush.msra.mxu0 0.0
    %2637 = vmatpush.msra.mxu0 0.0
    %2638 = vmatpush.msra.mxu0 0.0
    %2639 = vmatpush.msra.mxu0 %v2619
    %2640 = vmatmul.f32.gmra.mxu0 %v2622
    %v2641 = vpop.f32.mrf.mxu0
    %v2642 = vadd.f32 0.0, %v2641
    %2643 = vdwg.mxu0
    %2644 = vrot.lane.b32.xlu0 %v2061, 40
    %v2645 = vpop.permute.xlu0 %2644
    %v2648 = vsel %vm1176, %v2617, 0
    %2650 = vmatpush.msra.mxu0 0.0
    %2651 = vmatpush.msra.mxu0 0.0
    %2652 = vmatpush.msra.mxu0 0.0
    %2653 = vmatpush.msra.mxu0 0.0
    %2654 = vmatpush.msra.mxu0 0.0
    %2655 = vmatpush.msra.mxu0 0.0
    %2656 = vmatpush.msra.mxu0 0.0
    %2657 = vmatpush.msra.mxu0 0.0
    %2658 = vmatpush.msra.mxu0 0.0
    %2659 = vmatpush.msra.mxu0 0.0
    %2660 = vmatpush.msra.mxu0 0.0
    %2661 = vmatpush.msra.mxu0 0.0
    %2662 = vmatpush.msra.mxu0 0.0
    %2663 = vmatpush.msra.mxu0 0.0
    %2664 = vmatpush.msra.mxu0 0.0
    %2665 = vmatpush.msra.mxu0 %v2645
    %2666 = vmatmul.f32.gmra.mxu0 %v2648
    %v2667 = vpop.f32.mrf.mxu0
    %v2668 = vadd.f32 0.0, %v2667
    %2669 = vdwg.mxu0
    %v2671 = vsel %vm1176, %v2642, 0
    %v2674 = vsel %vm1176, %v2668, 0
    %2676 = vmatpush.msra.mxu0 0.0
    %2677 = vmatpush.msra.mxu0 0.0
    %2678 = vmatpush.msra.mxu0 0.0
    %2679 = vmatpush.msra.mxu0 0.0
    %2680 = vmatpush.msra.mxu0 0.0
    %2681 = vmatpush.msra.mxu0 0.0
    %2682 = vmatpush.msra.mxu0 0.0
    %2683 = vmatpush.msra.mxu0 0.0
    %2684 = vmatpush.msra.mxu0 0.0
    %2685 = vmatpush.msra.mxu0 0.0
    %2686 = vmatpush.msra.mxu0 0.0
    %2687 = vmatpush.msra.mxu0 0.0
    %2688 = vmatpush.msra.mxu0 0.0
    %2689 = vmatpush.msra.mxu0 0.0
    %2690 = vmatpush.msra.mxu0 0.0
    %2691 = vmatpush.msra.mxu0 %v2011
    %2692 = vmatmul.f32.gmra.mxu0 %v2671
    %v2693 = vpop.f32.mrf.mxu0
    %v2694 = vadd.f32 0.0, %v2693
    %2695 = vmatmul.f32.gmra.mxu0 %v2674
    %v2696 = vpop.f32.mrf.mxu0
    %v2697 = vadd.f32 0.0, %v2696
    %2698 = vdwg.mxu0
    %v2699 = vadd.f32 %v2538, %v2694
    %v2700 = vadd.f32 %v2539, %v2697
    %v2702 = vperm.slane %v2012, 0
    %v2704 = vadd.f32 %v2699, %v2702
    %v2705 = vadd.f32 %v2700, %v2702
    %v2706 = vadd.f32 %v2001, %v2704
    %v2707 = vadd.f32 %v2002, %v2705
    %v2708 = vsel %vm1143, %v2706, 0.0
    %2709 = vadd.xlane.f32.xlu0 %v2708
    %v2710 = vpop.xlane.xlu0 %2709
    %v2711 = vsel %vm1143, %v2707, 0.0
    %2712 = vadd.xlane.f32.xlu0 %v2711
    %v2713 = vpop.xlane.xlu0 %2712
    %v2714 = vmul.f32 %v2710, %v1831
    %v2715 = vmul.f32 %v2713, %v1831
    %v2716 = vsub.f32 %v2706, %v2714
    %v2717 = vsub.f32 %v2707, %v2715
    %v2718 = vmul.f32 %v2716, %v2716
    %v2719 = vmul.f32 %v2717, %v2717
    %v2720 = vsel %vm1143, %v2718, 0.0
    %2721 = vadd.xlane.f32.xlu0 %v2720
    %v2722 = vpop.xlane.xlu0 %2721
    %v2723 = vsel %vm1143, %v2719, 0.0
    %2724 = vadd.xlane.f32.xlu0 %v2723
    %v2725 = vpop.xlane.xlu0 %2724
    %v2726 = vmul.f32 %v2722, %v1831
    %v2727 = vmul.f32 %v2725, %v1831
    %v2728 = vadd.f32 %v2726, 1e-05
    %v2729 = vadd.f32 %v2727, 1e-05
    %v2730 = vrsqrt.pop %v2728
    %v2731 = vmul.f32 %v2730, %v2728
    %v2732 = vmul.f32 %v2731, %v2730
    %v2733 = vmul.f32 0.5, %v2732
    %v2734 = vsub.f32 1.5, %v2733
    %v2735 = vmul.f32 %v2730, %v2734
    %vm2736 = vweird.f32 %v2728
    %vm2737 = vweird.f32 %v2730
    %vm2738 = vmor %vm2736, %vm2737
    %v2739 = vsel %vm2738, %v2730, %v2735
    %v2740 = vrsqrt.pop %v2729
    %v2741 = vmul.f32 %v2740, %v2729
    %v2742 = vmul.f32 %v2741, %v2740
    %v2743 = vmul.f32 0.5, %v2742
    %v2744 = vsub.f32 1.5, %v2743
    %v2745 = vmul.f32 %v2740, %v2744
    %vm2746 = vweird.f32 %v2729
    %vm2747 = vweird.f32 %v2740
    %vm2748 = vmor %vm2746, %vm2747
    %v2749 = vsel %vm2748, %v2740, %v2745
    %v2750 = vmul.f32 %v2716, %v2739
    %v2751 = vmul.f32 %v2717, %v2749
    %v2753 = vperm.slane %v2013, 0
    %v2755 = vmul.f32 %v2750, %v2753
    %v2756 = vmul.f32 %v2751, %v2753
    %v2758 = vperm.slane %v2014, 0
    %v2760 = vadd.f32 %v2755, %v2758
    %v2761 = vadd.f32 %v2756, %v2758
    %v2763 = vperm.slane %v2019, 0
    %v2766 = vsel %vm1143, %v2760, 0
    %v2769 = vsel %vm1143, %v2761, 0
    %2771 = vmatpush.msra.mxu0 0.0
    %2772 = vmatpush.msra.mxu0 0.0
    %2773 = vmatpush.msra.mxu0 0.0
    %2774 = vmatpush.msra.mxu0 0.0
    %2775 = vmatpush.msra.mxu0 0.0
    %2776 = vmatpush.msra.mxu0 0.0
    %2777 = vmatpush.msra.mxu0 0.0
    %2778 = vmatpush.msra.mxu0 0.0
    %2779 = vmatpush.msra.mxu0 0.0
    %2780 = vmatpush.msra.mxu0 0.0
    %2781 = vmatpush.msra.mxu0 0.0
    %2782 = vmatpush.msra.mxu0 0.0
    %2783 = vmatpush.msra.mxu0 %v2018
    %2784 = vmatpush.msra.mxu0 %v2017
    %2785 = vmatpush.msra.mxu0 %v2016
    %2786 = vmatpush.msra.mxu0 %v2015
    %2787 = vmatmul.f32.gmra.mxu0 %v2766
    %v2788 = vpop.f32.mrf.mxu0
    %v2789 = vadd.f32 %v2763, %v2788
    %2790 = vmatmul.f32.gmra.mxu0 %v2769
    %v2791 = vpop.f32.mrf.mxu0
    %v2792 = vadd.f32 %v2763, %v2791
    %2793 = vdwg.mxu0
    %v2794 = vmax.f32 %v2789, 0.0
    %v2795 = vmax.f32 %v2792, 0.0
    %v2797 = vperm.slane %v2028, 0
    %v2800 = vsel %vm1917, %v2794, 0
    %v2803 = vsel %vm1917, %v2795, 0
    %2805 = vmatpush.msra.mxu0 0.0
    %2806 = vmatpush.msra.mxu0 0.0
    %2807 = vmatpush.msra.mxu0 0.0
    %2808 = vmatpush.msra.mxu0 0.0
    %2809 = vmatpush.msra.mxu0 0.0
    %2810 = vmatpush.msra.mxu0 0.0
    %2811 = vmatpush.msra.mxu0 0.0
    %2812 = vmatpush.msra.mxu0 0.0
    %2813 = vmatpush.msra.mxu0 %v2027
    %2814 = vmatpush.msra.mxu0 %v2026
    %2815 = vmatpush.msra.mxu0 %v2025
    %2816 = vmatpush.msra.mxu0 %v2024
    %2817 = vmatpush.msra.mxu0 %v2023
    %2818 = vmatpush.msra.mxu0 %v2022
    %2819 = vmatpush.msra.mxu0 %v2021
    %2820 = vmatpush.msra.mxu0 %v2020
    %2821 = vmatmul.f32.gmra.mxu0 %v2800
    %v2822 = vpop.f32.mrf.mxu0
    %v2823 = vadd.f32 %v2797, %v2822
    %2824 = vmatmul.f32.gmra.mxu0 %v2803
    %v2825 = vpop.f32.mrf.mxu0
    %v2826 = vadd.f32 %v2797, %v2825
    %2827 = vdwg.mxu0
    %v2828 = vadd.f32 %v2760, %v2823
    %v2829 = vadd.f32 %v2761, %v2826
    %v2830 = vsel %vm1143, %v2828, 0.0
    %2831 = vadd.xlane.f32.xlu0 %v2830
    %v2832 = vpop.xlane.xlu0 %2831
    %v2833 = vsel %vm1143, %v2829, 0.0
    %2834 = vadd.xlane.f32.xlu0 %v2833
    %v2835 = vpop.xlane.xlu0 %2834
    %v2836 = vmul.f32 %v2832, %v1831
    %v2837 = vmul.f32 %v2835, %v1831
    %v2838 = vsub.f32 %v2828, %v2836
    %v2839 = vsub.f32 %v2829, %v2837
    %v2840 = vmul.f32 %v2838, %v2838
    %v2841 = vmul.f32 %v2839, %v2839
    %v2842 = vsel %vm1143, %v2840, 0.0
    %2843 = vadd.xlane.f32.xlu0 %v2842
    %v2844 = vpop.xlane.xlu0 %2843
    %v2845 = vsel %vm1143, %v2841, 0.0
    %2846 = vadd.xlane.f32.xlu0 %v2845
    %v2847 = vpop.xlane.xlu0 %2846
    %v2848 = vmul.f32 %v2844, %v1831
    %v2849 = vmul.f32 %v2847, %v1831
    %v2850 = vadd.f32 %v2848, 1e-05
    %v2851 = vadd.f32 %v2849, 1e-05
    %v2852 = vrsqrt.pop %v2850
    %v2853 = vmul.f32 %v2852, %v2850
    %v2854 = vmul.f32 %v2853, %v2852
    %v2855 = vmul.f32 0.5, %v2854
    %v2856 = vsub.f32 1.5, %v2855
    %v2857 = vmul.f32 %v2852, %v2856
    %vm2858 = vweird.f32 %v2850
    %vm2859 = vweird.f32 %v2852
    %vm2860 = vmor %vm2858, %vm2859
    %v2861 = vsel %vm2860, %v2852, %v2857
    %v2862 = vrsqrt.pop %v2851
    %v2863 = vmul.f32 %v2862, %v2851
    %v2864 = vmul.f32 %v2863, %v2862
    %v2865 = vmul.f32 0.5, %v2864
    %v2866 = vsub.f32 1.5, %v2865
    %v2867 = vmul.f32 %v2862, %v2866
    %vm2868 = vweird.f32 %v2851
    %vm2869 = vweird.f32 %v2862
    %vm2870 = vmor %vm2868, %vm2869
    %v2871 = vsel %vm2870, %v2862, %v2867
    %v2872 = vmul.f32 %v2838, %v2861
    %v2873 = vmul.f32 %v2839, %v2871
    %v2875 = vperm.slane %v2029, 0
    %v2877 = vmul.f32 %v2872, %v2875
    %v2878 = vmul.f32 %v2873, %v2875
    %v2880 = vperm.slane %v2030, 0
    %v2882 = vadd.f32 %v2877, %v2880
    %v2883 = vadd.f32 %v2878, %v2880
    %v2884 = vld [vmem:[%s57] sm:$0xff]
    %v2885 = vld [vmem:[%s57 + $0x8] sm:$0xff]
    %v2886 = vld [vmem:[%s57 + $0x10] sm:$0xff]
    %v2887 = vld [vmem:[%s57 + $0x18] sm:$0xff]
    %v2888 = vld [vmem:[#allocation21] sm:$0x1]
    %v2889 = vld [vmem:[%s61] sm:$0xff]
    %v2890 = vld [vmem:[%s61 + $0x8] sm:$0xff]
    %v2891 = vld [vmem:[%s61 + $0x10] sm:$0xff]
    %v2892 = vld [vmem:[%s61 + $0x18] sm:$0xff]
    %v2893 = vld [vmem:[#allocation22] sm:$0x1]
    %v2894 = vld [vmem:[#allocation24] sm:$0x1]
    %v2895 = vld [vmem:[#allocation25] sm:$0x1]
    %v2896 = vld [vmem:[%s69] sm:$0xff]
    %v2897 = vld [vmem:[%s69 + $0x8] sm:$0xff]
    %v2898 = vld [vmem:[%s69 + $0x10] sm:$0xff]
    %v2899 = vld [vmem:[%s69 + $0x18] sm:$0xff]
    %v2900 = vld [vmem:[#allocation27] sm:$0x1]
    %v2901 = vld [vmem:[%s73] sm:$0xff]
    %v2902 = vld [vmem:[%s73 + $0x8] sm:$0xff]
    %v2903 = vld [vmem:[%s73 + $0x10] sm:$0xff]
    %v2904 = vld [vmem:[%s73 + $0x18] sm:$0xff]
    %v2905 = vld [vmem:[%s73 + $0x20] sm:$0xff]
    %v2906 = vld [vmem:[%s73 + $0x28] sm:$0xff]
    %v2907 = vld [vmem:[%s73 + $0x30] sm:$0xff]
    %v2908 = vld [vmem:[%s73 + $0x38] sm:$0xff]
    %v2909 = vld [vmem:[#allocation28] sm:$0x1]
    %v2910 = vld [vmem:[#allocation30] sm:$0x1]
    %v2911 = vld [vmem:[#allocation31] sm:$0x1]
    %v2913 = vperm.slane %v2888, 0
    %v2916 = vsel %vm1143, %v2882, 0
    %v2919 = vsel %vm1143, %v2883, 0
    %2921 = vmatpush.msra.mxu0 0.0
    %2922 = vmatpush.msra.mxu0 0.0
    %2923 = vmatpush.msra.mxu0 0.0
    %2924 = vmatpush.msra.mxu0 0.0
    %2925 = vmatpush.msra.mxu0 0.0
    %2926 = vmatpush.msra.mxu0 0.0
    %2927 = vmatpush.msra.mxu0 0.0
    %2928 = vmatpush.msra.mxu0 0.0
    %2929 = vmatpush.msra.mxu0 0.0
    %2930 = vmatpush.msra.mxu0 0.0
    %2931 = vmatpush.msra.mxu0 0.0
    %2932 = vmatpush.msra.mxu0 0.0
    %2933 = vmatpush.msra.mxu0 %v2887
    %2934 = vmatpush.msra.mxu0 %v2886
    %2935 = vmatpush.msra.mxu0 %v2885
    %2936 = vmatpush.msra.mxu0 %v2884
    %2937 = vmatmul.f32.gmra.mxu0 %v2916
    %v2938 = vpop.f32.mrf.mxu0
    %v2939 = vadd.f32 %v2913, %v2938
    %2940 = vmatmul.f32.gmra.mxu0 %v2919
    %v2941 = vpop.f32.mrf.mxu0
    %v2942 = vadd.f32 %v2913, %v2941
    %2943 = vdwg.mxu0
    %2945 = vrot.lane.b32.xlu0 %v2939, 96
    %v2946 = vpop.permute.xlu0 %2945
    %v2947 = vsel %vm1176, %v2939, 0
    %v2949 = vsel %vm1176, %v2946, 0
    %2951 = vmatpush.xpose.msra.mxu0 0.0
    %2952 = vmatpush.xpose.msra.mxu0 0.0
    %2953 = vmatpush.xpose.msra.mxu0 0.0
    %2954 = vmatpush.xpose.msra.mxu0 0.0
    %2955 = vmatpush.xpose.msra.mxu0 0.0
    %2956 = vmatpush.xpose.msra.mxu0 0.0
    %2957 = vmatpush.xpose.msra.mxu0 0.0
    %2958 = vmatpush.xpose.msra.mxu0 0.0
    %2959 = vmatpush.xpose.msra.mxu0 0.0
    %2960 = vmatpush.xpose.msra.mxu0 0.0
    %2961 = vmatpush.xpose.msra.mxu0 0.0
    %2962 = vmatpush.xpose.msra.mxu0 0.0
    %2963 = vmatpush.xpose.msra.mxu0 0.0
    %2964 = vmatpush.xpose.msra.mxu0 0.0
    %2965 = vmatpush.xpose.msra.mxu0 0.0
    %2966 = vmatpush.xpose.msra.mxu0 %v2949
    %2967 = vmatmul.f32.gmra.mxu0 %v2947
    %v2968 = vpop.f32.mrf.mxu0
    %v2969 = vadd.f32 0.0, %v2968
    %2970 = vdwg.mxu0
    %2972 = vrot.lane.b32.xlu0 %v2942, 96
    %v2973 = vpop.permute.xlu0 %2972
    %v2974 = vsel %vm1176, %v2942, 0
    %v2976 = vsel %vm1176, %v2973, 0
    %2978 = vmatpush.xpose.msra.mxu0 0.0
    %2979 = vmatpush.xpose.msra.mxu0 0.0
    %2980 = vmatpush.xpose.msra.mxu0 0.0
    %2981 = vmatpush.xpose.msra.mxu0 0.0
    %2982 = vmatpush.xpose.msra.mxu0 0.0
    %2983 = vmatpush.xpose.msra.mxu0 0.0
    %2984 = vmatpush.xpose.msra.mxu0 0.0
    %2985 = vmatpush.xpose.msra.mxu0 0.0
    %2986 = vmatpush.xpose.msra.mxu0 0.0
    %2987 = vmatpush.xpose.msra.mxu0 0.0
    %2988 = vmatpush.xpose.msra.mxu0 0.0
    %2989 = vmatpush.xpose.msra.mxu0 0.0
    %2990 = vmatpush.xpose.msra.mxu0 0.0
    %2991 = vmatpush.xpose.msra.mxu0 0.0
    %2992 = vmatpush.xpose.msra.mxu0 0.0
    %2993 = vmatpush.xpose.msra.mxu0 %v2976
    %2994 = vmatmul.f32.gmra.mxu0 %v2974
    %v2995 = vpop.f32.mrf.mxu0
    %v2996 = vadd.f32 0.0, %v2995
    %2997 = vdwg.mxu0
    %v2998 = vsel %vm1176, %v2969, -inf
    %2999 = vmax.xlane.f32.xlu0 %v2998
    %v3000 = vpop.xlane.xlu0 %2999
    %v3001 = vsel %vm1176, %v2996, -inf
    %3002 = vmax.xlane.f32.xlu0 %v3001
    %v3003 = vpop.xlane.xlu0 %3002
    %v3004 = vsub.f32 %v2969, %v3000
    %v3005 = vsub.f32 %v2996, %v3003
    %v3006 = vmul.f32 %v3004, 1.442695
    %v3007 = vpow.pop %v3006
    %v3008 = vmul.f32 %v3005, 1.442695
    %v3009 = vpow.pop %v3008
    %v3010 = vsel %vm1176, %v3007, 0.0
    %3011 = vadd.xlane.f32.xlu0 %v3010
    %v3012 = vpop.xlane.xlu0 %3011
    %v3013 = vsel %vm1176, %v3009, 0.0
    %3014 = vadd.xlane.f32.xlu0 %v3013
    %v3015 = vpop.xlane.xlu0 %3014
    %v3016 = vrcp.pop %v3012
    %v3017 = vrcp.pop %v3015
    %v3018 = vmul.f32 %v3007, %v3016
    %v3019 = vmul.f32 %v3009, %v3017
    %3020 = vrot.lane.b32.xlu0 %v2939, 64
    %v3021 = vpop.permute.xlu0 %3020
    %v3024 = vsel %vm1176, %v3018, 0
    %3026 = vmatpush.msra.mxu0 0.0
    %3027 = vmatpush.msra.mxu0 0.0
    %3028 = vmatpush.msra.mxu0 0.0
    %3029 = vmatpush.msra.mxu0 0.0
    %3030 = vmatpush.msra.mxu0 0.0
    %3031 = vmatpush.msra.mxu0 0.0
    %3032 = vmatpush.msra.mxu0 0.0
    %3033 = vmatpush.msra.mxu0 0.0
    %3034 = vmatpush.msra.mxu0 0.0
    %3035 = vmatpush.msra.mxu0 0.0
    %3036 = vmatpush.msra.mxu0 0.0
    %3037 = vmatpush.msra.mxu0 0.0
    %3038 = vmatpush.msra.mxu0 0.0
    %3039 = vmatpush.msra.mxu0 0.0
    %3040 = vmatpush.msra.mxu0 0.0
    %3041 = vmatpush.msra.mxu0 %v3021
    %3042 = vmatmul.f32.gmra.mxu0 %v3024
    %v3043 = vpop.f32.mrf.mxu0
    %v3044 = vadd.f32 0.0, %v3043
    %3045 = vdwg.mxu0
    %3046 = vrot.lane.b32.xlu0 %v2942, 64
    %v3047 = vpop.permute.xlu0 %3046
    %v3050 = vsel %vm1176, %v3019, 0
    %3052 = vmatpush.msra.mxu0 0.0
    %3053 = vmatpush.msra.mxu0 0.0
    %3054 = vmatpush.msra.mxu0 0.0
    %3055 = vmatpush.msra.mxu0 0.0
    %3056 = vmatpush.msra.mxu0 0.0
    %3057 = vmatpush.msra.mxu0 0.0
    %3058 = vmatpush.msra.mxu0 0.0
    %3059 = vmatpush.msra.mxu0 0.0
    %3060 = vmatpush.msra.mxu0 0.0
    %3061 = vmatpush.msra.mxu0 0.0
    %3062 = vmatpush.msra.mxu0 0.0
    %3063 = vmatpush.msra.mxu0 0.0
    %3064 = vmatpush.msra.mxu0 0.0
    %3065 = vmatpush.msra.mxu0 0.0
    %3066 = vmatpush.msra.mxu0 0.0
    %3067 = vmatpush.msra.mxu0 %v3047
    %3068 = vmatmul.f32.gmra.mxu0 %v3050
    %v3069 = vpop.f32.mrf.mxu0
    %v3070 = vadd.f32 0.0, %v3069
    %3071 = vdwg.mxu0
    %3072 = vrot.lane.b32.xlu0 %v2939, 120
    %v3073 = vpop.permute.xlu0 %3072
    %3074 = vrot.lane.b32.xlu0 %v2939, 88
    %v3075 = vpop.permute.xlu0 %3074
    %v3076 = vsel %vm1176, %v3073, 0
    %v3078 = vsel %vm1176, %v3075, 0
    %3080 = vmatpush.xpose.msra.mxu0 0.0
    %3081 = vmatpush.xpose.msra.mxu0 0.0
    %3082 = vmatpush.xpose.msra.mxu0 0.0
    %3083 = vmatpush.xpose.msra.mxu0 0.0
    %3084 = vmatpush.xpose.msra.mxu0 0.0
    %3085 = vmatpush.xpose.msra.mxu0 0.0
    %3086 = vmatpush.xpose.msra.mxu0 0.0
    %3087 = vmatpush.xpose.msra.mxu0 0.0
    %3088 = vmatpush.xpose.msra.mxu0 0.0
    %3089 = vmatpush.xpose.msra.mxu0 0.0
    %3090 = vmatpush.xpose.msra.mxu0 0.0
    %3091 = vmatpush.xpose.msra.mxu0 0.0
    %3092 = vmatpush.xpose.msra.mxu0 0.0
    %3093 = vmatpush.xpose.msra.mxu0 0.0
    %3094 = vmatpush.xpose.msra.mxu0 0.0
    %3095 = vmatpush.xpose.msra.mxu0 %v3078
    %3096 = vmatmul.f32.gmra.mxu0 %v3076
    %v3097 = vpop.f32.mrf.mxu0
    %v3098 = vadd.f32 0.0, %v3097
    %3099 = vdwg.mxu0
    %3100 = vrot.lane.b32.xlu0 %v2942, 120
    %v3101 = vpop.permute.xlu0 %3100
    %3102 = vrot.lane.b32.xlu0 %v2942, 88
    %v3103 = vpop.permute.xlu0 %3102
    %v3104 = vsel %vm1176, %v3101, 0
    %v3106 = vsel %vm1176, %v3103, 0
    %3108 = vmatpush.xpose.msra.mxu0 0.0
    %3109 = vmatpush.xpose.msra.mxu0 0.0
    %3110 = vmatpush.xpose.msra.mxu0 0.0
    %3111 = vmatpush.xpose.msra.mxu0 0.0
    %3112 = vmatpush.xpose.msra.mxu0 0.0
    %3113 = vmatpush.xpose.msra.mxu0 0.0
    %3114 = vmatpush.xpose.msra.mxu0 0.0
    %3115 = vmatpush.xpose.msra.mxu0 0.0
    %3116 = vmatpush.xpose.msra.mxu0 0.0
    %3117 = vmatpush.xpose.msra.mxu0 0.0
    %3118 = vmatpush.xpose.msra.mxu0 0.0
    %3119 = vmatpush.xpose.msra.mxu0 0.0
    %3120 = vmatpush.xpose.msra.mxu0 0.0
    %3121 = vmatpush.xpose.msra.mxu0 0.0
    %3122 = vmatpush.xpose.msra.mxu0 0.0
    %3123 = vmatpush.xpose.msra.mxu0 %v3106
    %3124 = vmatmul.f32.gmra.mxu0 %v3104
    %v3125 = vpop.f32.mrf.mxu0
    %v3126 = vadd.f32 0.0, %v3125
    %3127 = vdwg.mxu0
    %v3128 = vsel %vm1176, %v3098, -inf
    %3129 = vmax.xlane.f32.xlu0 %v3128
    %v3130 = vpop.xlane.xlu0 %3129
    %v3131 = vsel %vm1176, %v3126, -inf
    %3132 = vmax.xlane.f32.xlu0 %v3131
    %v3133 = vpop.xlane.xlu0 %3132
    %v3134 = vsub.f32 %v3098, %v3130
    %v3135 = vsub.f32 %v3126, %v3133
    %v3136 = vmul.f32 %v3134, 1.442695
    %v3137 = vpow.pop %v3136
    %v3138 = vmul.f32 %v3135, 1.442695
    %v3139 = vpow.pop %v3138
    %v3140 = vsel %vm1176, %v3137, 0.0
    %3141 = vadd.xlane.f32.xlu0 %v3140
    %v3142 = vpop.xlane.xlu0 %3141
    %v3143 = vsel %vm1176, %v3139, 0.0
    %3144 = vadd.xlane.f32.xlu0 %v3143
    %v3145 = vpop.xlane.xlu0 %3144
    %v3146 = vrcp.pop %v3142
    %v3147 = vrcp.pop %v3145
    %v3148 = vmul.f32 %v3137, %v3146
    %v3149 = vmul.f32 %v3139, %v3147
    %3150 = vrot.lane.b32.xlu0 %v2939, 56
    %v3151 = vpop.permute.xlu0 %3150
    %v3154 = vsel %vm1176, %v3148, 0
    %3156 = vmatpush.msra.mxu0 0.0
    %3157 = vmatpush.msra.mxu0 0.0
    %3158 = vmatpush.msra.mxu0 0.0
    %3159 = vmatpush.msra.mxu0 0.0
    %3160 = vmatpush.msra.mxu0 0.0
    %3161 = vmatpush.msra.mxu0 0.0
    %3162 = vmatpush.msra.mxu0 0.0
    %3163 = vmatpush.msra.mxu0 0.0
    %3164 = vmatpush.msra.mxu0 0.0
    %3165 = vmatpush.msra.mxu0 0.0
    %3166 = vmatpush.msra.mxu0 0.0
    %3167 = vmatpush.msra.mxu0 0.0
    %3168 = vmatpush.msra.mxu0 0.0
    %3169 = vmatpush.msra.mxu0 0.0
    %3170 = vmatpush.msra.mxu0 0.0
    %3171 = vmatpush.msra.mxu0 %v3151
    %3172 = vmatmul.f32.gmra.mxu0 %v3154
    %v3173 = vpop.f32.mrf.mxu0
    %v3174 = vadd.f32 0.0, %v3173
    %3175 = vdwg.mxu0
    %3176 = vrot.lane.b32.xlu0 %v2942, 56
    %v3177 = vpop.permute.xlu0 %3176
    %v3180 = vsel %vm1176, %v3149, 0
    %3182 = vmatpush.msra.mxu0 0.0
    %3183 = vmatpush.msra.mxu0 0.0
    %3184 = vmatpush.msra.mxu0 0.0
    %3185 = vmatpush.msra.mxu0 0.0
    %3186 = vmatpush.msra.mxu0 0.0
    %3187 = vmatpush.msra.mxu0 0.0
    %3188 = vmatpush.msra.mxu0 0.0
    %3189 = vmatpush.msra.mxu0 0.0
    %3190 = vmatpush.msra.mxu0 0.0
    %3191 = vmatpush.msra.mxu0 0.0
    %3192 = vmatpush.msra.mxu0 0.0
    %3193 = vmatpush.msra.mxu0 0.0
    %3194 = vmatpush.msra.mxu0 0.0
    %3195 = vmatpush.msra.mxu0 0.0
    %3196 = vmatpush.msra.mxu0 0.0
    %3197 = vmatpush.msra.mxu0 %v3177
    %3198 = vmatmul.f32.gmra.mxu0 %v3180
    %v3199 = vpop.f32.mrf.mxu0
    %v3200 = vadd.f32 0.0, %v3199
    %3201 = vdwg.mxu0
    %v3203 = vsel %vm1176, %v3174, 0
    %v3206 = vsel %vm1176, %v3200, 0
    %3208 = vmatpush.msra.mxu0 0.0
    %3209 = vmatpush.msra.mxu0 0.0
    %3210 = vmatpush.msra.mxu0 0.0
    %3211 = vmatpush.msra.mxu0 0.0
    %3212 = vmatpush.msra.mxu0 0.0
    %3213 = vmatpush.msra.mxu0 0.0
    %3214 = vmatpush.msra.mxu0 0.0
    %3215 = vmatpush.msra.mxu0 0.0
    %3216 = vmatpush.msra.mxu0 0.0
    %3217 = vmatpush.msra.mxu0 0.0
    %3218 = vmatpush.msra.mxu0 0.0
    %3219 = vmatpush.msra.mxu0 0.0
    %3220 = vmatpush.msra.mxu0 0.0
    %3221 = vmatpush.msra.mxu0 0.0
    %3222 = vmatpush.msra.mxu0 0.0
    %3223 = vmatpush.msra.mxu0 %v2890
    %3224 = vmatmul.f32.gmra.mxu0 %v3203
    %v3225 = vpop.f32.mrf.mxu0
    %v3226 = vadd.f32 0.0, %v3225
    %3227 = vmatmul.f32.gmra.mxu0 %v3206
    %v3228 = vpop.f32.mrf.mxu0
    %v3229 = vadd.f32 0.0, %v3228
    %3230 = vdwg.mxu0
    %v3232 = vsel %vm1176, %v3044, 0
    %v3235 = vsel %vm1176, %v3070, 0
    %3237 = vmatpush.msra.mxu0 0.0
    %3238 = vmatpush.msra.mxu0 0.0
    %3239 = vmatpush.msra.mxu0 0.0
    %3240 = vmatpush.msra.mxu0 0.0
    %3241 = vmatpush.msra.mxu0 0.0
    %3242 = vmatpush.msra.mxu0 0.0
    %3243 = vmatpush.msra.mxu0 0.0
    %3244 = vmatpush.msra.mxu0 0.0
    %3245 = vmatpush.msra.mxu0 0.0
    %3246 = vmatpush.msra.mxu0 0.0
    %3247 = vmatpush.msra.mxu0 0.0
    %3248 = vmatpush.msra.mxu0 0.0
    %3249 = vmatpush.msra.mxu0 0.0
    %3250 = vmatpush.msra.mxu0 0.0
    %3251 = vmatpush.msra.mxu0 0.0
    %3252 = vmatpush.msra.mxu0 %v2889
    %3253 = vmatmul.f32.gmra.mxu0 %v3232
    %v3254 = vpop.f32.mrf.mxu0
    %v3255 = vadd.f32 %v3226, %v3254
    %3256 = vmatmul.f32.gmra.mxu0 %v3235
    %v3257 = vpop.f32.mrf.mxu0
    %v3258 = vadd.f32 %v3229, %v3257
    %3259 = vdwg.mxu0
    %3260 = vrot.lane.b32.xlu0 %v2939, 112
    %v3261 = vpop.permute.xlu0 %3260
    %3262 = vrot.lane.b32.xlu0 %v2939, 80
    %v3263 = vpop.permute.xlu0 %3262
    %v3264 = vsel %vm1176, %v3261, 0
    %v3266 = vsel %vm1176, %v3263, 0
    %3268 = vmatpush.xpose.msra.mxu0 0.0
    %3269 = vmatpush.xpose.msra.mxu0 0.0
    %3270 = vmatpush.xpose.msra.mxu0 0.0
    %3271 = vmatpush.xpose.msra.mxu0 0.0
    %3272 = vmatpush.xpose.msra.mxu0 0.0
    %3273 = vmatpush.xpose.msra.mxu0 0.0
    %3274 = vmatpush.xpose.msra.mxu0 0.0
    %3275 = vmatpush.xpose.msra.mxu0 0.0
    %3276 = vmatpush.xpose.msra.mxu0 0.0
    %3277 = vmatpush.xpose.msra.mxu0 0.0
    %3278 = vmatpush.xpose.msra.mxu0 0.0
    %3279 = vmatpush.xpose.msra.mxu0 0.0
    %3280 = vmatpush.xpose.msra.mxu0 0.0
    %3281 = vmatpush.xpose.msra.mxu0 0.0
    %3282 = vmatpush.xpose.msra.mxu0 0.0
    %3283 = vmatpush.xpose.msra.mxu0 %v3266
    %3284 = vmatmul.f32.gmra.mxu0 %v3264
    %v3285 = vpop.f32.mrf.mxu0
    %v3286 = vadd.f32 0.0, %v3285
    %3287 = vdwg.mxu0
    %3288 = vrot.lane.b32.xlu0 %v2942, 112
    %v3289 = vpop.permute.xlu0 %3288
    %3290 = vrot.lane.b32.xlu0 %v2942, 80
    %v3291 = vpop.permute.xlu0 %3290
    %v3292 = vsel %vm1176, %v3289, 0
    %v3294 = vsel %vm1176, %v3291, 0
    %3296 = vmatpush.xpose.msra.mxu0 0.0
    %3297 = vmatpush.xpose.msra.mxu0 0.0
    %3298 = vmatpush.xpose.msra.mxu0 0.0
    %3299 = vmatpush.xpose.msra.mxu0 0.0
    %3300 = vmatpush.xpose.msra.mxu0 0.0
    %3301 = vmatpush.xpose.msra.mxu0 0.0
    %3302 = vmatpush.xpose.msra.mxu0 0.0
    %3303 = vmatpush.xpose.msra.mxu0 0.0
    %3304 = vmatpush.xpose.msra.mxu0 0.0
    %3305 = vmatpush.xpose.msra.mxu0 0.0
    %3306 = vmatpush.xpose.msra.mxu0 0.0
    %3307 = vmatpush.xpose.msra.mxu0 0.0
    %3308 = vmatpush.xpose.msra.mxu0 0.0
    %3309 = vmatpush.xpose.msra.mxu0 0.0
    %3310 = vmatpush.xpose.msra.mxu0 0.0
    %3311 = vmatpush.xpose.msra.mxu0 %v3294
    %3312 = vmatmul.f32.gmra.mxu0 %v3292
    %v3313 = vpop.f32.mrf.mxu0
    %v3314 = vadd.f32 0.0, %v3313
    %3315 = vdwg.mxu0
    %v3316 = vsel %vm1176, %v3286, -inf
    %3317 = vmax.xlane.f32.xlu0 %v3316
    %v3318 = vpop.xlane.xlu0 %3317
    %v3319 = vsel %vm1176, %v3314, -inf
    %3320 = vmax.xlane.f32.xlu0 %v3319
    %v3321 = vpop.xlane.xlu0 %3320
    %v3322 = vsub.f32 %v3286, %v3318
    %v3323 = vsub.f32 %v3314, %v3321
    %v3324 = vmul.f32 %v3322, 1.442695
    %v3325 = vpow.pop %v3324
    %v3326 = vmul.f32 %v3323, 1.442695
    %v3327 = vpow.pop %v3326
    %v3328 = vsel %vm1176, %v3325, 0.0
    %3329 = vadd.xlane.f32.xlu0 %v3328
    %v3330 = vpop.xlane.xlu0 %3329
    %v3331 = vsel %vm1176, %v3327, 0.0
    %3332 = vadd.xlane.f32.xlu0 %v3331
    %v3333 = vpop.xlane.xlu0 %3332
    %v3334 = vrcp.pop %v3330
    %v3335 = vrcp.pop %v3333
    %v3336 = vmul.f32 %v3325, %v3334
    %v3337 = vmul.f32 %v3327, %v3335
    %3338 = vrot.lane.b32.xlu0 %v2939, 48
    %v3339 = vpop.permute.xlu0 %3338
    %v3342 = vsel %vm1176, %v3336, 0
    %3344 = vmatpush.msra.mxu0 0.0
    %3345 = vmatpush.msra.mxu0 0.0
    %3346 = vmatpush.msra.mxu0 0.0
    %3347 = vmatpush.msra.mxu0 0.0
    %3348 = vmatpush.msra.mxu0 0.0
    %3349 = vmatpush.msra.mxu0 0.0
    %3350 = vmatpush.msra.mxu0 0.0
    %3351 = vmatpush.msra.mxu0 0.0
    %3352 = vmatpush.msra.mxu0 0.0
    %3353 = vmatpush.msra.mxu0 0.0
    %3354 = vmatpush.msra.mxu0 0.0
    %3355 = vmatpush.msra.mxu0 0.0
    %3356 = vmatpush.msra.mxu0 0.0
    %3357 = vmatpush.msra.mxu0 0.0
    %3358 = vmatpush.msra.mxu0 0.0
    %3359 = vmatpush.msra.mxu0 %v3339
    %3360 = vmatmul.f32.gmra.mxu0 %v3342
    %v3361 = vpop.f32.mrf.mxu0
    %v3362 = vadd.f32 0.0, %v3361
    %3363 = vdwg.mxu0
    %3364 = vrot.lane.b32.xlu0 %v2942, 48
    %v3365 = vpop.permute.xlu0 %3364
    %v3368 = vsel %vm1176, %v3337, 0
    %3370 = vmatpush.msra.mxu0 0.0
    %3371 = vmatpush.msra.mxu0 0.0
    %3372 = vmatpush.msra.mxu0 0.0
    %3373 = vmatpush.msra.mxu0 0.0
    %3374 = vmatpush.msra.mxu0 0.0
    %3375 = vmatpush.msra.mxu0 0.0
    %3376 = vmatpush.msra.mxu0 0.0
    %3377 = vmatpush.msra.mxu0 0.0
    %3378 = vmatpush.msra.mxu0 0.0
    %3379 = vmatpush.msra.mxu0 0.0
    %3380 = vmatpush.msra.mxu0 0.0
    %3381 = vmatpush.msra.mxu0 0.0
    %3382 = vmatpush.msra.mxu0 0.0
    %3383 = vmatpush.msra.mxu0 0.0
    %3384 = vmatpush.msra.mxu0 0.0
    %3385 = vmatpush.msra.mxu0 %v3365
    %3386 = vmatmul.f32.gmra.mxu0 %v3368
    %v3387 = vpop.f32.mrf.mxu0
    %v3388 = vadd.f32 0.0, %v3387
    %3389 = vdwg.mxu0
    %v3391 = vsel %vm1176, %v3362, 0
    %v3394 = vsel %vm1176, %v3388, 0
    %3396 = vmatpush.msra.mxu0 0.0
    %3397 = vmatpush.msra.mxu0 0.0
    %3398 = vmatpush.msra.mxu0 0.0
    %3399 = vmatpush.msra.mxu0 0.0
    %3400 = vmatpush.msra.mxu0 0.0
    %3401 = vmatpush.msra.mxu0 0.0
    %3402 = vmatpush.msra.mxu0 0.0
    %3403 = vmatpush.msra.mxu0 0.0
    %3404 = vmatpush.msra.mxu0 0.0
    %3405 = vmatpush.msra.mxu0 0.0
    %3406 = vmatpush.msra.mxu0 0.0
    %3407 = vmatpush.msra.mxu0 0.0
    %3408 = vmatpush.msra.mxu0 0.0
    %3409 = vmatpush.msra.mxu0 0.0
    %3410 = vmatpush.msra.mxu0 0.0
    %3411 = vmatpush.msra.mxu0 %v2891
    %3412 = vmatmul.f32.gmra.mxu0 %v3391
    %v3413 = vpop.f32.mrf.mxu0
    %v3414 = vadd.f32 0.0, %v3413
    %3415 = vmatmul.f32.gmra.mxu0 %v3394
    %v3416 = vpop.f32.mrf.mxu0
    %v3417 = vadd.f32 0.0, %v3416
    %3418 = vdwg.mxu0
    %v3419 = vadd.f32 %v3255, %v3414
    %v3420 = vadd.f32 %v3258, %v3417
    %3421 = vrot.lane.b32.xlu0 %v2939, 104
    %v3422 = vpop.permute.xlu0 %3421
    %3423 = vrot.lane.b32.xlu0 %v2939, 72
    %v3424 = vpop.permute.xlu0 %3423
    %v3425 = vsel %vm1176, %v3422, 0
    %v3427 = vsel %vm1176, %v3424, 0
    %3429 = vmatpush.xpose.msra.mxu0 0.0
    %3430 = vmatpush.xpose.msra.mxu0 0.0
    %3431 = vmatpush.xpose.msra.mxu0 0.0
    %3432 = vmatpush.xpose.msra.mxu0 0.0
    %3433 = vmatpush.xpose.msra.mxu0 0.0
    %3434 = vmatpush.xpose.msra.mxu0 0.0
    %3435 = vmatpush.xpose.msra.mxu0 0.0
    %3436 = vmatpush.xpose.msra.mxu0 0.0
    %3437 = vmatpush.xpose.msra.mxu0 0.0
    %3438 = vmatpush.xpose.msra.mxu0 0.0
    %3439 = vmatpush.xpose.msra.mxu0 0.0
    %3440 = vmatpush.xpose.msra.mxu0 0.0
    %3441 = vmatpush.xpose.msra.mxu0 0.0
    %3442 = vmatpush.xpose.msra.mxu0 0.0
    %3443 = vmatpush.xpose.msra.mxu0 0.0
    %3444 = vmatpush.xpose.msra.mxu0 %v3427
    %3445 = vmatmul.f32.gmra.mxu0 %v3425
    %v3446 = vpop.f32.mrf.mxu0
    %v3447 = vadd.f32 0.0, %v3446
    %3448 = vdwg.mxu0
    %3449 = vrot.lane.b32.xlu0 %v2942, 104
    %v3450 = vpop.permute.xlu0 %3449
    %3451 = vrot.lane.b32.xlu0 %v2942, 72
    %v3452 = vpop.permute.xlu0 %3451
    %v3453 = vsel %vm1176, %v3450, 0
    %v3455 = vsel %vm1176, %v3452, 0
    %3457 = vmatpush.xpose.msra.mxu0 0.0
    %3458 = vmatpush.xpose.msra.mxu0 0.0
    %3459 = vmatpush.xpose.msra.mxu0 0.0
    %3460 = vmatpush.xpose.msra.mxu0 0.0
    %3461 = vmatpush.xpose.msra.mxu0 0.0
    %3462 = vmatpush.xpose.msra.mxu0 0.0
    %3463 = vmatpush.xpose.msra.mxu0 0.0
    %3464 = vmatpush.xpose.msra.mxu0 0.0
    %3465 = vmatpush.xpose.msra.mxu0 0.0
    %3466 = vmatpush.xpose.msra.mxu0 0.0
    %3467 = vmatpush.xpose.msra.mxu0 0.0
    %3468 = vmatpush.xpose.msra.mxu0 0.0
    %3469 = vmatpush.xpose.msra.mxu0 0.0
    %3470 = vmatpush.xpose.msra.mxu0 0.0
    %3471 = vmatpush.xpose.msra.mxu0 0.0
    %3472 = vmatpush.xpose.msra.mxu0 %v3455
    %3473 = vmatmul.f32.gmra.mxu0 %v3453
    %v3474 = vpop.f32.mrf.mxu0
    %v3475 = vadd.f32 0.0, %v3474
    %3476 = vdwg.mxu0
    %v3477 = vsel %vm1176, %v3447, -inf
    %3478 = vmax.xlane.f32.xlu0 %v3477
    %v3479 = vpop.xlane.xlu0 %3478
    %v3480 = vsel %vm1176, %v3475, -inf
    %3481 = vmax.xlane.f32.xlu0 %v3480
    %v3482 = vpop.xlane.xlu0 %3481
    %v3483 = vsub.f32 %v3447, %v3479
    %v3484 = vsub.f32 %v3475, %v3482
    %v3485 = vmul.f32 %v3483, 1.442695
    %v3486 = vpow.pop %v3485
    %v3487 = vmul.f32 %v3484, 1.442695
    %v3488 = vpow.pop %v3487
    %v3489 = vsel %vm1176, %v3486, 0.0
    %3490 = vadd.xlane.f32.xlu0 %v3489
    %v3491 = vpop.xlane.xlu0 %3490
    %v3492 = vsel %vm1176, %v3488, 0.0
    %3493 = vadd.xlane.f32.xlu0 %v3492
    %v3494 = vpop.xlane.xlu0 %3493
    %v3495 = vrcp.pop %v3491
    %v3496 = vrcp.pop %v3494
    %v3497 = vmul.f32 %v3486, %v3495
    %v3498 = vmul.f32 %v3488, %v3496
    %3499 = vrot.lane.b32.xlu0 %v2939, 40
    %v3500 = vpop.permute.xlu0 %3499
    %v3503 = vsel %vm1176, %v3497, 0
    %3505 = vmatpush.msra.mxu0 0.0
    %3506 = vmatpush.msra.mxu0 0.0
    %3507 = vmatpush.msra.mxu0 0.0
    %3508 = vmatpush.msra.mxu0 0.0
    %3509 = vmatpush.msra.mxu0 0.0
    %3510 = vmatpush.msra.mxu0 0.0
    %3511 = vmatpush.msra.mxu0 0.0
    %3512 = vmatpush.msra.mxu0 0.0
    %3513 = vmatpush.msra.mxu0 0.0
    %3514 = vmatpush.msra.mxu0 0.0
    %3515 = vmatpush.msra.mxu0 0.0
    %3516 = vmatpush.msra.mxu0 0.0
    %3517 = vmatpush.msra.mxu0 0.0
    %3518 = vmatpush.msra.mxu0 0.0
    %3519 = vmatpush.msra.mxu0 0.0
    %3520 = vmatpush.msra.mxu0 %v3500
    %3521 = vmatmul.f32.gmra.mxu0 %v3503
    %v3522 = vpop.f32.mrf.mxu0
    %v3523 = vadd.f32 0.0, %v3522
    %3524 = vdwg.mxu0
    %3525 = vrot.lane.b32.xlu0 %v2942, 40
    %v3526 = vpop.permute.xlu0 %3525
    %v3529 = vsel %vm1176, %v3498, 0
    %3531 = vmatpush.msra.mxu0 0.0
    %3532 = vmatpush.msra.mxu0 0.0
    %3533 = vmatpush.msra.mxu0 0.0
    %3534 = vmatpush.msra.mxu0 0.0
    %3535 = vmatpush.msra.mxu0 0.0
    %3536 = vmatpush.msra.mxu0 0.0
    %3537 = vmatpush.msra.mxu0 0.0
    %3538 = vmatpush.msra.mxu0 0.0
    %3539 = vmatpush.msra.mxu0 0.0
    %3540 = vmatpush.msra.mxu0 0.0
    %3541 = vmatpush.msra.mxu0 0.0
    %3542 = vmatpush.msra.mxu0 0.0
    %3543 = vmatpush.msra.mxu0 0.0
    %3544 = vmatpush.msra.mxu0 0.0
    %3545 = vmatpush.msra.mxu0 0.0
    %3546 = vmatpush.msra.mxu0 %v3526
    %3547 = vmatmul.f32.gmra.mxu0 %v3529
    %v3548 = vpop.f32.mrf.mxu0
    %v3549 = vadd.f32 0.0, %v3548
    %3550 = vdwg.mxu0
    %v3552 = vsel %vm1176, %v3523, 0
    %v3555 = vsel %vm1176, %v3549, 0
    %3557 = vmatpush.msra.mxu0 0.0
    %3558 = vmatpush.msra.mxu0 0.0
    %3559 = vmatpush.msra.mxu0 0.0
    %3560 = vmatpush.msra.mxu0 0.0
    %3561 = vmatpush.msra.mxu0 0.0
    %3562 = vmatpush.msra.mxu0 0.0
    %3563 = vmatpush.msra.mxu0 0.0
    %3564 = vmatpush.msra.mxu0 0.0
    %3565 = vmatpush.msra.mxu0 0.0
    %3566 = vmatpush.msra.mxu0 0.0
    %3567 = vmatpush.msra.mxu0 0.0
    %3568 = vmatpush.msra.mxu0 0.0
    %3569 = vmatpush.msra.mxu0 0.0
    %3570 = vmatpush.msra.mxu0 0.0
    %3571 = vmatpush.msra.mxu0 0.0
    %3572 = vmatpush.msra.mxu0 %v2892
    %3573 = vmatmul.f32.gmra.mxu0 %v3552
    %v3574 = vpop.f32.mrf.mxu0
    %v3575 = vadd.f32 0.0, %v3574
    %3576 = vmatmul.f32.gmra.mxu0 %v3555
    %v3577 = vpop.f32.mrf.mxu0
    %v3578 = vadd.f32 0.0, %v3577
    %3579 = vdwg.mxu0
    %v3580 = vadd.f32 %v3419, %v3575
    %v3581 = vadd.f32 %v3420, %v3578
    %v3583 = vperm.slane %v2893, 0
    %v3585 = vadd.f32 %v3580, %v3583
    %v3586 = vadd.f32 %v3581, %v3583
    %v3587 = vadd.f32 %v2882, %v3585
    %v3588 = vadd.f32 %v2883, %v3586
    %v3589 = vsel %vm1143, %v3587, 0.0
    %3590 = vadd.xlane.f32.xlu0 %v3589
    %v3591 = vpop.xlane.xlu0 %3590
    %v3592 = vsel %vm1143, %v3588, 0.0
    %3593 = vadd.xlane.f32.xlu0 %v3592
    %v3594 = vpop.xlane.xlu0 %3593
    %v3595 = vmul.f32 %v3591, %v1831
    %v3596 = vmul.f32 %v3594, %v1831
    %v3597 = vsub.f32 %v3587, %v3595
    %v3598 = vsub.f32 %v3588, %v3596
    %v3599 = vmul.f32 %v3597, %v3597
    %v3600 = vmul.f32 %v3598, %v3598
    %v3601 = vsel %vm1143, %v3599, 0.0
    %3602 = vadd.xlane.f32.xlu0 %v3601
    %v3603 = vpop.xlane.xlu0 %3602
    %v3604 = vsel %vm1143, %v3600, 0.0
    %3605 = vadd.xlane.f32.xlu0 %v3604
    %v3606 = vpop.xlane.xlu0 %3605
    %v3607 = vmul.f32 %v3603, %v1831
    %v3608 = vmul.f32 %v3606, %v1831
    %v3609 = vadd.f32 %v3607, 1e-05
    %v3610 = vadd.f32 %v3608, 1e-05
    %v3611 = vrsqrt.pop %v3609
    %v3612 = vmul.f32 %v3611, %v3609
    %v3613 = vmul.f32 %v3612, %v3611
    %v3614 = vmul.f32 0.5, %v3613
    %v3615 = vsub.f32 1.5, %v3614
    %v3616 = vmul.f32 %v3611, %v3615
    %vm3617 = vweird.f32 %v3609
    %vm3618 = vweird.f32 %v3611
    %vm3619 = vmor %vm3617, %vm3618
    %v3620 = vsel %vm3619, %v3611, %v3616
    %v3621 = vrsqrt.pop %v3610
    %v3622 = vmul.f32 %v3621, %v3610
    %v3623 = vmul.f32 %v3622, %v3621
    %v3624 = vmul.f32 0.5, %v3623
    %v3625 = vsub.f32 1.5, %v3624
    %v3626 = vmul.f32 %v3621, %v3625
    %vm3627 = vweird.f32 %v3610
    %vm3628 = vweird.f32 %v3621
    %vm3629 = vmor %vm3627, %vm3628
    %v3630 = vsel %vm3629, %v3621, %v3626
    %v3631 = vmul.f32 %v3597, %v3620
    %v3632 = vmul.f32 %v3598, %v3630
    %v3634 = vperm.slane %v2894, 0
    %v3636 = vmul.f32 %v3631, %v3634
    %v3637 = vmul.f32 %v3632, %v3634
    %v3639 = vperm.slane %v2895, 0
    %v3641 = vadd.f32 %v3636, %v3639
    %v3642 = vadd.f32 %v3637, %v3639
    %v3644 = vperm.slane %v2900, 0
    %v3647 = vsel %vm1143, %v3641, 0
    %v3650 = vsel %vm1143, %v3642, 0
    %3652 = vmatpush.msra.mxu0 0.0
    %3653 = vmatpush.msra.mxu0 0.0
    %3654 = vmatpush.msra.mxu0 0.0
    %3655 = vmatpush.msra.mxu0 0.0
    %3656 = vmatpush.msra.mxu0 0.0
    %3657 = vmatpush.msra.mxu0 0.0
    %3658 = vmatpush.msra.mxu0 0.0
    %3659 = vmatpush.msra.mxu0 0.0
    %3660 = vmatpush.msra.mxu0 0.0
    %3661 = vmatpush.msra.mxu0 0.0
    %3662 = vmatpush.msra.mxu0 0.0
    %3663 = vmatpush.msra.mxu0 0.0
    %3664 = vmatpush.msra.mxu0 %v2899
    %3665 = vmatpush.msra.mxu0 %v2898
    %3666 = vmatpush.msra.mxu0 %v2897
    %3667 = vmatpush.msra.mxu0 %v2896
    %3668 = vmatmul.f32.gmra.mxu0 %v3647
    %v3669 = vpop.f32.mrf.mxu0
    %v3670 = vadd.f32 %v3644, %v3669
    %3671 = vmatmul.f32.gmra.mxu0 %v3650
    %v3672 = vpop.f32.mrf.mxu0
    %v3673 = vadd.f32 %v3644, %v3672
    %3674 = vdwg.mxu0
    %v3675 = vmax.f32 %v3670, 0.0
    %v3676 = vmax.f32 %v3673, 0.0
    %v3678 = vperm.slane %v2909, 0
    %v3681 = vsel %vm1917, %v3675, 0
    %v3684 = vsel %vm1917, %v3676, 0
    %3686 = vmatpush.msra.mxu0 0.0
    %3687 = vmatpush.msra.mxu0 0.0
    %3688 = vmatpush.msra.mxu0 0.0
    %3689 = vmatpush.msra.mxu0 0.0
    %3690 = vmatpush.msra.mxu0 0.0
    %3691 = vmatpush.msra.mxu0 0.0
    %3692 = vmatpush.msra.mxu0 0.0
    %3693 = vmatpush.msra.mxu0 0.0
    %3694 = vmatpush.msra.mxu0 %v2908
    %3695 = vmatpush.msra.mxu0 %v2907
    %3696 = vmatpush.msra.mxu0 %v2906
    %3697 = vmatpush.msra.mxu0 %v2905
    %3698 = vmatpush.msra.mxu0 %v2904
    %3699 = vmatpush.msra.mxu0 %v2903
    %3700 = vmatpush.msra.mxu0 %v2902
    %3701 = vmatpush.msra.mxu0 %v2901
    %3702 = vmatmul.f32.gmra.mxu0 %v3681
    %v3703 = vpop.f32.mrf.mxu0
    %v3704 = vadd.f32 %v3678, %v3703
    %3705 = vmatmul.f32.gmra.mxu0 %v3684
    %v3706 = vpop.f32.mrf.mxu0
    %v3707 = vadd.f32 %v3678, %v3706
    %3708 = vdwg.mxu0
    %v3709 = vadd.f32 %v3641, %v3704
    %v3710 = vadd.f32 %v3642, %v3707
    %v3711 = vsel %vm1143, %v3709, 0.0
    %3712 = vadd.xlane.f32.xlu0 %v3711
    %v3713 = vpop.xlane.xlu0 %3712
    %v3714 = vsel %vm1143, %v3710, 0.0
    %3715 = vadd.xlane.f32.xlu0 %v3714
    %v3716 = vpop.xlane.xlu0 %3715
    %v3717 = vmul.f32 %v3713, %v1831
    %v3718 = vmul.f32 %v3716, %v1831
    %v3719 = vsub.f32 %v3709, %v3717
    %v3720 = vsub.f32 %v3710, %v3718
    %v3721 = vmul.f32 %v3719, %v3719
    %v3722 = vmul.f32 %v3720, %v3720
    %v3723 = vsel %vm1143, %v3721, 0.0
    %3724 = vadd.xlane.f32.xlu0 %v3723
    %v3725 = vpop.xlane.xlu0 %3724
    %v3726 = vsel %vm1143, %v3722, 0.0
    %3727 = vadd.xlane.f32.xlu0 %v3726
    %v3728 = vpop.xlane.xlu0 %3727
    %v3729 = vmul.f32 %v3725, %v1831
    %v3730 = vmul.f32 %v3728, %v1831
    %v3731 = vadd.f32 %v3729, 1e-05
    %v3732 = vadd.f32 %v3730, 1e-05
    %v3733 = vrsqrt.pop %v3731
    %v3734 = vmul.f32 %v3733, %v3731
    %v3735 = vmul.f32 %v3734, %v3733
    %v3736 = vmul.f32 0.5, %v3735
    %v3737 = vsub.f32 1.5, %v3736
    %v3738 = vmul.f32 %v3733, %v3737
    %vm3739 = vweird.f32 %v3731
    %vm3740 = vweird.f32 %v3733
    %vm3741 = vmor %vm3739, %vm3740
    %v3742 = vsel %vm3741, %v3733, %v3738
    %v3743 = vrsqrt.pop %v3732
    %v3744 = vmul.f32 %v3743, %v3732
    %v3745 = vmul.f32 %v3744, %v3743
    %v3746 = vmul.f32 0.5, %v3745
    %v3747 = vsub.f32 1.5, %v3746
    %v3748 = vmul.f32 %v3743, %v3747
    %vm3749 = vweird.f32 %v3732
    %vm3750 = vweird.f32 %v3743
    %vm3751 = vmor %vm3749, %vm3750
    %v3752 = vsel %vm3751, %v3743, %v3748
    %v3753 = vmul.f32 %v3719, %v3742
    %v3754 = vmul.f32 %v3720, %v3752
    %v3756 = vperm.slane %v2910, 0
    %v3758 = vmul.f32 %v3753, %v3756
    %v3759 = vmul.f32 %v3754, %v3756
    %v3761 = vperm.slane %v2911, 0
    %v3763 = vadd.f32 %v3758, %v3761
    %v3764 = vadd.f32 %v3759, %v3761
    %3765 = vset.pattern.permute.xlu0 0
    %3766 = vperm.xlu0 %3765, %v1057
    %v3767 = vpop.permute.xlu0 %3766
    %3768 = vset.pattern.permute.xlu0 0
    %3769 = vperm.xlu0 %3768, %v1058
    %v3770 = vpop.permute.xlu0 %3769
    %vm3771 = vcmp.eq.s32.totalorder %v1078, %v3767
    %vm3772 = vcmp.eq.s32.totalorder %v1078, %v3770
    %v3773 = vsel %vm3771, 1.0, 0.0
    %v3774 = vsel %vm3772, 1.0, 0.0
    %3775 = vmatpush.msra.mxu0 %v1074
    %3776 = vmatpush.msra.mxu0 %v1073
    %3777 = vmatpush.msra.mxu0 %v1072
    %3778 = vmatpush.msra.mxu0 %v1071
    %3779 = vmatpush.msra.mxu0 %v1070
    %3780 = vmatpush.msra.mxu0 %v1069
    %3781 = vmatpush.msra.mxu0 %v1068
    %3782 = vmatpush.msra.mxu0 %v1067
    %3783 = vmatpush.msra.mxu0 %v1066
    %3784 = vmatpush.msra.mxu0 %v1065
    %3785 = vmatpush.msra.mxu0 %v1064
    %3786 = vmatpush.msra.mxu0 %v1063
    %3787 = vmatpush.msra.mxu0 %v1062
    %3788 = vmatpush.msra.mxu0 %v1061
    %3789 = vmatpush.msra.mxu0 %v1060
    %3790 = vmatpush.msra.mxu0 %v1059
    %3791 = vmatmul.f32.gmra.mxu0 %v3773
    %v3792 = vpop.f32.mrf.mxu0
    %v3793 = vadd.f32 0.0, %v3792
    %3794 = vmatmul.f32.gmra.mxu0 %v3774
    %v3795 = vpop.f32.mrf.mxu0
    %v3796 = vadd.f32 0.0, %v3795
    %3797 = vdwg.mxu0
    %v3798 = vld [vmem:[%s81] sm:$0xff]
    %v3799 = vld [vmem:[%s81 + $0x8] sm:$0xff]
    %v3800 = vld [vmem:[%s81 + $0x10] sm:$0xff]
    %v3801 = vld [vmem:[%s81 + $0x18] sm:$0xff]
    %v3802 = vld [vmem:[%s83] sm:$0x1]
    %v3803 = vld [vmem:[%s85] sm:$0xff]
    %v3804 = vld [vmem:[%s85 + $0x8] sm:$0xff]
    %v3805 = vld [vmem:[%s85 + $0x10] sm:$0xff]
    %v3806 = vld [vmem:[%s85 + $0x18] sm:$0xff]
    %v3807 = vld [vmem:[%s87] sm:$0x1]
    %v3808 = vld [vmem:[#allocation33] sm:$0x1]
    %v3809 = vld [vmem:[%s91] sm:$0x1]
    %v3810 = vld [vmem:[%s93] sm:$0xff]
    %v3811 = vld [vmem:[%s93 + $0x8] sm:$0xff]
    %v3812 = vld [vmem:[%s93 + $0x10] sm:$0xff]
    %v3813 = vld [vmem:[%s93 + $0x18] sm:$0xff]
    %v3814 = vld [vmem:[#allocation34] sm:$0x1]
    %v3815 = vld [vmem:[%s97] sm:$0xff]
    %v3816 = vld [vmem:[%s97 + $0x8] sm:$0xff]
    %v3817 = vld [vmem:[%s97 + $0x10] sm:$0xff]
    %v3818 = vld [vmem:[%s97 + $0x18] sm:$0xff]
    %v3819 = vld [vmem:[#allocation36] sm:$0x1]
    %v3820 = vld [vmem:[%s101] sm:$0xff]
    %v3821 = vld [vmem:[%s101 + $0x8] sm:$0xff]
    %v3822 = vld [vmem:[%s101 + $0x10] sm:$0xff]
    %v3823 = vld [vmem:[%s101 + $0x18] sm:$0xff]
    %v3824 = vld [vmem:[#allocation37] sm:$0x1]
    %v3825 = vld [vmem:[#allocation39] sm:$0x1]
    %v3826 = vld [vmem:[#allocation40] sm:$0x1]
    %v3827 = vld [vmem:[%s109] sm:$0xff]
    %v3828 = vld [vmem:[%s109 + $0x8] sm:$0xff]
    %v3829 = vld [vmem:[%s109 + $0x10] sm:$0xff]
    %v3830 = vld [vmem:[%s109 + $0x18] sm:$0xff]
    %v3831 = vld [vmem:[#allocation42] sm:$0x1]
    %v3832 = vld [vmem:[%s113] sm:$0xff]
    %v3833 = vld [vmem:[%s113 + $0x8] sm:$0xff]
    %v3834 = vld [vmem:[%s113 + $0x10] sm:$0xff]
    %v3835 = vld [vmem:[%s113 + $0x18] sm:$0xff]
    %v3836 = vld [vmem:[%s113 + $0x20] sm:$0xff]
    %v3837 = vld [vmem:[%s113 + $0x28] sm:$0xff]
    %v3838 = vld [vmem:[%s113 + $0x30] sm:$0xff]
    %v3839 = vld [vmem:[%s113 + $0x38] sm:$0xff]
    %v3840 = vld [vmem:[#allocation43] sm:$0x1]
    %v3841 = vld [vmem:[#allocation45] sm:$0x1]
    %v3842 = vld [vmem:[#allocation46] sm:$0x1]
    %v3844 = vperm.slane %v3802, 0
    %v3847 = vsel %vm1143, %v3793, 0
    %v3850 = vsel %vm1143, %v3796, 0
    %3852 = vmatpush.msra.mxu0 0.0
    %3853 = vmatpush.msra.mxu0 0.0
    %3854 = vmatpush.msra.mxu0 0.0
    %3855 = vmatpush.msra.mxu0 0.0
    %3856 = vmatpush.msra.mxu0 0.0
    %3857 = vmatpush.msra.mxu0 0.0
    %3858 = vmatpush.msra.mxu0 0.0
    %3859 = vmatpush.msra.mxu0 0.0
    %3860 = vmatpush.msra.mxu0 0.0
    %3861 = vmatpush.msra.mxu0 0.0
    %3862 = vmatpush.msra.mxu0 0.0
    %3863 = vmatpush.msra.mxu0 0.0
    %3864 = vmatpush.msra.mxu0 %v3801
    %3865 = vmatpush.msra.mxu0 %v3800
    %3866 = vmatpush.msra.mxu0 %v3799
    %3867 = vmatpush.msra.mxu0 %v3798
    %3868 = vmatmul.f32.gmra.mxu0 %v3847
    %v3869 = vpop.f32.mrf.mxu0
    %v3870 = vadd.f32 %v3844, %v3869
    %3871 = vmatmul.f32.gmra.mxu0 %v3850
    %v3872 = vpop.f32.mrf.mxu0
    %v3873 = vadd.f32 %v3844, %v3872
    %3874 = vdwg.mxu0
    %3876 = vrot.lane.b32.xlu0 %v3870, 96
    %v3877 = vpop.permute.xlu0 %3876
    %v3878 = vsel %vm1176, %v3870, 0
    %v3880 = vsel %vm1176, %v3877, 0
    %3882 = vmatpush.xpose.msra.mxu0 0.0
    %3883 = vmatpush.xpose.msra.mxu0 0.0
    %3884 = vmatpush.xpose.msra.mxu0 0.0
    %3885 = vmatpush.xpose.msra.mxu0 0.0
    %3886 = vmatpush.xpose.msra.mxu0 0.0
    %3887 = vmatpush.xpose.msra.mxu0 0.0
    %3888 = vmatpush.xpose.msra.mxu0 0.0
    %3889 = vmatpush.xpose.msra.mxu0 0.0
    %3890 = vmatpush.xpose.msra.mxu0 0.0
    %3891 = vmatpush.xpose.msra.mxu0 0.0
    %3892 = vmatpush.xpose.msra.mxu0 0.0
    %3893 = vmatpush.xpose.msra.mxu0 0.0
    %3894 = vmatpush.xpose.msra.mxu0 0.0
    %3895 = vmatpush.xpose.msra.mxu0 0.0
    %3896 = vmatpush.xpose.msra.mxu0 0.0
    %3897 = vmatpush.xpose.msra.mxu0 %v3880
    %3898 = vmatmul.f32.gmra.mxu0 %v3878
    %v3899 = vpop.f32.mrf.mxu0
    %v3900 = vadd.f32 0.0, %v3899
    %3901 = vdwg.mxu0
    %3903 = vrot.lane.b32.xlu0 %v3873, 96
    %v3904 = vpop.permute.xlu0 %3903
    %v3905 = vsel %vm1176, %v3873, 0
    %v3907 = vsel %vm1176, %v3904, 0
    %3909 = vmatpush.xpose.msra.mxu0 0.0
    %3910 = vmatpush.xpose.msra.mxu0 0.0
    %3911 = vmatpush.xpose.msra.mxu0 0.0
    %3912 = vmatpush.xpose.msra.mxu0 0.0
    %3913 = vmatpush.xpose.msra.mxu0 0.0
    %3914 = vmatpush.xpose.msra.mxu0 0.0
    %3915 = vmatpush.xpose.msra.mxu0 0.0
    %3916 = vmatpush.xpose.msra.mxu0 0.0
    %3917 = vmatpush.xpose.msra.mxu0 0.0
    %3918 = vmatpush.xpose.msra.mxu0 0.0
    %3919 = vmatpush.xpose.msra.mxu0 0.0
    %3920 = vmatpush.xpose.msra.mxu0 0.0
    %3921 = vmatpush.xpose.msra.mxu0 0.0
    %3922 = vmatpush.xpose.msra.mxu0 0.0
    %3923 = vmatpush.xpose.msra.mxu0 0.0
    %3924 = vmatpush.xpose.msra.mxu0 %v3907
    %3925 = vmatmul.f32.gmra.mxu0 %v3905
    %v3926 = vpop.f32.mrf.mxu0
    %v3927 = vadd.f32 0.0, %v3926
    %3928 = vdwg.mxu0
    %v3929 = vsel %vm1176, %v3900, -inf
    %3930 = vmax.xlane.f32.xlu0 %v3929
    %v3931 = vpop.xlane.xlu0 %3930
    %v3932 = vsel %vm1176, %v3927, -inf
    %3933 = vmax.xlane.f32.xlu0 %v3932
    %v3934 = vpop.xlane.xlu0 %3933
    %v3935 = vsub.f32 %v3900, %v3931
    %v3936 = vsub.f32 %v3927, %v3934
    %v3937 = vmul.f32 %v3935, 1.442695
    %v3938 = vpow.pop %v3937
    %v3939 = vmul.f32 %v3936, 1.442695
    %v3940 = vpow.pop %v3939
    %v3941 = vsel %vm1176, %v3938, 0.0
    %3942 = vadd.xlane.f32.xlu0 %v3941
    %v3943 = vpop.xlane.xlu0 %3942
    %v3944 = vsel %vm1176, %v3940, 0.0
    %3945 = vadd.xlane.f32.xlu0 %v3944
    %v3946 = vpop.xlane.xlu0 %3945
    %v3947 = vrcp.pop %v3943
    %v3948 = vrcp.pop %v3946
    %v3949 = vmul.f32 %v3938, %v3947
    %v3950 = vmul.f32 %v3940, %v3948
    %3951 = vrot.lane.b32.xlu0 %v3870, 64
    %v3952 = vpop.permute.xlu0 %3951
    %v3955 = vsel %vm1176, %v3949, 0
    %3957 = vmatpush.msra.mxu0 0.0
    %3958 = vmatpush.msra.mxu0 0.0
    %3959 = vmatpush.msra.mxu0 0.0
    %3960 = vmatpush.msra.mxu0 0.0
    %3961 = vmatpush.msra.mxu0 0.0
    %3962 = vmatpush.msra.mxu0 0.0
    %3963 = vmatpush.msra.mxu0 0.0
    %3964 = vmatpush.msra.mxu0 0.0
    %3965 = vmatpush.msra.mxu0 0.0
    %3966 = vmatpush.msra.mxu0 0.0
    %3967 = vmatpush.msra.mxu0 0.0
    %3968 = vmatpush.msra.mxu0 0.0
    %3969 = vmatpush.msra.mxu0 0.0
    %3970 = vmatpush.msra.mxu0 0.0
    %3971 = vmatpush.msra.mxu0 0.0
    %3972 = vmatpush.msra.mxu0 %v3952
    %3973 = vmatmul.f32.gmra.mxu0 %v3955
    %v3974 = vpop.f32.mrf.mxu0
    %v3975 = vadd.f32 0.0, %v3974
    %3976 = vdwg.mxu0
    %3977 = vrot.lane.b32.xlu0 %v3873, 64
    %v3978 = vpop.permute.xlu0 %3977
    %v3981 = vsel %vm1176, %v3950, 0
    %3983 = vmatpush.msra.mxu0 0.0
    %3984 = vmatpush.msra.mxu0 0.0
    %3985 = vmatpush.msra.mxu0 0.0
    %3986 = vmatpush.msra.mxu0 0.0
    %3987 = vmatpush.msra.mxu0 0.0
    %3988 = vmatpush.msra.mxu0 0.0
    %3989 = vmatpush.msra.mxu0 0.0
    %3990 = vmatpush.msra.mxu0 0.0
    %3991 = vmatpush.msra.mxu0 0.0
    %3992 = vmatpush.msra.mxu0 0.0
    %3993 = vmatpush.msra.mxu0 0.0
    %3994 = vmatpush.msra.mxu0 0.0
    %3995 = vmatpush.msra.mxu0 0.0
    %3996 = vmatpush.msra.mxu0 0.0
    %3997 = vmatpush.msra.mxu0 0.0
    %3998 = vmatpush.msra.mxu0 %v3978
    %3999 = vmatmul.f32.gmra.mxu0 %v3981
    %v4000 = vpop.f32.mrf.mxu0
    %v4001 = vadd.f32 0.0, %v4000
    %4002 = vdwg.mxu0
    %4003 = vrot.lane.b32.xlu0 %v3870, 120
    %v4004 = vpop.permute.xlu0 %4003
    %4005 = vrot.lane.b32.xlu0 %v3870, 88
    %v4006 = vpop.permute.xlu0 %4005
    %v4007 = vsel %vm1176, %v4004, 0
    %v4009 = vsel %vm1176, %v4006, 0
    %4011 = vmatpush.xpose.msra.mxu0 0.0
    %4012 = vmatpush.xpose.msra.mxu0 0.0
    %4013 = vmatpush.xpose.msra.mxu0 0.0
    %4014 = vmatpush.xpose.msra.mxu0 0.0
    %4015 = vmatpush.xpose.msra.mxu0 0.0
    %4016 = vmatpush.xpose.msra.mxu0 0.0
    %4017 = vmatpush.xpose.msra.mxu0 0.0
    %4018 = vmatpush.xpose.msra.mxu0 0.0
    %4019 = vmatpush.xpose.msra.mxu0 0.0
    %4020 = vmatpush.xpose.msra.mxu0 0.0
    %4021 = vmatpush.xpose.msra.mxu0 0.0
    %4022 = vmatpush.xpose.msra.mxu0 0.0
    %4023 = vmatpush.xpose.msra.mxu0 0.0
    %4024 = vmatpush.xpose.msra.mxu0 0.0
    %4025 = vmatpush.xpose.msra.mxu0 0.0
    %4026 = vmatpush.xpose.msra.mxu0 %v4009
    %4027 = vmatmul.f32.gmra.mxu0 %v4007
    %v4028 = vpop.f32.mrf.mxu0
    %v4029 = vadd.f32 0.0, %v4028
    %4030 = vdwg.mxu0
    %4031 = vrot.lane.b32.xlu0 %v3873, 120
    %v4032 = vpop.permute.xlu0 %4031
    %4033 = vrot.lane.b32.xlu0 %v3873, 88
    %v4034 = vpop.permute.xlu0 %4033
    %v4035 = vsel %vm1176, %v4032, 0
    %v4037 = vsel %vm1176, %v4034, 0
    %4039 = vmatpush.xpose.msra.mxu0 0.0
    %4040 = vmatpush.xpose.msra.mxu0 0.0
    %4041 = vmatpush.xpose.msra.mxu0 0.0
    %4042 = vmatpush.xpose.msra.mxu0 0.0
    %4043 = vmatpush.xpose.msra.mxu0 0.0
    %4044 = vmatpush.xpose.msra.mxu0 0.0
    %4045 = vmatpush.xpose.msra.mxu0 0.0
    %4046 = vmatpush.xpose.msra.mxu0 0.0
    %4047 = vmatpush.xpose.msra.mxu0 0.0
    %4048 = vmatpush.xpose.msra.mxu0 0.0
    %4049 = vmatpush.xpose.msra.mxu0 0.0
    %4050 = vmatpush.xpose.msra.mxu0 0.0
    %4051 = vmatpush.xpose.msra.mxu0 0.0
    %4052 = vmatpush.xpose.msra.mxu0 0.0
    %4053 = vmatpush.xpose.msra.mxu0 0.0
    %4054 = vmatpush.xpose.msra.mxu0 %v4037
    %4055 = vmatmul.f32.gmra.mxu0 %v4035
    %v4056 = vpop.f32.mrf.mxu0
    %v4057 = vadd.f32 0.0, %v4056
    %4058 = vdwg.mxu0
    %v4059 = vsel %vm1176, %v4029, -inf
    %4060 = vmax.xlane.f32.xlu0 %v4059
    %v4061 = vpop.xlane.xlu0 %4060
    %v4062 = vsel %vm1176, %v4057, -inf
    %4063 = vmax.xlane.f32.xlu0 %v4062
    %v4064 = vpop.xlane.xlu0 %4063
    %v4065 = vsub.f32 %v4029, %v4061
    %v4066 = vsub.f32 %v4057, %v4064
    %v4067 = vmul.f32 %v4065, 1.442695
    %v4068 = vpow.pop %v4067
    %v4069 = vmul.f32 %v4066, 1.442695
    %v4070 = vpow.pop %v4069
    %v4071 = vsel %vm1176, %v4068, 0.0
    %4072 = vadd.xlane.f32.xlu0 %v4071
    %v4073 = vpop.xlane.xlu0 %4072
    %v4074 = vsel %vm1176, %v4070, 0.0
    %4075 = vadd.xlane.f32.xlu0 %v4074
    %v4076 = vpop.xlane.xlu0 %4075
    %v4077 = vrcp.pop %v4073
    %v4078 = vrcp.pop %v4076
    %v4079 = vmul.f32 %v4068, %v4077
    %v4080 = vmul.f32 %v4070, %v4078
    %4081 = vrot.lane.b32.xlu0 %v3870, 56
    %v4082 = vpop.permute.xlu0 %4081
    %v4085 = vsel %vm1176, %v4079, 0
    %4087 = vmatpush.msra.mxu0 0.0
    %4088 = vmatpush.msra.mxu0 0.0
    %4089 = vmatpush.msra.mxu0 0.0
    %4090 = vmatpush.msra.mxu0 0.0
    %4091 = vmatpush.msra.mxu0 0.0
    %4092 = vmatpush.msra.mxu0 0.0
    %4093 = vmatpush.msra.mxu0 0.0
    %4094 = vmatpush.msra.mxu0 0.0
    %4095 = vmatpush.msra.mxu0 0.0
    %4096 = vmatpush.msra.mxu0 0.0
    %4097 = vmatpush.msra.mxu0 0.0
    %4098 = vmatpush.msra.mxu0 0.0
    %4099 = vmatpush.msra.mxu0 0.0
    %4100 = vmatpush.msra.mxu0 0.0
    %4101 = vmatpush.msra.mxu0 0.0
    %4102 = vmatpush.msra.mxu0 %v4082
    %4103 = vmatmul.f32.gmra.mxu0 %v4085
    %v4104 = vpop.f32.mrf.mxu0
    %v4105 = vadd.f32 0.0, %v4104
    %4106 = vdwg.mxu0
    %4107 = vrot.lane.b32.xlu0 %v3873, 56
    %v4108 = vpop.permute.xlu0 %4107
    %v4111 = vsel %vm1176, %v4080, 0
    %4113 = vmatpush.msra.mxu0 0.0
    %4114 = vmatpush.msra.mxu0 0.0
    %4115 = vmatpush.msra.mxu0 0.0
    %4116 = vmatpush.msra.mxu0 0.0
    %4117 = vmatpush.msra.mxu0 0.0
    %4118 = vmatpush.msra.mxu0 0.0
    %4119 = vmatpush.msra.mxu0 0.0
    %4120 = vmatpush.msra.mxu0 0.0
    %4121 = vmatpush.msra.mxu0 0.0
    %4122 = vmatpush.msra.mxu0 0.0
    %4123 = vmatpush.msra.mxu0 0.0
    %4124 = vmatpush.msra.mxu0 0.0
    %4125 = vmatpush.msra.mxu0 0.0
    %4126 = vmatpush.msra.mxu0 0.0
    %4127 = vmatpush.msra.mxu0 0.0
    %4128 = vmatpush.msra.mxu0 %v4108
    %4129 = vmatmul.f32.gmra.mxu0 %v4111
    %v4130 = vpop.f32.mrf.mxu0
    %v4131 = vadd.f32 0.0, %v4130
    %4132 = vdwg.mxu0
    %v4134 = vsel %vm1176, %v4105, 0
    %v4137 = vsel %vm1176, %v4131, 0
    %4139 = vmatpush.msra.mxu0 0.0
    %4140 = vmatpush.msra.mxu0 0.0
    %4141 = vmatpush.msra.mxu0 0.0
    %4142 = vmatpush.msra.mxu0 0.0
    %4143 = vmatpush.msra.mxu0 0.0
    %4144 = vmatpush.msra.mxu0 0.0
    %4145 = vmatpush.msra.mxu0 0.0
    %4146 = vmatpush.msra.mxu0 0.0
    %4147 = vmatpush.msra.mxu0 0.0
    %4148 = vmatpush.msra.mxu0 0.0
    %4149 = vmatpush.msra.mxu0 0.0
    %4150 = vmatpush.msra.mxu0 0.0
    %4151 = vmatpush.msra.mxu0 0.0
    %4152 = vmatpush.msra.mxu0 0.0
    %4153 = vmatpush.msra.mxu0 0.0
    %4154 = vmatpush.msra.mxu0 %v3804
    %4155 = vmatmul.f32.gmra.mxu0 %v4134
    %v4156 = vpop.f32.mrf.mxu0
    %v4157 = vadd.f32 0.0, %v4156
    %4158 = vmatmul.f32.gmra.mxu0 %v4137
    %v4159 = vpop.f32.mrf.mxu0
    %v4160 = vadd.f32 0.0, %v4159
    %4161 = vdwg.mxu0
    %v4163 = vsel %vm1176, %v3975, 0
    %v4166 = vsel %vm1176, %v4001, 0
    %4168 = vmatpush.msra.mxu0 0.0
    %4169 = vmatpush.msra.mxu0 0.0
    %4170 = vmatpush.msra.mxu0 0.0
    %4171 = vmatpush.msra.mxu0 0.0
    %4172 = vmatpush.msra.mxu0 0.0
    %4173 = vmatpush.msra.mxu0 0.0
    %4174 = vmatpush.msra.mxu0 0.0
    %4175 = vmatpush.msra.mxu0 0.0
    %4176 = vmatpush.msra.mxu0 0.0
    %4177 = vmatpush.msra.mxu0 0.0
    %4178 = vmatpush.msra.mxu0 0.0
    %4179 = vmatpush.msra.mxu0 0.0
    %4180 = vmatpush.msra.mxu0 0.0
    %4181 = vmatpush.msra.mxu0 0.0
    %4182 = vmatpush.msra.mxu0 0.0
    %4183 = vmatpush.msra.mxu0 %v3803
    %4184 = vmatmul.f32.gmra.mxu0 %v4163
    %v4185 = vpop.f32.mrf.mxu0
    %v4186 = vadd.f32 %v4157, %v4185
    %4187 = vmatmul.f32.gmra.mxu0 %v4166
    %v4188 = vpop.f32.mrf.mxu0
    %v4189 = vadd.f32 %v4160, %v4188
    %4190 = vdwg.mxu0
    %4191 = vrot.lane.b32.xlu0 %v3870, 112
    %v4192 = vpop.permute.xlu0 %4191
    %4193 = vrot.lane.b32.xlu0 %v3870, 80
    %v4194 = vpop.permute.xlu0 %4193
    %v4195 = vsel %vm1176, %v4192, 0
    %v4197 = vsel %vm1176, %v4194, 0
    %4199 = vmatpush.xpose.msra.mxu0 0.0
    %4200 = vmatpush.xpose.msra.mxu0 0.0
    %4201 = vmatpush.xpose.msra.mxu0 0.0
    %4202 = vmatpush.xpose.msra.mxu0 0.0
    %4203 = vmatpush.xpose.msra.mxu0 0.0
    %4204 = vmatpush.xpose.msra.mxu0 0.0
    %4205 = vmatpush.xpose.msra.mxu0 0.0
    %4206 = vmatpush.xpose.msra.mxu0 0.0
    %4207 = vmatpush.xpose.msra.mxu0 0.0
    %4208 = vmatpush.xpose.msra.mxu0 0.0
    %4209 = vmatpush.xpose.msra.mxu0 0.0
    %4210 = vmatpush.xpose.msra.mxu0 0.0
    %4211 = vmatpush.xpose.msra.mxu0 0.0
    %4212 = vmatpush.xpose.msra.mxu0 0.0
    %4213 = vmatpush.xpose.msra.mxu0 0.0
    %4214 = vmatpush.xpose.msra.mxu0 %v4197
    %4215 = vmatmul.f32.gmra.mxu0 %v4195
    %v4216 = vpop.f32.mrf.mxu0
    %v4217 = vadd.f32 0.0, %v4216
    %4218 = vdwg.mxu0
    %4219 = vrot.lane.b32.xlu0 %v3873, 112
    %v4220 = vpop.permute.xlu0 %4219
    %4221 = vrot.lane.b32.xlu0 %v3873, 80
    %v4222 = vpop.permute.xlu0 %4221
    %v4223 = vsel %vm1176, %v4220, 0
    %v4225 = vsel %vm1176, %v4222, 0
    %4227 = vmatpush.xpose.msra.mxu0 0.0
    %4228 = vmatpush.xpose.msra.mxu0 0.0
    %4229 = vmatpush.xpose.msra.mxu0 0.0
    %4230 = vmatpush.xpose.msra.mxu0 0.0
    %4231 = vmatpush.xpose.msra.mxu0 0.0
    %4232 = vmatpush.xpose.msra.mxu0 0.0
    %4233 = vmatpush.xpose.msra.mxu0 0.0
    %4234 = vmatpush.xpose.msra.mxu0 0.0
    %4235 = vmatpush.xpose.msra.mxu0 0.0
    %4236 = vmatpush.xpose.msra.mxu0 0.0
    %4237 = vmatpush.xpose.msra.mxu0 0.0
    %4238 = vmatpush.xpose.msra.mxu0 0.0
    %4239 = vmatpush.xpose.msra.mxu0 0.0
    %4240 = vmatpush.xpose.msra.mxu0 0.0
    %4241 = vmatpush.xpose.msra.mxu0 0.0
    %4242 = vmatpush.xpose.msra.mxu0 %v4225
    %4243 = vmatmul.f32.gmra.mxu0 %v4223
    %v4244 = vpop.f32.mrf.mxu0
    %v4245 = vadd.f32 0.0, %v4244
    %4246 = vdwg.mxu0
    %v4247 = vsel %vm1176, %v4217, -inf
    %4248 = vmax.xlane.f32.xlu0 %v4247
    %v4249 = vpop.xlane.xlu0 %4248
    %v4250 = vsel %vm1176, %v4245, -inf
    %4251 = vmax.xlane.f32.xlu0 %v4250
    %v4252 = vpop.xlane.xlu0 %4251
    %v4253 = vsub.f32 %v4217, %v4249
    %v4254 = vsub.f32 %v4245, %v4252
    %v4255 = vmul.f32 %v4253, 1.442695
    %v4256 = vpow.pop %v4255
    %v4257 = vmul.f32 %v4254, 1.442695
    %v4258 = vpow.pop %v4257
    %v4259 = vsel %vm1176, %v4256, 0.0
    %4260 = vadd.xlane.f32.xlu0 %v4259
    %v4261 = vpop.xlane.xlu0 %4260
    %v4262 = vsel %vm1176, %v4258, 0.0
    %4263 = vadd.xlane.f32.xlu0 %v4262
    %v4264 = vpop.xlane.xlu0 %4263
    %v4265 = vrcp.pop %v4261
    %v4266 = vrcp.pop %v4264
    %v4267 = vmul.f32 %v4256, %v4265
    %v4268 = vmul.f32 %v4258, %v4266
    %4269 = vrot.lane.b32.xlu0 %v3870, 48
    %v4270 = vpop.permute.xlu0 %4269
    %v4273 = vsel %vm1176, %v4267, 0
    %4275 = vmatpush.msra.mxu0 0.0
    %4276 = vmatpush.msra.mxu0 0.0
    %4277 = vmatpush.msra.mxu0 0.0
    %4278 = vmatpush.msra.mxu0 0.0
    %4279 = vmatpush.msra.mxu0 0.0
    %4280 = vmatpush.msra.mxu0 0.0
    %4281 = vmatpush.msra.mxu0 0.0
    %4282 = vmatpush.msra.mxu0 0.0
    %4283 = vmatpush.msra.mxu0 0.0
    %4284 = vmatpush.msra.mxu0 0.0
    %4285 = vmatpush.msra.mxu0 0.0
    %4286 = vmatpush.msra.mxu0 0.0
    %4287 = vmatpush.msra.mxu0 0.0
    %4288 = vmatpush.msra.mxu0 0.0
    %4289 = vmatpush.msra.mxu0 0.0
    %4290 = vmatpush.msra.mxu0 %v4270
    %4291 = vmatmul.f32.gmra.mxu0 %v4273
    %v4292 = vpop.f32.mrf.mxu0
    %v4293 = vadd.f32 0.0, %v4292
    %4294 = vdwg.mxu0
    %4295 = vrot.lane.b32.xlu0 %v3873, 48
    %v4296 = vpop.permute.xlu0 %4295
    %v4299 = vsel %vm1176, %v4268, 0
    %4301 = vmatpush.msra.mxu0 0.0
    %4302 = vmatpush.msra.mxu0 0.0
    %4303 = vmatpush.msra.mxu0 0.0
    %4304 = vmatpush.msra.mxu0 0.0
    %4305 = vmatpush.msra.mxu0 0.0
    %4306 = vmatpush.msra.mxu0 0.0
    %4307 = vmatpush.msra.mxu0 0.0
    %4308 = vmatpush.msra.mxu0 0.0
    %4309 = vmatpush.msra.mxu0 0.0
    %4310 = vmatpush.msra.mxu0 0.0
    %4311 = vmatpush.msra.mxu0 0.0
    %4312 = vmatpush.msra.mxu0 0.0
    %4313 = vmatpush.msra.mxu0 0.0
    %4314 = vmatpush.msra.mxu0 0.0
    %4315 = vmatpush.msra.mxu0 0.0
    %4316 = vmatpush.msra.mxu0 %v4296
    %4317 = vmatmul.f32.gmra.mxu0 %v4299
    %v4318 = vpop.f32.mrf.mxu0
    %v4319 = vadd.f32 0.0, %v4318
    %4320 = vdwg.mxu0
    %v4322 = vsel %vm1176, %v4293, 0
    %v4325 = vsel %vm1176, %v4319, 0
    %4327 = vmatpush.msra.mxu0 0.0
    %4328 = vmatpush.msra.mxu0 0.0
    %4329 = vmatpush.msra.mxu0 0.0
    %4330 = vmatpush.msra.mxu0 0.0
    %4331 = vmatpush.msra.mxu0 0.0
    %4332 = vmatpush.msra.mxu0 0.0
    %4333 = vmatpush.msra.mxu0 0.0
    %4334 = vmatpush.msra.mxu0 0.0
    %4335 = vmatpush.msra.mxu0 0.0
    %4336 = vmatpush.msra.mxu0 0.0
    %4337 = vmatpush.msra.mxu0 0.0
    %4338 = vmatpush.msra.mxu0 0.0
    %4339 = vmatpush.msra.mxu0 0.0
    %4340 = vmatpush.msra.mxu0 0.0
    %4341 = vmatpush.msra.mxu0 0.0
    %4342 = vmatpush.msra.mxu0 %v3805
    %4343 = vmatmul.f32.gmra.mxu0 %v4322
    %v4344 = vpop.f32.mrf.mxu0
    %v4345 = vadd.f32 0.0, %v4344
    %4346 = vmatmul.f32.gmra.mxu0 %v4325
    %v4347 = vpop.f32.mrf.mxu0
    %v4348 = vadd.f32 0.0, %v4347
    %4349 = vdwg.mxu0
    %v4350 = vadd.f32 %v4186, %v4345
    %v4351 = vadd.f32 %v4189, %v4348
    %4352 = vrot.lane.b32.xlu0 %v3870, 104
    %v4353 = vpop.permute.xlu0 %4352
    %4354 = vrot.lane.b32.xlu0 %v3870, 72
    %v4355 = vpop.permute.xlu0 %4354
    %v4356 = vsel %vm1176, %v4353, 0
    %v4358 = vsel %vm1176, %v4355, 0
    %4360 = vmatpush.xpose.msra.mxu0 0.0
    %4361 = vmatpush.xpose.msra.mxu0 0.0
    %4362 = vmatpush.xpose.msra.mxu0 0.0
    %4363 = vmatpush.xpose.msra.mxu0 0.0
    %4364 = vmatpush.xpose.msra.mxu0 0.0
    %4365 = vmatpush.xpose.msra.mxu0 0.0
    %4366 = vmatpush.xpose.msra.mxu0 0.0
    %4367 = vmatpush.xpose.msra.mxu0 0.0
    %4368 = vmatpush.xpose.msra.mxu0 0.0
    %4369 = vmatpush.xpose.msra.mxu0 0.0
    %4370 = vmatpush.xpose.msra.mxu0 0.0
    %4371 = vmatpush.xpose.msra.mxu0 0.0
    %4372 = vmatpush.xpose.msra.mxu0 0.0
    %4373 = vmatpush.xpose.msra.mxu0 0.0
    %4374 = vmatpush.xpose.msra.mxu0 0.0
    %4375 = vmatpush.xpose.msra.mxu0 %v4358
    %4376 = vmatmul.f32.gmra.mxu0 %v4356
    %v4377 = vpop.f32.mrf.mxu0
    %v4378 = vadd.f32 0.0, %v4377
    %4379 = vdwg.mxu0
    %4380 = vrot.lane.b32.xlu0 %v3873, 104
    %v4381 = vpop.permute.xlu0 %4380
    %4382 = vrot.lane.b32.xlu0 %v3873, 72
    %v4383 = vpop.permute.xlu0 %4382
    %v4384 = vsel %vm1176, %v4381, 0
    %v4386 = vsel %vm1176, %v4383, 0
    %4388 = vmatpush.xpose.msra.mxu0 0.0
    %4389 = vmatpush.xpose.msra.mxu0 0.0
    %4390 = vmatpush.xpose.msra.mxu0 0.0
    %4391 = vmatpush.xpose.msra.mxu0 0.0
    %4392 = vmatpush.xpose.msra.mxu0 0.0
    %4393 = vmatpush.xpose.msra.mxu0 0.0
    %4394 = vmatpush.xpose.msra.mxu0 0.0
    %4395 = vmatpush.xpose.msra.mxu0 0.0
    %4396 = vmatpush.xpose.msra.mxu0 0.0
    %4397 = vmatpush.xpose.msra.mxu0 0.0
    %4398 = vmatpush.xpose.msra.mxu0 0.0
    %4399 = vmatpush.xpose.msra.mxu0 0.0
    %4400 = vmatpush.xpose.msra.mxu0 0.0
    %4401 = vmatpush.xpose.msra.mxu0 0.0
    %4402 = vmatpush.xpose.msra.mxu0 0.0
    %4403 = vmatpush.xpose.msra.mxu0 %v4386
    %4404 = vmatmul.f32.gmra.mxu0 %v4384
    %v4405 = vpop.f32.mrf.mxu0
    %v4406 = vadd.f32 0.0, %v4405
    %4407 = vdwg.mxu0
    %v4408 = vsel %vm1176, %v4378, -inf
    %4409 = vmax.xlane.f32.xlu0 %v4408
    %v4410 = vpop.xlane.xlu0 %4409
    %v4411 = vsel %vm1176, %v4406, -inf
    %4412 = vmax.xlane.f32.xlu0 %v4411
    %v4413 = vpop.xlane.xlu0 %4412
    %v4414 = vsub.f32 %v4378, %v4410
    %v4415 = vsub.f32 %v4406, %v4413
    %v4416 = vmul.f32 %v4414, 1.442695
    %v4417 = vpow.pop %v4416
    %v4418 = vmul.f32 %v4415, 1.442695
    %v4419 = vpow.pop %v4418
    %v4420 = vsel %vm1176, %v4417, 0.0
    %4421 = vadd.xlane.f32.xlu0 %v4420
    %v4422 = vpop.xlane.xlu0 %4421
    %v4423 = vsel %vm1176, %v4419, 0.0
    %4424 = vadd.xlane.f32.xlu0 %v4423
    %v4425 = vpop.xlane.xlu0 %4424
    %v4426 = vrcp.pop %v4422
    %v4427 = vrcp.pop %v4425
    %v4428 = vmul.f32 %v4417, %v4426
    %v4429 = vmul.f32 %v4419, %v4427
    %4430 = vrot.lane.b32.xlu0 %v3870, 40
    %v4431 = vpop.permute.xlu0 %4430
    %v4434 = vsel %vm1176, %v4428, 0
    %4436 = vmatpush.msra.mxu0 0.0
    %4437 = vmatpush.msra.mxu0 0.0
    %4438 = vmatpush.msra.mxu0 0.0
    %4439 = vmatpush.msra.mxu0 0.0
    %4440 = vmatpush.msra.mxu0 0.0
    %4441 = vmatpush.msra.mxu0 0.0
    %4442 = vmatpush.msra.mxu0 0.0
    %4443 = vmatpush.msra.mxu0 0.0
    %4444 = vmatpush.msra.mxu0 0.0
    %4445 = vmatpush.msra.mxu0 0.0
    %4446 = vmatpush.msra.mxu0 0.0
    %4447 = vmatpush.msra.mxu0 0.0
    %4448 = vmatpush.msra.mxu0 0.0
    %4449 = vmatpush.msra.mxu0 0.0
    %4450 = vmatpush.msra.mxu0 0.0
    %4451 = vmatpush.msra.mxu0 %v4431
    %4452 = vmatmul.f32.gmra.mxu0 %v4434
    %v4453 = vpop.f32.mrf.mxu0
    %v4454 = vadd.f32 0.0, %v4453
    %4455 = vdwg.mxu0
    %4456 = vrot.lane.b32.xlu0 %v3873, 40
    %v4457 = vpop.permute.xlu0 %4456
    %v4460 = vsel %vm1176, %v4429, 0
    %4462 = vmatpush.msra.mxu0 0.0
    %4463 = vmatpush.msra.mxu0 0.0
    %4464 = vmatpush.msra.mxu0 0.0
    %4465 = vmatpush.msra.mxu0 0.0
    %4466 = vmatpush.msra.mxu0 0.0
    %4467 = vmatpush.msra.mxu0 0.0
    %4468 = vmatpush.msra.mxu0 0.0
    %4469 = vmatpush.msra.mxu0 0.0
    %4470 = vmatpush.msra.mxu0 0.0
    %4471 = vmatpush.msra.mxu0 0.0
    %4472 = vmatpush.msra.mxu0 0.0
    %4473 = vmatpush.msra.mxu0 0.0
    %4474 = vmatpush.msra.mxu0 0.0
    %4475 = vmatpush.msra.mxu0 0.0
    %4476 = vmatpush.msra.mxu0 0.0
    %4477 = vmatpush.msra.mxu0 %v4457
    %4478 = vmatmul.f32.gmra.mxu0 %v4460
    %v4479 = vpop.f32.mrf.mxu0
    %v4480 = vadd.f32 0.0, %v4479
    %4481 = vdwg.mxu0
    %v4483 = vsel %vm1176, %v4454, 0
    %v4486 = vsel %vm1176, %v4480, 0
    %4488 = vmatpush.msra.mxu0 0.0
    %4489 = vmatpush.msra.mxu0 0.0
    %4490 = vmatpush.msra.mxu0 0.0
    %4491 = vmatpush.msra.mxu0 0.0
    %4492 = vmatpush.msra.mxu0 0.0
    %4493 = vmatpush.msra.mxu0 0.0
    %4494 = vmatpush.msra.mxu0 0.0
    %4495 = vmatpush.msra.mxu0 0.0
    %4496 = vmatpush.msra.mxu0 0.0
    %4497 = vmatpush.msra.mxu0 0.0
    %4498 = vmatpush.msra.mxu0 0.0
    %4499 = vmatpush.msra.mxu0 0.0
    %4500 = vmatpush.msra.mxu0 0.0
    %4501 = vmatpush.msra.mxu0 0.0
    %4502 = vmatpush.msra.mxu0 0.0
    %4503 = vmatpush.msra.mxu0 %v3806
    %4504 = vmatmul.f32.gmra.mxu0 %v4483
    %v4505 = vpop.f32.mrf.mxu0
    %v4506 = vadd.f32 0.0, %v4505
    %4507 = vmatmul.f32.gmra.mxu0 %v4486
    %v4508 = vpop.f32.mrf.mxu0
    %v4509 = vadd.f32 0.0, %v4508
    %4510 = vdwg.mxu0
    %v4511 = vadd.f32 %v4350, %v4506
    %v4512 = vadd.f32 %v4351, %v4509
    %v4514 = vperm.slane %v3807, 0
    %v4516 = vadd.f32 %v4511, %v4514
    %v4517 = vadd.f32 %v4512, %v4514
    %v4518 = vadd.f32 %v3793, %v4516
    %v4519 = vadd.f32 %v3796, %v4517
    %v4520 = vsel %vm1143, %v4518, 0.0
    %4521 = vadd.xlane.f32.xlu0 %v4520
    %v4522 = vpop.xlane.xlu0 %4521
    %v4523 = vsel %vm1143, %v4519, 0.0
    %4524 = vadd.xlane.f32.xlu0 %v4523
    %v4525 = vpop.xlane.xlu0 %4524
    %v4526 = vmul.f32 %v4522, %v1831
    %v4527 = vmul.f32 %v4525, %v1831
    %v4528 = vsub.f32 %v4518, %v4526
    %v4529 = vsub.f32 %v4519, %v4527
    %v4530 = vmul.f32 %v4528, %v4528
    %v4531 = vmul.f32 %v4529, %v4529
    %v4532 = vsel %vm1143, %v4530, 0.0
    %4533 = vadd.xlane.f32.xlu0 %v4532
    %v4534 = vpop.xlane.xlu0 %4533
    %v4535 = vsel %vm1143, %v4531, 0.0
    %4536 = vadd.xlane.f32.xlu0 %v4535
    %v4537 = vpop.xlane.xlu0 %4536
    %v4538 = vmul.f32 %v4534, %v1831
    %v4539 = vmul.f32 %v4537, %v1831
    %v4540 = vadd.f32 %v4538, 1e-05
    %v4541 = vadd.f32 %v4539, 1e-05
    %v4542 = vrsqrt.pop %v4540
    %v4543 = vmul.f32 %v4542, %v4540
    %v4544 = vmul.f32 %v4543, %v4542
    %v4545 = vmul.f32 0.5, %v4544
    %v4546 = vsub.f32 1.5, %v4545
    %v4547 = vmul.f32 %v4542, %v4546
    %vm4548 = vweird.f32 %v4540
    %vm4549 = vweird.f32 %v4542
    %vm4550 = vmor %vm4548, %vm4549
    %v4551 = vsel %vm4550, %v4542, %v4547
    %v4552 = vrsqrt.pop %v4541
    %v4553 = vmul.f32 %v4552, %v4541
    %v4554 = vmul.f32 %v4553, %v4552
    %v4555 = vmul.f32 0.5, %v4554
    %v4556 = vsub.f32 1.5, %v4555
    %v4557 = vmul.f32 %v4552, %v4556
    %vm4558 = vweird.f32 %v4541
    %vm4559 = vweird.f32 %v4552
    %vm4560 = vmor %vm4558, %vm4559
    %v4561 = vsel %vm4560, %v4552, %v4557
    %v4562 = vmul.f32 %v4528, %v4551
    %v4563 = vmul.f32 %v4529, %v4561
    %v4565 = vperm.slane %v3808, 0
    %v4567 = vmul.f32 %v4562, %v4565
    %v4568 = vmul.f32 %v4563, %v4565
    %v4570 = vperm.slane %v3809, 0
    %v4572 = vadd.f32 %v4567, %v4570
    %v4573 = vadd.f32 %v4568, %v4570
    %v4575 = vperm.slane %v3814, 0
    %v4578 = vsel %vm1143, %v4572, 0
    %v4581 = vsel %vm1143, %v4573, 0
    %4583 = vmatpush.msra.mxu0 0.0
    %4584 = vmatpush.msra.mxu0 0.0
    %4585 = vmatpush.msra.mxu0 0.0
    %4586 = vmatpush.msra.mxu0 0.0
    %4587 = vmatpush.msra.mxu0 0.0
    %4588 = vmatpush.msra.mxu0 0.0
    %4589 = vmatpush.msra.mxu0 0.0
    %4590 = vmatpush.msra.mxu0 0.0
    %4591 = vmatpush.msra.mxu0 0.0
    %4592 = vmatpush.msra.mxu0 0.0
    %4593 = vmatpush.msra.mxu0 0.0
    %4594 = vmatpush.msra.mxu0 0.0
    %4595 = vmatpush.msra.mxu0 %v3813
    %4596 = vmatpush.msra.mxu0 %v3812
    %4597 = vmatpush.msra.mxu0 %v3811
    %4598 = vmatpush.msra.mxu0 %v3810
    %4599 = vmatmul.f32.gmra.mxu0 %v4578
    %v4600 = vpop.f32.mrf.mxu0
    %v4601 = vadd.f32 %v4575, %v4600
    %4602 = vmatmul.f32.gmra.mxu0 %v4581
    %v4603 = vpop.f32.mrf.mxu0
    %v4604 = vadd.f32 %v4575, %v4603
    %4605 = vdwg.mxu0
    %v4607 = vperm.slane %v3819, 0
    %v4610 = vsel %vm1143, %v3763, 0
    %v4613 = vsel %vm1143, %v3764, 0
    %4615 = vmatpush.msra.mxu0 0.0
    %4616 = vmatpush.msra.mxu0 0.0
    %4617 = vmatpush.msra.mxu0 0.0
    %4618 = vmatpush.msra.mxu0 0.0
    %4619 = vmatpush.msra.mxu0 0.0
    %4620 = vmatpush.msra.mxu0 0.0
    %4621 = vmatpush.msra.mxu0 0.0
    %4622 = vmatpush.msra.mxu0 0.0
    %4623 = vmatpush.msra.mxu0 0.0
    %4624 = vmatpush.msra.mxu0 0.0
    %4625 = vmatpush.msra.mxu0 0.0
    %4626 = vmatpush.msra.mxu0 0.0
    %4627 = vmatpush.msra.mxu0 %v3818
    %4628 = vmatpush.msra.mxu0 %v3817
    %4629 = vmatpush.msra.mxu0 %v3816
    %4630 = vmatpush.msra.mxu0 %v3815
    %4631 = vmatmul.f32.gmra.mxu0 %v4610
    %v4632 = vpop.f32.mrf.mxu0
    %v4633 = vadd.f32 %v4607, %v4632
    %4634 = vmatmul.f32.gmra.mxu0 %v4613
    %v4635 = vpop.f32.mrf.mxu0
    %v4636 = vadd.f32 %v4607, %v4635
    %4637 = vdwg.mxu0
    %v4639 = vsel %vm1176, %v4601, 0
    %v4642 = vsel %vm1176, %v4633, 0
    %4644 = vmatpush.xpose.msra.mxu0 0.0
    %4645 = vmatpush.xpose.msra.mxu0 0.0
    %4646 = vmatpush.xpose.msra.mxu0 0.0
    %4647 = vmatpush.xpose.msra.mxu0 0.0
    %4648 = vmatpush.xpose.msra.mxu0 0.0
    %4649 = vmatpush.xpose.msra.mxu0 0.0
    %4650 = vmatpush.xpose.msra.mxu0 0.0
    %4651 = vmatpush.xpose.msra.mxu0 0.0
    %4652 = vmatpush.xpose.msra.mxu0 0.0
    %4653 = vmatpush.xpose.msra.mxu0 0.0
    %4654 = vmatpush.xpose.msra.mxu0 0.0
    %4655 = vmatpush.xpose.msra.mxu0 0.0
    %4656 = vmatpush.xpose.msra.mxu0 0.0
    %4657 = vmatpush.xpose.msra.mxu0 0.0
    %4658 = vmatpush.xpose.msra.mxu0 0.0
    %4659 = vmatpush.xpose.msra.mxu0 %v4642
    %4660 = vmatmul.f32.gmra.mxu0 %v4639
    %v4661 = vpop.f32.mrf.mxu0
    %v4662 = vadd.f32 0.0, %v4661
    %4663 = vdwg.mxu0
    %v4665 = vsel %vm1176, %v4604, 0
    %v4668 = vsel %vm1176, %v4636, 0
    %4670 = vmatpush.xpose.msra.mxu0 0.0
    %4671 = vmatpush.xpose.msra.mxu0 0.0
    %4672 = vmatpush.xpose.msra.mxu0 0.0
    %4673 = vmatpush.xpose.msra.mxu0 0.0
    %4674 = vmatpush.xpose.msra.mxu0 0.0
    %4675 = vmatpush.xpose.msra.mxu0 0.0
    %4676 = vmatpush.xpose.msra.mxu0 0.0
    %4677 = vmatpush.xpose.msra.mxu0 0.0
    %4678 = vmatpush.xpose.msra.mxu0 0.0
    %4679 = vmatpush.xpose.msra.mxu0 0.0
    %4680 = vmatpush.xpose.msra.mxu0 0.0
    %4681 = vmatpush.xpose.msra.mxu0 0.0
    %4682 = vmatpush.xpose.msra.mxu0 0.0
    %4683 = vmatpush.xpose.msra.mxu0 0.0
    %4684 = vmatpush.xpose.msra.mxu0 0.0
    %4685 = vmatpush.xpose.msra.mxu0 %v4668
    %4686 = vmatmul.f32.gmra.mxu0 %v4665
    %v4687 = vpop.f32.mrf.mxu0
    %v4688 = vadd.f32 0.0, %v4687
    %4689 = vdwg.mxu0
    %v4690 = vsel %vm1176, %v4662, -inf
    %4691 = vmax.xlane.f32.xlu0 %v4690
    %v4692 = vpop.xlane.xlu0 %4691
    %v4693 = vsel %vm1176, %v4688, -inf
    %4694 = vmax.xlane.f32.xlu0 %v4693
    %v4695 = vpop.xlane.xlu0 %4694
    %v4696 = vsub.f32 %v4662, %v4692
    %v4697 = vsub.f32 %v4688, %v4695
    %v4698 = vmul.f32 %v4696, 1.442695
    %v4699 = vpow.pop %v4698
    %v4700 = vmul.f32 %v4697, 1.442695
    %v4701 = vpow.pop %v4700
    %v4702 = vsel %vm1176, %v4699, 0.0
    %4703 = vadd.xlane.f32.xlu0 %v4702
    %v4704 = vpop.xlane.xlu0 %4703
    %v4705 = vsel %vm1176, %v4701, 0.0
    %4706 = vadd.xlane.f32.xlu0 %v4705
    %v4707 = vpop.xlane.xlu0 %4706
    %v4708 = vrcp.pop %v4704
    %v4709 = vrcp.pop %v4707
    %v4710 = vmul.f32 %v4699, %v4708
    %v4711 = vmul.f32 %v4701, %v4709
    %4712 = vrot.lane.b32.xlu0 %v4633, 96
    %v4713 = vpop.permute.xlu0 %4712
    %v4716 = vsel %vm1176, %v4710, 0
    %4718 = vmatpush.msra.mxu0 0.0
    %4719 = vmatpush.msra.mxu0 0.0
    %4720 = vmatpush.msra.mxu0 0.0
    %4721 = vmatpush.msra.mxu0 0.0
    %4722 = vmatpush.msra.mxu0 0.0
    %4723 = vmatpush.msra.mxu0 0.0
    %4724 = vmatpush.msra.mxu0 0.0
    %4725 = vmatpush.msra.mxu0 0.0
    %4726 = vmatpush.msra.mxu0 0.0
    %4727 = vmatpush.msra.mxu0 0.0
    %4728 = vmatpush.msra.mxu0 0.0
    %4729 = vmatpush.msra.mxu0 0.0
    %4730 = vmatpush.msra.mxu0 0.0
    %4731 = vmatpush.msra.mxu0 0.0
    %4732 = vmatpush.msra.mxu0 0.0
    %4733 = vmatpush.msra.mxu0 %v4713
    %4734 = vmatmul.f32.gmra.mxu0 %v4716
    %v4735 = vpop.f32.mrf.mxu0
    %v4736 = vadd.f32 0.0, %v4735
    %4737 = vdwg.mxu0
    %4738 = vrot.lane.b32.xlu0 %v4636, 96
    %v4739 = vpop.permute.xlu0 %4738
    %v4742 = vsel %vm1176, %v4711, 0
    %4744 = vmatpush.msra.mxu0 0.0
    %4745 = vmatpush.msra.mxu0 0.0
    %4746 = vmatpush.msra.mxu0 0.0
    %4747 = vmatpush.msra.mxu0 0.0
    %4748 = vmatpush.msra.mxu0 0.0
    %4749 = vmatpush.msra.mxu0 0.0
    %4750 = vmatpush.msra.mxu0 0.0
    %4751 = vmatpush.msra.mxu0 0.0
    %4752 = vmatpush.msra.mxu0 0.0
    %4753 = vmatpush.msra.mxu0 0.0
    %4754 = vmatpush.msra.mxu0 0.0
    %4755 = vmatpush.msra.mxu0 0.0
    %4756 = vmatpush.msra.mxu0 0.0
    %4757 = vmatpush.msra.mxu0 0.0
    %4758 = vmatpush.msra.mxu0 0.0
    %4759 = vmatpush.msra.mxu0 %v4739
    %4760 = vmatmul.f32.gmra.mxu0 %v4742
    %v4761 = vpop.f32.mrf.mxu0
    %v4762 = vadd.f32 0.0, %v4761
    %4763 = vdwg.mxu0
    %4764 = vrot.lane.b32.xlu0 %v4601, 120
    %v4765 = vpop.permute.xlu0 %4764
    %4766 = vrot.lane.b32.xlu0 %v4633, 120
    %v4767 = vpop.permute.xlu0 %4766
    %v4768 = vsel %vm1176, %v4765, 0
    %v4770 = vsel %vm1176, %v4767, 0
    %4772 = vmatpush.xpose.msra.mxu0 0.0
    %4773 = vmatpush.xpose.msra.mxu0 0.0
    %4774 = vmatpush.xpose.msra.mxu0 0.0
    %4775 = vmatpush.xpose.msra.mxu0 0.0
    %4776 = vmatpush.xpose.msra.mxu0 0.0
    %4777 = vmatpush.xpose.msra.mxu0 0.0
    %4778 = vmatpush.xpose.msra.mxu0 0.0
    %4779 = vmatpush.xpose.msra.mxu0 0.0
    %4780 = vmatpush.xpose.msra.mxu0 0.0
    %4781 = vmatpush.xpose.msra.mxu0 0.0
    %4782 = vmatpush.xpose.msra.mxu0 0.0
    %4783 = vmatpush.xpose.msra.mxu0 0.0
    %4784 = vmatpush.xpose.msra.mxu0 0.0
    %4785 = vmatpush.xpose.msra.mxu0 0.0
    %4786 = vmatpush.xpose.msra.mxu0 0.0
    %4787 = vmatpush.xpose.msra.mxu0 %v4770
    %4788 = vmatmul.f32.gmra.mxu0 %v4768
    %v4789 = vpop.f32.mrf.mxu0
    %v4790 = vadd.f32 0.0, %v4789
    %4791 = vdwg.mxu0
    %4792 = vrot.lane.b32.xlu0 %v4604, 120
    %v4793 = vpop.permute.xlu0 %4792
    %4794 = vrot.lane.b32.xlu0 %v4636, 120
    %v4795 = vpop.permute.xlu0 %4794
    %v4796 = vsel %vm1176, %v4793, 0
    %v4798 = vsel %vm1176, %v4795, 0
    %4800 = vmatpush.xpose.msra.mxu0 0.0
    %4801 = vmatpush.xpose.msra.mxu0 0.0
    %4802 = vmatpush.xpose.msra.mxu0 0.0
    %4803 = vmatpush.xpose.msra.mxu0 0.0
    %4804 = vmatpush.xpose.msra.mxu0 0.0
    %4805 = vmatpush.xpose.msra.mxu0 0.0
    %4806 = vmatpush.xpose.msra.mxu0 0.0
    %4807 = vmatpush.xpose.msra.mxu0 0.0
    %4808 = vmatpush.xpose.msra.mxu0 0.0
    %4809 = vmatpush.xpose.msra.mxu0 0.0
    %4810 = vmatpush.xpose.msra.mxu0 0.0
    %4811 = vmatpush.xpose.msra.mxu0 0.0
    %4812 = vmatpush.xpose.msra.mxu0 0.0
    %4813 = vmatpush.xpose.msra.mxu0 0.0
    %4814 = vmatpush.xpose.msra.mxu0 0.0
    %4815 = vmatpush.xpose.msra.mxu0 %v4798
    %4816 = vmatmul.f32.gmra.mxu0 %v4796
    %v4817 = vpop.f32.mrf.mxu0
    %v4818 = vadd.f32 0.0, %v4817
    %4819 = vdwg.mxu0
    %v4820 = vsel %vm1176, %v4790, -inf
    %4821 = vmax.xlane.f32.xlu0 %v4820
    %v4822 = vpop.xlane.xlu0 %4821
    %v4823 = vsel %vm1176, %v4818, -inf
    %4824 = vmax.xlane.f32.xlu0 %v4823
    %v4825 = vpop.xlane.xlu0 %4824
    %v4826 = vsub.f32 %v4790, %v4822
    %v4827 = vsub.f32 %v4818, %v4825
    %v4828 = vmul.f32 %v4826, 1.442695
    %v4829 = vpow.pop %v4828
    %v4830 = vmul.f32 %v4827, 1.442695
    %v4831 = vpow.pop %v4830
    %v4832 = vsel %vm1176, %v4829, 0.0
    %4833 = vadd.xlane.f32.xlu0 %v4832
    %v4834 = vpop.xlane.xlu0 %4833
    %v4835 = vsel %vm1176, %v4831, 0.0
    %4836 = vadd.xlane.f32.xlu0 %v4835
    %v4837 = vpop.xlane.xlu0 %4836
    %v4838 = vrcp.pop %v4834
    %v4839 = vrcp.pop %v4837
    %v4840 = vmul.f32 %v4829, %v4838
    %v4841 = vmul.f32 %v4831, %v4839
    %4842 = vrot.lane.b32.xlu0 %v4633, 88
    %v4843 = vpop.permute.xlu0 %4842
    %v4846 = vsel %vm1176, %v4840, 0
    %4848 = vmatpush.msra.mxu0 0.0
    %4849 = vmatpush.msra.mxu0 0.0
    %4850 = vmatpush.msra.mxu0 0.0
    %4851 = vmatpush.msra.mxu0 0.0
    %4852 = vmatpush.msra.mxu0 0.0
    %4853 = vmatpush.msra.mxu0 0.0
    %4854 = vmatpush.msra.mxu0 0.0
    %4855 = vmatpush.msra.mxu0 0.0
    %4856 = vmatpush.msra.mxu0 0.0
    %4857 = vmatpush.msra.mxu0 0.0
    %4858 = vmatpush.msra.mxu0 0.0
    %4859 = vmatpush.msra.mxu0 0.0
    %4860 = vmatpush.msra.mxu0 0.0
    %4861 = vmatpush.msra.mxu0 0.0
    %4862 = vmatpush.msra.mxu0 0.0
    %4863 = vmatpush.msra.mxu0 %v4843
    %4864 = vmatmul.f32.gmra.mxu0 %v4846
    %v4865 = vpop.f32.mrf.mxu0
    %v4866 = vadd.f32 0.0, %v4865
    %4867 = vdwg.mxu0
    %4868 = vrot.lane.b32.xlu0 %v4636, 88
    %v4869 = vpop.permute.xlu0 %4868
    %v4872 = vsel %vm1176, %v4841, 0
    %4874 = vmatpush.msra.mxu0 0.0
    %4875 = vmatpush.msra.mxu0 0.0
    %4876 = vmatpush.msra.mxu0 0.0
    %4877 = vmatpush.msra.mxu0 0.0
    %4878 = vmatpush.msra.mxu0 0.0
    %4879 = vmatpush.msra.mxu0 0.0
    %4880 = vmatpush.msra.mxu0 0.0
    %4881 = vmatpush.msra.mxu0 0.0
    %4882 = vmatpush.msra.mxu0 0.0
    %4883 = vmatpush.msra.mxu0 0.0
    %4884 = vmatpush.msra.mxu0 0.0
    %4885 = vmatpush.msra.mxu0 0.0
    %4886 = vmatpush.msra.mxu0 0.0
    %4887 = vmatpush.msra.mxu0 0.0
    %4888 = vmatpush.msra.mxu0 0.0
    %4889 = vmatpush.msra.mxu0 %v4869
    %4890 = vmatmul.f32.gmra.mxu0 %v4872
    %v4891 = vpop.f32.mrf.mxu0
    %v4892 = vadd.f32 0.0, %v4891
    %4893 = vdwg.mxu0
    %v4895 = vsel %vm1176, %v4866, 0
    %v4898 = vsel %vm1176, %v4892, 0
    %4900 = vmatpush.msra.mxu0 0.0
    %4901 = vmatpush.msra.mxu0 0.0
    %4902 = vmatpush.msra.mxu0 0.0
    %4903 = vmatpush.msra.mxu0 0.0
    %4904 = vmatpush.msra.mxu0 0.0
    %4905 = vmatpush.msra.mxu0 0.0
    %4906 = vmatpush.msra.mxu0 0.0
    %4907 = vmatpush.msra.mxu0 0.0
    %4908 = vmatpush.msra.mxu0 0.0
    %4909 = vmatpush.msra.mxu0 0.0
    %4910 = vmatpush.msra.mxu0 0.0
    %4911 = vmatpush.msra.mxu0 0.0
    %4912 = vmatpush.msra.mxu0 0.0
    %4913 = vmatpush.msra.mxu0 0.0
    %4914 = vmatpush.msra.mxu0 0.0
    %4915 = vmatpush.msra.mxu0 %v3821
    %4916 = vmatmul.f32.gmra.mxu0 %v4895
    %v4917 = vpop.f32.mrf.mxu0
    %v4918 = vadd.f32 0.0, %v4917
    %4919 = vmatmul.f32.gmra.mxu0 %v4898
    %v4920 = vpop.f32.mrf.mxu0
    %v4921 = vadd.f32 0.0, %v4920
    %4922 = vdwg.mxu0
    %v4924 = vsel %vm1176, %v4736, 0
    %v4927 = vsel %vm1176, %v4762, 0
    %4929 = vmatpush.msra.mxu0 0.0
    %4930 = vmatpush.msra.mxu0 0.0
    %4931 = vmatpush.msra.mxu0 0.0
    %4932 = vmatpush.msra.mxu0 0.0
    %4933 = vmatpush.msra.mxu0 0.0
    %4934 = vmatpush.msra.mxu0 0.0
    %4935 = vmatpush.msra.mxu0 0.0
    %4936 = vmatpush.msra.mxu0 0.0
    %4937 = vmatpush.msra.mxu0 0.0
    %4938 = vmatpush.msra.mxu0 0.0
    %4939 = vmatpush.msra.mxu0 0.0
    %4940 = vmatpush.msra.mxu0 0.0
    %4941 = vmatpush.msra.mxu0 0.0
    %4942 = vmatpush.msra.mxu0 0.0
    %4943 = vmatpush.msra.mxu0 0.0
    %4944 = vmatpush.msra.mxu0 %v3820
    %4945 = vmatmul.f32.gmra.mxu0 %v4924
    %v4946 = vpop.f32.mrf.mxu0
    %v4947 = vadd.f32 %v4918, %v4946
    %4948 = vmatmul.f32.gmra.mxu0 %v4927
    %v4949 = vpop.f32.mrf.mxu0
    %v4950 = vadd.f32 %v4921, %v4949
    %4951 = vdwg.mxu0
    %4952 = vrot.lane.b32.xlu0 %v4601, 112
    %v4953 = vpop.permute.xlu0 %4952
    %4954 = vrot.lane.b32.xlu0 %v4633, 112
    %v4955 = vpop.permute.xlu0 %4954
    %v4956 = vsel %vm1176, %v4953, 0
    %v4958 = vsel %vm1176, %v4955, 0
    %4960 = vmatpush.xpose.msra.mxu0 0.0
    %4961 = vmatpush.xpose.msra.mxu0 0.0
    %4962 = vmatpush.xpose.msra.mxu0 0.0
    %4963 = vmatpush.xpose.msra.mxu0 0.0
    %4964 = vmatpush.xpose.msra.mxu0 0.0
    %4965 = vmatpush.xpose.msra.mxu0 0.0
    %4966 = vmatpush.xpose.msra.mxu0 0.0
    %4967 = vmatpush.xpose.msra.mxu0 0.0
    %4968 = vmatpush.xpose.msra.mxu0 0.0
    %4969 = vmatpush.xpose.msra.mxu0 0.0
    %4970 = vmatpush.xpose.msra.mxu0 0.0
    %4971 = vmatpush.xpose.msra.mxu0 0.0
    %4972 = vmatpush.xpose.msra.mxu0 0.0
    %4973 = vmatpush.xpose.msra.mxu0 0.0
    %4974 = vmatpush.xpose.msra.mxu0 0.0
    %4975 = vmatpush.xpose.msra.mxu0 %v4958
    %4976 = vmatmul.f32.gmra.mxu0 %v4956
    %v4977 = vpop.f32.mrf.mxu0
    %v4978 = vadd.f32 0.0, %v4977
    %4979 = vdwg.mxu0
    %4980 = vrot.lane.b32.xlu0 %v4604, 112
    %v4981 = vpop.permute.xlu0 %4980
    %4982 = vrot.lane.b32.xlu0 %v4636, 112
    %v4983 = vpop.permute.xlu0 %4982
    %v4984 = vsel %vm1176, %v4981, 0
    %v4986 = vsel %vm1176, %v4983, 0
    %4988 = vmatpush.xpose.msra.mxu0 0.0
    %4989 = vmatpush.xpose.msra.mxu0 0.0
    %4990 = vmatpush.xpose.msra.mxu0 0.0
    %4991 = vmatpush.xpose.msra.mxu0 0.0
    %4992 = vmatpush.xpose.msra.mxu0 0.0
    %4993 = vmatpush.xpose.msra.mxu0 0.0
    %4994 = vmatpush.xpose.msra.mxu0 0.0
    %4995 = vmatpush.xpose.msra.mxu0 0.0
    %4996 = vmatpush.xpose.msra.mxu0 0.0
    %4997 = vmatpush.xpose.msra.mxu0 0.0
    %4998 = vmatpush.xpose.msra.mxu0 0.0
    %4999 = vmatpush.xpose.msra.mxu0 0.0
    %5000 = vmatpush.xpose.msra.mxu0 0.0
    %5001 = vmatpush.xpose.msra.mxu0 0.0
    %5002 = vmatpush.xpose.msra.mxu0 0.0
    %5003 = vmatpush.xpose.msra.mxu0 %v4986
    %5004 = vmatmul.f32.gmra.mxu0 %v4984
    %v5005 = vpop.f32.mrf.mxu0
    %v5006 = vadd.f32 0.0, %v5005
    %5007 = vdwg.mxu0
    %v5008 = vsel %vm1176, %v4978, -inf
    %5009 = vmax.xlane.f32.xlu0 %v5008
    %v5010 = vpop.xlane.xlu0 %5009
    %v5011 = vsel %vm1176, %v5006, -inf
    %5012 = vmax.xlane.f32.xlu0 %v5011
    %v5013 = vpop.xlane.xlu0 %5012
    %v5014 = vsub.f32 %v4978, %v5010
    %v5015 = vsub.f32 %v5006, %v5013
    %v5016 = vmul.f32 %v5014, 1.442695
    %v5017 = vpow.pop %v5016
    %v5018 = vmul.f32 %v5015, 1.442695
    %v5019 = vpow.pop %v5018
    %v5020 = vsel %vm1176, %v5017, 0.0
    %5021 = vadd.xlane.f32.xlu0 %v5020
    %v5022 = vpop.xlane.xlu0 %5021
    %v5023 = vsel %vm1176, %v5019, 0.0
    %5024 = vadd.xlane.f32.xlu0 %v5023
    %v5025 = vpop.xlane.xlu0 %5024
    %v5026 = vrcp.pop %v5022
    %v5027 = vrcp.pop %v5025
    %v5028 = vmul.f32 %v5017, %v5026
    %v5029 = vmul.f32 %v5019, %v5027
    %5030 = vrot.lane.b32.xlu0 %v4633, 80
    %v5031 = vpop.permute.xlu0 %5030
    %v5034 = vsel %vm1176, %v5028, 0
    %5036 = vmatpush.msra.mxu0 0.0
    %5037 = vmatpush.msra.mxu0 0.0
    %5038 = vmatpush.msra.mxu0 0.0
    %5039 = vmatpush.msra.mxu0 0.0
    %5040 = vmatpush.msra.mxu0 0.0
    %5041 = vmatpush.msra.mxu0 0.0
    %5042 = vmatpush.msra.mxu0 0.0
    %5043 = vmatpush.msra.mxu0 0.0
    %5044 = vmatpush.msra.mxu0 0.0
    %5045 = vmatpush.msra.mxu0 0.0
    %5046 = vmatpush.msra.mxu0 0.0
    %5047 = vmatpush.msra.mxu0 0.0
    %5048 = vmatpush.msra.mxu0 0.0
    %5049 = vmatpush.msra.mxu0 0.0
    %5050 = vmatpush.msra.mxu0 0.0
    %5051 = vmatpush.msra.mxu0 %v5031
    %5052 = vmatmul.f32.gmra.mxu0 %v5034
    %v5053 = vpop.f32.mrf.mxu0
    %v5054 = vadd.f32 0.0, %v5053
    %5055 = vdwg.mxu0
    %5056 = vrot.lane.b32.xlu0 %v4636, 80
    %v5057 = vpop.permute.xlu0 %5056
    %v5060 = vsel %vm1176, %v5029, 0
    %5062 = vmatpush.msra.mxu0 0.0
    %5063 = vmatpush.msra.mxu0 0.0
    %5064 = vmatpush.msra.mxu0 0.0
    %5065 = vmatpush.msra.mxu0 0.0
    %5066 = vmatpush.msra.mxu0 0.0
    %5067 = vmatpush.msra.mxu0 0.0
    %5068 = vmatpush.msra.mxu0 0.0
    %5069 = vmatpush.msra.mxu0 0.0
    %5070 = vmatpush.msra.mxu0 0.0
    %5071 = vmatpush.msra.mxu0 0.0
    %5072 = vmatpush.msra.mxu0 0.0
    %5073 = vmatpush.msra.mxu0 0.0
    %5074 = vmatpush.msra.mxu0 0.0
    %5075 = vmatpush.msra.mxu0 0.0
    %5076 = vmatpush.msra.mxu0 0.0
    %5077 = vmatpush.msra.mxu0 %v5057
    %5078 = vmatmul.f32.gmra.mxu0 %v5060
    %v5079 = vpop.f32.mrf.mxu0
    %v5080 = vadd.f32 0.0, %v5079
    %5081 = vdwg.mxu0
    %v5083 = vsel %vm1176, %v5054, 0
    %v5086 = vsel %vm1176, %v5080, 0
    %5088 = vmatpush.msra.mxu0 0.0
    %5089 = vmatpush.msra.mxu0 0.0
    %5090 = vmatpush.msra.mxu0 0.0
    %5091 = vmatpush.msra.mxu0 0.0
    %5092 = vmatpush.msra.mxu0 0.0
    %5093 = vmatpush.msra.mxu0 0.0
    %5094 = vmatpush.msra.mxu0 0.0
    %5095 = vmatpush.msra.mxu0 0.0
    %5096 = vmatpush.msra.mxu0 0.0
    %5097 = vmatpush.msra.mxu0 0.0
    %5098 = vmatpush.msra.mxu0 0.0
    %5099 = vmatpush.msra.mxu0 0.0
    %5100 = vmatpush.msra.mxu0 0.0
    %5101 = vmatpush.msra.mxu0 0.0
    %5102 = vmatpush.msra.mxu0 0.0
    %5103 = vmatpush.msra.mxu0 %v3822
    %5104 = vmatmul.f32.gmra.mxu0 %v5083
    %v5105 = vpop.f32.mrf.mxu0
    %v5106 = vadd.f32 0.0, %v5105
    %5107 = vmatmul.f32.gmra.mxu0 %v5086
    %v5108 = vpop.f32.mrf.mxu0
    %v5109 = vadd.f32 0.0, %v5108
    %5110 = vdwg.mxu0
    %v5111 = vadd.f32 %v4947, %v5106
    %v5112 = vadd.f32 %v4950, %v5109
    %5113 = vrot.lane.b32.xlu0 %v4601, 104
    %v5114 = vpop.permute.xlu0 %5113
    %5115 = vrot.lane.b32.xlu0 %v4633, 104
    %v5116 = vpop.permute.xlu0 %5115
    %v5117 = vsel %vm1176, %v5114, 0
    %v5119 = vsel %vm1176, %v5116, 0
    %5121 = vmatpush.xpose.msra.mxu0 0.0
    %5122 = vmatpush.xpose.msra.mxu0 0.0
    %5123 = vmatpush.xpose.msra.mxu0 0.0
    %5124 = vmatpush.xpose.msra.mxu0 0.0
    %5125 = vmatpush.xpose.msra.mxu0 0.0
    %5126 = vmatpush.xpose.msra.mxu0 0.0
    %5127 = vmatpush.xpose.msra.mxu0 0.0
    %5128 = vmatpush.xpose.msra.mxu0 0.0
    %5129 = vmatpush.xpose.msra.mxu0 0.0
    %5130 = vmatpush.xpose.msra.mxu0 0.0
    %5131 = vmatpush.xpose.msra.mxu0 0.0
    %5132 = vmatpush.xpose.msra.mxu0 0.0
    %5133 = vmatpush.xpose.msra.mxu0 0.0
    %5134 = vmatpush.xpose.msra.mxu0 0.0
    %5135 = vmatpush.xpose.msra.mxu0 0.0
    %5136 = vmatpush.xpose.msra.mxu0 %v5119
    %5137 = vmatmul.f32.gmra.mxu0 %v5117
    %v5138 = vpop.f32.mrf.mxu0
    %v5139 = vadd.f32 0.0, %v5138
    %5140 = vdwg.mxu0
    %5141 = vrot.lane.b32.xlu0 %v4604, 104
    %v5142 = vpop.permute.xlu0 %5141
    %5143 = vrot.lane.b32.xlu0 %v4636, 104
    %v5144 = vpop.permute.xlu0 %5143
    %v5145 = vsel %vm1176, %v5142, 0
    %v5147 = vsel %vm1176, %v5144, 0
    %5149 = vmatpush.xpose.msra.mxu0 0.0
    %5150 = vmatpush.xpose.msra.mxu0 0.0
    %5151 = vmatpush.xpose.msra.mxu0 0.0
    %5152 = vmatpush.xpose.msra.mxu0 0.0
    %5153 = vmatpush.xpose.msra.mxu0 0.0
    %5154 = vmatpush.xpose.msra.mxu0 0.0
    %5155 = vmatpush.xpose.msra.mxu0 0.0
    %5156 = vmatpush.xpose.msra.mxu0 0.0
    %5157 = vmatpush.xpose.msra.mxu0 0.0
    %5158 = vmatpush.xpose.msra.mxu0 0.0
    %5159 = vmatpush.xpose.msra.mxu0 0.0
    %5160 = vmatpush.xpose.msra.mxu0 0.0
    %5161 = vmatpush.xpose.msra.mxu0 0.0
    %5162 = vmatpush.xpose.msra.mxu0 0.0
    %5163 = vmatpush.xpose.msra.mxu0 0.0
    %5164 = vmatpush.xpose.msra.mxu0 %v5147
    %5165 = vmatmul.f32.gmra.mxu0 %v5145
    %v5166 = vpop.f32.mrf.mxu0
    %v5167 = vadd.f32 0.0, %v5166
    %5168 = vdwg.mxu0
    %v5169 = vsel %vm1176, %v5139, -inf
    %5170 = vmax.xlane.f32.xlu0 %v5169
    %v5171 = vpop.xlane.xlu0 %5170
    %v5172 = vsel %vm1176, %v5167, -inf
    %5173 = vmax.xlane.f32.xlu0 %v5172
    %v5174 = vpop.xlane.xlu0 %5173
    %v5175 = vsub.f32 %v5139, %v5171
    %v5176 = vsub.f32 %v5167, %v5174
    %v5177 = vmul.f32 %v5175, 1.442695
    %v5178 = vpow.pop %v5177
    %v5179 = vmul.f32 %v5176, 1.442695
    %v5180 = vpow.pop %v5179
    %v5181 = vsel %vm1176, %v5178, 0.0
    %5182 = vadd.xlane.f32.xlu0 %v5181
    %v5183 = vpop.xlane.xlu0 %5182
    %v5184 = vsel %vm1176, %v5180, 0.0
    %5185 = vadd.xlane.f32.xlu0 %v5184
    %v5186 = vpop.xlane.xlu0 %5185
    %v5187 = vrcp.pop %v5183
    %v5188 = vrcp.pop %v5186
    %v5189 = vmul.f32 %v5178, %v5187
    %v5190 = vmul.f32 %v5180, %v5188
    %5191 = vrot.lane.b32.xlu0 %v4633, 72
    %v5192 = vpop.permute.xlu0 %5191
    %v5195 = vsel %vm1176, %v5189, 0
    %5197 = vmatpush.msra.mxu0 0.0
    %5198 = vmatpush.msra.mxu0 0.0
    %5199 = vmatpush.msra.mxu0 0.0
    %5200 = vmatpush.msra.mxu0 0.0
    %5201 = vmatpush.msra.mxu0 0.0
    %5202 = vmatpush.msra.mxu0 0.0
    %5203 = vmatpush.msra.mxu0 0.0
    %5204 = vmatpush.msra.mxu0 0.0
    %5205 = vmatpush.msra.mxu0 0.0
    %5206 = vmatpush.msra.mxu0 0.0
    %5207 = vmatpush.msra.mxu0 0.0
    %5208 = vmatpush.msra.mxu0 0.0
    %5209 = vmatpush.msra.mxu0 0.0
    %5210 = vmatpush.msra.mxu0 0.0
    %5211 = vmatpush.msra.mxu0 0.0
    %5212 = vmatpush.msra.mxu0 %v5192
    %5213 = vmatmul.f32.gmra.mxu0 %v5195
    %v5214 = vpop.f32.mrf.mxu0
    %v5215 = vadd.f32 0.0, %v5214
    %5216 = vdwg.mxu0
    %5217 = vrot.lane.b32.xlu0 %v4636, 72
    %v5218 = vpop.permute.xlu0 %5217
    %v5221 = vsel %vm1176, %v5190, 0
    %5223 = vmatpush.msra.mxu0 0.0
    %5224 = vmatpush.msra.mxu0 0.0
    %5225 = vmatpush.msra.mxu0 0.0
    %5226 = vmatpush.msra.mxu0 0.0
    %5227 = vmatpush.msra.mxu0 0.0
    %5228 = vmatpush.msra.mxu0 0.0
    %5229 = vmatpush.msra.mxu0 0.0
    %5230 = vmatpush.msra.mxu0 0.0
    %5231 = vmatpush.msra.mxu0 0.0
    %5232 = vmatpush.msra.mxu0 0.0
    %5233 = vmatpush.msra.mxu0 0.0
    %5234 = vmatpush.msra.mxu0 0.0
    %5235 = vmatpush.msra.mxu0 0.0
    %5236 = vmatpush.msra.mxu0 0.0
    %5237 = vmatpush.msra.mxu0 0.0
    %5238 = vmatpush.msra.mxu0 %v5218
    %5239 = vmatmul.f32.gmra.mxu0 %v5221
    %v5240 = vpop.f32.mrf.mxu0
    %v5241 = vadd.f32 0.0, %v5240
    %5242 = vdwg.mxu0
    %v5244 = vsel %vm1176, %v5215, 0
    %v5247 = vsel %vm1176, %v5241, 0
    %5249 = vmatpush.msra.mxu0 0.0
    %5250 = vmatpush.msra.mxu0 0.0
    %5251 = vmatpush.msra.mxu0 0.0
    %5252 = vmatpush.msra.mxu0 0.0
    %5253 = vmatpush.msra.mxu0 0.0
    %5254 = vmatpush.msra.mxu0 0.0
    %5255 = vmatpush.msra.mxu0 0.0
    %5256 = vmatpush.msra.mxu0 0.0
    %5257 = vmatpush.msra.mxu0 0.0
    %5258 = vmatpush.msra.mxu0 0.0
    %5259 = vmatpush.msra.mxu0 0.0
    %5260 = vmatpush.msra.mxu0 0.0
    %5261 = vmatpush.msra.mxu0 0.0
    %5262 = vmatpush.msra.mxu0 0.0
    %5263 = vmatpush.msra.mxu0 0.0
    %5264 = vmatpush.msra.mxu0 %v3823
    %5265 = vmatmul.f32.gmra.mxu0 %v5244
    %v5266 = vpop.f32.mrf.mxu0
    %v5267 = vadd.f32 0.0, %v5266
    %5268 = vmatmul.f32.gmra.mxu0 %v5247
    %v5269 = vpop.f32.mrf.mxu0
    %v5270 = vadd.f32 0.0, %v5269
    %5271 = vdwg.mxu0
    %v5272 = vadd.f32 %v5111, %v5267
    %v5273 = vadd.f32 %v5112, %v5270
    %v5275 = vperm.slane %v3824, 0
    %v5277 = vadd.f32 %v5272, %v5275
    %v5278 = vadd.f32 %v5273, %v5275
    %v5279 = vadd.f32 %v4572, %v5277
    %v5280 = vadd.f32 %v4573, %v5278
    %v5281 = vsel %vm1143, %v5279, 0.0
    %5282 = vadd.xlane.f32.xlu0 %v5281
    %v5283 = vpop.xlane.xlu0 %5282
    %v5284 = vsel %vm1143, %v5280, 0.0
    %5285 = vadd.xlane.f32.xlu0 %v5284
    %v5286 = vpop.xlane.xlu0 %5285
    %v5287 = vmul.f32 %v5283, %v1831
    %v5288 = vmul.f32 %v5286, %v1831
    %v5289 = vsub.f32 %v5279, %v5287
    %v5290 = vsub.f32 %v5280, %v5288
    %v5291 = vmul.f32 %v5289, %v5289
    %v5292 = vmul.f32 %v5290, %v5290
    %v5293 = vsel %vm1143, %v5291, 0.0
    %5294 = vadd.xlane.f32.xlu0 %v5293
    %v5295 = vpop.xlane.xlu0 %5294
    %v5296 = vsel %vm1143, %v5292, 0.0
    %5297 = vadd.xlane.f32.xlu0 %v5296
    %v5298 = vpop.xlane.xlu0 %5297
    %v5299 = vmul.f32 %v5295, %v1831
    %v5300 = vmul.f32 %v5298, %v1831
    %v5301 = vadd.f32 %v5299, 1e-05
    %v5302 = vadd.f32 %v5300, 1e-05
    %v5303 = vrsqrt.pop %v5301
    %v5304 = vmul.f32 %v5303, %v5301
    %v5305 = vmul.f32 %v5304, %v5303
    %v5306 = vmul.f32 0.5, %v5305
    %v5307 = vsub.f32 1.5, %v5306
    %v5308 = vmul.f32 %v5303, %v5307
    %vm5309 = vweird.f32 %v5301
    %vm5310 = vweird.f32 %v5303
    %vm5311 = vmor %vm5309, %vm5310
    %v5312 = vsel %vm5311, %v5303, %v5308
    %v5313 = vrsqrt.pop %v5302
    %v5314 = vmul.f32 %v5313, %v5302
    %v5315 = vmul.f32 %v5314, %v5313
    %v5316 = vmul.f32 0.5, %v5315
    %v5317 = vsub.f32 1.5, %v5316
    %v5318 = vmul.f32 %v5313, %v5317
    %vm5319 = vweird.f32 %v5302
    %vm5320 = vweird.f32 %v5313
    %vm5321 = vmor %vm5319, %vm5320
    %v5322 = vsel %vm5321, %v5313, %v5318
    %v5323 = vmul.f32 %v5289, %v5312
    %v5324 = vmul.f32 %v5290, %v5322
    %v5326 = vperm.slane %v3825, 0
    %v5328 = vmul.f32 %v5323, %v5326
    %v5329 = vmul.f32 %v5324, %v5326
    %v5331 = vperm.slane %v3826, 0
    %v5333 = vadd.f32 %v5328, %v5331
    %v5334 = vadd.f32 %v5329, %v5331
    %v5336 = vperm.slane %v3831, 0
    %v5339 = vsel %vm1143, %v5333, 0
    %v5342 = vsel %vm1143, %v5334, 0
    %5344 = vmatpush.msra.mxu0 0.0
    %5345 = vmatpush.msra.mxu0 0.0
    %5346 = vmatpush.msra.mxu0 0.0
    %5347 = vmatpush.msra.mxu0 0.0
    %5348 = vmatpush.msra.mxu0 0.0
    %5349 = vmatpush.msra.mxu0 0.0
    %5350 = vmatpush.msra.mxu0 0.0
    %5351 = vmatpush.msra.mxu0 0.0
    %5352 = vmatpush.msra.mxu0 0.0
    %5353 = vmatpush.msra.mxu0 0.0
    %5354 = vmatpush.msra.mxu0 0.0
    %5355 = vmatpush.msra.mxu0 0.0
    %5356 = vmatpush.msra.mxu0 %v3830
    %5357 = vmatpush.msra.mxu0 %v3829
    %5358 = vmatpush.msra.mxu0 %v3828
    %5359 = vmatpush.msra.mxu0 %v3827
    %5360 = vmatmul.f32.gmra.mxu0 %v5339
    %v5361 = vpop.f32.mrf.mxu0
    %v5362 = vadd.f32 %v5336, %v5361
    %5363 = vmatmul.f32.gmra.mxu0 %v5342
    %v5364 = vpop.f32.mrf.mxu0
    %v5365 = vadd.f32 %v5336, %v5364
    %5366 = vdwg.mxu0
    %v5367 = vmax.f32 %v5362, 0.0
    %v5368 = vmax.f32 %v5365, 0.0
    %v5370 = vperm.slane %v3840, 0
    %v5373 = vsel %vm1917, %v5367, 0
    %v5376 = vsel %vm1917, %v5368, 0
    %5378 = vmatpush.msra.mxu0 0.0
    %5379 = vmatpush.msra.mxu0 0.0
    %5380 = vmatpush.msra.mxu0 0.0
    %5381 = vmatpush.msra.mxu0 0.0
    %5382 = vmatpush.msra.mxu0 0.0
    %5383 = vmatpush.msra.mxu0 0.0
    %5384 = vmatpush.msra.mxu0 0.0
    %5385 = vmatpush.msra.mxu0 0.0
    %5386 = vmatpush.msra.mxu0 %v3839
    %5387 = vmatpush.msra.mxu0 %v3838
    %5388 = vmatpush.msra.mxu0 %v3837
    %5389 = vmatpush.msra.mxu0 %v3836
    %5390 = vmatpush.msra.mxu0 %v3835
    %5391 = vmatpush.msra.mxu0 %v3834
    %5392 = vmatpush.msra.mxu0 %v3833
    %5393 = vmatpush.msra.mxu0 %v3832
    %5394 = vmatmul.f32.gmra.mxu0 %v5373
    %v5395 = vpop.f32.mrf.mxu0
    %v5396 = vadd.f32 %v5370, %v5395
    %5397 = vmatmul.f32.gmra.mxu0 %v5376
    %v5398 = vpop.f32.mrf.mxu0
    %v5399 = vadd.f32 %v5370, %v5398
    %5400 = vdwg.mxu0
    %v5401 = vadd.f32 %v5333, %v5396
    %v5402 = vadd.f32 %v5334, %v5399
    %v5403 = vsel %vm1143, %v5401, 0.0
    %5404 = vadd.xlane.f32.xlu0 %v5403
    %v5405 = vpop.xlane.xlu0 %5404
    %v5406 = vsel %vm1143, %v5402, 0.0
    %5407 = vadd.xlane.f32.xlu0 %v5406
    %v5408 = vpop.xlane.xlu0 %5407
    %v5409 = vmul.f32 %v5405, %v1831
    %v5410 = vmul.f32 %v5408, %v1831
    %v5411 = vsub.f32 %v5401, %v5409
    %v5412 = vsub.f32 %v5402, %v5410
    %v5413 = vmul.f32 %v5411, %v5411
    %v5414 = vmul.f32 %v5412, %v5412
    %v5415 = vsel %vm1143, %v5413, 0.0
    %5416 = vadd.xlane.f32.xlu0 %v5415
    %v5417 = vpop.xlane.xlu0 %5416
    %v5418 = vsel %vm1143, %v5414, 0.0
    %5419 = vadd.xlane.f32.xlu0 %v5418
    %v5420 = vpop.xlane.xlu0 %5419
    %v5421 = vmul.f32 %v5417, %v1831
    %v5422 = vmul.f32 %v5420, %v1831
    %v5423 = vadd.f32 %v5421, 1e-05
    %v5424 = vadd.f32 %v5422, 1e-05
    %v5425 = vrsqrt.pop %v5423
    %v5426 = vmul.f32 %v5425, %v5423
    %v5427 = vmul.f32 %v5426, %v5425
    %v5428 = vmul.f32 0.5, %v5427
    %v5429 = vsub.f32 1.5, %v5428
    %v5430 = vmul.f32 %v5425, %v5429
    %vm5431 = vweird.f32 %v5423
    %vm5432 = vweird.f32 %v5425
    %vm5433 = vmor %vm5431, %vm5432
    %v5434 = vsel %vm5433, %v5425, %v5430
    %v5435 = vrsqrt.pop %v5424
    %v5436 = vmul.f32 %v5435, %v5424
    %v5437 = vmul.f32 %v5436, %v5435
    %v5438 = vmul.f32 0.5, %v5437
    %v5439 = vsub.f32 1.5, %v5438
    %v5440 = vmul.f32 %v5435, %v5439
    %vm5441 = vweird.f32 %v5424
    %vm5442 = vweird.f32 %v5435
    %vm5443 = vmor %vm5441, %vm5442
    %v5444 = vsel %vm5443, %v5435, %v5440
    %v5445 = vmul.f32 %v5411, %v5434
    %v5446 = vmul.f32 %v5412, %v5444
    %v5448 = vperm.slane %v3841, 0
    %v5450 = vmul.f32 %v5445, %v5448
    %v5451 = vmul.f32 %v5446, %v5448
    %v5453 = vperm.slane %v3842, 0
    %v5455 = vadd.f32 %v5450, %v5453
    %v5456 = vadd.f32 %v5451, %v5453
    %v5457 = vld [vmem:[%s121] sm:$0xff]
    %v5458 = vld [vmem:[%s121 + $0x8] sm:$0xff]
    %v5459 = vld [vmem:[%s121 + $0x10] sm:$0xff]
    %v5460 = vld [vmem:[%s121 + $0x18] sm:$0xff]
    %v5461 = vld [vmem:[#allocation48] sm:$0x1]
    %v5462 = vld [vmem:[%s125] sm:$0xff]
    %v5463 = vld [vmem:[%s125 + $0x8] sm:$0xff]
    %v5464 = vld [vmem:[%s125 + $0x10] sm:$0xff]
    %v5465 = vld [vmem:[%s125 + $0x18] sm:$0xff]
    %v5466 = vld [vmem:[#allocation49] sm:$0x1]
    %v5467 = vld [vmem:[#allocation51] sm:$0x1]
    %v5468 = vld [vmem:[#allocation52] sm:$0x1]
    %v5469 = vld [vmem:[%s133] sm:$0xff]
    %v5470 = vld [vmem:[%s133 + $0x8] sm:$0xff]
    %v5471 = vld [vmem:[%s133 + $0x10] sm:$0xff]
    %v5472 = vld [vmem:[%s133 + $0x18] sm:$0xff]
    %v5473 = vld [vmem:[#allocation54] sm:$0x1]
    %v5474 = vld [vmem:[%s137] sm:$0xff]
    %v5475 = vld [vmem:[%s137 + $0x8] sm:$0xff]
    %v5476 = vld [vmem:[%s137 + $0x10] sm:$0xff]
    %v5477 = vld [vmem:[%s137 + $0x18] sm:$0xff]
    %v5478 = vld [vmem:[#allocation55] sm:$0x1]
    %v5479 = vld [vmem:[%s141] sm:$0xff]
    %v5480 = vld [vmem:[%s141 + $0x8] sm:$0xff]
    %v5481 = vld [vmem:[%s141 + $0x10] sm:$0xff]
    %v5482 = vld [vmem:[%s141 + $0x18] sm:$0xff]
    %v5483 = vld [vmem:[#allocation57] sm:$0x1]
    %v5484 = vld [vmem:[#allocation58] sm:$0x1]
    %v5485 = vld [vmem:[#allocation60] sm:$0x1]
    %v5486 = vld [vmem:[%s149] sm:$0xff]
    %v5487 = vld [vmem:[%s149 + $0x8] sm:$0xff]
    %v5488 = vld [vmem:[%s149 + $0x10] sm:$0xff]
    %v5489 = vld [vmem:[%s149 + $0x18] sm:$0xff]
    %v5490 = vld [vmem:[#allocation61] sm:$0x1]
    %v5491 = vld [vmem:[%s153] sm:$0xff]
    %v5492 = vld [vmem:[%s153 + $0x8] sm:$0xff]
    %v5493 = vld [vmem:[%s153 + $0x10] sm:$0xff]
    %v5494 = vld [vmem:[%s153 + $0x18] sm:$0xff]
    %v5495 = vld [vmem:[%s153 + $0x20] sm:$0xff]
    %v5496 = vld [vmem:[%s153 + $0x28] sm:$0xff]
    %v5497 = vld [vmem:[%s153 + $0x30] sm:$0xff]
    %v5498 = vld [vmem:[%s153 + $0x38] sm:$0xff]
    %v5499 = vld [vmem:[#allocation63] sm:$0x1]
    %v5500 = vld [vmem:[#allocation64] sm:$0x1]
    %v5501 = vld [vmem:[#allocation66] sm:$0x1]
    %v5503 = vperm.slane %v5461, 0
    %v5506 = vsel %vm1143, %v5455, 0
    %v5509 = vsel %vm1143, %v5456, 0
    %5511 = vmatpush.msra.mxu0 0.0
    %5512 = vmatpush.msra.mxu0 0.0
    %5513 = vmatpush.msra.mxu0 0.0
    %5514 = vmatpush.msra.mxu0 0.0
    %5515 = vmatpush.msra.mxu0 0.0
    %5516 = vmatpush.msra.mxu0 0.0
    %5517 = vmatpush.msra.mxu0 0.0
    %5518 = vmatpush.msra.mxu0 0.0
    %5519 = vmatpush.msra.mxu0 0.0
    %5520 = vmatpush.msra.mxu0 0.0
    %5521 = vmatpush.msra.mxu0 0.0
    %5522 = vmatpush.msra.mxu0 0.0
    %5523 = vmatpush.msra.mxu0 %v5460
    %5524 = vmatpush.msra.mxu0 %v5459
    %5525 = vmatpush.msra.mxu0 %v5458
    %5526 = vmatpush.msra.mxu0 %v5457
    %5527 = vmatmul.f32.gmra.mxu0 %v5506
    %v5528 = vpop.f32.mrf.mxu0
    %v5529 = vadd.f32 %v5503, %v5528
    %5530 = vmatmul.f32.gmra.mxu0 %v5509
    %v5531 = vpop.f32.mrf.mxu0
    %v5532 = vadd.f32 %v5503, %v5531
    %5533 = vdwg.mxu0
    %5535 = vrot.lane.b32.xlu0 %v5529, 96
    %v5536 = vpop.permute.xlu0 %5535
    %v5537 = vsel %vm1176, %v5529, 0
    %v5539 = vsel %vm1176, %v5536, 0
    %5541 = vmatpush.xpose.msra.mxu0 0.0
    %5542 = vmatpush.xpose.msra.mxu0 0.0
    %5543 = vmatpush.xpose.msra.mxu0 0.0
    %5544 = vmatpush.xpose.msra.mxu0 0.0
    %5545 = vmatpush.xpose.msra.mxu0 0.0
    %5546 = vmatpush.xpose.msra.mxu0 0.0
    %5547 = vmatpush.xpose.msra.mxu0 0.0
    %5548 = vmatpush.xpose.msra.mxu0 0.0
    %5549 = vmatpush.xpose.msra.mxu0 0.0
    %5550 = vmatpush.xpose.msra.mxu0 0.0
    %5551 = vmatpush.xpose.msra.mxu0 0.0
    %5552 = vmatpush.xpose.msra.mxu0 0.0
    %5553 = vmatpush.xpose.msra.mxu0 0.0
    %5554 = vmatpush.xpose.msra.mxu0 0.0
    %5555 = vmatpush.xpose.msra.mxu0 0.0
    %5556 = vmatpush.xpose.msra.mxu0 %v5539
    %5557 = vmatmul.f32.gmra.mxu0 %v5537
    %v5558 = vpop.f32.mrf.mxu0
    %v5559 = vadd.f32 0.0, %v5558
    %5560 = vdwg.mxu0
    %5562 = vrot.lane.b32.xlu0 %v5532, 96
    %v5563 = vpop.permute.xlu0 %5562
    %v5564 = vsel %vm1176, %v5532, 0
    %v5566 = vsel %vm1176, %v5563, 0
    %5568 = vmatpush.xpose.msra.mxu0 0.0
    %5569 = vmatpush.xpose.msra.mxu0 0.0
    %5570 = vmatpush.xpose.msra.mxu0 0.0
    %5571 = vmatpush.xpose.msra.mxu0 0.0
    %5572 = vmatpush.xpose.msra.mxu0 0.0
    %5573 = vmatpush.xpose.msra.mxu0 0.0
    %5574 = vmatpush.xpose.msra.mxu0 0.0
    %5575 = vmatpush.xpose.msra.mxu0 0.0
    %5576 = vmatpush.xpose.msra.mxu0 0.0
    %5577 = vmatpush.xpose.msra.mxu0 0.0
    %5578 = vmatpush.xpose.msra.mxu0 0.0
    %5579 = vmatpush.xpose.msra.mxu0 0.0
    %5580 = vmatpush.xpose.msra.mxu0 0.0
    %5581 = vmatpush.xpose.msra.mxu0 0.0
    %5582 = vmatpush.xpose.msra.mxu0 0.0
    %5583 = vmatpush.xpose.msra.mxu0 %v5566
    %5584 = vmatmul.f32.gmra.mxu0 %v5564
    %v5585 = vpop.f32.mrf.mxu0
    %v5586 = vadd.f32 0.0, %v5585
    %5587 = vdwg.mxu0
    %v5588 = vsel %vm1176, %v5559, -inf
    %5589 = vmax.xlane.f32.xlu0 %v5588
    %v5590 = vpop.xlane.xlu0 %5589
    %v5591 = vsel %vm1176, %v5586, -inf
    %5592 = vmax.xlane.f32.xlu0 %v5591
    %v5593 = vpop.xlane.xlu0 %5592
    %v5594 = vsub.f32 %v5559, %v5590
    %v5595 = vsub.f32 %v5586, %v5593
    %v5596 = vmul.f32 %v5594, 1.442695
    %v5597 = vpow.pop %v5596
    %v5598 = vmul.f32 %v5595, 1.442695
    %v5599 = vpow.pop %v5598
    %v5600 = vsel %vm1176, %v5597, 0.0
    %5601 = vadd.xlane.f32.xlu0 %v5600
    %v5602 = vpop.xlane.xlu0 %5601
    %v5603 = vsel %vm1176, %v5599, 0.0
    %5604 = vadd.xlane.f32.xlu0 %v5603
    %v5605 = vpop.xlane.xlu0 %5604
    %v5606 = vrcp.pop %v5602
    %v5607 = vrcp.pop %v5605
    %v5608 = vmul.f32 %v5597, %v5606
    %v5609 = vmul.f32 %v5599, %v5607
    %5610 = vrot.lane.b32.xlu0 %v5529, 64
    %v5611 = vpop.permute.xlu0 %5610
    %v5614 = vsel %vm1176, %v5608, 0
    %5616 = vmatpush.msra.mxu0 0.0
    %5617 = vmatpush.msra.mxu0 0.0
    %5618 = vmatpush.msra.mxu0 0.0
    %5619 = vmatpush.msra.mxu0 0.0
    %5620 = vmatpush.msra.mxu0 0.0
    %5621 = vmatpush.msra.mxu0 0.0
    %5622 = vmatpush.msra.mxu0 0.0
    %5623 = vmatpush.msra.mxu0 0.0
    %5624 = vmatpush.msra.mxu0 0.0
    %5625 = vmatpush.msra.mxu0 0.0
    %5626 = vmatpush.msra.mxu0 0.0
    %5627 = vmatpush.msra.mxu0 0.0
    %5628 = vmatpush.msra.mxu0 0.0
    %5629 = vmatpush.msra.mxu0 0.0
    %5630 = vmatpush.msra.mxu0 0.0
    %5631 = vmatpush.msra.mxu0 %v5611
    %5632 = vmatmul.f32.gmra.mxu0 %v5614
    %v5633 = vpop.f32.mrf.mxu0
    %v5634 = vadd.f32 0.0, %v5633
    %5635 = vdwg.mxu0
    %5636 = vrot.lane.b32.xlu0 %v5532, 64
    %v5637 = vpop.permute.xlu0 %5636
    %v5640 = vsel %vm1176, %v5609, 0
    %5642 = vmatpush.msra.mxu0 0.0
    %5643 = vmatpush.msra.mxu0 0.0
    %5644 = vmatpush.msra.mxu0 0.0
    %5645 = vmatpush.msra.mxu0 0.0
    %5646 = vmatpush.msra.mxu0 0.0
    %5647 = vmatpush.msra.mxu0 0.0
    %5648 = vmatpush.msra.mxu0 0.0
    %5649 = vmatpush.msra.mxu0 0.0
    %5650 = vmatpush.msra.mxu0 0.0
    %5651 = vmatpush.msra.mxu0 0.0
    %5652 = vmatpush.msra.mxu0 0.0
    %5653 = vmatpush.msra.mxu0 0.0
    %5654 = vmatpush.msra.mxu0 0.0
    %5655 = vmatpush.msra.mxu0 0.0
    %5656 = vmatpush.msra.mxu0 0.0
    %5657 = vmatpush.msra.mxu0 %v5637
    %5658 = vmatmul.f32.gmra.mxu0 %v5640
    %v5659 = vpop.f32.mrf.mxu0
    %v5660 = vadd.f32 0.0, %v5659
    %5661 = vdwg.mxu0
    %5662 = vrot.lane.b32.xlu0 %v5529, 120
    %v5663 = vpop.permute.xlu0 %5662
    %5664 = vrot.lane.b32.xlu0 %v5529, 88
    %v5665 = vpop.permute.xlu0 %5664
    %v5666 = vsel %vm1176, %v5663, 0
    %v5668 = vsel %vm1176, %v5665, 0
    %5670 = vmatpush.xpose.msra.mxu0 0.0
    %5671 = vmatpush.xpose.msra.mxu0 0.0
    %5672 = vmatpush.xpose.msra.mxu0 0.0
    %5673 = vmatpush.xpose.msra.mxu0 0.0
    %5674 = vmatpush.xpose.msra.mxu0 0.0
    %5675 = vmatpush.xpose.msra.mxu0 0.0
    %5676 = vmatpush.xpose.msra.mxu0 0.0
    %5677 = vmatpush.xpose.msra.mxu0 0.0
    %5678 = vmatpush.xpose.msra.mxu0 0.0
    %5679 = vmatpush.xpose.msra.mxu0 0.0
    %5680 = vmatpush.xpose.msra.mxu0 0.0
    %5681 = vmatpush.xpose.msra.mxu0 0.0
    %5682 = vmatpush.xpose.msra.mxu0 0.0
    %5683 = vmatpush.xpose.msra.mxu0 0.0
    %5684 = vmatpush.xpose.msra.mxu0 0.0
    %5685 = vmatpush.xpose.msra.mxu0 %v5668
    %5686 = vmatmul.f32.gmra.mxu0 %v5666
    %v5687 = vpop.f32.mrf.mxu0
    %v5688 = vadd.f32 0.0, %v5687
    %5689 = vdwg.mxu0
    %5690 = vrot.lane.b32.xlu0 %v5532, 120
    %v5691 = vpop.permute.xlu0 %5690
    %5692 = vrot.lane.b32.xlu0 %v5532, 88
    %v5693 = vpop.permute.xlu0 %5692
    %v5694 = vsel %vm1176, %v5691, 0
    %v5696 = vsel %vm1176, %v5693, 0
    %5698 = vmatpush.xpose.msra.mxu0 0.0
    %5699 = vmatpush.xpose.msra.mxu0 0.0
    %5700 = vmatpush.xpose.msra.mxu0 0.0
    %5701 = vmatpush.xpose.msra.mxu0 0.0
    %5702 = vmatpush.xpose.msra.mxu0 0.0
    %5703 = vmatpush.xpose.msra.mxu0 0.0
    %5704 = vmatpush.xpose.msra.mxu0 0.0
    %5705 = vmatpush.xpose.msra.mxu0 0.0
    %5706 = vmatpush.xpose.msra.mxu0 0.0
    %5707 = vmatpush.xpose.msra.mxu0 0.0
    %5708 = vmatpush.xpose.msra.mxu0 0.0
    %5709 = vmatpush.xpose.msra.mxu0 0.0
    %5710 = vmatpush.xpose.msra.mxu0 0.0
    %5711 = vmatpush.xpose.msra.mxu0 0.0
    %5712 = vmatpush.xpose.msra.mxu0 0.0
    %5713 = vmatpush.xpose.msra.mxu0 %v5696
    %5714 = vmatmul.f32.gmra.mxu0 %v5694
    %v5715 = vpop.f32.mrf.mxu0
    %v5716 = vadd.f32 0.0, %v5715
    %5717 = vdwg.mxu0
    %v5718 = vsel %vm1176, %v5688, -inf
    %5719 = vmax.xlane.f32.xlu0 %v5718
    %v5720 = vpop.xlane.xlu0 %5719
    %v5721 = vsel %vm1176, %v5716, -inf
    %5722 = vmax.xlane.f32.xlu0 %v5721
    %v5723 = vpop.xlane.xlu0 %5722
    %v5724 = vsub.f32 %v5688, %v5720
    %v5725 = vsub.f32 %v5716, %v5723
    %v5726 = vmul.f32 %v5724, 1.442695
    %v5727 = vpow.pop %v5726
    %v5728 = vmul.f32 %v5725, 1.442695
    %v5729 = vpow.pop %v5728
    %v5730 = vsel %vm1176, %v5727, 0.0
    %5731 = vadd.xlane.f32.xlu0 %v5730
    %v5732 = vpop.xlane.xlu0 %5731
    %v5733 = vsel %vm1176, %v5729, 0.0
    %5734 = vadd.xlane.f32.xlu0 %v5733
    %v5735 = vpop.xlane.xlu0 %5734
    %v5736 = vrcp.pop %v5732
    %v5737 = vrcp.pop %v5735
    %v5738 = vmul.f32 %v5727, %v5736
    %v5739 = vmul.f32 %v5729, %v5737
    %5740 = vrot.lane.b32.xlu0 %v5529, 56
    %v5741 = vpop.permute.xlu0 %5740
    %v5744 = vsel %vm1176, %v5738, 0
    %5746 = vmatpush.msra.mxu0 0.0
    %5747 = vmatpush.msra.mxu0 0.0
    %5748 = vmatpush.msra.mxu0 0.0
    %5749 = vmatpush.msra.mxu0 0.0
    %5750 = vmatpush.msra.mxu0 0.0
    %5751 = vmatpush.msra.mxu0 0.0
    %5752 = vmatpush.msra.mxu0 0.0
    %5753 = vmatpush.msra.mxu0 0.0
    %5754 = vmatpush.msra.mxu0 0.0
    %5755 = vmatpush.msra.mxu0 0.0
    %5756 = vmatpush.msra.mxu0 0.0
    %5757 = vmatpush.msra.mxu0 0.0
    %5758 = vmatpush.msra.mxu0 0.0
    %5759 = vmatpush.msra.mxu0 0.0
    %5760 = vmatpush.msra.mxu0 0.0
    %5761 = vmatpush.msra.mxu0 %v5741
    %5762 = vmatmul.f32.gmra.mxu0 %v5744
    %v5763 = vpop.f32.mrf.mxu0
    %v5764 = vadd.f32 0.0, %v5763
    %5765 = vdwg.mxu0
    %5766 = vrot.lane.b32.xlu0 %v5532, 56
    %v5767 = vpop.permute.xlu0 %5766
    %v5770 = vsel %vm1176, %v5739, 0
    %5772 = vmatpush.msra.mxu0 0.0
    %5773 = vmatpush.msra.mxu0 0.0
    %5774 = vmatpush.msra.mxu0 0.0
    %5775 = vmatpush.msra.mxu0 0.0
    %5776 = vmatpush.msra.mxu0 0.0
    %5777 = vmatpush.msra.mxu0 0.0
    %5778 = vmatpush.msra.mxu0 0.0
    %5779 = vmatpush.msra.mxu0 0.0
    %5780 = vmatpush.msra.mxu0 0.0
    %5781 = vmatpush.msra.mxu0 0.0
    %5782 = vmatpush.msra.mxu0 0.0
    %5783 = vmatpush.msra.mxu0 0.0
    %5784 = vmatpush.msra.mxu0 0.0
    %5785 = vmatpush.msra.mxu0 0.0
    %5786 = vmatpush.msra.mxu0 0.0
    %5787 = vmatpush.msra.mxu0 %v5767
    %5788 = vmatmul.f32.gmra.mxu0 %v5770
    %v5789 = vpop.f32.mrf.mxu0
    %v5790 = vadd.f32 0.0, %v5789
    %5791 = vdwg.mxu0
    %v5793 = vsel %vm1176, %v5764, 0
    %v5796 = vsel %vm1176, %v5790, 0
    %5798 = vmatpush.msra.mxu0 0.0
    %5799 = vmatpush.msra.mxu0 0.0
    %5800 = vmatpush.msra.mxu0 0.0
    %5801 = vmatpush.msra.mxu0 0.0
    %5802 = vmatpush.msra.mxu0 0.0
    %5803 = vmatpush.msra.mxu0 0.0
    %5804 = vmatpush.msra.mxu0 0.0
    %5805 = vmatpush.msra.mxu0 0.0
    %5806 = vmatpush.msra.mxu0 0.0
    %5807 = vmatpush.msra.mxu0 0.0
    %5808 = vmatpush.msra.mxu0 0.0
    %5809 = vmatpush.msra.mxu0 0.0
    %5810 = vmatpush.msra.mxu0 0.0
    %5811 = vmatpush.msra.mxu0 0.0
    %5812 = vmatpush.msra.mxu0 0.0
    %5813 = vmatpush.msra.mxu0 %v5463
    %5814 = vmatmul.f32.gmra.mxu0 %v5793
    %v5815 = vpop.f32.mrf.mxu0
    %v5816 = vadd.f32 0.0, %v5815
    %5817 = vmatmul.f32.gmra.mxu0 %v5796
    %v5818 = vpop.f32.mrf.mxu0
    %v5819 = vadd.f32 0.0, %v5818
    %5820 = vdwg.mxu0
    %v5822 = vsel %vm1176, %v5634, 0
    %v5825 = vsel %vm1176, %v5660, 0
    %5827 = vmatpush.msra.mxu0 0.0
    %5828 = vmatpush.msra.mxu0 0.0
    %5829 = vmatpush.msra.mxu0 0.0
    %5830 = vmatpush.msra.mxu0 0.0
    %5831 = vmatpush.msra.mxu0 0.0
    %5832 = vmatpush.msra.mxu0 0.0
    %5833 = vmatpush.msra.mxu0 0.0
    %5834 = vmatpush.msra.mxu0 0.0
    %5835 = vmatpush.msra.mxu0 0.0
    %5836 = vmatpush.msra.mxu0 0.0
    %5837 = vmatpush.msra.mxu0 0.0
    %5838 = vmatpush.msra.mxu0 0.0
    %5839 = vmatpush.msra.mxu0 0.0
    %5840 = vmatpush.msra.mxu0 0.0
    %5841 = vmatpush.msra.mxu0 0.0
    %5842 = vmatpush.msra.mxu0 %v5462
    %5843 = vmatmul.f32.gmra.mxu0 %v5822
    %v5844 = vpop.f32.mrf.mxu0
    %v5845 = vadd.f32 %v5816, %v5844
    %5846 = vmatmul.f32.gmra.mxu0 %v5825
    %v5847 = vpop.f32.mrf.mxu0
    %v5848 = vadd.f32 %v5819, %v5847
    %5849 = vdwg.mxu0
    %5850 = vrot.lane.b32.xlu0 %v5529, 112
    %v5851 = vpop.permute.xlu0 %5850
    %5852 = vrot.lane.b32.xlu0 %v5529, 80
    %v5853 = vpop.permute.xlu0 %5852
    %v5854 = vsel %vm1176, %v5851, 0
    %v5856 = vsel %vm1176, %v5853, 0
    %5858 = vmatpush.xpose.msra.mxu0 0.0
    %5859 = vmatpush.xpose.msra.mxu0 0.0
    %5860 = vmatpush.xpose.msra.mxu0 0.0
    %5861 = vmatpush.xpose.msra.mxu0 0.0
    %5862 = vmatpush.xpose.msra.mxu0 0.0
    %5863 = vmatpush.xpose.msra.mxu0 0.0
    %5864 = vmatpush.xpose.msra.mxu0 0.0
    %5865 = vmatpush.xpose.msra.mxu0 0.0
    %5866 = vmatpush.xpose.msra.mxu0 0.0
    %5867 = vmatpush.xpose.msra.mxu0 0.0
    %5868 = vmatpush.xpose.msra.mxu0 0.0
    %5869 = vmatpush.xpose.msra.mxu0 0.0
    %5870 = vmatpush.xpose.msra.mxu0 0.0
    %5871 = vmatpush.xpose.msra.mxu0 0.0
    %5872 = vmatpush.xpose.msra.mxu0 0.0
    %5873 = vmatpush.xpose.msra.mxu0 %v5856
    %5874 = vmatmul.f32.gmra.mxu0 %v5854
    %v5875 = vpop.f32.mrf.mxu0
    %v5876 = vadd.f32 0.0, %v5875
    %5877 = vdwg.mxu0
    %5878 = vrot.lane.b32.xlu0 %v5532, 112
    %v5879 = vpop.permute.xlu0 %5878
    %5880 = vrot.lane.b32.xlu0 %v5532, 80
    %v5881 = vpop.permute.xlu0 %5880
    %v5882 = vsel %vm1176, %v5879, 0
    %v5884 = vsel %vm1176, %v5881, 0
    %5886 = vmatpush.xpose.msra.mxu0 0.0
    %5887 = vmatpush.xpose.msra.mxu0 0.0
    %5888 = vmatpush.xpose.msra.mxu0 0.0
    %5889 = vmatpush.xpose.msra.mxu0 0.0
    %5890 = vmatpush.xpose.msra.mxu0 0.0
    %5891 = vmatpush.xpose.msra.mxu0 0.0
    %5892 = vmatpush.xpose.msra.mxu0 0.0
    %5893 = vmatpush.xpose.msra.mxu0 0.0
    %5894 = vmatpush.xpose.msra.mxu0 0.0
    %5895 = vmatpush.xpose.msra.mxu0 0.0
    %5896 = vmatpush.xpose.msra.mxu0 0.0
    %5897 = vmatpush.xpose.msra.mxu0 0.0
    %5898 = vmatpush.xpose.msra.mxu0 0.0
    %5899 = vmatpush.xpose.msra.mxu0 0.0
    %5900 = vmatpush.xpose.msra.mxu0 0.0
    %5901 = vmatpush.xpose.msra.mxu0 %v5884
    %5902 = vmatmul.f32.gmra.mxu0 %v5882
    %v5903 = vpop.f32.mrf.mxu0
    %v5904 = vadd.f32 0.0, %v5903
    %5905 = vdwg.mxu0
    %v5906 = vsel %vm1176, %v5876, -inf
    %5907 = vmax.xlane.f32.xlu0 %v5906
    %v5908 = vpop.xlane.xlu0 %5907
    %v5909 = vsel %vm1176, %v5904, -inf
    %5910 = vmax.xlane.f32.xlu0 %v5909
    %v5911 = vpop.xlane.xlu0 %5910
    %v5912 = vsub.f32 %v5876, %v5908
    %v5913 = vsub.f32 %v5904, %v5911
    %v5914 = vmul.f32 %v5912, 1.442695
    %v5915 = vpow.pop %v5914
    %v5916 = vmul.f32 %v5913, 1.442695
    %v5917 = vpow.pop %v5916
    %v5918 = vsel %vm1176, %v5915, 0.0
    %5919 = vadd.xlane.f32.xlu0 %v5918
    %v5920 = vpop.xlane.xlu0 %5919
    %v5921 = vsel %vm1176, %v5917, 0.0
    %5922 = vadd.xlane.f32.xlu0 %v5921
    %v5923 = vpop.xlane.xlu0 %5922
    %v5924 = vrcp.pop %v5920
    %v5925 = vrcp.pop %v5923
    %v5926 = vmul.f32 %v5915, %v5924
    %v5927 = vmul.f32 %v5917, %v5925
    %5928 = vrot.lane.b32.xlu0 %v5529, 48
    %v5929 = vpop.permute.xlu0 %5928
    %v5932 = vsel %vm1176, %v5926, 0
    %5934 = vmatpush.msra.mxu0 0.0
    %5935 = vmatpush.msra.mxu0 0.0
    %5936 = vmatpush.msra.mxu0 0.0
    %5937 = vmatpush.msra.mxu0 0.0
    %5938 = vmatpush.msra.mxu0 0.0
    %5939 = vmatpush.msra.mxu0 0.0
    %5940 = vmatpush.msra.mxu0 0.0
    %5941 = vmatpush.msra.mxu0 0.0
    %5942 = vmatpush.msra.mxu0 0.0
    %5943 = vmatpush.msra.mxu0 0.0
    %5944 = vmatpush.msra.mxu0 0.0
    %5945 = vmatpush.msra.mxu0 0.0
    %5946 = vmatpush.msra.mxu0 0.0
    %5947 = vmatpush.msra.mxu0 0.0
    %5948 = vmatpush.msra.mxu0 0.0
    %5949 = vmatpush.msra.mxu0 %v5929
    %5950 = vmatmul.f32.gmra.mxu0 %v5932
    %v5951 = vpop.f32.mrf.mxu0
    %v5952 = vadd.f32 0.0, %v5951
    %5953 = vdwg.mxu0
    %5954 = vrot.lane.b32.xlu0 %v5532, 48
    %v5955 = vpop.permute.xlu0 %5954
    %v5958 = vsel %vm1176, %v5927, 0
    %5960 = vmatpush.msra.mxu0 0.0
    %5961 = vmatpush.msra.mxu0 0.0
    %5962 = vmatpush.msra.mxu0 0.0
    %5963 = vmatpush.msra.mxu0 0.0
    %5964 = vmatpush.msra.mxu0 0.0
    %5965 = vmatpush.msra.mxu0 0.0
    %5966 = vmatpush.msra.mxu0 0.0
    %5967 = vmatpush.msra.mxu0 0.0
    %5968 = vmatpush.msra.mxu0 0.0
    %5969 = vmatpush.msra.mxu0 0.0
    %5970 = vmatpush.msra.mxu0 0.0
    %5971 = vmatpush.msra.mxu0 0.0
    %5972 = vmatpush.msra.mxu0 0.0
    %5973 = vmatpush.msra.mxu0 0.0
    %5974 = vmatpush.msra.mxu0 0.0
    %5975 = vmatpush.msra.mxu0 %v5955
    %5976 = vmatmul.f32.gmra.mxu0 %v5958
    %v5977 = vpop.f32.mrf.mxu0
    %v5978 = vadd.f32 0.0, %v5977
    %5979 = vdwg.mxu0
    %v5981 = vsel %vm1176, %v5952, 0
    %v5984 = vsel %vm1176, %v5978, 0
    %5986 = vmatpush.msra.mxu0 0.0
    %5987 = vmatpush.msra.mxu0 0.0
    %5988 = vmatpush.msra.mxu0 0.0
    %5989 = vmatpush.msra.mxu0 0.0
    %5990 = vmatpush.msra.mxu0 0.0
    %5991 = vmatpush.msra.mxu0 0.0
    %5992 = vmatpush.msra.mxu0 0.0
    %5993 = vmatpush.msra.mxu0 0.0
    %5994 = vmatpush.msra.mxu0 0.0
    %5995 = vmatpush.msra.mxu0 0.0
    %5996 = vmatpush.msra.mxu0 0.0
    %5997 = vmatpush.msra.mxu0 0.0
    %5998 = vmatpush.msra.mxu0 0.0
    %5999 = vmatpush.msra.mxu0 0.0
    %6000 = vmatpush.msra.mxu0 0.0
    %6001 = vmatpush.msra.mxu0 %v5464
    %6002 = vmatmul.f32.gmra.mxu0 %v5981
    %v6003 = vpop.f32.mrf.mxu0
    %v6004 = vadd.f32 0.0, %v6003
    %6005 = vmatmul.f32.gmra.mxu0 %v5984
    %v6006 = vpop.f32.mrf.mxu0
    %v6007 = vadd.f32 0.0, %v6006
    %6008 = vdwg.mxu0
    %v6009 = vadd.f32 %v5845, %v6004
    %v6010 = vadd.f32 %v5848, %v6007
    %6011 = vrot.lane.b32.xlu0 %v5529, 104
    %v6012 = vpop.permute.xlu0 %6011
    %6013 = vrot.lane.b32.xlu0 %v5529, 72
    %v6014 = vpop.permute.xlu0 %6013
    %v6015 = vsel %vm1176, %v6012, 0
    %v6017 = vsel %vm1176, %v6014, 0
    %6019 = vmatpush.xpose.msra.mxu0 0.0
    %6020 = vmatpush.xpose.msra.mxu0 0.0
    %6021 = vmatpush.xpose.msra.mxu0 0.0
    %6022 = vmatpush.xpose.msra.mxu0 0.0
    %6023 = vmatpush.xpose.msra.mxu0 0.0
    %6024 = vmatpush.xpose.msra.mxu0 0.0
    %6025 = vmatpush.xpose.msra.mxu0 0.0
    %6026 = vmatpush.xpose.msra.mxu0 0.0
    %6027 = vmatpush.xpose.msra.mxu0 0.0
    %6028 = vmatpush.xpose.msra.mxu0 0.0
    %6029 = vmatpush.xpose.msra.mxu0 0.0
    %6030 = vmatpush.xpose.msra.mxu0 0.0
    %6031 = vmatpush.xpose.msra.mxu0 0.0
    %6032 = vmatpush.xpose.msra.mxu0 0.0
    %6033 = vmatpush.xpose.msra.mxu0 0.0
    %6034 = vmatpush.xpose.msra.mxu0 %v6017
    %6035 = vmatmul.f32.gmra.mxu0 %v6015
    %v6036 = vpop.f32.mrf.mxu0
    %v6037 = vadd.f32 0.0, %v6036
    %6038 = vdwg.mxu0
    %6039 = vrot.lane.b32.xlu0 %v5532, 104
    %v6040 = vpop.permute.xlu0 %6039
    %6041 = vrot.lane.b32.xlu0 %v5532, 72
    %v6042 = vpop.permute.xlu0 %6041
    %v6043 = vsel %vm1176, %v6040, 0
    %v6045 = vsel %vm1176, %v6042, 0
    %6047 = vmatpush.xpose.msra.mxu0 0.0
    %6048 = vmatpush.xpose.msra.mxu0 0.0
    %6049 = vmatpush.xpose.msra.mxu0 0.0
    %6050 = vmatpush.xpose.msra.mxu0 0.0
    %6051 = vmatpush.xpose.msra.mxu0 0.0
    %6052 = vmatpush.xpose.msra.mxu0 0.0
    %6053 = vmatpush.xpose.msra.mxu0 0.0
    %6054 = vmatpush.xpose.msra.mxu0 0.0
    %6055 = vmatpush.xpose.msra.mxu0 0.0
    %6056 = vmatpush.xpose.msra.mxu0 0.0
    %6057 = vmatpush.xpose.msra.mxu0 0.0
    %6058 = vmatpush.xpose.msra.mxu0 0.0
    %6059 = vmatpush.xpose.msra.mxu0 0.0
    %6060 = vmatpush.xpose.msra.mxu0 0.0
    %6061 = vmatpush.xpose.msra.mxu0 0.0
    %6062 = vmatpush.xpose.msra.mxu0 %v6045
    %6063 = vmatmul.f32.gmra.mxu0 %v6043
    %v6064 = vpop.f32.mrf.mxu0
    %v6065 = vadd.f32 0.0, %v6064
    %6066 = vdwg.mxu0
    %v6067 = vsel %vm1176, %v6037, -inf
    %6068 = vmax.xlane.f32.xlu0 %v6067
    %v6069 = vpop.xlane.xlu0 %6068
    %v6070 = vsel %vm1176, %v6065, -inf
    %6071 = vmax.xlane.f32.xlu0 %v6070
    %v6072 = vpop.xlane.xlu0 %6071
    %v6073 = vsub.f32 %v6037, %v6069
    %v6074 = vsub.f32 %v6065, %v6072
    %v6075 = vmul.f32 %v6073, 1.442695
    %v6076 = vpow.pop %v6075
    %v6077 = vmul.f32 %v6074, 1.442695
    %v6078 = vpow.pop %v6077
    %v6079 = vsel %vm1176, %v6076, 0.0
    %6080 = vadd.xlane.f32.xlu0 %v6079
    %v6081 = vpop.xlane.xlu0 %6080
    %v6082 = vsel %vm1176, %v6078, 0.0
    %6083 = vadd.xlane.f32.xlu0 %v6082
    %v6084 = vpop.xlane.xlu0 %6083
    %v6085 = vrcp.pop %v6081
    %v6086 = vrcp.pop %v6084
    %v6087 = vmul.f32 %v6076, %v6085
    %v6088 = vmul.f32 %v6078, %v6086
    %6089 = vrot.lane.b32.xlu0 %v5529, 40
    %v6090 = vpop.permute.xlu0 %6089
    %v6093 = vsel %vm1176, %v6087, 0
    %6095 = vmatpush.msra.mxu0 0.0
    %6096 = vmatpush.msra.mxu0 0.0
    %6097 = vmatpush.msra.mxu0 0.0
    %6098 = vmatpush.msra.mxu0 0.0
    %6099 = vmatpush.msra.mxu0 0.0
    %6100 = vmatpush.msra.mxu0 0.0
    %6101 = vmatpush.msra.mxu0 0.0
    %6102 = vmatpush.msra.mxu0 0.0
    %6103 = vmatpush.msra.mxu0 0.0
    %6104 = vmatpush.msra.mxu0 0.0
    %6105 = vmatpush.msra.mxu0 0.0
    %6106 = vmatpush.msra.mxu0 0.0
    %6107 = vmatpush.msra.mxu0 0.0
    %6108 = vmatpush.msra.mxu0 0.0
    %6109 = vmatpush.msra.mxu0 0.0
    %6110 = vmatpush.msra.mxu0 %v6090
    %6111 = vmatmul.f32.gmra.mxu0 %v6093
    %v6112 = vpop.f32.mrf.mxu0
    %v6113 = vadd.f32 0.0, %v6112
    %6114 = vdwg.mxu0
    %6115 = vrot.lane.b32.xlu0 %v5532, 40
    %v6116 = vpop.permute.xlu0 %6115
    %v6119 = vsel %vm1176, %v6088, 0
    %6121 = vmatpush.msra.mxu0 0.0
    %6122 = vmatpush.msra.mxu0 0.0
    %6123 = vmatpush.msra.mxu0 0.0
    %6124 = vmatpush.msra.mxu0 0.0
    %6125 = vmatpush.msra.mxu0 0.0
    %6126 = vmatpush.msra.mxu0 0.0
    %6127 = vmatpush.msra.mxu0 0.0
    %6128 = vmatpush.msra.mxu0 0.0
    %6129 = vmatpush.msra.mxu0 0.0
    %6130 = vmatpush.msra.mxu0 0.0
    %6131 = vmatpush.msra.mxu0 0.0
    %6132 = vmatpush.msra.mxu0 0.0
    %6133 = vmatpush.msra.mxu0 0.0
    %6134 = vmatpush.msra.mxu0 0.0
    %6135 = vmatpush.msra.mxu0 0.0
    %6136 = vmatpush.msra.mxu0 %v6116
    %6137 = vmatmul.f32.gmra.mxu0 %v6119
    %v6138 = vpop.f32.mrf.mxu0
    %v6139 = vadd.f32 0.0, %v6138
    %6140 = vdwg.mxu0
    %v6142 = vsel %vm1176, %v6113, 0
    %v6145 = vsel %vm1176, %v6139, 0
    %6147 = vmatpush.msra.mxu0 0.0
    %6148 = vmatpush.msra.mxu0 0.0
    %6149 = vmatpush.msra.mxu0 0.0
    %6150 = vmatpush.msra.mxu0 0.0
    %6151 = vmatpush.msra.mxu0 0.0
    %6152 = vmatpush.msra.mxu0 0.0
    %6153 = vmatpush.msra.mxu0 0.0
    %6154 = vmatpush.msra.mxu0 0.0
    %6155 = vmatpush.msra.mxu0 0.0
    %6156 = vmatpush.msra.mxu0 0.0
    %6157 = vmatpush.msra.mxu0 0.0
    %6158 = vmatpush.msra.mxu0 0.0
    %6159 = vmatpush.msra.mxu0 0.0
    %6160 = vmatpush.msra.mxu0 0.0
    %6161 = vmatpush.msra.mxu0 0.0
    %6162 = vmatpush.msra.mxu0 %v5465
    %6163 = vmatmul.f32.gmra.mxu0 %v6142
    %v6164 = vpop.f32.mrf.mxu0
    %v6165 = vadd.f32 0.0, %v6164
    %6166 = vmatmul.f32.gmra.mxu0 %v6145
    %v6167 = vpop.f32.mrf.mxu0
    %v6168 = vadd.f32 0.0, %v6167
    %6169 = vdwg.mxu0
    %v6170 = vadd.f32 %v6009, %v6165
    %v6171 = vadd.f32 %v6010, %v6168
    %v6173 = vperm.slane %v5466, 0
    %v6175 = vadd.f32 %v6170, %v6173
    %v6176 = vadd.f32 %v6171, %v6173
    %v6177 = vadd.f32 %v5455, %v6175
    %v6178 = vadd.f32 %v5456, %v6176
    %v6179 = vsel %vm1143, %v6177, 0.0
    %6180 = vadd.xlane.f32.xlu0 %v6179
    %v6181 = vpop.xlane.xlu0 %6180
    %v6182 = vsel %vm1143, %v6178, 0.0
    %6183 = vadd.xlane.f32.xlu0 %v6182
    %v6184 = vpop.xlane.xlu0 %6183
    %v6185 = vmul.f32 %v6181, %v1831
    %v6186 = vmul.f32 %v6184, %v1831
    %v6187 = vsub.f32 %v6177, %v6185
    %v6188 = vsub.f32 %v6178, %v6186
    %v6189 = vmul.f32 %v6187, %v6187
    %v6190 = vmul.f32 %v6188, %v6188
    %v6191 = vsel %vm1143, %v6189, 0.0
    %6192 = vadd.xlane.f32.xlu0 %v6191
    %v6193 = vpop.xlane.xlu0 %6192
    %v6194 = vsel %vm1143, %v6190, 0.0
    %6195 = vadd.xlane.f32.xlu0 %v6194
    %v6196 = vpop.xlane.xlu0 %6195
    %v6197 = vmul.f32 %v6193, %v1831
    %v6198 = vmul.f32 %v6196, %v1831
    %v6199 = vadd.f32 %v6197, 1e-05
    %v6200 = vadd.f32 %v6198, 1e-05
    %v6201 = vrsqrt.pop %v6199
    %v6202 = vmul.f32 %v6201, %v6199
    %v6203 = vmul.f32 %v6202, %v6201
    %v6204 = vmul.f32 0.5, %v6203
    %v6205 = vsub.f32 1.5, %v6204
    %v6206 = vmul.f32 %v6201, %v6205
    %vm6207 = vweird.f32 %v6199
    %vm6208 = vweird.f32 %v6201
    %vm6209 = vmor %vm6207, %vm6208
    %v6210 = vsel %vm6209, %v6201, %v6206
    %v6211 = vrsqrt.pop %v6200
    %v6212 = vmul.f32 %v6211, %v6200
    %v6213 = vmul.f32 %v6212, %v6211
    %v6214 = vmul.f32 0.5, %v6213
    %v6215 = vsub.f32 1.5, %v6214
    %v6216 = vmul.f32 %v6211, %v6215
    %vm6217 = vweird.f32 %v6200
    %vm6218 = vweird.f32 %v6211
    %vm6219 = vmor %vm6217, %vm6218
    %v6220 = vsel %vm6219, %v6211, %v6216
    %v6221 = vmul.f32 %v6187, %v6210
    %v6222 = vmul.f32 %v6188, %v6220
    %v6224 = vperm.slane %v5467, 0
    %v6226 = vmul.f32 %v6221, %v6224
    %v6227 = vmul.f32 %v6222, %v6224
    %v6229 = vperm.slane %v5468, 0
    %v6231 = vadd.f32 %v6226, %v6229
    %v6232 = vadd.f32 %v6227, %v6229
    %v6234 = vperm.slane %v5473, 0
    %v6237 = vsel %vm1143, %v6231, 0
    %v6240 = vsel %vm1143, %v6232, 0
    %6242 = vmatpush.msra.mxu0 0.0
    %6243 = vmatpush.msra.mxu0 0.0
    %6244 = vmatpush.msra.mxu0 0.0
    %6245 = vmatpush.msra.mxu0 0.0
    %6246 = vmatpush.msra.mxu0 0.0
    %6247 = vmatpush.msra.mxu0 0.0
    %6248 = vmatpush.msra.mxu0 0.0
    %6249 = vmatpush.msra.mxu0 0.0
    %6250 = vmatpush.msra.mxu0 0.0
    %6251 = vmatpush.msra.mxu0 0.0
    %6252 = vmatpush.msra.mxu0 0.0
    %6253 = vmatpush.msra.mxu0 0.0
    %6254 = vmatpush.msra.mxu0 %v5472
    %6255 = vmatpush.msra.mxu0 %v5471
    %6256 = vmatpush.msra.mxu0 %v5470
    %6257 = vmatpush.msra.mxu0 %v5469
    %6258 = vmatmul.f32.gmra.mxu0 %v6237
    %v6259 = vpop.f32.mrf.mxu0
    %v6260 = vadd.f32 %v6234, %v6259
    %6261 = vmatmul.f32.gmra.mxu0 %v6240
    %v6262 = vpop.f32.mrf.mxu0
    %v6263 = vadd.f32 %v6234, %v6262
    %6264 = vdwg.mxu0
    %v6266 = vperm.slane %v5478, 0
    %6268 = vmatpush.msra.mxu0 0.0
    %6269 = vmatpush.msra.mxu0 0.0
    %6270 = vmatpush.msra.mxu0 0.0
    %6271 = vmatpush.msra.mxu0 0.0
    %6272 = vmatpush.msra.mxu0 0.0
    %6273 = vmatpush.msra.mxu0 0.0
    %6274 = vmatpush.msra.mxu0 0.0
    %6275 = vmatpush.msra.mxu0 0.0
    %6276 = vmatpush.msra.mxu0 0.0
    %6277 = vmatpush.msra.mxu0 0.0
    %6278 = vmatpush.msra.mxu0 0.0
    %6279 = vmatpush.msra.mxu0 0.0
    %6280 = vmatpush.msra.mxu0 %v5477
    %6281 = vmatpush.msra.mxu0 %v5476
    %6282 = vmatpush.msra.mxu0 %v5475
    %6283 = vmatpush.msra.mxu0 %v5474
    %6284 = vmatmul.f32.gmra.mxu0 %v4610
    %v6285 = vpop.f32.mrf.mxu0
    %v6286 = vadd.f32 %v6266, %v6285
    %6287 = vmatmul.f32.gmra.mxu0 %v4613
    %v6288 = vpop.f32.mrf.mxu0
    %v6289 = vadd.f32 %v6266, %v6288
    %6290 = vdwg.mxu0
    %v6292 = vsel %vm1176, %v6260, 0
    %v6295 = vsel %vm1176, %v6286, 0
    %6297 = vmatpush.xpose.msra.mxu0 0.0
    %6298 = vmatpush.xpose.msra.mxu0 0.0
    %6299 = vmatpush.xpose.msra.mxu0 0.0
    %6300 = vmatpush.xpose.msra.mxu0 0.0
    %6301 = vmatpush.xpose.msra.mxu0 0.0
    %6302 = vmatpush.xpose.msra.mxu0 0.0
    %6303 = vmatpush.xpose.msra.mxu0 0.0
    %6304 = vmatpush.xpose.msra.mxu0 0.0
    %6305 = vmatpush.xpose.msra.mxu0 0.0
    %6306 = vmatpush.xpose.msra.mxu0 0.0
    %6307 = vmatpush.xpose.msra.mxu0 0.0
    %6308 = vmatpush.xpose.msra.mxu0 0.0
    %6309 = vmatpush.xpose.msra.mxu0 0.0
    %6310 = vmatpush.xpose.msra.mxu0 0.0
    %6311 = vmatpush.xpose.msra.mxu0 0.0
    %6312 = vmatpush.xpose.msra.mxu0 %v6295
    %6313 = vmatmul.f32.gmra.mxu0 %v6292
    %v6314 = vpop.f32.mrf.mxu0
    %v6315 = vadd.f32 0.0, %v6314
    %6316 = vdwg.mxu0
    %v6318 = vsel %vm1176, %v6263, 0
    %v6321 = vsel %vm1176, %v6289, 0
    %6323 = vmatpush.xpose.msra.mxu0 0.0
    %6324 = vmatpush.xpose.msra.mxu0 0.0
    %6325 = vmatpush.xpose.msra.mxu0 0.0
    %6326 = vmatpush.xpose.msra.mxu0 0.0
    %6327 = vmatpush.xpose.msra.mxu0 0.0
    %6328 = vmatpush.xpose.msra.mxu0 0.0
    %6329 = vmatpush.xpose.msra.mxu0 0.0
    %6330 = vmatpush.xpose.msra.mxu0 0.0
    %6331 = vmatpush.xpose.msra.mxu0 0.0
    %6332 = vmatpush.xpose.msra.mxu0 0.0
    %6333 = vmatpush.xpose.msra.mxu0 0.0
    %6334 = vmatpush.xpose.msra.mxu0 0.0
    %6335 = vmatpush.xpose.msra.mxu0 0.0
    %6336 = vmatpush.xpose.msra.mxu0 0.0
    %6337 = vmatpush.xpose.msra.mxu0 0.0
    %6338 = vmatpush.xpose.msra.mxu0 %v6321
    %6339 = vmatmul.f32.gmra.mxu0 %v6318
    %v6340 = vpop.f32.mrf.mxu0
    %v6341 = vadd.f32 0.0, %v6340
    %6342 = vdwg.mxu0
    %v6343 = vsel %vm1176, %v6315, -inf
    %6344 = vmax.xlane.f32.xlu0 %v6343
    %v6345 = vpop.xlane.xlu0 %6344
    %v6346 = vsel %vm1176, %v6341, -inf
    %6347 = vmax.xlane.f32.xlu0 %v6346
    %v6348 = vpop.xlane.xlu0 %6347
    %v6349 = vsub.f32 %v6315, %v6345
    %v6350 = vsub.f32 %v6341, %v6348
    %v6351 = vmul.f32 %v6349, 1.442695
    %v6352 = vpow.pop %v6351
    %v6353 = vmul.f32 %v6350, 1.442695
    %v6354 = vpow.pop %v6353
    %v6355 = vsel %vm1176, %v6352, 0.0
    %6356 = vadd.xlane.f32.xlu0 %v6355
    %v6357 = vpop.xlane.xlu0 %6356
    %v6358 = vsel %vm1176, %v6354, 0.0
    %6359 = vadd.xlane.f32.xlu0 %v6358
    %v6360 = vpop.xlane.xlu0 %6359
    %v6361 = vrcp.pop %v6357
    %v6362 = vrcp.pop %v6360
    %v6363 = vmul.f32 %v6352, %v6361
    %v6364 = vmul.f32 %v6354, %v6362
    %6365 = vrot.lane.b32.xlu0 %v6286, 96
    %v6366 = vpop.permute.xlu0 %6365
    %v6369 = vsel %vm1176, %v6363, 0
    %6371 = vmatpush.msra.mxu0 0.0
    %6372 = vmatpush.msra.mxu0 0.0
    %6373 = vmatpush.msra.mxu0 0.0
    %6374 = vmatpush.msra.mxu0 0.0
    %6375 = vmatpush.msra.mxu0 0.0
    %6376 = vmatpush.msra.mxu0 0.0
    %6377 = vmatpush.msra.mxu0 0.0
    %6378 = vmatpush.msra.mxu0 0.0
    %6379 = vmatpush.msra.mxu0 0.0
    %6380 = vmatpush.msra.mxu0 0.0
    %6381 = vmatpush.msra.mxu0 0.0
    %6382 = vmatpush.msra.mxu0 0.0
    %6383 = vmatpush.msra.mxu0 0.0
    %6384 = vmatpush.msra.mxu0 0.0
    %6385 = vmatpush.msra.mxu0 0.0
    %6386 = vmatpush.msra.mxu0 %v6366
    %6387 = vmatmul.f32.gmra.mxu0 %v6369
    %v6388 = vpop.f32.mrf.mxu0
    %v6389 = vadd.f32 0.0, %v6388
    %6390 = vdwg.mxu0
    %6391 = vrot.lane.b32.xlu0 %v6289, 96
    %v6392 = vpop.permute.xlu0 %6391
    %v6395 = vsel %vm1176, %v6364, 0
    %6397 = vmatpush.msra.mxu0 0.0
    %6398 = vmatpush.msra.mxu0 0.0
    %6399 = vmatpush.msra.mxu0 0.0
    %6400 = vmatpush.msra.mxu0 0.0
    %6401 = vmatpush.msra.mxu0 0.0
    %6402 = vmatpush.msra.mxu0 0.0
    %6403 = vmatpush.msra.mxu0 0.0
    %6404 = vmatpush.msra.mxu0 0.0
    %6405 = vmatpush.msra.mxu0 0.0
    %6406 = vmatpush.msra.mxu0 0.0
    %6407 = vmatpush.msra.mxu0 0.0
    %6408 = vmatpush.msra.mxu0 0.0
    %6409 = vmatpush.msra.mxu0 0.0
    %6410 = vmatpush.msra.mxu0 0.0
    %6411 = vmatpush.msra.mxu0 0.0
    %6412 = vmatpush.msra.mxu0 %v6392
    %6413 = vmatmul.f32.gmra.mxu0 %v6395
    %v6414 = vpop.f32.mrf.mxu0
    %v6415 = vadd.f32 0.0, %v6414
    %6416 = vdwg.mxu0
    %6417 = vrot.lane.b32.xlu0 %v6260, 120
    %v6418 = vpop.permute.xlu0 %6417
    %6419 = vrot.lane.b32.xlu0 %v6286, 120
    %v6420 = vpop.permute.xlu0 %6419
    %v6421 = vsel %vm1176, %v6418, 0
    %v6423 = vsel %vm1176, %v6420, 0
    %6425 = vmatpush.xpose.msra.mxu0 0.0
    %6426 = vmatpush.xpose.msra.mxu0 0.0
    %6427 = vmatpush.xpose.msra.mxu0 0.0
    %6428 = vmatpush.xpose.msra.mxu0 0.0
    %6429 = vmatpush.xpose.msra.mxu0 0.0
    %6430 = vmatpush.xpose.msra.mxu0 0.0
    %6431 = vmatpush.xpose.msra.mxu0 0.0
    %6432 = vmatpush.xpose.msra.mxu0 0.0
    %6433 = vmatpush.xpose.msra.mxu0 0.0
    %6434 = vmatpush.xpose.msra.mxu0 0.0
    %6435 = vmatpush.xpose.msra.mxu0 0.0
    %6436 = vmatpush.xpose.msra.mxu0 0.0
    %6437 = vmatpush.xpose.msra.mxu0 0.0
    %6438 = vmatpush.xpose.msra.mxu0 0.0
    %6439 = vmatpush.xpose.msra.mxu0 0.0
    %6440 = vmatpush.xpose.msra.mxu0 %v6423
    %6441 = vmatmul.f32.gmra.mxu0 %v6421
    %v6442 = vpop.f32.mrf.mxu0
    %v6443 = vadd.f32 0.0, %v6442
    %6444 = vdwg.mxu0
    %6445 = vrot.lane.b32.xlu0 %v6263, 120
    %v6446 = vpop.permute.xlu0 %6445
    %6447 = vrot.lane.b32.xlu0 %v6289, 120
    %v6448 = vpop.permute.xlu0 %6447
    %v6449 = vsel %vm1176, %v6446, 0
    %v6451 = vsel %vm1176, %v6448, 0
    %6453 = vmatpush.xpose.msra.mxu0 0.0
    %6454 = vmatpush.xpose.msra.mxu0 0.0
    %6455 = vmatpush.xpose.msra.mxu0 0.0
    %6456 = vmatpush.xpose.msra.mxu0 0.0
    %6457 = vmatpush.xpose.msra.mxu0 0.0
    %6458 = vmatpush.xpose.msra.mxu0 0.0
    %6459 = vmatpush.xpose.msra.mxu0 0.0
    %6460 = vmatpush.xpose.msra.mxu0 0.0
    %6461 = vmatpush.xpose.msra.mxu0 0.0
    %6462 = vmatpush.xpose.msra.mxu0 0.0
    %6463 = vmatpush.xpose.msra.mxu0 0.0
    %6464 = vmatpush.xpose.msra.mxu0 0.0
    %6465 = vmatpush.xpose.msra.mxu0 0.0
    %6466 = vmatpush.xpose.msra.mxu0 0.0
    %6467 = vmatpush.xpose.msra.mxu0 0.0
    %6468 = vmatpush.xpose.msra.mxu0 %v6451
    %6469 = vmatmul.f32.gmra.mxu0 %v6449
    %v6470 = vpop.f32.mrf.mxu0
    %v6471 = vadd.f32 0.0, %v6470
    %6472 = vdwg.mxu0
    %v6473 = vsel %vm1176, %v6443, -inf
    %6474 = vmax.xlane.f32.xlu0 %v6473
    %v6475 = vpop.xlane.xlu0 %6474
    %v6476 = vsel %vm1176, %v6471, -inf
    %6477 = vmax.xlane.f32.xlu0 %v6476
    %v6478 = vpop.xlane.xlu0 %6477
    %v6479 = vsub.f32 %v6443, %v6475
    %v6480 = vsub.f32 %v6471, %v6478
    %v6481 = vmul.f32 %v6479, 1.442695
    %v6482 = vpow.pop %v6481
    %v6483 = vmul.f32 %v6480, 1.442695
    %v6484 = vpow.pop %v6483
    %v6485 = vsel %vm1176, %v6482, 0.0
    %6486 = vadd.xlane.f32.xlu0 %v6485
    %v6487 = vpop.xlane.xlu0 %6486
    %v6488 = vsel %vm1176, %v6484, 0.0
    %6489 = vadd.xlane.f32.xlu0 %v6488
    %v6490 = vpop.xlane.xlu0 %6489
    %v6491 = vrcp.pop %v6487
    %v6492 = vrcp.pop %v6490
    %v6493 = vmul.f32 %v6482, %v6491
    %v6494 = vmul.f32 %v6484, %v6492
    %6495 = vrot.lane.b32.xlu0 %v6286, 88
    %v6496 = vpop.permute.xlu0 %6495
    %v6499 = vsel %vm1176, %v6493, 0
    %6501 = vmatpush.msra.mxu0 0.0
    %6502 = vmatpush.msra.mxu0 0.0
    %6503 = vmatpush.msra.mxu0 0.0
    %6504 = vmatpush.msra.mxu0 0.0
    %6505 = vmatpush.msra.mxu0 0.0
    %6506 = vmatpush.msra.mxu0 0.0
    %6507 = vmatpush.msra.mxu0 0.0
    %6508 = vmatpush.msra.mxu0 0.0
    %6509 = vmatpush.msra.mxu0 0.0
    %6510 = vmatpush.msra.mxu0 0.0
    %6511 = vmatpush.msra.mxu0 0.0
    %6512 = vmatpush.msra.mxu0 0.0
    %6513 = vmatpush.msra.mxu0 0.0
    %6514 = vmatpush.msra.mxu0 0.0
    %6515 = vmatpush.msra.mxu0 0.0
    %6516 = vmatpush.msra.mxu0 %v6496
    %6517 = vmatmul.f32.gmra.mxu0 %v6499
    %v6518 = vpop.f32.mrf.mxu0
    %v6519 = vadd.f32 0.0, %v6518
    %6520 = vdwg.mxu0
    %6521 = vrot.lane.b32.xlu0 %v6289, 88
    %v6522 = vpop.permute.xlu0 %6521
    %v6525 = vsel %vm1176, %v6494, 0
    %6527 = vmatpush.msra.mxu0 0.0
    %6528 = vmatpush.msra.mxu0 0.0
    %6529 = vmatpush.msra.mxu0 0.0
    %6530 = vmatpush.msra.mxu0 0.0
    %6531 = vmatpush.msra.mxu0 0.0
    %6532 = vmatpush.msra.mxu0 0.0
    %6533 = vmatpush.msra.mxu0 0.0
    %6534 = vmatpush.msra.mxu0 0.0
    %6535 = vmatpush.msra.mxu0 0.0
    %6536 = vmatpush.msra.mxu0 0.0
    %6537 = vmatpush.msra.mxu0 0.0
    %6538 = vmatpush.msra.mxu0 0.0
    %6539 = vmatpush.msra.mxu0 0.0
    %6540 = vmatpush.msra.mxu0 0.0
    %6541 = vmatpush.msra.mxu0 0.0
    %6542 = vmatpush.msra.mxu0 %v6522
    %6543 = vmatmul.f32.gmra.mxu0 %v6525
    %v6544 = vpop.f32.mrf.mxu0
    %v6545 = vadd.f32 0.0, %v6544
    %6546 = vdwg.mxu0
    %v6548 = vsel %vm1176, %v6519, 0
    %v6551 = vsel %vm1176, %v6545, 0
    %6553 = vmatpush.msra.mxu0 0.0
    %6554 = vmatpush.msra.mxu0 0.0
    %6555 = vmatpush.msra.mxu0 0.0
    %6556 = vmatpush.msra.mxu0 0.0
    %6557 = vmatpush.msra.mxu0 0.0
    %6558 = vmatpush.msra.mxu0 0.0
    %6559 = vmatpush.msra.mxu0 0.0
    %6560 = vmatpush.msra.mxu0 0.0
    %6561 = vmatpush.msra.mxu0 0.0
    %6562 = vmatpush.msra.mxu0 0.0
    %6563 = vmatpush.msra.mxu0 0.0
    %6564 = vmatpush.msra.mxu0 0.0
    %6565 = vmatpush.msra.mxu0 0.0
    %6566 = vmatpush.msra.mxu0 0.0
    %6567 = vmatpush.msra.mxu0 0.0
    %6568 = vmatpush.msra.mxu0 %v5480
    %6569 = vmatmul.f32.gmra.mxu0 %v6548
    %v6570 = vpop.f32.mrf.mxu0
    %v6571 = vadd.f32 0.0, %v6570
    %6572 = vmatmul.f32.gmra.mxu0 %v6551
    %v6573 = vpop.f32.mrf.mxu0
    %v6574 = vadd.f32 0.0, %v6573
    %6575 = vdwg.mxu0
    %v6577 = vsel %vm1176, %v6389, 0
    %v6580 = vsel %vm1176, %v6415, 0
    %6582 = vmatpush.msra.mxu0 0.0
    %6583 = vmatpush.msra.mxu0 0.0
    %6584 = vmatpush.msra.mxu0 0.0
    %6585 = vmatpush.msra.mxu0 0.0
    %6586 = vmatpush.msra.mxu0 0.0
    %6587 = vmatpush.msra.mxu0 0.0
    %6588 = vmatpush.msra.mxu0 0.0
    %6589 = vmatpush.msra.mxu0 0.0
    %6590 = vmatpush.msra.mxu0 0.0
    %6591 = vmatpush.msra.mxu0 0.0
    %6592 = vmatpush.msra.mxu0 0.0
    %6593 = vmatpush.msra.mxu0 0.0
    %6594 = vmatpush.msra.mxu0 0.0
    %6595 = vmatpush.msra.mxu0 0.0
    %6596 = vmatpush.msra.mxu0 0.0
    %6597 = vmatpush.msra.mxu0 %v5479
    %6598 = vmatmul.f32.gmra.mxu0 %v6577
    %v6599 = vpop.f32.mrf.mxu0
    %v6600 = vadd.f32 %v6571, %v6599
    %6601 = vmatmul.f32.gmra.mxu0 %v6580
    %v6602 = vpop.f32.mrf.mxu0
    %v6603 = vadd.f32 %v6574, %v6602
    %6604 = vdwg.mxu0
    %6605 = vrot.lane.b32.xlu0 %v6260, 112
    %v6606 = vpop.permute.xlu0 %6605
    %6607 = vrot.lane.b32.xlu0 %v6286, 112
    %v6608 = vpop.permute.xlu0 %6607
    %v6609 = vsel %vm1176, %v6606, 0
    %v6611 = vsel %vm1176, %v6608, 0
    %6613 = vmatpush.xpose.msra.mxu0 0.0
    %6614 = vmatpush.xpose.msra.mxu0 0.0
    %6615 = vmatpush.xpose.msra.mxu0 0.0
    %6616 = vmatpush.xpose.msra.mxu0 0.0
    %6617 = vmatpush.xpose.msra.mxu0 0.0
    %6618 = vmatpush.xpose.msra.mxu0 0.0
    %6619 = vmatpush.xpose.msra.mxu0 0.0
    %6620 = vmatpush.xpose.msra.mxu0 0.0
    %6621 = vmatpush.xpose.msra.mxu0 0.0
    %6622 = vmatpush.xpose.msra.mxu0 0.0
    %6623 = vmatpush.xpose.msra.mxu0 0.0
    %6624 = vmatpush.xpose.msra.mxu0 0.0
    %6625 = vmatpush.xpose.msra.mxu0 0.0
    %6626 = vmatpush.xpose.msra.mxu0 0.0
    %6627 = vmatpush.xpose.msra.mxu0 0.0
    %6628 = vmatpush.xpose.msra.mxu0 %v6611
    %6629 = vmatmul.f32.gmra.mxu0 %v6609
    %v6630 = vpop.f32.mrf.mxu0
    %v6631 = vadd.f32 0.0, %v6630
    %6632 = vdwg.mxu0
    %6633 = vrot.lane.b32.xlu0 %v6263, 112
    %v6634 = vpop.permute.xlu0 %6633
    %6635 = vrot.lane.b32.xlu0 %v6289, 112
    %v6636 = vpop.permute.xlu0 %6635
    %v6637 = vsel %vm1176, %v6634, 0
    %v6639 = vsel %vm1176, %v6636, 0
    %6641 = vmatpush.xpose.msra.mxu0 0.0
    %6642 = vmatpush.xpose.msra.mxu0 0.0
    %6643 = vmatpush.xpose.msra.mxu0 0.0
    %6644 = vmatpush.xpose.msra.mxu0 0.0
    %6645 = vmatpush.xpose.msra.mxu0 0.0
    %6646 = vmatpush.xpose.msra.mxu0 0.0
    %6647 = vmatpush.xpose.msra.mxu0 0.0
    %6648 = vmatpush.xpose.msra.mxu0 0.0
    %6649 = vmatpush.xpose.msra.mxu0 0.0
    %6650 = vmatpush.xpose.msra.mxu0 0.0
    %6651 = vmatpush.xpose.msra.mxu0 0.0
    %6652 = vmatpush.xpose.msra.mxu0 0.0
    %6653 = vmatpush.xpose.msra.mxu0 0.0
    %6654 = vmatpush.xpose.msra.mxu0 0.0
    %6655 = vmatpush.xpose.msra.mxu0 0.0
    %6656 = vmatpush.xpose.msra.mxu0 %v6639
    %6657 = vmatmul.f32.gmra.mxu0 %v6637
    %v6658 = vpop.f32.mrf.mxu0
    %v6659 = vadd.f32 0.0, %v6658
    %6660 = vdwg.mxu0
    %v6661 = vsel %vm1176, %v6631, -inf
    %6662 = vmax.xlane.f32.xlu0 %v6661
    %v6663 = vpop.xlane.xlu0 %6662
    %v6664 = vsel %vm1176, %v6659, -inf
    %6665 = vmax.xlane.f32.xlu0 %v6664
    %v6666 = vpop.xlane.xlu0 %6665
    %v6667 = vsub.f32 %v6631, %v6663
    %v6668 = vsub.f32 %v6659, %v6666
    %v6669 = vmul.f32 %v6667, 1.442695
    %v6670 = vpow.pop %v6669
    %v6671 = vmul.f32 %v6668, 1.442695
    %v6672 = vpow.pop %v6671
    %v6673 = vsel %vm1176, %v6670, 0.0
    %6674 = vadd.xlane.f32.xlu0 %v6673
    %v6675 = vpop.xlane.xlu0 %6674
    %v6676 = vsel %vm1176, %v6672, 0.0
    %6677 = vadd.xlane.f32.xlu0 %v6676
    %v6678 = vpop.xlane.xlu0 %6677
    %v6679 = vrcp.pop %v6675
    %v6680 = vrcp.pop %v6678
    %v6681 = vmul.f32 %v6670, %v6679
    %v6682 = vmul.f32 %v6672, %v6680
    %6683 = vrot.lane.b32.xlu0 %v6286, 80
    %v6684 = vpop.permute.xlu0 %6683
    %v6687 = vsel %vm1176, %v6681, 0
    %6689 = vmatpush.msra.mxu0 0.0
    %6690 = vmatpush.msra.mxu0 0.0
    %6691 = vmatpush.msra.mxu0 0.0
    %6692 = vmatpush.msra.mxu0 0.0
    %6693 = vmatpush.msra.mxu0 0.0
    %6694 = vmatpush.msra.mxu0 0.0
    %6695 = vmatpush.msra.mxu0 0.0
    %6696 = vmatpush.msra.mxu0 0.0
    %6697 = vmatpush.msra.mxu0 0.0
    %6698 = vmatpush.msra.mxu0 0.0
    %6699 = vmatpush.msra.mxu0 0.0
    %6700 = vmatpush.msra.mxu0 0.0
    %6701 = vmatpush.msra.mxu0 0.0
    %6702 = vmatpush.msra.mxu0 0.0
    %6703 = vmatpush.msra.mxu0 0.0
    %6704 = vmatpush.msra.mxu0 %v6684
    %6705 = vmatmul.f32.gmra.mxu0 %v6687
    %v6706 = vpop.f32.mrf.mxu0
    %v6707 = vadd.f32 0.0, %v6706
    %6708 = vdwg.mxu0
    %6709 = vrot.lane.b32.xlu0 %v6289, 80
    %v6710 = vpop.permute.xlu0 %6709
    %v6713 = vsel %vm1176, %v6682, 0
    %6715 = vmatpush.msra.mxu0 0.0
    %6716 = vmatpush.msra.mxu0 0.0
    %6717 = vmatpush.msra.mxu0 0.0
    %6718 = vmatpush.msra.mxu0 0.0
    %6719 = vmatpush.msra.mxu0 0.0
    %6720 = vmatpush.msra.mxu0 0.0
    %6721 = vmatpush.msra.mxu0 0.0
    %6722 = vmatpush.msra.mxu0 0.0
    %6723 = vmatpush.msra.mxu0 0.0
    %6724 = vmatpush.msra.mxu0 0.0
    %6725 = vmatpush.msra.mxu0 0.0
    %6726 = vmatpush.msra.mxu0 0.0
    %6727 = vmatpush.msra.mxu0 0.0
    %6728 = vmatpush.msra.mxu0 0.0
    %6729 = vmatpush.msra.mxu0 0.0
    %6730 = vmatpush.msra.mxu0 %v6710
    %6731 = vmatmul.f32.gmra.mxu0 %v6713
    %v6732 = vpop.f32.mrf.mxu0
    %v6733 = vadd.f32 0.0, %v6732
    %6734 = vdwg.mxu0
    %v6736 = vsel %vm1176, %v6707, 0
    %v6739 = vsel %vm1176, %v6733, 0
    %6741 = vmatpush.msra.mxu0 0.0
    %6742 = vmatpush.msra.mxu0 0.0
    %6743 = vmatpush.msra.mxu0 0.0
    %6744 = vmatpush.msra.mxu0 0.0
    %6745 = vmatpush.msra.mxu0 0.0
    %6746 = vmatpush.msra.mxu0 0.0
    %6747 = vmatpush.msra.mxu0 0.0
    %6748 = vmatpush.msra.mxu0 0.0
    %6749 = vmatpush.msra.mxu0 0.0
    %6750 = vmatpush.msra.mxu0 0.0
    %6751 = vmatpush.msra.mxu0 0.0
    %6752 = vmatpush.msra.mxu0 0.0
    %6753 = vmatpush.msra.mxu0 0.0
    %6754 = vmatpush.msra.mxu0 0.0
    %6755 = vmatpush.msra.mxu0 0.0
    %6756 = vmatpush.msra.mxu0 %v5481
    %6757 = vmatmul.f32.gmra.mxu0 %v6736
    %v6758 = vpop.f32.mrf.mxu0
    %v6759 = vadd.f32 0.0, %v6758
    %6760 = vmatmul.f32.gmra.mxu0 %v6739
    %v6761 = vpop.f32.mrf.mxu0
    %v6762 = vadd.f32 0.0, %v6761
    %6763 = vdwg.mxu0
    %v6764 = vadd.f32 %v6600, %v6759
    %v6765 = vadd.f32 %v6603, %v6762
    %6766 = vrot.lane.b32.xlu0 %v6260, 104
    %v6767 = vpop.permute.xlu0 %6766
    %6768 = vrot.lane.b32.xlu0 %v6286, 104
    %v6769 = vpop.permute.xlu0 %6768
    %v6770 = vsel %vm1176, %v6767, 0
    %v6772 = vsel %vm1176, %v6769, 0
    %6774 = vmatpush.xpose.msra.mxu0 0.0
    %6775 = vmatpush.xpose.msra.mxu0 0.0
    %6776 = vmatpush.xpose.msra.mxu0 0.0
    %6777 = vmatpush.xpose.msra.mxu0 0.0
    %6778 = vmatpush.xpose.msra.mxu0 0.0
    %6779 = vmatpush.xpose.msra.mxu0 0.0
    %6780 = vmatpush.xpose.msra.mxu0 0.0
    %6781 = vmatpush.xpose.msra.mxu0 0.0
    %6782 = vmatpush.xpose.msra.mxu0 0.0
    %6783 = vmatpush.xpose.msra.mxu0 0.0
    %6784 = vmatpush.xpose.msra.mxu0 0.0
    %6785 = vmatpush.xpose.msra.mxu0 0.0
    %6786 = vmatpush.xpose.msra.mxu0 0.0
    %6787 = vmatpush.xpose.msra.mxu0 0.0
    %6788 = vmatpush.xpose.msra.mxu0 0.0
    %6789 = vmatpush.xpose.msra.mxu0 %v6772
    %6790 = vmatmul.f32.gmra.mxu0 %v6770
    %v6791 = vpop.f32.mrf.mxu0
    %v6792 = vadd.f32 0.0, %v6791
    %6793 = vdwg.mxu0
    %6794 = vrot.lane.b32.xlu0 %v6263, 104
    %v6795 = vpop.permute.xlu0 %6794
    %6796 = vrot.lane.b32.xlu0 %v6289, 104
    %v6797 = vpop.permute.xlu0 %6796
    %v6798 = vsel %vm1176, %v6795, 0
    %v6800 = vsel %vm1176, %v6797, 0
    %6802 = vmatpush.xpose.msra.mxu0 0.0
    %6803 = vmatpush.xpose.msra.mxu0 0.0
    %6804 = vmatpush.xpose.msra.mxu0 0.0
    %6805 = vmatpush.xpose.msra.mxu0 0.0
    %6806 = vmatpush.xpose.msra.mxu0 0.0
    %6807 = vmatpush.xpose.msra.mxu0 0.0
    %6808 = vmatpush.xpose.msra.mxu0 0.0
    %6809 = vmatpush.xpose.msra.mxu0 0.0
    %6810 = vmatpush.xpose.msra.mxu0 0.0
    %6811 = vmatpush.xpose.msra.mxu0 0.0
    %6812 = vmatpush.xpose.msra.mxu0 0.0
    %6813 = vmatpush.xpose.msra.mxu0 0.0
    %6814 = vmatpush.xpose.msra.mxu0 0.0
    %6815 = vmatpush.xpose.msra.mxu0 0.0
    %6816 = vmatpush.xpose.msra.mxu0 0.0
    %6817 = vmatpush.xpose.msra.mxu0 %v6800
    %6818 = vmatmul.f32.gmra.mxu0 %v6798
    %v6819 = vpop.f32.mrf.mxu0
    %v6820 = vadd.f32 0.0, %v6819
    %6821 = vdwg.mxu0
    %v6822 = vsel %vm1176, %v6792, -inf
    %6823 = vmax.xlane.f32.xlu0 %v6822
    %v6824 = vpop.xlane.xlu0 %6823
    %v6825 = vsel %vm1176, %v6820, -inf
    %6826 = vmax.xlane.f32.xlu0 %v6825
    %v6827 = vpop.xlane.xlu0 %6826
    %v6828 = vsub.f32 %v6792, %v6824
    %v6829 = vsub.f32 %v6820, %v6827
    %v6830 = vmul.f32 %v6828, 1.442695
    %v6831 = vpow.pop %v6830
    %v6832 = vmul.f32 %v6829, 1.442695
    %v6833 = vpow.pop %v6832
    %v6834 = vsel %vm1176, %v6831, 0.0
    %6835 = vadd.xlane.f32.xlu0 %v6834
    %v6836 = vpop.xlane.xlu0 %6835
    %v6837 = vsel %vm1176, %v6833, 0.0
    %6838 = vadd.xlane.f32.xlu0 %v6837
    %v6839 = vpop.xlane.xlu0 %6838
    %v6840 = vrcp.pop %v6836
    %v6841 = vrcp.pop %v6839
    %v6842 = vmul.f32 %v6831, %v6840
    %v6843 = vmul.f32 %v6833, %v6841
    %6844 = vrot.lane.b32.xlu0 %v6286, 72
    %v6845 = vpop.permute.xlu0 %6844
    %v6848 = vsel %vm1176, %v6842, 0
    %6850 = vmatpush.msra.mxu0 0.0
    %6851 = vmatpush.msra.mxu0 0.0
    %6852 = vmatpush.msra.mxu0 0.0
    %6853 = vmatpush.msra.mxu0 0.0
    %6854 = vmatpush.msra.mxu0 0.0
    %6855 = vmatpush.msra.mxu0 0.0
    %6856 = vmatpush.msra.mxu0 0.0
    %6857 = vmatpush.msra.mxu0 0.0
    %6858 = vmatpush.msra.mxu0 0.0
    %6859 = vmatpush.msra.mxu0 0.0
    %6860 = vmatpush.msra.mxu0 0.0
    %6861 = vmatpush.msra.mxu0 0.0
    %6862 = vmatpush.msra.mxu0 0.0
    %6863 = vmatpush.msra.mxu0 0.0
    %6864 = vmatpush.msra.mxu0 0.0
    %6865 = vmatpush.msra.mxu0 %v6845
    %6866 = vmatmul.f32.gmra.mxu0 %v6848
    %v6867 = vpop.f32.mrf.mxu0
    %v6868 = vadd.f32 0.0, %v6867
    %6869 = vdwg.mxu0
    %6870 = vrot.lane.b32.xlu0 %v6289, 72
    %v6871 = vpop.permute.xlu0 %6870
    %v6874 = vsel %vm1176, %v6843, 0
    %6876 = vmatpush.msra.mxu0 0.0
    %6877 = vmatpush.msra.mxu0 0.0
    %6878 = vmatpush.msra.mxu0 0.0
    %6879 = vmatpush.msra.mxu0 0.0
    %6880 = vmatpush.msra.mxu0 0.0
    %6881 = vmatpush.msra.mxu0 0.0
    %6882 = vmatpush.msra.mxu0 0.0
    %6883 = vmatpush.msra.mxu0 0.0
    %6884 = vmatpush.msra.mxu0 0.0
    %6885 = vmatpush.msra.mxu0 0.0
    %6886 = vmatpush.msra.mxu0 0.0
    %6887 = vmatpush.msra.mxu0 0.0
    %6888 = vmatpush.msra.mxu0 0.0
    %6889 = vmatpush.msra.mxu0 0.0
    %6890 = vmatpush.msra.mxu0 0.0
    %6891 = vmatpush.msra.mxu0 %v6871
    %6892 = vmatmul.f32.gmra.mxu0 %v6874
    %v6893 = vpop.f32.mrf.mxu0
    %v6894 = vadd.f32 0.0, %v6893
    %6895 = vdwg.mxu0
    %v6897 = vsel %vm1176, %v6868, 0
    %v6900 = vsel %vm1176, %v6894, 0
    %6902 = vmatpush.msra.mxu0 0.0
    %6903 = vmatpush.msra.mxu0 0.0
    %6904 = vmatpush.msra.mxu0 0.0
    %6905 = vmatpush.msra.mxu0 0.0
    %6906 = vmatpush.msra.mxu0 0.0
    %6907 = vmatpush.msra.mxu0 0.0
    %6908 = vmatpush.msra.mxu0 0.0
    %6909 = vmatpush.msra.mxu0 0.0
    %6910 = vmatpush.msra.mxu0 0.0
    %6911 = vmatpush.msra.mxu0 0.0
    %6912 = vmatpush.msra.mxu0 0.0
    %6913 = vmatpush.msra.mxu0 0.0
    %6914 = vmatpush.msra.mxu0 0.0
    %6915 = vmatpush.msra.mxu0 0.0
    %6916 = vmatpush.msra.mxu0 0.0
    %6917 = vmatpush.msra.mxu0 %v5482
    %6918 = vmatmul.f32.gmra.mxu0 %v6897
    %v6919 = vpop.f32.mrf.mxu0
    %v6920 = vadd.f32 0.0, %v6919
    %6921 = vmatmul.f32.gmra.mxu0 %v6900
    %v6922 = vpop.f32.mrf.mxu0
    %v6923 = vadd.f32 0.0, %v6922
    %6924 = vdwg.mxu0
    %v6925 = vadd.f32 %v6764, %v6920
    %v6926 = vadd.f32 %v6765, %v6923
    %v6928 = vperm.slane %v5483, 0
    %v6930 = vadd.f32 %v6925, %v6928
    %v6931 = vadd.f32 %v6926, %v6928
    %v6932 = vadd.f32 %v6231, %v6930
    %v6933 = vadd.f32 %v6232, %v6931
    %v6934 = vsel %vm1143, %v6932, 0.0
    %6935 = vadd.xlane.f32.xlu0 %v6934
    %v6936 = vpop.xlane.xlu0 %6935
    %v6937 = vsel %vm1143, %v6933, 0.0
    %6938 = vadd.xlane.f32.xlu0 %v6937
    %v6939 = vpop.xlane.xlu0 %6938
    %v6940 = vmul.f32 %v6936, %v1831
    %v6941 = vmul.f32 %v6939, %v1831
    %v6942 = vsub.f32 %v6932, %v6940
    %v6943 = vsub.f32 %v6933, %v6941
    %v6944 = vmul.f32 %v6942, %v6942
    %v6945 = vmul.f32 %v6943, %v6943
    %v6946 = vsel %vm1143, %v6944, 0.0
    %6947 = vadd.xlane.f32.xlu0 %v6946
    %v6948 = vpop.xlane.xlu0 %6947
    %v6949 = vsel %vm1143, %v6945, 0.0
    %6950 = vadd.xlane.f32.xlu0 %v6949
    %v6951 = vpop.xlane.xlu0 %6950
    %v6952 = vmul.f32 %v6948, %v1831
    %v6953 = vmul.f32 %v6951, %v1831
    %v6954 = vadd.f32 %v6952, 1e-05
    %v6955 = vadd.f32 %v6953, 1e-05
    %v6956 = vrsqrt.pop %v6954
    %v6957 = vmul.f32 %v6956, %v6954
    %v6958 = vmul.f32 %v6957, %v6956
    %v6959 = vmul.f32 0.5, %v6958
    %v6960 = vsub.f32 1.5, %v6959
    %v6961 = vmul.f32 %v6956, %v6960
    %vm6962 = vweird.f32 %v6954
    %vm6963 = vweird.f32 %v6956
    %vm6964 = vmor %vm6962, %vm6963
    %v6965 = vsel %vm6964, %v6956, %v6961
    %v6966 = vrsqrt.pop %v6955
    %v6967 = vmul.f32 %v6966, %v6955
    %v6968 = vmul.f32 %v6967, %v6966
    %v6969 = vmul.f32 0.5, %v6968
    %v6970 = vsub.f32 1.5, %v6969
    %v6971 = vmul.f32 %v6966, %v6970
    %vm6972 = vweird.f32 %v6955
    %vm6973 = vweird.f32 %v6966
    %vm6974 = vmor %vm6972, %vm6973
    %v6975 = vsel %vm6974, %v6966, %v6971
    %v6976 = vmul.f32 %v6942, %v6965
    %v6977 = vmul.f32 %v6943, %v6975
    %v6979 = vperm.slane %v5484, 0
    %v6981 = vmul.f32 %v6976, %v6979
    %v6982 = vmul.f32 %v6977, %v6979
    %v6984 = vperm.slane %v5485, 0
    %v6986 = vadd.f32 %v6981, %v6984
    %v6987 = vadd.f32 %v6982, %v6984
    %v6989 = vperm.slane %v5490, 0
    %v6992 = vsel %vm1143, %v6986, 0
    %v6995 = vsel %vm1143, %v6987, 0
    %6997 = vmatpush.msra.mxu0 0.0
    %6998 = vmatpush.msra.mxu0 0.0
    %6999 = vmatpush.msra.mxu0 0.0
    %7000 = vmatpush.msra.mxu0 0.0
    %7001 = vmatpush.msra.mxu0 0.0
    %7002 = vmatpush.msra.mxu0 0.0
    %7003 = vmatpush.msra.mxu0 0.0
    %7004 = vmatpush.msra.mxu0 0.0
    %7005 = vmatpush.msra.mxu0 0.0
    %7006 = vmatpush.msra.mxu0 0.0
    %7007 = vmatpush.msra.mxu0 0.0
    %7008 = vmatpush.msra.mxu0 0.0
    %7009 = vmatpush.msra.mxu0 %v5489
    %7010 = vmatpush.msra.mxu0 %v5488
    %7011 = vmatpush.msra.mxu0 %v5487
    %7012 = vmatpush.msra.mxu0 %v5486
    %7013 = vmatmul.f32.gmra.mxu0 %v6992
    %v7014 = vpop.f32.mrf.mxu0
    %v7015 = vadd.f32 %v6989, %v7014
    %7016 = vmatmul.f32.gmra.mxu0 %v6995
    %v7017 = vpop.f32.mrf.mxu0
    %v7018 = vadd.f32 %v6989, %v7017
    %7019 = vdwg.mxu0
    %v7020 = vmax.f32 %v7015, 0.0
    %v7021 = vmax.f32 %v7018, 0.0
    %v7023 = vperm.slane %v5499, 0
    %v7026 = vsel %vm1917, %v7020, 0
    %v7029 = vsel %vm1917, %v7021, 0
    %7031 = vmatpush.msra.mxu0 0.0
    %7032 = vmatpush.msra.mxu0 0.0
    %7033 = vmatpush.msra.mxu0 0.0
    %7034 = vmatpush.msra.mxu0 0.0
    %7035 = vmatpush.msra.mxu0 0.0
    %7036 = vmatpush.msra.mxu0 0.0
    %7037 = vmatpush.msra.mxu0 0.0
    %7038 = vmatpush.msra.mxu0 0.0
    %7039 = vmatpush.msra.mxu0 %v5498
    %7040 = vmatpush.msra.mxu0 %v5497
    %7041 = vmatpush.msra.mxu0 %v5496
    %7042 = vmatpush.msra.mxu0 %v5495
    %7043 = vmatpush.msra.mxu0 %v5494
    %7044 = vmatpush.msra.mxu0 %v5493
    %7045 = vmatpush.msra.mxu0 %v5492
    %7046 = vmatpush.msra.mxu0 %v5491
    %7047 = vmatmul.f32.gmra.mxu0 %v7026
    %v7048 = vpop.f32.mrf.mxu0
    %v7049 = vadd.f32 %v7023, %v7048
    %7050 = vmatmul.f32.gmra.mxu0 %v7029
    %v7051 = vpop.f32.mrf.mxu0
    %v7052 = vadd.f32 %v7023, %v7051
    %7053 = vdwg.mxu0
    %v7054 = vadd.f32 %v6986, %v7049
    %v7055 = vadd.f32 %v6987, %v7052
    %v7056 = vsel %vm1143, %v7054, 0.0
    %7057 = vadd.xlane.f32.xlu0 %v7056
    %v7058 = vpop.xlane.xlu0 %7057
    %v7059 = vsel %vm1143, %v7055, 0.0
    %7060 = vadd.xlane.f32.xlu0 %v7059
    %v7061 = vpop.xlane.xlu0 %7060
    %v7062 = vmul.f32 %v7058, %v1831
    %v7063 = vmul.f32 %v7061, %v1831
    %v7064 = vsub.f32 %v7054, %v7062
    %v7065 = vsub.f32 %v7055, %v7063
    %v7066 = vmul.f32 %v7064, %v7064
    %v7067 = vmul.f32 %v7065, %v7065
    %v7068 = vsel %vm1143, %v7066, 0.0
    %7069 = vadd.xlane.f32.xlu0 %v7068
    %v7070 = vpop.xlane.xlu0 %7069
    %v7071 = vsel %vm1143, %v7067, 0.0
    %7072 = vadd.xlane.f32.xlu0 %v7071
    %v7073 = vpop.xlane.xlu0 %7072
    %v7074 = vmul.f32 %v7070, %v1831
    %v7075 = vmul.f32 %v7073, %v1831
    %v7076 = vadd.f32 %v7074, 1e-05
    %v7077 = vadd.f32 %v7075, 1e-05
    %v7078 = vrsqrt.pop %v7076
    %v7079 = vmul.f32 %v7078, %v7076
    %v7080 = vmul.f32 %v7079, %v7078
    %v7081 = vmul.f32 0.5, %v7080
    %v7082 = vsub.f32 1.5, %v7081
    %v7083 = vmul.f32 %v7078, %v7082
    %vm7084 = vweird.f32 %v7076
    %vm7085 = vweird.f32 %v7078
    %vm7086 = vmor %vm7084, %vm7085
    %v7087 = vsel %vm7086, %v7078, %v7083
    %v7088 = vrsqrt.pop %v7077
    %v7089 = vmul.f32 %v7088, %v7077
    %v7090 = vmul.f32 %v7089, %v7088
    %v7091 = vmul.f32 0.5, %v7090
    %v7092 = vsub.f32 1.5, %v7091
    %v7093 = vmul.f32 %v7088, %v7092
    %vm7094 = vweird.f32 %v7077
    %vm7095 = vweird.f32 %v7088
    %vm7096 = vmor %vm7094, %vm7095
    %v7097 = vsel %vm7096, %v7088, %v7093
    %v7098 = vmul.f32 %v7064, %v7087
    %v7099 = vmul.f32 %v7065, %v7097
    %v7101 = vperm.slane %v5500, 0
    %v7103 = vmul.f32 %v7098, %v7101
    %v7104 = vmul.f32 %v7099, %v7101
    %v7106 = vperm.slane %v5501, 0
    %v7108 = vadd.f32 %v7103, %v7106
    %v7109 = vadd.f32 %v7104, %v7106
    %v7110 = vld [vmem:[#allocation67] sm:$0xff]
    %v7111 = vld [vmem:[#allocation67 + $0x8] sm:$0xff]
    %v7112 = vld [vmem:[#allocation67 + $0x10] sm:$0xff]
    %v7113 = vld [vmem:[#allocation67 + $0x18] sm:$0xff]
    %v7114 = vld [vmem:[#allocation69] sm:$0x1]
    %v7115 = vld [vmem:[#allocation70] sm:$0xff]
    %v7116 = vld [vmem:[#allocation70 + $0x8] sm:$0xff]
    %v7117 = vld [vmem:[#allocation70 + $0x10] sm:$0xff]
    %v7118 = vld [vmem:[#allocation70 + $0x18] sm:$0xff]
    %v7119 = vld [vmem:[#allocation72] sm:$0x1]
    %v7120 = vld [vmem:[#allocation73] sm:$0xff]
    %v7121 = vld [vmem:[#allocation73 + $0x8] sm:$0xff]
    %v7122 = vld [vmem:[#allocation73 + $0x10] sm:$0xff]
    %v7123 = vld [vmem:[#allocation73 + $0x18] sm:$0xff]
    %v7124 = vld [vmem:[#allocation75] sm:$0x1]
    %v7125 = vld [vmem:[#allocation76] sm:$0xff]
    %v7126 = vld [vmem:[#allocation76 + $0x8] sm:$0xff]
    %v7127 = vld [vmem:[#allocation76 + $0x10] sm:$0xff]
    %v7128 = vld [vmem:[#allocation76 + $0x18] sm:$0xff]
    %v7129 = vld [vmem:[#allocation78] sm:$0x1]
    %v7131 = vperm.slane %v7114, 0
    %v7134 = vsel %vm1143, %v7108, 0
    %v7137 = vsel %vm1143, %v7109, 0
    %7139 = vmatpush.msra.mxu0 0.0
    %7140 = vmatpush.msra.mxu0 0.0
    %7141 = vmatpush.msra.mxu0 0.0
    %7142 = vmatpush.msra.mxu0 0.0
    %7143 = vmatpush.msra.mxu0 0.0
    %7144 = vmatpush.msra.mxu0 0.0
    %7145 = vmatpush.msra.mxu0 0.0
    %7146 = vmatpush.msra.mxu0 0.0
    %7147 = vmatpush.msra.mxu0 0.0
    %7148 = vmatpush.msra.mxu0 0.0
    %7149 = vmatpush.msra.mxu0 0.0
    %7150 = vmatpush.msra.mxu0 0.0
    %7151 = vmatpush.msra.mxu0 %v7113
    %7152 = vmatpush.msra.mxu0 %v7112
    %7153 = vmatpush.msra.mxu0 %v7111
    %7154 = vmatpush.msra.mxu0 %v7110
    %7155 = vmatmul.f32.gmra.mxu0 %v7134
    %v7156 = vpop.f32.mrf.mxu0
    %v7157 = vadd.f32 %v7131, %v7156
    %7158 = vmatmul.f32.gmra.mxu0 %v7137
    %v7159 = vpop.f32.mrf.mxu0
    %v7160 = vadd.f32 %v7131, %v7159
    %7161 = vdwg.mxu0
    %v7163 = vperm.slane %v7119, 0
    %7165 = vmatpush.msra.mxu0 0.0
    %7166 = vmatpush.msra.mxu0 0.0
    %7167 = vmatpush.msra.mxu0 0.0
    %7168 = vmatpush.msra.mxu0 0.0
    %7169 = vmatpush.msra.mxu0 0.0
    %7170 = vmatpush.msra.mxu0 0.0
    %7171 = vmatpush.msra.mxu0 0.0
    %7172 = vmatpush.msra.mxu0 0.0
    %7173 = vmatpush.msra.mxu0 0.0
    %7174 = vmatpush.msra.mxu0 0.0
    %7175 = vmatpush.msra.mxu0 0.0
    %7176 = vmatpush.msra.mxu0 0.0
    %7177 = vmatpush.msra.mxu0 %v7118
    %7178 = vmatpush.msra.mxu0 %v7117
    %7179 = vmatpush.msra.mxu0 %v7116
    %7180 = vmatpush.msra.mxu0 %v7115
    %7181 = vmatmul.f32.gmra.mxu0 %v4610
    %v7182 = vpop.f32.mrf.mxu0
    %v7183 = vadd.f32 %v7163, %v7182
    %7184 = vmatmul.f32.gmra.mxu0 %v4613
    %v7185 = vpop.f32.mrf.mxu0
    %v7186 = vadd.f32 %v7163, %v7185
    %7187 = vdwg.mxu0
    %v7189 = vperm.slane %v7124, 0
    %v7192 = vsel %vm1143, %v1075, 0
    %v7195 = vsel %vm1143, %v1076, 0
    %7197 = vmatpush.msra.mxu0 0.0
    %7198 = vmatpush.msra.mxu0 0.0
    %7199 = vmatpush.msra.mxu0 0.0
    %7200 = vmatpush.msra.mxu0 0.0
    %7201 = vmatpush.msra.mxu0 0.0
    %7202 = vmatpush.msra.mxu0 0.0
    %7203 = vmatpush.msra.mxu0 0.0
    %7204 = vmatpush.msra.mxu0 0.0
    %7205 = vmatpush.msra.mxu0 0.0
    %7206 = vmatpush.msra.mxu0 0.0
    %7207 = vmatpush.msra.mxu0 0.0
    %7208 = vmatpush.msra.mxu0 0.0
    %7209 = vmatpush.msra.mxu0 %v7123
    %7210 = vmatpush.msra.mxu0 %v7122
    %7211 = vmatpush.msra.mxu0 %v7121
    %7212 = vmatpush.msra.mxu0 %v7120
    %7213 = vmatmul.f32.gmra.mxu0 %v7192
    %v7214 = vpop.f32.mrf.mxu0
    %v7215 = vadd.f32 %v7189, %v7214
    %7216 = vmatmul.f32.gmra.mxu0 %v7195
    %v7217 = vpop.f32.mrf.mxu0
    %v7218 = vadd.f32 %v7189, %v7217
    %7219 = vdwg.mxu0
    %v7221 = vsel %vm1176, %v7157, 0
    %v7224 = vsel %vm1176, %v7183, 0
    %7226 = vmatpush.xpose.msra.mxu0 0.0
    %7227 = vmatpush.xpose.msra.mxu0 0.0
    %7228 = vmatpush.xpose.msra.mxu0 0.0
    %7229 = vmatpush.xpose.msra.mxu0 0.0
    %7230 = vmatpush.xpose.msra.mxu0 0.0
    %7231 = vmatpush.xpose.msra.mxu0 0.0
    %7232 = vmatpush.xpose.msra.mxu0 0.0
    %7233 = vmatpush.xpose.msra.mxu0 0.0
    %7234 = vmatpush.xpose.msra.mxu0 0.0
    %7235 = vmatpush.xpose.msra.mxu0 0.0
    %7236 = vmatpush.xpose.msra.mxu0 0.0
    %7237 = vmatpush.xpose.msra.mxu0 0.0
    %7238 = vmatpush.xpose.msra.mxu0 0.0
    %7239 = vmatpush.xpose.msra.mxu0 0.0
    %7240 = vmatpush.xpose.msra.mxu0 0.0
    %7241 = vmatpush.xpose.msra.mxu0 %v7224
    %7242 = vmatmul.f32.gmra.mxu0 %v7221
    %v7243 = vpop.f32.mrf.mxu0
    %v7244 = vadd.f32 0.0, %v7243
    %7245 = vdwg.mxu0
    %v7247 = vsel %vm1176, %v7160, 0
    %v7250 = vsel %vm1176, %v7186, 0
    %7252 = vmatpush.xpose.msra.mxu0 0.0
    %7253 = vmatpush.xpose.msra.mxu0 0.0
    %7254 = vmatpush.xpose.msra.mxu0 0.0
    %7255 = vmatpush.xpose.msra.mxu0 0.0
    %7256 = vmatpush.xpose.msra.mxu0 0.0
    %7257 = vmatpush.xpose.msra.mxu0 0.0
    %7258 = vmatpush.xpose.msra.mxu0 0.0
    %7259 = vmatpush.xpose.msra.mxu0 0.0
    %7260 = vmatpush.xpose.msra.mxu0 0.0
    %7261 = vmatpush.xpose.msra.mxu0 0.0
    %7262 = vmatpush.xpose.msra.mxu0 0.0
    %7263 = vmatpush.xpose.msra.mxu0 0.0
    %7264 = vmatpush.xpose.msra.mxu0 0.0
    %7265 = vmatpush.xpose.msra.mxu0 0.0
    %7266 = vmatpush.xpose.msra.mxu0 0.0
    %7267 = vmatpush.xpose.msra.mxu0 %v7250
    %7268 = vmatmul.f32.gmra.mxu0 %v7247
    %v7269 = vpop.f32.mrf.mxu0
    %v7270 = vadd.f32 0.0, %v7269
    %7271 = vdwg.mxu0
    %v7272 = vsel %vm1176, %v7244, -inf
    %7273 = vmax.xlane.f32.xlu0 %v7272
    %v7274 = vpop.xlane.xlu0 %7273
    %v7275 = vsel %vm1176, %v7270, -inf
    %7276 = vmax.xlane.f32.xlu0 %v7275
    %v7277 = vpop.xlane.xlu0 %7276
    %v7278 = vsub.f32 %v7244, %v7274
    %v7279 = vsub.f32 %v7270, %v7277
    %v7280 = vmul.f32 %v7278, 1.442695
    %v7281 = vpow.pop %v7280
    %v7282 = vmul.f32 %v7279, 1.442695
    %v7283 = vpow.pop %v7282
    %v7284 = vsel %vm1176, %v7281, 0.0
    %7285 = vadd.xlane.f32.xlu0 %v7284
    %v7286 = vpop.xlane.xlu0 %7285
    %v7287 = vsel %vm1176, %v7283, 0.0
    %7288 = vadd.xlane.f32.xlu0 %v7287
    %v7289 = vpop.xlane.xlu0 %7288
    %v7290 = vrcp.pop %v7286
    %v7291 = vrcp.pop %v7289
    %v7292 = vmul.f32 %v7281, %v7290
    %v7293 = vmul.f32 %v7283, %v7291
    %v7295 = vsel %vm1176, %v7292, 0
    %7297 = vmatpush.msra.mxu0 0.0
    %7298 = vmatpush.msra.mxu0 0.0
    %7299 = vmatpush.msra.mxu0 0.0
    %7300 = vmatpush.msra.mxu0 0.0
    %7301 = vmatpush.msra.mxu0 0.0
    %7302 = vmatpush.msra.mxu0 0.0
    %7303 = vmatpush.msra.mxu0 0.0
    %7304 = vmatpush.msra.mxu0 0.0
    %7305 = vmatpush.msra.mxu0 0.0
    %7306 = vmatpush.msra.mxu0 0.0
    %7307 = vmatpush.msra.mxu0 0.0
    %7308 = vmatpush.msra.mxu0 0.0
    %7309 = vmatpush.msra.mxu0 0.0
    %7310 = vmatpush.msra.mxu0 0.0
    %7311 = vmatpush.msra.mxu0 0.0
    %7312 = vmatpush.msra.mxu0 %v7215
    %7313 = vmatmul.f32.gmra.mxu0 %v7295
    %v7314 = vpop.f32.mrf.mxu0
    %v7315 = vadd.f32 0.0, %v7314
    %7316 = vdwg.mxu0
    %v7318 = vsel %vm1176, %v7293, 0
    %7320 = vmatpush.msra.mxu0 0.0
    %7321 = vmatpush.msra.mxu0 0.0
    %7322 = vmatpush.msra.mxu0 0.0
    %7323 = vmatpush.msra.mxu0 0.0
    %7324 = vmatpush.msra.mxu0 0.0
    %7325 = vmatpush.msra.mxu0 0.0
    %7326 = vmatpush.msra.mxu0 0.0
    %7327 = vmatpush.msra.mxu0 0.0
    %7328 = vmatpush.msra.mxu0 0.0
    %7329 = vmatpush.msra.mxu0 0.0
    %7330 = vmatpush.msra.mxu0 0.0
    %7331 = vmatpush.msra.mxu0 0.0
    %7332 = vmatpush.msra.mxu0 0.0
    %7333 = vmatpush.msra.mxu0 0.0
    %7334 = vmatpush.msra.mxu0 0.0
    %7335 = vmatpush.msra.mxu0 %v7218
    %7336 = vmatmul.f32.gmra.mxu0 %v7318
    %v7337 = vpop.f32.mrf.mxu0
    %v7338 = vadd.f32 0.0, %v7337
    %7339 = vdwg.mxu0
    %7340 = vrot.lane.b32.xlu0 %v7157, 120
    %v7341 = vpop.permute.xlu0 %7340
    %7342 = vrot.lane.b32.xlu0 %v7183, 120
    %v7343 = vpop.permute.xlu0 %7342
    %v7344 = vsel %vm1176, %v7341, 0
    %v7346 = vsel %vm1176, %v7343, 0
    %7348 = vmatpush.xpose.msra.mxu0 0.0
    %7349 = vmatpush.xpose.msra.mxu0 0.0
    %7350 = vmatpush.xpose.msra.mxu0 0.0
    %7351 = vmatpush.xpose.msra.mxu0 0.0
    %7352 = vmatpush.xpose.msra.mxu0 0.0
    %7353 = vmatpush.xpose.msra.mxu0 0.0
    %7354 = vmatpush.xpose.msra.mxu0 0.0
    %7355 = vmatpush.xpose.msra.mxu0 0.0
    %7356 = vmatpush.xpose.msra.mxu0 0.0
    %7357 = vmatpush.xpose.msra.mxu0 0.0
    %7358 = vmatpush.xpose.msra.mxu0 0.0
    %7359 = vmatpush.xpose.msra.mxu0 0.0
    %7360 = vmatpush.xpose.msra.mxu0 0.0
    %7361 = vmatpush.xpose.msra.mxu0 0.0
    %7362 = vmatpush.xpose.msra.mxu0 0.0
    %7363 = vmatpush.xpose.msra.mxu0 %v7346
    %7364 = vmatmul.f32.gmra.mxu0 %v7344
    %v7365 = vpop.f32.mrf.mxu0
    %v7366 = vadd.f32 0.0, %v7365
    %7367 = vdwg.mxu0
    %7368 = vrot.lane.b32.xlu0 %v7160, 120
    %v7369 = vpop.permute.xlu0 %7368
    %7370 = vrot.lane.b32.xlu0 %v7186, 120
    %v7371 = vpop.permute.xlu0 %7370
    %v7372 = vsel %vm1176, %v7369, 0
    %v7374 = vsel %vm1176, %v7371, 0
    %7376 = vmatpush.xpose.msra.mxu0 0.0
    %7377 = vmatpush.xpose.msra.mxu0 0.0
    %7378 = vmatpush.xpose.msra.mxu0 0.0
    %7379 = vmatpush.xpose.msra.mxu0 0.0
    %7380 = vmatpush.xpose.msra.mxu0 0.0
    %7381 = vmatpush.xpose.msra.mxu0 0.0
    %7382 = vmatpush.xpose.msra.mxu0 0.0
    %7383 = vmatpush.xpose.msra.mxu0 0.0
    %7384 = vmatpush.xpose.msra.mxu0 0.0
    %7385 = vmatpush.xpose.msra.mxu0 0.0
    %7386 = vmatpush.xpose.msra.mxu0 0.0
    %7387 = vmatpush.xpose.msra.mxu0 0.0
    %7388 = vmatpush.xpose.msra.mxu0 0.0
    %7389 = vmatpush.xpose.msra.mxu0 0.0
    %7390 = vmatpush.xpose.msra.mxu0 0.0
    %7391 = vmatpush.xpose.msra.mxu0 %v7374
    %7392 = vmatmul.f32.gmra.mxu0 %v7372
    %v7393 = vpop.f32.mrf.mxu0
    %v7394 = vadd.f32 0.0, %v7393
    %7395 = vdwg.mxu0
    %v7396 = vsel %vm1176, %v7366, -inf
    %7397 = vmax.xlane.f32.xlu0 %v7396
    %v7398 = vpop.xlane.xlu0 %7397
    %v7399 = vsel %vm1176, %v7394, -inf
    %7400 = vmax.xlane.f32.xlu0 %v7399
    %v7401 = vpop.xlane.xlu0 %7400
    %v7402 = vsub.f32 %v7366, %v7398
    %v7403 = vsub.f32 %v7394, %v7401
    %v7404 = vmul.f32 %v7402, 1.442695
    %v7405 = vpow.pop %v7404
    %v7406 = vmul.f32 %v7403, 1.442695
    %v7407 = vpow.pop %v7406
    %v7408 = vsel %vm1176, %v7405, 0.0
    %7409 = vadd.xlane.f32.xlu0 %v7408
    %v7410 = vpop.xlane.xlu0 %7409
    %v7411 = vsel %vm1176, %v7407, 0.0
    %7412 = vadd.xlane.f32.xlu0 %v7411
    %v7413 = vpop.xlane.xlu0 %7412
    %v7414 = vrcp.pop %v7410
    %v7415 = vrcp.pop %v7413
    %v7416 = vmul.f32 %v7405, %v7414
    %v7417 = vmul.f32 %v7407, %v7415
    %7419 = vrot.lane.b32.xlu0 %v7215, 120
    %v7420 = vpop.permute.xlu0 %7419
    %v7423 = vsel %vm1176, %v7416, 0
    %7425 = vmatpush.msra.mxu0 0.0
    %7426 = vmatpush.msra.mxu0 0.0
    %7427 = vmatpush.msra.mxu0 0.0
    %7428 = vmatpush.msra.mxu0 0.0
    %7429 = vmatpush.msra.mxu0 0.0
    %7430 = vmatpush.msra.mxu0 0.0
    %7431 = vmatpush.msra.mxu0 0.0
    %7432 = vmatpush.msra.mxu0 0.0
    %7433 = vmatpush.msra.mxu0 0.0
    %7434 = vmatpush.msra.mxu0 0.0
    %7435 = vmatpush.msra.mxu0 0.0
    %7436 = vmatpush.msra.mxu0 0.0
    %7437 = vmatpush.msra.mxu0 0.0
    %7438 = vmatpush.msra.mxu0 0.0
    %7439 = vmatpush.msra.mxu0 0.0
    %7440 = vmatpush.msra.mxu0 %v7420
    %7441 = vmatmul.f32.gmra.mxu0 %v7423
    %v7442 = vpop.f32.mrf.mxu0
    %v7443 = vadd.f32 0.0, %v7442
    %7444 = vdwg.mxu0
    %7446 = vrot.lane.b32.xlu0 %v7218, 120
    %v7447 = vpop.permute.xlu0 %7446
    %v7450 = vsel %vm1176, %v7417, 0
    %7452 = vmatpush.msra.mxu0 0.0
    %7453 = vmatpush.msra.mxu0 0.0
    %7454 = vmatpush.msra.mxu0 0.0
    %7455 = vmatpush.msra.mxu0 0.0
    %7456 = vmatpush.msra.mxu0 0.0
    %7457 = vmatpush.msra.mxu0 0.0
    %7458 = vmatpush.msra.mxu0 0.0
    %7459 = vmatpush.msra.mxu0 0.0
    %7460 = vmatpush.msra.mxu0 0.0
    %7461 = vmatpush.msra.mxu0 0.0
    %7462 = vmatpush.msra.mxu0 0.0
    %7463 = vmatpush.msra.mxu0 0.0
    %7464 = vmatpush.msra.mxu0 0.0
    %7465 = vmatpush.msra.mxu0 0.0
    %7466 = vmatpush.msra.mxu0 0.0
    %7467 = vmatpush.msra.mxu0 %v7447
    %7468 = vmatmul.f32.gmra.mxu0 %v7450
    %v7469 = vpop.f32.mrf.mxu0
    %v7470 = vadd.f32 0.0, %v7469
    %7471 = vdwg.mxu0
    %v7473 = vsel %vm1176, %v7443, 0
    %v7476 = vsel %vm1176, %v7470, 0
    %7478 = vmatpush.msra.mxu0 0.0
    %7479 = vmatpush.msra.mxu0 0.0
    %7480 = vmatpush.msra.mxu0 0.0
    %7481 = vmatpush.msra.mxu0 0.0
    %7482 = vmatpush.msra.mxu0 0.0
    %7483 = vmatpush.msra.mxu0 0.0
    %7484 = vmatpush.msra.mxu0 0.0
    %7485 = vmatpush.msra.mxu0 0.0
    %7486 = vmatpush.msra.mxu0 0.0
    %7487 = vmatpush.msra.mxu0 0.0
    %7488 = vmatpush.msra.mxu0 0.0
    %7489 = vmatpush.msra.mxu0 0.0
    %7490 = vmatpush.msra.mxu0 0.0
    %7491 = vmatpush.msra.mxu0 0.0
    %7492 = vmatpush.msra.mxu0 0.0
    %7493 = vmatpush.msra.mxu0 %v7126
    %7494 = vmatmul.f32.gmra.mxu0 %v7473
    %v7495 = vpop.f32.mrf.mxu0
    %v7496 = vadd.f32 0.0, %v7495
    %7497 = vmatmul.f32.gmra.mxu0 %v7476
    %v7498 = vpop.f32.mrf.mxu0
    %v7499 = vadd.f32 0.0, %v7498
    %7500 = vdwg.mxu0
    %v7502 = vsel %vm1176, %v7315, 0
    %v7505 = vsel %vm1176, %v7338, 0
    %7507 = vmatpush.msra.mxu0 0.0
    %7508 = vmatpush.msra.mxu0 0.0
    %7509 = vmatpush.msra.mxu0 0.0
    %7510 = vmatpush.msra.mxu0 0.0
    %7511 = vmatpush.msra.mxu0 0.0
    %7512 = vmatpush.msra.mxu0 0.0
    %7513 = vmatpush.msra.mxu0 0.0
    %7514 = vmatpush.msra.mxu0 0.0
    %7515 = vmatpush.msra.mxu0 0.0
    %7516 = vmatpush.msra.mxu0 0.0
    %7517 = vmatpush.msra.mxu0 0.0
    %7518 = vmatpush.msra.mxu0 0.0
    %7519 = vmatpush.msra.mxu0 0.0
    %7520 = vmatpush.msra.mxu0 0.0
    %7521 = vmatpush.msra.mxu0 0.0
    %7522 = vmatpush.msra.mxu0 %v7125
    %7523 = vmatmul.f32.gmra.mxu0 %v7502
    %v7524 = vpop.f32.mrf.mxu0
    %v7525 = vadd.f32 %v7496, %v7524
    %7526 = vmatmul.f32.gmra.mxu0 %v7505
    %v7527 = vpop.f32.mrf.mxu0
    %v7528 = vadd.f32 %v7499, %v7527
    %7529 = vdwg.mxu0
    %7530 = vrot.lane.b32.xlu0 %v7157, 112
    %v7531 = vpop.permute.xlu0 %7530
    %7532 = vrot.lane.b32.xlu0 %v7183, 112
    %v7533 = vpop.permute.xlu0 %7532
    %v7534 = vsel %vm1176, %v7531, 0
    %v7536 = vsel %vm1176, %v7533, 0
    %7538 = vmatpush.xpose.msra.mxu0 0.0
    %7539 = vmatpush.xpose.msra.mxu0 0.0
    %7540 = vmatpush.xpose.msra.mxu0 0.0
    %7541 = vmatpush.xpose.msra.mxu0 0.0
    %7542 = vmatpush.xpose.msra.mxu0 0.0
    %7543 = vmatpush.xpose.msra.mxu0 0.0
    %7544 = vmatpush.xpose.msra.mxu0 0.0
    %7545 = vmatpush.xpose.msra.mxu0 0.0
    %7546 = vmatpush.xpose.msra.mxu0 0.0
    %7547 = vmatpush.xpose.msra.mxu0 0.0
    %7548 = vmatpush.xpose.msra.mxu0 0.0
    %7549 = vmatpush.xpose.msra.mxu0 0.0
    %7550 = vmatpush.xpose.msra.mxu0 0.0
    %7551 = vmatpush.xpose.msra.mxu0 0.0
    %7552 = vmatpush.xpose.msra.mxu0 0.0
    %7553 = vmatpush.xpose.msra.mxu0 %v7536
    %7554 = vmatmul.f32.gmra.mxu0 %v7534
    %v7555 = vpop.f32.mrf.mxu0
    %v7556 = vadd.f32 0.0, %v7555
    %7557 = vdwg.mxu0
    %7558 = vrot.lane.b32.xlu0 %v7160, 112
    %v7559 = vpop.permute.xlu0 %7558
    %7560 = vrot.lane.b32.xlu0 %v7186, 112
    %v7561 = vpop.permute.xlu0 %7560
    %v7562 = vsel %vm1176, %v7559, 0
    %v7564 = vsel %vm1176, %v7561, 0
    %7566 = vmatpush.xpose.msra.mxu0 0.0
    %7567 = vmatpush.xpose.msra.mxu0 0.0
    %7568 = vmatpush.xpose.msra.mxu0 0.0
    %7569 = vmatpush.xpose.msra.mxu0 0.0
    %7570 = vmatpush.xpose.msra.mxu0 0.0
    %7571 = vmatpush.xpose.msra.mxu0 0.0
    %7572 = vmatpush.xpose.msra.mxu0 0.0
    %7573 = vmatpush.xpose.msra.mxu0 0.0
    %7574 = vmatpush.xpose.msra.mxu0 0.0
    %7575 = vmatpush.xpose.msra.mxu0 0.0
    %7576 = vmatpush.xpose.msra.mxu0 0.0
    %7577 = vmatpush.xpose.msra.mxu0 0.0
    %7578 = vmatpush.xpose.msra.mxu0 0.0
    %7579 = vmatpush.xpose.msra.mxu0 0.0
    %7580 = vmatpush.xpose.msra.mxu0 0.0
    %7581 = vmatpush.xpose.msra.mxu0 %v7564
    %7582 = vmatmul.f32.gmra.mxu0 %v7562
    %v7583 = vpop.f32.mrf.mxu0
    %v7584 = vadd.f32 0.0, %v7583
    %7585 = vdwg.mxu0
    %v7586 = vsel %vm1176, %v7556, -inf
    %7587 = vmax.xlane.f32.xlu0 %v7586
    %v7588 = vpop.xlane.xlu0 %7587
    %v7589 = vsel %vm1176, %v7584, -inf
    %7590 = vmax.xlane.f32.xlu0 %v7589
    %v7591 = vpop.xlane.xlu0 %7590
    %v7592 = vsub.f32 %v7556, %v7588
    %v7593 = vsub.f32 %v7584, %v7591
    %v7594 = vmul.f32 %v7592, 1.442695
    %v7595 = vpow.pop %v7594
    %v7596 = vmul.f32 %v7593, 1.442695
    %v7597 = vpow.pop %v7596
    %v7598 = vsel %vm1176, %v7595, 0.0
    %7599 = vadd.xlane.f32.xlu0 %v7598
    %v7600 = vpop.xlane.xlu0 %7599
    %v7601 = vsel %vm1176, %v7597, 0.0
    %7602 = vadd.xlane.f32.xlu0 %v7601
    %v7603 = vpop.xlane.xlu0 %7602
    %v7604 = vrcp.pop %v7600
    %v7605 = vrcp.pop %v7603
    %v7606 = vmul.f32 %v7595, %v7604
    %v7607 = vmul.f32 %v7597, %v7605
    %7608 = vrot.lane.b32.xlu0 %v7215, 112
    %v7609 = vpop.permute.xlu0 %7608
    %v7612 = vsel %vm1176, %v7606, 0
    %7614 = vmatpush.msra.mxu0 0.0
    %7615 = vmatpush.msra.mxu0 0.0
    %7616 = vmatpush.msra.mxu0 0.0
    %7617 = vmatpush.msra.mxu0 0.0
    %7618 = vmatpush.msra.mxu0 0.0
    %7619 = vmatpush.msra.mxu0 0.0
    %7620 = vmatpush.msra.mxu0 0.0
    %7621 = vmatpush.msra.mxu0 0.0
    %7622 = vmatpush.msra.mxu0 0.0
    %7623 = vmatpush.msra.mxu0 0.0
    %7624 = vmatpush.msra.mxu0 0.0
    %7625 = vmatpush.msra.mxu0 0.0
    %7626 = vmatpush.msra.mxu0 0.0
    %7627 = vmatpush.msra.mxu0 0.0
    %7628 = vmatpush.msra.mxu0 0.0
    %7629 = vmatpush.msra.mxu0 %v7609
    %7630 = vmatmul.f32.gmra.mxu0 %v7612
    %v7631 = vpop.f32.mrf.mxu0
    %v7632 = vadd.f32 0.0, %v7631
    %7633 = vdwg.mxu0
    %7634 = vrot.lane.b32.xlu0 %v7218, 112
    %v7635 = vpop.permute.xlu0 %7634
    %v7638 = vsel %vm1176, %v7607, 0
    %7640 = vmatpush.msra.mxu0 0.0
    %7641 = vmatpush.msra.mxu0 0.0
    %7642 = vmatpush.msra.mxu0 0.0
    %7643 = vmatpush.msra.mxu0 0.0
    %7644 = vmatpush.msra.mxu0 0.0
    %7645 = vmatpush.msra.mxu0 0.0
    %7646 = vmatpush.msra.mxu0 0.0
    %7647 = vmatpush.msra.mxu0 0.0
    %7648 = vmatpush.msra.mxu0 0.0
    %7649 = vmatpush.msra.mxu0 0.0
    %7650 = vmatpush.msra.mxu0 0.0
    %7651 = vmatpush.msra.mxu0 0.0
    %7652 = vmatpush.msra.mxu0 0.0
    %7653 = vmatpush.msra.mxu0 0.0
    %7654 = vmatpush.msra.mxu0 0.0
    %7655 = vmatpush.msra.mxu0 %v7635
    %7656 = vmatmul.f32.gmra.mxu0 %v7638
    %v7657 = vpop.f32.mrf.mxu0
    %v7658 = vadd.f32 0.0, %v7657
    %7659 = vdwg.mxu0
    %v7661 = vsel %vm1176, %v7632, 0
    %v7664 = vsel %vm1176, %v7658, 0
    %7666 = vmatpush.msra.mxu0 0.0
    %7667 = vmatpush.msra.mxu0 0.0
    %7668 = vmatpush.msra.mxu0 0.0
    %7669 = vmatpush.msra.mxu0 0.0
    %7670 = vmatpush.msra.mxu0 0.0
    %7671 = vmatpush.msra.mxu0 0.0
    %7672 = vmatpush.msra.mxu0 0.0
    %7673 = vmatpush.msra.mxu0 0.0
    %7674 = vmatpush.msra.mxu0 0.0
    %7675 = vmatpush.msra.mxu0 0.0
    %7676 = vmatpush.msra.mxu0 0.0
    %7677 = vmatpush.msra.mxu0 0.0
    %7678 = vmatpush.msra.mxu0 0.0
    %7679 = vmatpush.msra.mxu0 0.0
    %7680 = vmatpush.msra.mxu0 0.0
    %7681 = vmatpush.msra.mxu0 %v7127
    %7682 = vmatmul.f32.gmra.mxu0 %v7661
    %v7683 = vpop.f32.mrf.mxu0
    %v7684 = vadd.f32 0.0, %v7683
    %7685 = vmatmul.f32.gmra.mxu0 %v7664
    %v7686 = vpop.f32.mrf.mxu0
    %v7687 = vadd.f32 0.0, %v7686
    %7688 = vdwg.mxu0
    %v7689 = vadd.f32 %v7525, %v7684
    %v7690 = vadd.f32 %v7528, %v7687
    %7691 = vrot.lane.b32.xlu0 %v7157, 104
    %v7692 = vpop.permute.xlu0 %7691
    %7693 = vrot.lane.b32.xlu0 %v7183, 104
    %v7694 = vpop.permute.xlu0 %7693
    %v7695 = vsel %vm1176, %v7692, 0
    %v7697 = vsel %vm1176, %v7694, 0
    %7699 = vmatpush.xpose.msra.mxu0 0.0
    %7700 = vmatpush.xpose.msra.mxu0 0.0
    %7701 = vmatpush.xpose.msra.mxu0 0.0
    %7702 = vmatpush.xpose.msra.mxu0 0.0
    %7703 = vmatpush.xpose.msra.mxu0 0.0
    %7704 = vmatpush.xpose.msra.mxu0 0.0
    %7705 = vmatpush.xpose.msra.mxu0 0.0
    %7706 = vmatpush.xpose.msra.mxu0 0.0
    %7707 = vmatpush.xpose.msra.mxu0 0.0
    %7708 = vmatpush.xpose.msra.mxu0 0.0
    %7709 = vmatpush.xpose.msra.mxu0 0.0
    %7710 = vmatpush.xpose.msra.mxu0 0.0
    %7711 = vmatpush.xpose.msra.mxu0 0.0
    %7712 = vmatpush.xpose.msra.mxu0 0.0
    %7713 = vmatpush.xpose.msra.mxu0 0.0
    %7714 = vmatpush.xpose.msra.mxu0 %v7697
    %7715 = vmatmul.f32.gmra.mxu0 %v7695
    %v7716 = vpop.f32.mrf.mxu0
    %v7717 = vadd.f32 0.0, %v7716
    %7718 = vdwg.mxu0
    %7719 = vrot.lane.b32.xlu0 %v7160, 104
    %v7720 = vpop.permute.xlu0 %7719
    %7721 = vrot.lane.b32.xlu0 %v7186, 104
    %v7722 = vpop.permute.xlu0 %7721
    %v7723 = vsel %vm1176, %v7720, 0
    %v7725 = vsel %vm1176, %v7722, 0
    %7727 = vmatpush.xpose.msra.mxu0 0.0
    %7728 = vmatpush.xpose.msra.mxu0 0.0
    %7729 = vmatpush.xpose.msra.mxu0 0.0
    %7730 = vmatpush.xpose.msra.mxu0 0.0
    %7731 = vmatpush.xpose.msra.mxu0 0.0
    %7732 = vmatpush.xpose.msra.mxu0 0.0
    %7733 = vmatpush.xpose.msra.mxu0 0.0
    %7734 = vmatpush.xpose.msra.mxu0 0.0
    %7735 = vmatpush.xpose.msra.mxu0 0.0
    %7736 = vmatpush.xpose.msra.mxu0 0.0
    %7737 = vmatpush.xpose.msra.mxu0 0.0
    %7738 = vmatpush.xpose.msra.mxu0 0.0
    %7739 = vmatpush.xpose.msra.mxu0 0.0
    %7740 = vmatpush.xpose.msra.mxu0 0.0
    %7741 = vmatpush.xpose.msra.mxu0 0.0
    %7742 = vmatpush.xpose.msra.mxu0 %v7725
    %7743 = vmatmul.f32.gmra.mxu0 %v7723
    %v7744 = vpop.f32.mrf.mxu0
    %v7745 = vadd.f32 0.0, %v7744
    %7746 = vdwg.mxu0
    %v7747 = vsel %vm1176, %v7717, -inf
    %7748 = vmax.xlane.f32.xlu0 %v7747
    %v7749 = vpop.xlane.xlu0 %7748
    %v7750 = vsel %vm1176, %v7745, -inf
    %7751 = vmax.xlane.f32.xlu0 %v7750
    %v7752 = vpop.xlane.xlu0 %7751
    %v7753 = vsub.f32 %v7717, %v7749
    %v7754 = vsub.f32 %v7745, %v7752
    %v7755 = vmul.f32 %v7753, 1.442695
    %v7756 = vpow.pop %v7755
    %v7757 = vmul.f32 %v7754, 1.442695
    %v7758 = vpow.pop %v7757
    %v7759 = vsel %vm1176, %v7756, 0.0
    %7760 = vadd.xlane.f32.xlu0 %v7759
    %v7761 = vpop.xlane.xlu0 %7760
    %v7762 = vsel %vm1176, %v7758, 0.0
    %7763 = vadd.xlane.f32.xlu0 %v7762
    %v7764 = vpop.xlane.xlu0 %7763
    %v7765 = vrcp.pop %v7761
    %v7766 = vrcp.pop %v7764
    %v7767 = vmul.f32 %v7756, %v7765
    %v7768 = vmul.f32 %v7758, %v7766
    %7769 = vrot.lane.b32.xlu0 %v7215, 104
    %v7770 = vpop.permute.xlu0 %7769
    %v7773 = vsel %vm1176, %v7767, 0
    %7775 = vmatpush.msra.mxu0 0.0
    %7776 = vmatpush.msra.mxu0 0.0
    %7777 = vmatpush.msra.mxu0 0.0
    %7778 = vmatpush.msra.mxu0 0.0
    %7779 = vmatpush.msra.mxu0 0.0
    %7780 = vmatpush.msra.mxu0 0.0
    %7781 = vmatpush.msra.mxu0 0.0
    %7782 = vmatpush.msra.mxu0 0.0
    %7783 = vmatpush.msra.mxu0 0.0
    %7784 = vmatpush.msra.mxu0 0.0
    %7785 = vmatpush.msra.mxu0 0.0
    %7786 = vmatpush.msra.mxu0 0.0
    %7787 = vmatpush.msra.mxu0 0.0
    %7788 = vmatpush.msra.mxu0 0.0
    %7789 = vmatpush.msra.mxu0 0.0
    %7790 = vmatpush.msra.mxu0 %v7770
    %7791 = vmatmul.f32.gmra.mxu0 %v7773
    %v7792 = vpop.f32.mrf.mxu0
    %v7793 = vadd.f32 0.0, %v7792
    %7794 = vdwg.mxu0
    %7795 = vrot.lane.b32.xlu0 %v7218, 104
    %v7796 = vpop.permute.xlu0 %7795
    %v7799 = vsel %vm1176, %v7768, 0
    %7801 = vmatpush.msra.mxu0 0.0
    %7802 = vmatpush.msra.mxu0 0.0
    %7803 = vmatpush.msra.mxu0 0.0
    %7804 = vmatpush.msra.mxu0 0.0
    %7805 = vmatpush.msra.mxu0 0.0
    %7806 = vmatpush.msra.mxu0 0.0
    %7807 = vmatpush.msra.mxu0 0.0
    %7808 = vmatpush.msra.mxu0 0.0
    %7809 = vmatpush.msra.mxu0 0.0
    %7810 = vmatpush.msra.mxu0 0.0
    %7811 = vmatpush.msra.mxu0 0.0
    %7812 = vmatpush.msra.mxu0 0.0
    %7813 = vmatpush.msra.mxu0 0.0
    %7814 = vmatpush.msra.mxu0 0.0
    %7815 = vmatpush.msra.mxu0 0.0
    %7816 = vmatpush.msra.mxu0 %v7796
    %7817 = vmatmul.f32.gmra.mxu0 %v7799
    %v7818 = vpop.f32.mrf.mxu0
    %v7819 = vadd.f32 0.0, %v7818
    %7820 = vdwg.mxu0
    %v7822 = vsel %vm1176, %v7793, 0
    %v7825 = vsel %vm1176, %v7819, 0
    %7827 = vmatpush.msra.mxu0 0.0
    %7828 = vmatpush.msra.mxu0 0.0
    %7829 = vmatpush.msra.mxu0 0.0
    %7830 = vmatpush.msra.mxu0 0.0
    %7831 = vmatpush.msra.mxu0 0.0
    %7832 = vmatpush.msra.mxu0 0.0
    %7833 = vmatpush.msra.mxu0 0.0
    %7834 = vmatpush.msra.mxu0 0.0
    %7835 = vmatpush.msra.mxu0 0.0
    %7836 = vmatpush.msra.mxu0 0.0
    %7837 = vmatpush.msra.mxu0 0.0
    %7838 = vmatpush.msra.mxu0 0.0
    %7839 = vmatpush.msra.mxu0 0.0
    %7840 = vmatpush.msra.mxu0 0.0
    %7841 = vmatpush.msra.mxu0 0.0
    %7842 = vmatpush.msra.mxu0 %v7128
    %7843 = vmatmul.f32.gmra.mxu0 %v7822
    %v7844 = vpop.f32.mrf.mxu0
    %v7845 = vadd.f32 0.0, %v7844
    %7846 = vmatmul.f32.gmra.mxu0 %v7825
    %v7847 = vpop.f32.mrf.mxu0
    %v7848 = vadd.f32 0.0, %v7847
    %7849 = vdwg.mxu0
    %v7850 = vadd.f32 %v7689, %v7845
    %v7851 = vadd.f32 %v7690, %v7848
    %v7853 = vperm.slane %v7129, 0
    %v7855 = vadd.f32 %v7850, %v7853
    %v7856 = vadd.f32 %v7851, %v7853
    %7857 = vst.msk [vmem:[%s177] sm:$0xff] %vm1143, %v7855
    %7858 = vst.msk [vmem:[%s177 + $0x8] sm:$0xff] %vm1143, %v7856
    // Predicated region
    $region558: #{gene_transformer_forward.1} parent=1 // pred_check
      _
    $region559: #{gene_transformer_forward.1} parent=1 // pred_check_branch
      %7860 = sbr.rel (0) target = $region561
    $region560: #{gene_transformer_forward.1} parent=1 // pred_region
      _
    $region561: #{gene_transformer_forward.1} parent=1 // pred_fallthru
      _
    // Predicated region
    $region562: #{gene_transformer_forward.1} parent=1 // pred_check
      _
    $region563: #{gene_transformer_forward.1} parent=1 // pred_check_branch
      %7862 = sbr.rel (0) target = $region565
    $region564: #{gene_transformer_forward.1} parent=1 // pred_region
      _
    $region565: #{gene_transformer_forward.1} parent=1 // pred_fallthru
      _
    %7863 = vsyncpa [#allocation3], 1
    %7864 = vsyncpa [#allocation5], 1
    %7865 = vsyncpa [#allocation8], 1
    %7866 = vsyncpa [#allocation11], 1
    %7867 = vsyncpa [#allocation14], 1
    %7868 = vsyncpa [#allocation17], 1
    %7869 = vsyncpa [#allocation20], 1
    %7870 = vsyncpa [#allocation23], 1
    %7871 = vsyncpa [#allocation26], 1
    %7872 = vsyncpa [#allocation29], 1
    %7873 = vsyncpa [#allocation32], 1
    %7874 = vsyncpa [#allocation35], 1
    %7875 = vsyncpa [#allocation38], 1
    %7876 = vsyncpa [#allocation41], 1
    %7877 = vsyncpa [#allocation44], 1
    %7878 = vsyncpa [#allocation47], 1
    %7879 = vsyncpa [#allocation50], 1
    %7880 = vsyncpa [#allocation53], 1
    %7881 = vsyncpa [#allocation56], 1
    %7882 = vsyncpa [#allocation59], 1
    %7883 = vsyncpa [#allocation62], 1
    %7884 = vsyncpa [#allocation65], 1
    %7885 = vsyncpa [#allocation68], 1
    %7886 = vsyncpa [#allocation71], 1
    %7887 = vsyncpa [#allocation74], 1
    %7888 = vsyncpa [#allocation77], 1

</llo_original>
